<compile_context>
chip_gen: v7x
topology: tpu7x:2x2x1
jax: 0.10.0
libtpu: 0.0.40
codegen_flags: <defaults>
</compile_context>

<pallas_src>
import functools

import jax
import jax.numpy as jnp
from jax import lax
from jax.experimental import pallas as pl
from jax.experimental.pallas import tpu as pltpu


# --------------------------------------------------------------------------
# Kernel
# --------------------------------------------------------------------------
def cnn_kernel(x_ref, prevk_ref, nextk_ref, pool_ref,
               w1, b1, w2, b2, w3, b3,
               wr1a, br1a, wr1b, br1b,
               wr2a, br2a, wr2b, br2b,
               wf1, bf1, wf2, bf2,
               out_ref, *, inv_len):
    """One grid step processes TB samples stacked as an (M=TB*L, C) slab."""
    x = x_ref[...]            # (M, Cin) bf16
    prevk = prevk_ref[...]    # (M, 1) f32: 0.0 at each sample's first row
    nextk = nextk_ref[...]    # (M, 1) f32: 0.0 at each sample's last row

    def conv(h, w_ref, b_ref):
        # h: (M, Cin) bf16.  conv1d(k=3, pad=1) at row l:
        #   y_l = h_{l-1}@W0 + h_l@W1 + h_{l+1}@W2
        # computed as 3 matmuls on the un-shifted h, with the shifts applied
        # to the f32 outputs (no (M,3C) concat, no shifted bf16 copies).
        y0 = jnp.dot(h, w_ref[0], preferred_element_type=jnp.float32)
        y1 = jnp.dot(h, w_ref[1], preferred_element_type=jnp.float32)
        y2 = jnp.dot(h, w_ref[2], preferred_element_type=jnp.float32)
        y = (jnp.roll(y0, 1, axis=0) * prevk      # zero across sample boundary
             + y1
             + jnp.roll(y2, -1, axis=0) * nextk)
        return y + b_ref[...]                     # (M, Cout) f32

    def relu_bf16(y):
        # bias+ReLU in f32, single bf16 cast per layer for the next matmul.
        return jnp.maximum(y, 0.0).astype(jnp.bfloat16)

    h = relu_bf16(conv(x, w1, b1))                # (M, 64)
    h = relu_bf16(conv(h, w2, b2))                # (M, 128)
    h = relu_bf16(conv(h, w3, b3))                # (M, 256)

    r = relu_bf16(conv(h, wr1a, br1a))
    r = relu_bf16(conv(r, wr1b, br1b))
    h = h + r                                     # residual block 1 (bf16)

    r = relu_bf16(conv(h, wr2a, br2a))
    r = relu_bf16(conv(r, wr2b, br2b))
    h = h + r                                     # residual block 2 (bf16)

    # Per-sample mean over L: bf16 0/1 pooling matmul (MXU) + exact f32 scale.
    m = jnp.dot(pool_ref[...], h, preferred_element_type=jnp.float32) * inv_len

    f = jnp.maximum(
        jnp.dot(m.astype(jnp.bfloat16), wf1[...],
                preferred_element_type=jnp.float32) + bf1[...],
        0.0)                                      # (TB, 128)
    logits = jnp.dot(f.astype(jnp.bfloat16), wf2[...],
                     preferred_element_type=jnp.float32) + bf2[...]
    out_ref[...] = logits.astype(out_ref.dtype)   # (TB, OUT_PAD) lane-dense


# --------------------------------------------------------------------------
# One-time parameter preparation (transpose / pad / bf16 cast)
# --------------------------------------------------------------------------
def prepare_params(params, *, out_pad):
    conv_params = params[:7]
    (wf1, bf1), (wf2, bf2) = params[7:]

    prepped = []
    for w, b in conv_params:
        # (Cout, Cin, 3) -> (3, Cin, Cout); tap k multiplies x[l-1+k].
        wk = jnp.transpose(w, (2, 1, 0)).astype(jnp.bfloat16)
        prepped += [wk, b.reshape(1, -1).astype(jnp.float32)]

    prepped += [jnp.transpose(wf1).astype(jnp.bfloat16),        # (256, 128)
                bf1.reshape(1, -1).astype(jnp.float32)]

    out_classes = wf2.shape[0]
    wf2k = jnp.pad(jnp.transpose(wf2),
                   ((0, 0), (0, out_pad - out_classes))).astype(jnp.bfloat16)
    bf2k = jnp.pad(bf2.reshape(1, -1),
                   ((0, 0), (0, out_pad - out_classes))).astype(jnp.float32)
    prepped += [wf2k, bf2k]
    return prepped


def _choose_tb(n, seq_len, *, target_rows=1024, max_tb=256):
    """Samples per grid step: aim for M~1024 matmul rows, TB multiple of 8,
    and keep >= 2 grid steps when the batch allows (v7x has 2 TensorCores)."""
    tb = max(8, (min(target_rows // max(seq_len, 1), max_tb) // 8) * 8)
    cap = max(8, (pl.cdiv(n, 2) // 8) * 8) if n > 8 else 8
    return min(tb, cap)


def _vmem_limit_bytes(M, tb, cin, out_pad, weight_bytes):
    """Explicit scoped-VMEM budget (v7x: 64 MiB physical, 32 MiB default)."""
    x_blk = 2 * M * cin * 2                      # bf16 input, double-buffered
    out_blk = 2 * tb * out_pad * 4               # f32 logits, double-buffered
    consts = tb * M * 2 + 2 * M * 4 + 2 * weight_bytes
    acts = 4 * M * 256 * 4 + 4 * M * 256 * 2     # f32 temporaries + bf16 acts
    est = x_blk + out_blk + consts + acts + (2 << 20)
    return int(min(max(est, 32 << 20), 48 << 20))


# --------------------------------------------------------------------------
# Wrapper (layout conversion + BlockSpecs)
# --------------------------------------------------------------------------
def cnn_forward(x_ncl, prepped, *, out_classes, out_pad):
    """x_ncl: (N, Cin, L) float32 (PyTorch NCL). Returns (N, out_classes)."""
    N, Cin, L = x_ncl.shape
    tb = _choose_tb(N, L)
    n_pad = pl.cdiv(N, tb) * tb
    M = tb * L

    # NCL -> NLC, bf16 at TRUE channel count (no 128-lane f32 padding of x),
    # pad batch to a TB multiple, flatten batch & sequence into matmul rows.
    x = jnp.transpose(x_ncl, (0, 2, 1)).astype(jnp.bfloat16)       # (N, L, Cin)
    x = jnp.pad(x, ((0, n_pad - N), (0, 0), (0, 0)))
    x_flat = x.reshape(n_pad * L, Cin)                             # (n_pad*L, Cin)

    # Constant per-step helpers (identical for every grid step).
    pos = jnp.arange(M) % L
    prevk = (pos != 0).astype(jnp.float32)[:, None]                # (M, 1)
    nextk = (pos != L - 1).astype(jnp.float32)[:, None]            # (M, 1)
    sample = jnp.arange(M) // L
    pool = (jnp.arange(tb)[:, None] == sample[None, :]).astype(jnp.bfloat16)

    flat_args = [x_flat, prevk, nextk, pool] + list(prepped)

    def const_spec(a):
        # Fully-resident block, same block every grid step.
        return pl.BlockSpec(a.shape, lambda b, _nd=a.ndim: (0,) * _nd)

    in_specs = [
        pl.BlockSpec((M, Cin), lambda b: (b, 0)),
        const_spec(prevk), const_spec(nextk), const_spec(pool),
    ] + [const_spec(a) for a in prepped]

    weight_bytes = sum(int(a.size) * a.dtype.itemsize for a in prepped)
    vmem_limit = _vmem_limit_bytes(M, tb, Cin, out_pad, weight_bytes)

    kernel = functools.partial(cnn_kernel, inv_len=float(1.0 / L))
    out = pl.pallas_call(
        kernel,
        out_shape=jax.ShapeDtypeStruct((n_pad, out_pad), jnp.float32),
        grid=(n_pad // tb,),
        in_specs=in_specs,
        out_specs=pl.BlockSpec((tb, out_pad), lambda b: (b, 0)),
        compiler_params=pltpu.CompilerParams(
            dimension_semantics=("parallel",),     # batch axis: shard on v7x cores
            vmem_limit_bytes=vmem_limit),
    )(*flat_args)
    return out[:N, :out_classes]


# --------------------------------------------------------------------------
# Deterministic parameter init (PyTorch-default-style uniform, synthetic)
# --------------------------------------------------------------------------
def init_params(key, in_channels, out_classes):
    def conv(key, cin, cout):
        k1, k2 = jax.random.split(key)
        bound = 1.0 / jnp.sqrt(cin * 3.0)
        w = jax.random.uniform(k1, (cout, cin, 3), jnp.float32, -bound, bound)
        b = jax.random.uniform(k2, (cout,), jnp.float32, -bound, bound)
        return w, b

    def linear(key, cin, cout):
        k1, k2 = jax.random.split(key)
        bound = 1.0 / jnp.sqrt(float(cin))
        w = jax.random.uniform(k1, (cout, cin), jnp.float32, -bound, bound)
        b = jax.random.uniform(k2, (cout,), jnp.float32, -bound, bound)
        return w, b

    keys = jax.random.split(key, 9)
    return [
        conv(keys[0], in_channels, 64),
        conv(keys[1], 64, 128),
        conv(keys[2], 128, 256),
        conv(keys[3], 256, 256),   # res_block1 conv a
        conv(keys[4], 256, 256),   # res_block1 conv b
        conv(keys[5], 256, 256),   # res_block2 conv a
        conv(keys[6], 256, 256),   # res_block2 conv b
        linear(keys[7], 256, 128),
        linear(keys[8], 128, out_classes),
    ]


# --------------------------------------------------------------------------
# Pure-JAX f32 reference (correctness check only)
# --------------------------------------------------------------------------
def reference_forward(x_ncl, params):
    def conv1d(x, w, b):
        y = lax.conv_general_dilated(
            x, w, window_strides=(1,), padding=[(1, 1)],
            dimension_numbers=('NCH', 'OIH', 'NCH'))
        return y + b[None, :, None]

    (w1, b1), (w2, b2), (w3, b3), (wr1a, br1a), (wr1b, br1b), \
        (wr2a, br2a), (wr2b, br2b), (wf1, bf1), (wf2, bf2) = params

    h = jax.nn.relu(conv1d(x_ncl, w1, b1))
    h = jax.nn.relu(conv1d(h, w2, b2))
    h = jax.nn.relu(conv1d(h, w3, b3))
    r = jax.nn.relu(conv1d(h, wr1a, br1a))
    r = jax.nn.relu(conv1d(r, wr1b, br1b))
    h = h + r
    r = jax.nn.relu(conv1d(h, wr2a, br2a))
    r = jax.nn.relu(conv1d(r, wr2b, br2b))
    h = h + r
    m = h.mean(axis=2)                       # (N, 256)
    f = jax.nn.relu(m @ wf1.T + bf1)
    return f @ wf2.T + bf2


# --------------------------------------------------------------------------
if __name__ == "__main__":
    # Small shapes consistent with the module: CNNModel(in_channels, out_classes=2).
    # N=12 exercises both batch padding (n_pad=16) and a 2-step parallel grid.
    N, CIN, L, OUT = 12, 32, 16, 2
    OUT_PAD = ((OUT + 127) // 128) * 128     # lane-dense output store

    key = jax.random.PRNGKey(0)
    kx, kp = jax.random.split(key)
    x = jax.random.normal(kx, (N, CIN, L), jnp.float32)   # PyTorch NCL input
    params = init_params(kp, CIN, OUT)

    prepped = prepare_params(params, out_pad=OUT_PAD)     # once
    out = cnn_forward(x, prepped, out_classes=OUT, out_pad=OUT_PAD)
    out = jax.block_until_ready(out)

    ref = jax.block_until_ready(reference_forward(x, params))
    assert out.shape == (N, OUT), out.shape
    # bf16 matmul operands / activations with f32 accumulation -> looser tol.
    assert jnp.allclose(out, ref, rtol=5e-2, atol=5e-2), (out, ref)

    print("KERNEL_OK")
</pallas_src>

<mosaic_0001>
module attributes {stable_mosaic.version = 11 : i64} {
  func.func @cnn_kernel(%arg0: i32, %arg1: memref<128x32xbf16, #tpu.memory_space<vmem>>, %arg2: memref<128x1xf32, #tpu.memory_space<vmem>>, %arg3: memref<128x1xf32, #tpu.memory_space<vmem>>, %arg4: memref<8x128xbf16, #tpu.memory_space<vmem>>, %arg5: memref<3x32x64xbf16, #tpu.memory_space<vmem>>, %arg6: memref<1x64xf32, #tpu.memory_space<vmem>>, %arg7: memref<3x64x128xbf16, #tpu.memory_space<vmem>>, %arg8: memref<1x128xf32, #tpu.memory_space<vmem>>, %arg9: memref<3x128x256xbf16, #tpu.memory_space<vmem>>, %arg10: memref<1x256xf32, #tpu.memory_space<vmem>>, %arg11: memref<3x256x256xbf16, #tpu.memory_space<vmem>>, %arg12: memref<1x256xf32, #tpu.memory_space<vmem>>, %arg13: memref<3x256x256xbf16, #tpu.memory_space<vmem>>, %arg14: memref<1x256xf32, #tpu.memory_space<vmem>>, %arg15: memref<3x256x256xbf16, #tpu.memory_space<vmem>>, %arg16: memref<1x256xf32, #tpu.memory_space<vmem>>, %arg17: memref<3x256x256xbf16, #tpu.memory_space<vmem>>, %arg18: memref<1x256xf32, #tpu.memory_space<vmem>>, %arg19: memref<256x128xbf16, #tpu.memory_space<vmem>>, %arg20: memref<1x128xf32, #tpu.memory_space<vmem>>, %arg21: memref<128x128xbf16, #tpu.memory_space<vmem>>, %arg22: memref<1x128xf32, #tpu.memory_space<vmem>>, %arg23: memref<8x128xf32, #tpu.memory_space<vmem>>) attributes {dimension_semantics = [#tpu.dimension_semantics<parallel>], iteration_bounds = array<i64: 2>, scalar_prefetch = 0 : i64, scratch_operands = 0 : i64, tpu.core_type = #tpu.core_type<tc>, window_params = [{transform_indices = @transform_0, window_bounds = array<i64: 128, 32>}, {pipeline_mode = #tpu.pipeline_mode<synchronous>, transform_indices = @transform_1, window_bounds = array<i64: 128, 1>}, {pipeline_mode = #tpu.pipeline_mode<synchronous>, transform_indices = @transform_2, window_bounds = array<i64: 128, 1>}, {pipeline_mode = #tpu.pipeline_mode<synchronous>, transform_indices = @transform_3, window_bounds = array<i64: 8, 128>}, {pipeline_mode = #tpu.pipeline_mode<synchronous>, transform_indices = @transform_4, window_bounds = array<i64: 3, 32, 64>}, {pipeline_mode = #tpu.pipeline_mode<synchronous>, transform_indices = @transform_5, window_bounds = array<i64: 1, 64>}, {pipeline_mode = #tpu.pipeline_mode<synchronous>, transform_indices = @transform_6, window_bounds = array<i64: 3, 64, 128>}, {pipeline_mode = #tpu.pipeline_mode<synchronous>, transform_indices = @transform_7, window_bounds = array<i64: 1, 128>}, {pipeline_mode = #tpu.pipeline_mode<synchronous>, transform_indices = @transform_8, window_bounds = array<i64: 3, 128, 256>}, {pipeline_mode = #tpu.pipeline_mode<synchronous>, transform_indices = @transform_9, window_bounds = array<i64: 1, 256>}, {pipeline_mode = #tpu.pipeline_mode<synchronous>, transform_indices = @transform_10, window_bounds = array<i64: 3, 256, 256>}, {pipeline_mode = #tpu.pipeline_mode<synchronous>, transform_indices = @transform_11, window_bounds = array<i64: 1, 256>}, {pipeline_mode = #tpu.pipeline_mode<synchronous>, transform_indices = @transform_12, window_bounds = array<i64: 3, 256, 256>}, {pipeline_mode = #tpu.pipeline_mode<synchronous>, transform_indices = @transform_13, window_bounds = array<i64: 1, 256>}, {pipeline_mode = #tpu.pipeline_mode<synchronous>, transform_indices = @transform_14, window_bounds = array<i64: 3, 256, 256>}, {pipeline_mode = #tpu.pipeline_mode<synchronous>, transform_indices = @transform_15, window_bounds = array<i64: 1, 256>}, {pipeline_mode = #tpu.pipeline_mode<synchronous>, transform_indices = @transform_16, window_bounds = array<i64: 3, 256, 256>}, {pipeline_mode = #tpu.pipeline_mode<synchronous>, transform_indices = @transform_17, window_bounds = array<i64: 1, 256>}, {pipeline_mode = #tpu.pipeline_mode<synchronous>, transform_indices = @transform_18, window_bounds = array<i64: 256, 128>}, {pipeline_mode = #tpu.pipeline_mode<synchronous>, transform_indices = @transform_19, window_bounds = array<i64: 1, 128>}, {pipeline_mode = #tpu.pipeline_mode<synchronous>, transform_indices = @transform_20, window_bounds = array<i64: 128, 128>}, {pipeline_mode = #tpu.pipeline_mode<synchronous>, transform_indices = @transform_21, window_bounds = array<i64: 1, 128>}, {transform_indices = @transform_22, window_bounds = array<i64: 8, 128>}]} {
    %c0 = arith.constant 0 : index
    %c0_0 = arith.constant 0 : index
    %0 = vector.load %arg1[%c0, %c0_0] : memref<128x32xbf16, #tpu.memory_space<vmem>>, vector<128x32xbf16>
    %c0_1 = arith.constant 0 : index
    %c0_2 = arith.constant 0 : index
    %1 = vector.load %arg2[%c0_1, %c0_2] : memref<128x1xf32, #tpu.memory_space<vmem>>, vector<128x1xf32>
    %c0_3 = arith.constant 0 : index
    %c0_4 = arith.constant 0 : index
    %2 = vector.load %arg3[%c0_3, %c0_4] : memref<128x1xf32, #tpu.memory_space<vmem>>, vector<128x1xf32>
    %c0_5 = arith.constant 0 : index
    %c0_6 = arith.constant 0 : index
    %c0_7 = arith.constant 0 : index
    %3 = vector.load %arg5[%c0_5, %c0_6, %c0_7] : memref<3x32x64xbf16, #tpu.memory_space<vmem>>, vector<1x32x64xbf16>
    %4 = vector.shape_cast %3 : vector<1x32x64xbf16> to vector<32x64xbf16>
    %cst = arith.constant dense<0.000000e+00> : vector<128x64xf32>
    %5 = tpu.matmul %0, %4, %cst {dimension_numbers = #tpu.dot_dimension_numbers<[1], [0], [0], [1], [0, 0, 1, 1], [], []>} : vector<128x32xbf16>, vector<32x64xbf16>, vector<128x64xf32> -> vector<128x64xf32>
    %c1 = arith.constant 1 : index
    %c0_8 = arith.constant 0 : index
    %c0_9 = arith.constant 0 : index
    %6 = vector.load %arg5[%c1, %c0_8, %c0_9] : memref<3x32x64xbf16, #tpu.memory_space<vmem>>, vector<1x32x64xbf16>
    %7 = vector.shape_cast %6 : vector<1x32x64xbf16> to vector<32x64xbf16>
    %cst_10 = arith.constant dense<0.000000e+00> : vector<128x64xf32>
    %8 = tpu.matmul %0, %7, %cst_10 {dimension_numbers = #tpu.dot_dimension_numbers<[1], [0], [0], [1], [0, 0, 1, 1], [], []>} : vector<128x32xbf16>, vector<32x64xbf16>, vector<128x64xf32> -> vector<128x64xf32>
    %c2 = arith.constant 2 : index
    %c0_11 = arith.constant 0 : index
    %c0_12 = arith.constant 0 : index
    %9 = vector.load %arg5[%c2, %c0_11, %c0_12] : memref<3x32x64xbf16, #tpu.memory_space<vmem>>, vector<1x32x64xbf16>
    %10 = vector.shape_cast %9 : vector<1x32x64xbf16> to vector<32x64xbf16>
    %cst_13 = arith.constant dense<0.000000e+00> : vector<128x64xf32>
    %11 = tpu.matmul %0, %10, %cst_13 {dimension_numbers = #tpu.dot_dimension_numbers<[1], [0], [0], [1], [0, 0, 1, 1], [], []>} : vector<128x32xbf16>, vector<32x64xbf16>, vector<128x64xf32> -> vector<128x64xf32>
    %12 = vector.extract_strided_slice %5 {offsets = [127, 0], sizes = [1, 64], strides = [1, 1]} : vector<128x64xf32> to vector<1x64xf32>
    %13 = vector.extract_strided_slice %5 {offsets = [0, 0], sizes = [127, 64], strides = [1, 1]} : vector<128x64xf32> to vector<127x64xf32>
    %14 = tpu.concatenate %12, %13 in 0 : vector<1x64xf32>, vector<127x64xf32> -> vector<128x64xf32>
    %15 = vector.broadcast %1 : vector<128x1xf32> to vector<128x64xf32>
    %16 = arith.mulf %14, %15 : vector<128x64xf32>
    %17 = arith.addf %16, %8 : vector<128x64xf32>
    %18 = vector.extract_strided_slice %11 {offsets = [1, 0], sizes = [127, 64], strides = [1, 1]} : vector<128x64xf32> to vector<127x64xf32>
    %19 = vector.extract_strided_slice %11 {offsets = [0, 0], sizes = [1, 64], strides = [1, 1]} : vector<128x64xf32> to vector<1x64xf32>
    %20 = tpu.concatenate %18, %19 in 0 : vector<127x64xf32>, vector<1x64xf32> -> vector<128x64xf32>
    %21 = vector.broadcast %2 : vector<128x1xf32> to vector<128x64xf32>
    %22 = arith.mulf %20, %21 : vector<128x64xf32>
    %23 = arith.addf %17, %22 : vector<128x64xf32>
    %c0_14 = arith.constant 0 : index
    %c0_15 = arith.constant 0 : index
    %24 = vector.load %arg6[%c0_14, %c0_15] : memref<1x64xf32, #tpu.memory_space<vmem>>, vector<1x64xf32>
    %25 = vector.broadcast %24 : vector<1x64xf32> to vector<128x64xf32>
    %26 = arith.addf %23, %25 : vector<128x64xf32>
    %cst_16 = arith.constant 0.000000e+00 : f32
    %27 = vector.broadcast %cst_16 : f32 to vector<128x64xf32>
    %28 = arith.maximumf %26, %27 : vector<128x64xf32>
    %29 = arith.truncf %28 : vector<128x64xf32> to vector<128x64xbf16>
    %c0_17 = arith.constant 0 : index
    %c0_18 = arith.constant 0 : index
    %c0_19 = arith.constant 0 : index
    %30 = vector.load %arg7[%c0_17, %c0_18, %c0_19] : memref<3x64x128xbf16, #tpu.memory_space<vmem>>, vector<1x64x128xbf16>
    %31 = vector.shape_cast %30 : vector<1x64x128xbf16> to vector<64x128xbf16>
    %cst_20 = arith.constant dense<0.000000e+00> : vector<128x128xf32>
    %32 = tpu.matmul %29, %31, %cst_20 {dimension_numbers = #tpu.dot_dimension_numbers<[1], [0], [0], [1], [0, 0, 1, 1], [], []>} : vector<128x64xbf16>, vector<64x128xbf16>, vector<128x128xf32> -> vector<128x128xf32>
    %c1_21 = arith.constant 1 : index
    %c0_22 = arith.constant 0 : index
    %c0_23 = arith.constant 0 : index
    %33 = vector.load %arg7[%c1_21, %c0_22, %c0_23] : memref<3x64x128xbf16, #tpu.memory_space<vmem>>, vector<1x64x128xbf16>
    %34 = vector.shape_cast %33 : vector<1x64x128xbf16> to vector<64x128xbf16>
    %cst_24 = arith.constant dense<0.000000e+00> : vector<128x128xf32>
    %35 = tpu.matmul %29, %34, %cst_24 {dimension_numbers = #tpu.dot_dimension_numbers<[1], [0], [0], [1], [0, 0, 1, 1], [], []>} : vector<128x64xbf16>, vector<64x128xbf16>, vector<128x128xf32> -> vector<128x128xf32>
    %c2_25 = arith.constant 2 : index
    %c0_26 = arith.constant 0 : index
    %c0_27 = arith.constant 0 : index
    %36 = vector.load %arg7[%c2_25, %c0_26, %c0_27] : memref<3x64x128xbf16, #tpu.memory_space<vmem>>, vector<1x64x128xbf16>
    %37 = vector.shape_cast %36 : vector<1x64x128xbf16> to vector<64x128xbf16>
    %cst_28 = arith.constant dense<0.000000e+00> : vector<128x128xf32>
    %38 = tpu.matmul %29, %37, %cst_28 {dimension_numbers = #tpu.dot_dimension_numbers<[1], [0], [0], [1], [0, 0, 1, 1], [], []>} : vector<128x64xbf16>, vector<64x128xbf16>, vector<128x128xf32> -> vector<128x128xf32>
    %39 = vector.extract_strided_slice %32 {offsets = [127, 0], sizes = [1, 128], strides = [1, 1]} : vector<128x128xf32> to vector<1x128xf32>
    %40 = vector.extract_strided_slice %32 {offsets = [0, 0], sizes = [127, 128], strides = [1, 1]} : vector<128x128xf32> to vector<127x128xf32>
    %41 = tpu.concatenate %39, %40 in 0 : vector<1x128xf32>, vector<127x128xf32> -> vector<128x128xf32>
    %42 = vector.broadcast %1 : vector<128x1xf32> to vector<128x128xf32>
    %43 = arith.mulf %41, %42 : vector<128x128xf32>
    %44 = arith.addf %43, %35 : vector<128x128xf32>
    %45 = vector.extract_strided_slice %38 {offsets = [1, 0], sizes = [127, 128], strides = [1, 1]} : vector<128x128xf32> to vector<127x128xf32>
    %46 = vector.extract_strided_slice %38 {offsets = [0, 0], sizes = [1, 128], strides = [1, 1]} : vector<128x128xf32> to vector<1x128xf32>
    %47 = tpu.concatenate %45, %46 in 0 : vector<127x128xf32>, vector<1x128xf32> -> vector<128x128xf32>
    %48 = vector.broadcast %2 : vector<128x1xf32> to vector<128x128xf32>
    %49 = arith.mulf %47, %48 : vector<128x128xf32>
    %50 = arith.addf %44, %49 : vector<128x128xf32>
    %c0_29 = arith.constant 0 : index
    %c0_30 = arith.constant 0 : index
    %51 = vector.load %arg8[%c0_29, %c0_30] : memref<1x128xf32, #tpu.memory_space<vmem>>, vector<1x128xf32>
    %52 = vector.broadcast %51 : vector<1x128xf32> to vector<128x128xf32>
    %53 = arith.addf %50, %52 : vector<128x128xf32>
    %cst_31 = arith.constant 0.000000e+00 : f32
    %54 = vector.broadcast %cst_31 : f32 to vector<128x128xf32>
    %55 = arith.maximumf %53, %54 : vector<128x128xf32>
    %56 = arith.truncf %55 : vector<128x128xf32> to vector<128x128xbf16>
    %c0_32 = arith.constant 0 : index
    %c0_33 = arith.constant 0 : index
    %c0_34 = arith.constant 0 : index
    %57 = vector.load %arg9[%c0_32, %c0_33, %c0_34] : memref<3x128x256xbf16, #tpu.memory_space<vmem>>, vector<1x128x256xbf16>
    %58 = vector.shape_cast %57 : vector<1x128x256xbf16> to vector<128x256xbf16>
    %cst_35 = arith.constant dense<0.000000e+00> : vector<128x256xf32>
    %59 = tpu.matmul %56, %58, %cst_35 {dimension_numbers = #tpu.dot_dimension_numbers<[1], [0], [0], [1], [0, 0, 1, 1], [], []>} : vector<128x128xbf16>, vector<128x256xbf16>, vector<128x256xf32> -> vector<128x256xf32>
    %c1_36 = arith.constant 1 : index
    %c0_37 = arith.constant 0 : index
    %c0_38 = arith.constant 0 : index
    %60 = vector.load %arg9[%c1_36, %c0_37, %c0_38] : memref<3x128x256xbf16, #tpu.memory_space<vmem>>, vector<1x128x256xbf16>
    %61 = vector.shape_cast %60 : vector<1x128x256xbf16> to vector<128x256xbf16>
    %cst_39 = arith.constant dense<0.000000e+00> : vector<128x256xf32>
    %62 = tpu.matmul %56, %61, %cst_39 {dimension_numbers = #tpu.dot_dimension_numbers<[1], [0], [0], [1], [0, 0, 1, 1], [], []>} : vector<128x128xbf16>, vector<128x256xbf16>, vector<128x256xf32> -> vector<128x256xf32>
    %c2_40 = arith.constant 2 : index
    %c0_41 = arith.constant 0 : index
    %c0_42 = arith.constant 0 : index
    %63 = vector.load %arg9[%c2_40, %c0_41, %c0_42] : memref<3x128x256xbf16, #tpu.memory_space<vmem>>, vector<1x128x256xbf16>
    %64 = vector.shape_cast %63 : vector<1x128x256xbf16> to vector<128x256xbf16>
    %cst_43 = arith.constant dense<0.000000e+00> : vector<128x256xf32>
    %65 = tpu.matmul %56, %64, %cst_43 {dimension_numbers = #tpu.dot_dimension_numbers<[1], [0], [0], [1], [0, 0, 1, 1], [], []>} : vector<128x128xbf16>, vector<128x256xbf16>, vector<128x256xf32> -> vector<128x256xf32>
    %66 = vector.extract_strided_slice %59 {offsets = [127, 0], sizes = [1, 256], strides = [1, 1]} : vector<128x256xf32> to vector<1x256xf32>
    %67 = vector.extract_strided_slice %59 {offsets = [0, 0], sizes = [127, 256], strides = [1, 1]} : vector<128x256xf32> to vector<127x256xf32>
    %68 = tpu.concatenate %66, %67 in 0 : vector<1x256xf32>, vector<127x256xf32> -> vector<128x256xf32>
    %69 = vector.broadcast %1 : vector<128x1xf32> to vector<128x256xf32>
    %70 = arith.mulf %68, %69 : vector<128x256xf32>
    %71 = arith.addf %70, %62 : vector<128x256xf32>
    %72 = vector.extract_strided_slice %65 {offsets = [1, 0], sizes = [127, 256], strides = [1, 1]} : vector<128x256xf32> to vector<127x256xf32>
    %73 = vector.extract_strided_slice %65 {offsets = [0, 0], sizes = [1, 256], strides = [1, 1]} : vector<128x256xf32> to vector<1x256xf32>
    %74 = tpu.concatenate %72, %73 in 0 : vector<127x256xf32>, vector<1x256xf32> -> vector<128x256xf32>
    %75 = vector.broadcast %2 : vector<128x1xf32> to vector<128x256xf32>
    %76 = arith.mulf %74, %75 : vector<128x256xf32>
    %77 = arith.addf %71, %76 : vector<128x256xf32>
    %c0_44 = arith.constant 0 : index
    %c0_45 = arith.constant 0 : index
    %78 = vector.load %arg10[%c0_44, %c0_45] : memref<1x256xf32, #tpu.memory_space<vmem>>, vector<1x256xf32>
    %79 = vector.broadcast %78 : vector<1x256xf32> to vector<128x256xf32>
    %80 = arith.addf %77, %79 : vector<128x256xf32>
    %cst_46 = arith.constant 0.000000e+00 : f32
    %81 = vector.broadcast %cst_46 : f32 to vector<128x256xf32>
    %82 = arith.maximumf %80, %81 : vector<128x256xf32>
    %83 = arith.truncf %82 : vector<128x256xf32> to vector<128x256xbf16>
    %c0_47 = arith.constant 0 : index
    %c0_48 = arith.constant 0 : index
    %c0_49 = arith.constant 0 : index
    %84 = vector.load %arg11[%c0_47, %c0_48, %c0_49] : memref<3x256x256xbf16, #tpu.memory_space<vmem>>, vector<1x256x256xbf16>
    %85 = vector.shape_cast %84 : vector<1x256x256xbf16> to vector<256x256xbf16>
    %cst_50 = arith.constant dense<0.000000e+00> : vector<128x256xf32>
    %86 = tpu.matmul %83, %85, %cst_50 {dimension_numbers = #tpu.dot_dimension_numbers<[1], [0], [0], [1], [0, 0, 1, 1], [], []>} : vector<128x256xbf16>, vector<256x256xbf16>, vector<128x256xf32> -> vector<128x256xf32>
    %c1_51 = arith.constant 1 : index
    %c0_52 = arith.constant 0 : index
    %c0_53 = arith.constant 0 : index
    %87 = vector.load %arg11[%c1_51, %c0_52, %c0_53] : memref<3x256x256xbf16, #tpu.memory_space<vmem>>, vector<1x256x256xbf16>
    %88 = vector.shape_cast %87 : vector<1x256x256xbf16> to vector<256x256xbf16>
    %cst_54 = arith.constant dense<0.000000e+00> : vector<128x256xf32>
    %89 = tpu.matmul %83, %88, %cst_54 {dimension_numbers = #tpu.dot_dimension_numbers<[1], [0], [0], [1], [0, 0, 1, 1], [], []>} : vector<128x256xbf16>, vector<256x256xbf16>, vector<128x256xf32> -> vector<128x256xf32>
    %c2_55 = arith.constant 2 : index
    %c0_56 = arith.constant 0 : index
    %c0_57 = arith.constant 0 : index
    %90 = vector.load %arg11[%c2_55, %c0_56, %c0_57] : memref<3x256x256xbf16, #tpu.memory_space<vmem>>, vector<1x256x256xbf16>
    %91 = vector.shape_cast %90 : vector<1x256x256xbf16> to vector<256x256xbf16>
    %cst_58 = arith.constant dense<0.000000e+00> : vector<128x256xf32>
    %92 = tpu.matmul %83, %91, %cst_58 {dimension_numbers = #tpu.dot_dimension_numbers<[1], [0], [0], [1], [0, 0, 1, 1], [], []>} : vector<128x256xbf16>, vector<256x256xbf16>, vector<128x256xf32> -> vector<128x256xf32>
    %93 = vector.extract_strided_slice %86 {offsets = [127, 0], sizes = [1, 256], strides = [1, 1]} : vector<128x256xf32> to vector<1x256xf32>
    %94 = vector.extract_strided_slice %86 {offsets = [0, 0], sizes = [127, 256], strides = [1, 1]} : vector<128x256xf32> to vector<127x256xf32>
    %95 = tpu.concatenate %93, %94 in 0 : vector<1x256xf32>, vector<127x256xf32> -> vector<128x256xf32>
    %96 = vector.broadcast %1 : vector<128x1xf32> to vector<128x256xf32>
    %97 = arith.mulf %95, %96 : vector<128x256xf32>
    %98 = arith.addf %97, %89 : vector<128x256xf32>
    %99 = vector.extract_strided_slice %92 {offsets = [1, 0], sizes = [127, 256], strides = [1, 1]} : vector<128x256xf32> to vector<127x256xf32>
    %100 = vector.extract_strided_slice %92 {offsets = [0, 0], sizes = [1, 256], strides = [1, 1]} : vector<128x256xf32> to vector<1x256xf32>
    %101 = tpu.concatenate %99, %100 in 0 : vector<127x256xf32>, vector<1x256xf32> -> vector<128x256xf32>
    %102 = vector.broadcast %2 : vector<128x1xf32> to vector<128x256xf32>
    %103 = arith.mulf %101, %102 : vector<128x256xf32>
    %104 = arith.addf %98, %103 : vector<128x256xf32>
    %c0_59 = arith.constant 0 : index
    %c0_60 = arith.constant 0 : index
    %105 = vector.load %arg12[%c0_59, %c0_60] : memref<1x256xf32, #tpu.memory_space<vmem>>, vector<1x256xf32>
    %106 = vector.broadcast %105 : vector<1x256xf32> to vector<128x256xf32>
    %107 = arith.addf %104, %106 : vector<128x256xf32>
    %cst_61 = arith.constant 0.000000e+00 : f32
    %108 = vector.broadcast %cst_61 : f32 to vector<128x256xf32>
    %109 = arith.maximumf %107, %108 : vector<128x256xf32>
    %110 = arith.truncf %109 : vector<128x256xf32> to vector<128x256xbf16>
    %c0_62 = arith.constant 0 : index
    %c0_63 = arith.constant 0 : index
    %c0_64 = arith.constant 0 : index
    %111 = vector.load %arg13[%c0_62, %c0_63, %c0_64] : memref<3x256x256xbf16, #tpu.memory_space<vmem>>, vector<1x256x256xbf16>
    %112 = vector.shape_cast %111 : vector<1x256x256xbf16> to vector<256x256xbf16>
    %cst_65 = arith.constant dense<0.000000e+00> : vector<128x256xf32>
    %113 = tpu.matmul %110, %112, %cst_65 {dimension_numbers = #tpu.dot_dimension_numbers<[1], [0], [0], [1], [0, 0, 1, 1], [], []>} : vector<128x256xbf16>, vector<256x256xbf16>, vector<128x256xf32> -> vector<128x256xf32>
    %c1_66 = arith.constant 1 : index
    %c0_67 = arith.constant 0 : index
    %c0_68 = arith.constant 0 : index
    %114 = vector.load %arg13[%c1_66, %c0_67, %c0_68] : memref<3x256x256xbf16, #tpu.memory_space<vmem>>, vector<1x256x256xbf16>
    %115 = vector.shape_cast %114 : vector<1x256x256xbf16> to vector<256x256xbf16>
    %cst_69 = arith.constant dense<0.000000e+00> : vector<128x256xf32>
    %116 = tpu.matmul %110, %115, %cst_69 {dimension_numbers = #tpu.dot_dimension_numbers<[1], [0], [0], [1], [0, 0, 1, 1], [], []>} : vector<128x256xbf16>, vector<256x256xbf16>, vector<128x256xf32> -> vector<128x256xf32>
    %c2_70 = arith.constant 2 : index
    %c0_71 = arith.constant 0 : index
    %c0_72 = arith.constant 0 : index
    %117 = vector.load %arg13[%c2_70, %c0_71, %c0_72] : memref<3x256x256xbf16, #tpu.memory_space<vmem>>, vector<1x256x256xbf16>
    %118 = vector.shape_cast %117 : vector<1x256x256xbf16> to vector<256x256xbf16>
    %cst_73 = arith.constant dense<0.000000e+00> : vector<128x256xf32>
    %119 = tpu.matmul %110, %118, %cst_73 {dimension_numbers = #tpu.dot_dimension_numbers<[1], [0], [0], [1], [0, 0, 1, 1], [], []>} : vector<128x256xbf16>, vector<256x256xbf16>, vector<128x256xf32> -> vector<128x256xf32>
    %120 = vector.extract_strided_slice %113 {offsets = [127, 0], sizes = [1, 256], strides = [1, 1]} : vector<128x256xf32> to vector<1x256xf32>
    %121 = vector.extract_strided_slice %113 {offsets = [0, 0], sizes = [127, 256], strides = [1, 1]} : vector<128x256xf32> to vector<127x256xf32>
    %122 = tpu.concatenate %120, %121 in 0 : vector<1x256xf32>, vector<127x256xf32> -> vector<128x256xf32>
    %123 = vector.broadcast %1 : vector<128x1xf32> to vector<128x256xf32>
    %124 = arith.mulf %122, %123 : vector<128x256xf32>
    %125 = arith.addf %124, %116 : vector<128x256xf32>
    %126 = vector.extract_strided_slice %119 {offsets = [1, 0], sizes = [127, 256], strides = [1, 1]} : vector<128x256xf32> to vector<127x256xf32>
    %127 = vector.extract_strided_slice %119 {offsets = [0, 0], sizes = [1, 256], strides = [1, 1]} : vector<128x256xf32> to vector<1x256xf32>
    %128 = tpu.concatenate %126, %127 in 0 : vector<127x256xf32>, vector<1x256xf32> -> vector<128x256xf32>
    %129 = vector.broadcast %2 : vector<128x1xf32> to vector<128x256xf32>
    %130 = arith.mulf %128, %129 : vector<128x256xf32>
    %131 = arith.addf %125, %130 : vector<128x256xf32>
    %c0_74 = arith.constant 0 : index
    %c0_75 = arith.constant 0 : index
    %132 = vector.load %arg14[%c0_74, %c0_75] : memref<1x256xf32, #tpu.memory_space<vmem>>, vector<1x256xf32>
    %133 = vector.broadcast %132 : vector<1x256xf32> to vector<128x256xf32>
    %134 = arith.addf %131, %133 : vector<128x256xf32>
    %cst_76 = arith.constant 0.000000e+00 : f32
    %135 = vector.broadcast %cst_76 : f32 to vector<128x256xf32>
    %136 = arith.maximumf %134, %135 : vector<128x256xf32>
    %137 = arith.truncf %136 : vector<128x256xf32> to vector<128x256xbf16>
    %138 = arith.addf %83, %137 : vector<128x256xbf16>
    %c0_77 = arith.constant 0 : index
    %c0_78 = arith.constant 0 : index
    %c0_79 = arith.constant 0 : index
    %139 = vector.load %arg15[%c0_77, %c0_78, %c0_79] : memref<3x256x256xbf16, #tpu.memory_space<vmem>>, vector<1x256x256xbf16>
    %140 = vector.shape_cast %139 : vector<1x256x256xbf16> to vector<256x256xbf16>
    %cst_80 = arith.constant dense<0.000000e+00> : vector<128x256xf32>
    %141 = tpu.matmul %138, %140, %cst_80 {dimension_numbers = #tpu.dot_dimension_numbers<[1], [0], [0], [1], [0, 0, 1, 1], [], []>} : vector<128x256xbf16>, vector<256x256xbf16>, vector<128x256xf32> -> vector<128x256xf32>
    %c1_81 = arith.constant 1 : index
    %c0_82 = arith.constant 0 : index
    %c0_83 = arith.constant 0 : index
    %142 = vector.load %arg15[%c1_81, %c0_82, %c0_83] : memref<3x256x256xbf16, #tpu.memory_space<vmem>>, vector<1x256x256xbf16>
    %143 = vector.shape_cast %142 : vector<1x256x256xbf16> to vector<256x256xbf16>
    %cst_84 = arith.constant dense<0.000000e+00> : vector<128x256xf32>
    %144 = tpu.matmul %138, %143, %cst_84 {dimension_numbers = #tpu.dot_dimension_numbers<[1], [0], [0], [1], [0, 0, 1, 1], [], []>} : vector<128x256xbf16>, vector<256x256xbf16>, vector<128x256xf32> -> vector<128x256xf32>
    %c2_85 = arith.constant 2 : index
    %c0_86 = arith.constant 0 : index
    %c0_87 = arith.constant 0 : index
    %145 = vector.load %arg15[%c2_85, %c0_86, %c0_87] : memref<3x256x256xbf16, #tpu.memory_space<vmem>>, vector<1x256x256xbf16>
    %146 = vector.shape_cast %145 : vector<1x256x256xbf16> to vector<256x256xbf16>
    %cst_88 = arith.constant dense<0.000000e+00> : vector<128x256xf32>
    %147 = tpu.matmul %138, %146, %cst_88 {dimension_numbers = #tpu.dot_dimension_numbers<[1], [0], [0], [1], [0, 0, 1, 1], [], []>} : vector<128x256xbf16>, vector<256x256xbf16>, vector<128x256xf32> -> vector<128x256xf32>
    %148 = vector.extract_strided_slice %141 {offsets = [127, 0], sizes = [1, 256], strides = [1, 1]} : vector<128x256xf32> to vector<1x256xf32>
    %149 = vector.extract_strided_slice %141 {offsets = [0, 0], sizes = [127, 256], strides = [1, 1]} : vector<128x256xf32> to vector<127x256xf32>
    %150 = tpu.concatenate %148, %149 in 0 : vector<1x256xf32>, vector<127x256xf32> -> vector<128x256xf32>
    %151 = vector.broadcast %1 : vector<128x1xf32> to vector<128x256xf32>
    %152 = arith.mulf %150, %151 : vector<128x256xf32>
    %153 = arith.addf %152, %144 : vector<128x256xf32>
    %154 = vector.extract_strided_slice %147 {offsets = [1, 0], sizes = [127, 256], strides = [1, 1]} : vector<128x256xf32> to vector<127x256xf32>
    %155 = vector.extract_strided_slice %147 {offsets = [0, 0], sizes = [1, 256], strides = [1, 1]} : vector<128x256xf32> to vector<1x256xf32>
    %156 = tpu.concatenate %154, %155 in 0 : vector<127x256xf32>, vector<1x256xf32> -> vector<128x256xf32>
    %157 = vector.broadcast %2 : vector<128x1xf32> to vector<128x256xf32>
    %158 = arith.mulf %156, %157 : vector<128x256xf32>
    %159 = arith.addf %153, %158 : vector<128x256xf32>
    %c0_89 = arith.constant 0 : index
    %c0_90 = arith.constant 0 : index
    %160 = vector.load %arg16[%c0_89, %c0_90] : memref<1x256xf32, #tpu.memory_space<vmem>>, vector<1x256xf32>
    %161 = vector.broadcast %160 : vector<1x256xf32> to vector<128x256xf32>
    %162 = arith.addf %159, %161 : vector<128x256xf32>
    %cst_91 = arith.constant 0.000000e+00 : f32
    %163 = vector.broadcast %cst_91 : f32 to vector<128x256xf32>
    %164 = arith.maximumf %162, %163 : vector<128x256xf32>
    %165 = arith.truncf %164 : vector<128x256xf32> to vector<128x256xbf16>
    %c0_92 = arith.constant 0 : index
    %c0_93 = arith.constant 0 : index
    %c0_94 = arith.constant 0 : index
    %166 = vector.load %arg17[%c0_92, %c0_93, %c0_94] : memref<3x256x256xbf16, #tpu.memory_space<vmem>>, vector<1x256x256xbf16>
    %167 = vector.shape_cast %166 : vector<1x256x256xbf16> to vector<256x256xbf16>
    %cst_95 = arith.constant dense<0.000000e+00> : vector<128x256xf32>
    %168 = tpu.matmul %165, %167, %cst_95 {dimension_numbers = #tpu.dot_dimension_numbers<[1], [0], [0], [1], [0, 0, 1, 1], [], []>} : vector<128x256xbf16>, vector<256x256xbf16>, vector<128x256xf32> -> vector<128x256xf32>
    %c1_96 = arith.constant 1 : index
    %c0_97 = arith.constant 0 : index
    %c0_98 = arith.constant 0 : index
    %169 = vector.load %arg17[%c1_96, %c0_97, %c0_98] : memref<3x256x256xbf16, #tpu.memory_space<vmem>>, vector<1x256x256xbf16>
    %170 = vector.shape_cast %169 : vector<1x256x256xbf16> to vector<256x256xbf16>
    %cst_99 = arith.constant dense<0.000000e+00> : vector<128x256xf32>
    %171 = tpu.matmul %165, %170, %cst_99 {dimension_numbers = #tpu.dot_dimension_numbers<[1], [0], [0], [1], [0, 0, 1, 1], [], []>} : vector<128x256xbf16>, vector<256x256xbf16>, vector<128x256xf32> -> vector<128x256xf32>
    %c2_100 = arith.constant 2 : index
    %c0_101 = arith.constant 0 : index
    %c0_102 = arith.constant 0 : index
    %172 = vector.load %arg17[%c2_100, %c0_101, %c0_102] : memref<3x256x256xbf16, #tpu.memory_space<vmem>>, vector<1x256x256xbf16>
    %173 = vector.shape_cast %172 : vector<1x256x256xbf16> to vector<256x256xbf16>
    %cst_103 = arith.constant dense<0.000000e+00> : vector<128x256xf32>
    %174 = tpu.matmul %165, %173, %cst_103 {dimension_numbers = #tpu.dot_dimension_numbers<[1], [0], [0], [1], [0, 0, 1, 1], [], []>} : vector<128x256xbf16>, vector<256x256xbf16>, vector<128x256xf32> -> vector<128x256xf32>
    %175 = vector.extract_strided_slice %168 {offsets = [127, 0], sizes = [1, 256], strides = [1, 1]} : vector<128x256xf32> to vector<1x256xf32>
    %176 = vector.extract_strided_slice %168 {offsets = [0, 0], sizes = [127, 256], strides = [1, 1]} : vector<128x256xf32> to vector<127x256xf32>
    %177 = tpu.concatenate %175, %176 in 0 : vector<1x256xf32>, vector<127x256xf32> -> vector<128x256xf32>
    %178 = vector.broadcast %1 : vector<128x1xf32> to vector<128x256xf32>
    %179 = arith.mulf %177, %178 : vector<128x256xf32>
    %180 = arith.addf %179, %171 : vector<128x256xf32>
    %181 = vector.extract_strided_slice %174 {offsets = [1, 0], sizes = [127, 256], strides = [1, 1]} : vector<128x256xf32> to vector<127x256xf32>
    %182 = vector.extract_strided_slice %174 {offsets = [0, 0], sizes = [1, 256], strides = [1, 1]} : vector<128x256xf32> to vector<1x256xf32>
    %183 = tpu.concatenate %181, %182 in 0 : vector<127x256xf32>, vector<1x256xf32> -> vector<128x256xf32>
    %184 = vector.broadcast %2 : vector<128x1xf32> to vector<128x256xf32>
    %185 = arith.mulf %183, %184 : vector<128x256xf32>
    %186 = arith.addf %180, %185 : vector<128x256xf32>
    %c0_104 = arith.constant 0 : index
    %c0_105 = arith.constant 0 : index
    %187 = vector.load %arg18[%c0_104, %c0_105] : memref<1x256xf32, #tpu.memory_space<vmem>>, vector<1x256xf32>
    %188 = vector.broadcast %187 : vector<1x256xf32> to vector<128x256xf32>
    %189 = arith.addf %186, %188 : vector<128x256xf32>
    %cst_106 = arith.constant 0.000000e+00 : f32
    %190 = vector.broadcast %cst_106 : f32 to vector<128x256xf32>
    %191 = arith.maximumf %189, %190 : vector<128x256xf32>
    %192 = arith.truncf %191 : vector<128x256xf32> to vector<128x256xbf16>
    %193 = arith.addf %138, %192 : vector<128x256xbf16>
    %c0_107 = arith.constant 0 : index
    %c0_108 = arith.constant 0 : index
    %194 = vector.load %arg4[%c0_107, %c0_108] : memref<8x128xbf16, #tpu.memory_space<vmem>>, vector<8x128xbf16>
    %cst_109 = arith.constant dense<0.000000e+00> : vector<8x256xf32>
    %195 = tpu.matmul %194, %193, %cst_109 {dimension_numbers = #tpu.dot_dimension_numbers<[1], [0], [0], [1], [0, 0, 1, 1], [], []>} : vector<8x128xbf16>, vector<128x256xbf16>, vector<8x256xf32> -> vector<8x256xf32>
    %cst_110 = arith.constant 6.250000e-02 : f32
    %196 = vector.broadcast %cst_110 : f32 to vector<8x256xf32>
    %197 = arith.mulf %195, %196 : vector<8x256xf32>
    %198 = arith.truncf %197 : vector<8x256xf32> to vector<8x256xbf16>
    %c0_111 = arith.constant 0 : index
    %c0_112 = arith.constant 0 : index
    %199 = vector.load %arg19[%c0_111, %c0_112] : memref<256x128xbf16, #tpu.memory_space<vmem>>, vector<256x128xbf16>
    %cst_113 = arith.constant dense<0.000000e+00> : vector<8x128xf32>
    %200 = tpu.matmul %198, %199, %cst_113 {dimension_numbers = #tpu.dot_dimension_numbers<[1], [0], [0], [1], [0, 0, 1, 1], [], []>} : vector<8x256xbf16>, vector<256x128xbf16>, vector<8x128xf32> -> vector<8x128xf32>
    %c0_114 = arith.constant 0 : index
    %c0_115 = arith.constant 0 : index
    %201 = vector.load %arg20[%c0_114, %c0_115] : memref<1x128xf32, #tpu.memory_space<vmem>>, vector<1x128xf32>
    %202 = vector.broadcast %201 : vector<1x128xf32> to vector<8x128xf32>
    %203 = arith.addf %200, %202 : vector<8x128xf32>
    %cst_116 = arith.constant 0.000000e+00 : f32
    %204 = vector.broadcast %cst_116 : f32 to vector<8x128xf32>
    %205 = arith.maximumf %203, %204 : vector<8x128xf32>
    %206 = arith.truncf %205 : vector<8x128xf32> to vector<8x128xbf16>
    %c0_117 = arith.constant 0 : index
    %c0_118 = arith.constant 0 : index
    %207 = vector.load %arg21[%c0_117, %c0_118] : memref<128x128xbf16, #tpu.memory_space<vmem>>, vector<128x128xbf16>
    %cst_119 = arith.constant dense<0.000000e+00> : vector<8x128xf32>
    %208 = tpu.matmul %206, %207, %cst_119 {dimension_numbers = #tpu.dot_dimension_numbers<[1], [0], [0], [1], [0, 0, 1, 1], [], []>} : vector<8x128xbf16>, vector<128x128xbf16>, vector<8x128xf32> -> vector<8x128xf32>
    %c0_120 = arith.constant 0 : index
    %c0_121 = arith.constant 0 : index
    %209 = vector.load %arg22[%c0_120, %c0_121] : memref<1x128xf32, #tpu.memory_space<vmem>>, vector<1x128xf32>
    %210 = vector.broadcast %209 : vector<1x128xf32> to vector<8x128xf32>
    %211 = arith.addf %208, %210 : vector<8x128xf32>
    %c0_122 = arith.constant 0 : index
    %c0_123 = arith.constant 0 : index
    %212 = vector.load %arg23[%c0_122, %c0_123] : memref<8x128xf32, #tpu.memory_space<vmem>>, vector<8x128xf32>
    tpu.vector_store %arg23[%c0_122, %c0_123], %211 {strides = array<i32>} : memref<8x128xf32, #tpu.memory_space<vmem>>, vector<8x128xf32>,
    return
  }
  func.func @transform_0(%arg0: i32) -> (i32, i32) {
    %c0_i32 = arith.constant 0 : i32
    %c0_i32_0 = arith.constant 0 : i32
    return %arg0, %c0_i32 : i32, i32
  }
  func.func @transform_1(%arg0: i32) -> (i32, i32) {
    %c0_i32 = arith.constant 0 : i32
    %c0_i32_0 = arith.constant 0 : i32
    %c0_i32_1 = arith.constant 0 : i32
    return %c0_i32, %c0_i32_0 : i32, i32
  }
  func.func @transform_2(%arg0: i32) -> (i32, i32) {
    %c0_i32 = arith.constant 0 : i32
    %c0_i32_0 = arith.constant 0 : i32
    %c0_i32_1 = arith.constant 0 : i32
    return %c0_i32, %c0_i32_0 : i32, i32
  }
  func.func @transform_3(%arg0: i32) -> (i32, i32) {
    %c0_i32 = arith.constant 0 : i32
    %c0_i32_0 = arith.constant 0 : i32
    %c0_i32_1 = arith.constant 0 : i32
    return %c0_i32, %c0_i32_0 : i32, i32
  }
  func.func @transform_4(%arg0: i32) -> (i32, i32, i32) {
    %c0_i32 = arith.constant 0 : i32
    %c0_i32_0 = arith.constant 0 : i32
    %c0_i32_1 = arith.constant 0 : i32
    %c0_i32_2 = arith.constant 0 : i32
    return %c0_i32, %c0_i32_0, %c0_i32_1 : i32, i32, i32
  }
  func.func @transform_5(%arg0: i32) -> (i32, i32) {
    %c0_i32 = arith.constant 0 : i32
    %c0_i32_0 = arith.constant 0 : i32
    %c0_i32_1 = arith.constant 0 : i32
    return %c0_i32, %c0_i32_0 : i32, i32
  }
  func.func @transform_6(%arg0: i32) -> (i32, i32, i32) {
    %c0_i32 = arith.constant 0 : i32
    %c0_i32_0 = arith.constant 0 : i32
    %c0_i32_1 = arith.constant 0 : i32
    %c0_i32_2 = arith.constant 0 : i32
    return %c0_i32, %c0_i32_0, %c0_i32_1 : i32, i32, i32
  }
  func.func @transform_7(%arg0: i32) -> (i32, i32) {
    %c0_i32 = arith.constant 0 : i32
    %c0_i32_0 = arith.constant 0 : i32
    %c0_i32_1 = arith.constant 0 : i32
    return %c0_i32, %c0_i32_0 : i32, i32
  }
  func.func @transform_8(%arg0: i32) -> (i32, i32, i32) {
    %c0_i32 = arith.constant 0 : i32
    %c0_i32_0 = arith.constant 0 : i32
    %c0_i32_1 = arith.constant 0 : i32
    %c0_i32_2 = arith.constant 0 : i32
    return %c0_i32, %c0_i32_0, %c0_i32_1 : i32, i32, i32
  }
  func.func @transform_9(%arg0: i32) -> (i32, i32) {
    %c0_i32 = arith.constant 0 : i32
    %c0_i32_0 = arith.constant 0 : i32
    %c0_i32_1 = arith.constant 0 : i32
    return %c0_i32, %c0_i32_0 : i32, i32
  }
  func.func @transform_10(%arg0: i32) -> (i32, i32, i32) {
    %c0_i32 = arith.constant 0 : i32
    %c0_i32_0 = arith.constant 0 : i32
    %c0_i32_1 = arith.constant 0 : i32
    %c0_i32_2 = arith.constant 0 : i32
    return %c0_i32, %c0_i32_0, %c0_i32_1 : i32, i32, i32
  }
  func.func @transform_11(%arg0: i32) -> (i32, i32) {
    %c0_i32 = arith.constant 0 : i32
    %c0_i32_0 = arith.constant 0 : i32
    %c0_i32_1 = arith.constant 0 : i32
    return %c0_i32, %c0_i32_0 : i32, i32
  }
  func.func @transform_12(%arg0: i32) -> (i32, i32, i32) {
    %c0_i32 = arith.constant 0 : i32
    %c0_i32_0 = arith.constant 0 : i32
    %c0_i32_1 = arith.constant 0 : i32
    %c0_i32_2 = arith.constant 0 : i32
    return %c0_i32, %c0_i32_0, %c0_i32_1 : i32, i32, i32
  }
  func.func @transform_13(%arg0: i32) -> (i32, i32) {
    %c0_i32 = arith.constant 0 : i32
    %c0_i32_0 = arith.constant 0 : i32
    %c0_i32_1 = arith.constant 0 : i32
    return %c0_i32, %c0_i32_0 : i32, i32
  }
  func.func @transform_14(%arg0: i32) -> (i32, i32, i32) {
    %c0_i32 = arith.constant 0 : i32
    %c0_i32_0 = arith.constant 0 : i32
    %c0_i32_1 = arith.constant 0 : i32
    %c0_i32_2 = arith.constant 0 : i32
    return %c0_i32, %c0_i32_0, %c0_i32_1 : i32, i32, i32
  }
  func.func @transform_15(%arg0: i32) -> (i32, i32) {
    %c0_i32 = arith.constant 0 : i32
    %c0_i32_0 = arith.constant 0 : i32
    %c0_i32_1 = arith.constant 0 : i32
    return %c0_i32, %c0_i32_0 : i32, i32
  }
  func.func @transform_16(%arg0: i32) -> (i32, i32, i32) {
    %c0_i32 = arith.constant 0 : i32
    %c0_i32_0 = arith.constant 0 : i32
    %c0_i32_1 = arith.constant 0 : i32
    %c0_i32_2 = arith.constant 0 : i32
    return %c0_i32, %c0_i32_0, %c0_i32_1 : i32, i32, i32
  }
  func.func @transform_17(%arg0: i32) -> (i32, i32) {
    %c0_i32 = arith.constant 0 : i32
    %c0_i32_0 = arith.constant 0 : i32
    %c0_i32_1 = arith.constant 0 : i32
    return %c0_i32, %c0_i32_0 : i32, i32
  }
  func.func @transform_18(%arg0: i32) -> (i32, i32) {
    %c0_i32 = arith.constant 0 : i32
    %c0_i32_0 = arith.constant 0 : i32
    %c0_i32_1 = arith.constant 0 : i32
    return %c0_i32, %c0_i32_0 : i32, i32
  }
  func.func @transform_19(%arg0: i32) -> (i32, i32) {
    %c0_i32 = arith.constant 0 : i32
    %c0_i32_0 = arith.constant 0 : i32
    %c0_i32_1 = arith.constant 0 : i32
    return %c0_i32, %c0_i32_0 : i32, i32
  }
  func.func @transform_20(%arg0: i32) -> (i32, i32) {
    %c0_i32 = arith.constant 0 : i32
    %c0_i32_0 = arith.constant 0 : i32
    %c0_i32_1 = arith.constant 0 : i32
    return %c0_i32, %c0_i32_0 : i32, i32
  }
  func.func @transform_21(%arg0: i32) -> (i32, i32) {
    %c0_i32 = arith.constant 0 : i32
    %c0_i32_0 = arith.constant 0 : i32
    %c0_i32_1 = arith.constant 0 : i32
    return %c0_i32, %c0_i32_0 : i32, i32
  }
  func.func @transform_22(%arg0: i32) -> (i32, i32) {
    %c0_i32 = arith.constant 0 : i32
    %c0_i32_0 = arith.constant 0 : i32
    return %arg0, %c0_i32 : i32, i32
  }
}

</mosaic_0001>

<llo_original>
// kernel: tpu_custom_call.1
$region0: #{tpu_custom_call.1}
  #allocation0 [shape = 'u32[]', space=smem, size = 0x4, offset = 0x4, fixed_abs, tag = 'smem constant byte address 0x4 - core index']
  #allocation1 [shape = 'u32[144,128]{1,0:T(1,128)}', space=vmem, size = 0x12000, scoped, tag = 'internal scratch']
  %s0 = inlined_call_operand.vmem [shape: bf16[256,32], index: 0, kind: input, shape index: {}]
  %s1 = inlined_call_operand.vmem [shape: f32[128,1], index: 1, kind: input, shape index: {}]
  %s2 = inlined_call_operand.vmem [shape: f32[128,1], index: 2, kind: input, shape index: {}]
  %s3 = inlined_call_operand.hbm [shape: bf16[8,128], index: 3, kind: input, shape index: {}]
  %s4 = inlined_call_operand.hbm [shape: bf16[3,32,64], index: 4, kind: input, shape index: {}]
  %s5 = inlined_call_operand.hbm [shape: f32[1,64], index: 5, kind: input, shape index: {}]
  %s6 = inlined_call_operand.hbm [shape: bf16[3,64,128], index: 6, kind: input, shape index: {}]
  %s7 = inlined_call_operand.hbm [shape: f32[1,128], index: 7, kind: input, shape index: {}]
  %s8 = inlined_call_operand.vmem [shape: bf16[3,128,256], index: 8, kind: input, shape index: {}]
  %s9 = inlined_call_operand.hbm [shape: f32[1,256], index: 9, kind: input, shape index: {}]
  %s10 = inlined_call_operand.hbm [shape: bf16[3,256,256], index: 10, kind: input, shape index: {}]
  %s11 = inlined_call_operand.vmem [shape: f32[1,256], index: 11, kind: input, shape index: {}]
  %s12 = inlined_call_operand.hbm [shape: bf16[3,256,256], index: 12, kind: input, shape index: {}]
  %s13 = inlined_call_operand.vmem [shape: f32[1,256], index: 13, kind: input, shape index: {}]
  %s14 = inlined_call_operand.hbm [shape: bf16[3,256,256], index: 14, kind: input, shape index: {}]
  %s15 = inlined_call_operand.vmem [shape: f32[1,256], index: 15, kind: input, shape index: {}]
  %s16 = inlined_call_operand.hbm [shape: bf16[3,256,256], index: 16, kind: input, shape index: {}]
  %s17 = inlined_call_operand.vmem [shape: f32[1,256], index: 17, kind: input, shape index: {}]
  %s18 = inlined_call_operand.hbm [shape: bf16[256,128], index: 18, kind: input, shape index: {}]
  %s19 = inlined_call_operand.vmem [shape: f32[1,128], index: 19, kind: input, shape index: {}]
  %s20 = inlined_call_operand.vmem [shape: bf16[128,128], index: 20, kind: input, shape index: {}]
  %s21 = inlined_call_operand.vmem [shape: f32[1,128], index: 21, kind: input, shape index: {}]
  %s22 = inlined_call_operand.hbm [shape: f32[16,128], index: 22, kind: output, shape index: {}]
  %s23 = sld [smem:[#allocation0]]
  $region165: #{tpu_custom_call.1} parent=0
    _
  %s25 = ssub.s32 1, %s23
  %s26 = scalar_select 0, %s25, %s23
  $region1: #{tpu_custom_call.1} parent=0
    #allocation2 [shape = 'u8[2048]{0}', space=vmem, size = 0x800, scoped, tag = 'input window, operand 3, single buffered']
    #allocation3 [shape = 's32[2]{0}', space=sflag, size = 0x8, scoped, tag = 'scoped memory for tpu_custom_call.1']
    #allocation4 [shape = 's32[2]{0}', space=sflag, size = 0x8, scoped, tag = 'scoped memory for tpu_custom_call.1']
    #allocation5 [shape = 'u8[24576]{0}', space=vmem, size = 0x6000, scoped, tag = 'input window, operand 4, single buffered']
    #allocation6 [shape = 's32[1]{0}', space=sflag, size = 0x4, scoped, tag = 'scoped memory for tpu_custom_call.1']
    #allocation7 [shape = 'u8[512]{0}', space=vmem, size = 0x400, scoped, tag = 'input window, operand 5, single buffered']
    #allocation8 [shape = 'u8[49152]{0}', space=vmem, size = 0xc000, scoped, tag = 'input window, operand 6, single buffered']
    #allocation9 [shape = 's32[1]{0}', space=sflag, size = 0x4, scoped, tag = 'scoped memory for tpu_custom_call.1']
    #allocation10 [shape = 'u8[512]{0}', space=vmem, size = 0x400, scoped, tag = 'input window, operand 7, single buffered']
    #allocation11 [shape = 'u8[1024]{0}', space=vmem, size = 0x400, scoped, tag = 'input window, operand 9, single buffered']
    #allocation12 [shape = 's32[1]{0}', space=sflag, size = 0x4, scoped, tag = 'scoped memory for tpu_custom_call.1']
    #allocation13 [shape = 'u8[393216]{0}', space=vmem, size = 0x60000, scoped, tag = 'input window, operand 10, single buffered']
    #allocation14 [shape = 'u8[393216]{0}', space=vmem, size = 0x60000, scoped, tag = 'input window, operand 12, single buffered']
    #allocation15 [shape = 's32[1]{0}', space=sflag, size = 0x4, scoped, tag = 'scoped memory for tpu_custom_call.1']
    #allocation16 [shape = 'u8[393216]{0}', space=vmem, size = 0x60000, scoped, tag = 'input window, operand 14, single buffered']
    #allocation17 [shape = 'u8[393216]{0}', space=vmem, size = 0x60000, scoped, tag = 'input window, operand 16, single buffered']
    #allocation18 [shape = 's32[1]{0}', space=sflag, size = 0x4, scoped, tag = 'scoped memory for tpu_custom_call.1']
    #allocation19 [shape = 'u8[65536]{0}', space=vmem, size = 0x10000, scoped, tag = 'input window, operand 18, single buffered']
    #allocation20 [shape = 'u8[8192]{0}', space=vmem, size = 0x2000, scoped, tag = 'output window, operand 0']
    %27 = vsyncpa [#allocation3], 0
    %28 = vsyncpa [#allocation6], 0
    %29 = vsyncpa [#allocation9], 0
    %30 = vsyncpa [#allocation12], 0
    %31 = vsyncpa [#allocation15], 0
    %32 = vsyncpa [#allocation18], 0
    %33 = vsyncpa [#allocation4], 0
    %s34 = scalar_lea.sflag [#allocation4], 1
    %35 = vsyncpa %s34, 0
    loop: start=0, step=1, limit=4
    $region2: #{tpu_custom_call.1} parent=1 // loop_pre_header
      _
    $region3: #{tpu_custom_call.1} parent=1 // loop_header
      %s37 = sphi 0, %s41
      %p38 = scmp.ge.s32.totalorder %s37, 4
      %s47 = sphi 0, %s49
      %s50 = sphi 0, %s47
      %s51 = sphi 0, %s50
      %s67 = sphi 0, %s51
      %s71 = sphi 0, %s71
      %s73 = sphi 0, %s71
      %s74 = sphi 0, %s73
      %s88 = sphi 0, %s74
      %s92 = sphi 0, %s92
      %s94 = sphi 0, %s92
      %s95 = sphi 0, %s94
      %s109 = sphi 0, %s95
      %s113 = sphi 0, %s113
      %s115 = sphi 0, %s113
      %s116 = sphi 0, %s115
      %s130 = sphi 0, %s116
      %s134 = sphi 0, %s134
      %s136 = sphi 0, %s134
      %s137 = sphi 0, %s136
      %s151 = sphi 0, %s137
      %s155 = sphi 0, %s155
      %s157 = sphi 0, %s155
      %s158 = sphi 0, %s157
      %s172 = sphi 0, %s158
      %s176 = sphi 0, %s176
      %s178 = sphi 0, %s176
      %s179 = sphi 0, %s178
      %s193 = sphi 0, %s179
      %s197 = sphi 0, %s197
      %s199 = sphi 0, %s197
      %s200 = sphi 0, %s199
      %s214 = sphi 0, %s200
      %s218 = sphi 0, %s218
      %s220 = sphi 0, %s218
      %s221 = sphi 0, %s220
      %s235 = sphi 0, %s221
      %s239 = sphi 0, %s239
      %s241 = sphi 0, %s239
      %s242 = sphi 0, %s241
      %s256 = sphi 0, %s242
      %s260 = sphi 0, %s260
      %s262 = sphi 0, %s260
      %s263 = sphi 0, %s262
      %s277 = sphi 0, %s263
      %s281 = sphi 0, %s281
      %s283 = sphi 0, %s281
      %s284 = sphi 0, %s283
      %s298 = sphi 0, %s284
      %s302 = sphi 0, %s302
      %s304 = sphi 0, %s302
      %s305 = sphi 0, %s304
      %s319 = sphi 0, %s305
      %s323 = sphi 0, %s323
      %s325 = sphi 0, %s323
      %s326 = sphi 0, %s325
      %s340 = sphi 0, %s326
      %s344 = sphi 0, %s344
      %s346 = sphi 0, %s344
      %s347 = sphi 0, %s346
      %s361 = sphi 0, %s347
      %s365 = sphi 0, %s365
      %s367 = sphi 0, %s365
      %s368 = sphi 0, %s367
      %s382 = sphi 0, %s368
      %s386 = sphi 0, %s386
      %s388 = sphi 0, %s386
      %s389 = sphi 0, %s388
      %s403 = sphi 0, %s389
      %s407 = sphi 0, %s407
      %s409 = sphi 0, %s407
      %s410 = sphi 0, %s409
      %s424 = sphi 0, %s410
      %s428 = sphi 0, %s428
      %s430 = sphi 0, %s428
      %s431 = sphi 0, %s430
      %s445 = sphi 0, %s431
      %s449 = sphi 0, %s449
      %s451 = sphi 0, %s449
      %s452 = sphi 0, %s451
      %s466 = sphi 0, %s452
      %s470 = sphi 0, %s470
      %s472 = sphi 0, %s470
      %s473 = sphi 0, %s472
      %s487 = sphi 0, %s473
      %s491 = sphi 0, %s491
      %s493 = sphi 0, %s491
      %s494 = sphi 0, %s493
      %s508 = sphi 0, %s494
      %s514 = sphi 0, %s516
      %s517 = sphi 0, %s514
      %s518 = sphi 0, %s517
      %s534 = sphi 0, %s518
    $region4: #{tpu_custom_call.1} parent=1 // loop_header_branch
      %40 = sbr.rel (%p38) target = $region8
    $region5: #{tpu_custom_call.1} parent=1 // loop_body
      %s42 = ssub.s32 %s37, 1
      %s43 = ssub.s32 %s37, 2
      %s44 = sadd.s32 %s37, 1
      %s45 = ssub.s32 %s37, %s44
      %p46 = scmp.eq.s32.totalorder %s45, 0
      %s48 = sadd.s32 %s47, 1
      %s49 = scalar_select %p46, %s47, %s48
      %p52 = pneg %p46
      %p53 = scmp.eq.s32.totalorder %s37, 1
      %p54 = por %p52, %p53
      %p55 = scmp.ne.s32.totalorder %s47, %s50
      %p56 = scmp.eq.s32.totalorder %s37, 0
      %p57 = por %p55, %p56
      %p58 = scmp.ne.s32.totalorder %s47, %s50
      %p59 = scmp.eq.s32.totalorder %s42, 1
      %p60 = por %p58, %p59
      %p61 = scmp.ne.s32.totalorder %s50, %s51
      %p62 = scmp.eq.s32.totalorder %s42, 0
      %p63 = por %p61, %p62
      %p64 = scmp.ne.s32.totalorder %s50, %s51
      %p65 = scmp.eq.s32.totalorder %s43, 1
      %p66 = por %p64, %p65
      %p68 = scmp.ne.s32.totalorder %s51, %s67
      %p69 = scmp.eq.s32.totalorder %s43, 0
      %p70 = por %p68, %p69
      %s72 = sadd.s32 %s71, 1
      %p75 = scmp.eq.s32.totalorder %s37, 1
      %p76 = scmp.ne.s32.totalorder %s71, %s73
      %p77 = scmp.eq.s32.totalorder %s37, 0
      %p78 = por %p76, %p77
      %p79 = scmp.ne.s32.totalorder %s71, %s73
      %p80 = scmp.eq.s32.totalorder %s42, 1
      %p81 = por %p79, %p80
      %p82 = scmp.ne.s32.totalorder %s73, %s74
      %p83 = scmp.eq.s32.totalorder %s42, 0
      %p84 = por %p82, %p83
      %p85 = scmp.ne.s32.totalorder %s73, %s74
      %p86 = scmp.eq.s32.totalorder %s43, 1
      %p87 = por %p85, %p86
      %p89 = scmp.ne.s32.totalorder %s74, %s88
      %p90 = scmp.eq.s32.totalorder %s43, 0
      %p91 = por %p89, %p90
      %s93 = sadd.s32 %s92, 1
      %p96 = scmp.eq.s32.totalorder %s37, 1
      %p97 = scmp.ne.s32.totalorder %s92, %s94
      %p98 = scmp.eq.s32.totalorder %s37, 0
      %p99 = por %p97, %p98
      %p100 = scmp.ne.s32.totalorder %s92, %s94
      %p101 = scmp.eq.s32.totalorder %s42, 1
      %p102 = por %p100, %p101
      %p103 = scmp.ne.s32.totalorder %s94, %s95
      %p104 = scmp.eq.s32.totalorder %s42, 0
      %p105 = por %p103, %p104
      %p106 = scmp.ne.s32.totalorder %s94, %s95
      %p107 = scmp.eq.s32.totalorder %s43, 1
      %p108 = por %p106, %p107
      %p110 = scmp.ne.s32.totalorder %s95, %s109
      %p111 = scmp.eq.s32.totalorder %s43, 0
      %p112 = por %p110, %p111
      %s114 = sadd.s32 %s113, 1
      %p117 = scmp.eq.s32.totalorder %s37, 1
      %p118 = scmp.ne.s32.totalorder %s113, %s115
      %p119 = scmp.eq.s32.totalorder %s37, 0
      %p120 = por %p118, %p119
      %p121 = scmp.ne.s32.totalorder %s113, %s115
      %p122 = scmp.eq.s32.totalorder %s42, 1
      %p123 = por %p121, %p122
      %p124 = scmp.ne.s32.totalorder %s115, %s116
      %p125 = scmp.eq.s32.totalorder %s42, 0
      %p126 = por %p124, %p125
      %p127 = scmp.ne.s32.totalorder %s115, %s116
      %p128 = scmp.eq.s32.totalorder %s43, 1
      %p129 = por %p127, %p128
      %p131 = scmp.ne.s32.totalorder %s116, %s130
      %p132 = scmp.eq.s32.totalorder %s43, 0
      %p133 = por %p131, %p132
      %s135 = sadd.s32 %s134, 1
      %p138 = scmp.eq.s32.totalorder %s37, 1
      %p139 = scmp.ne.s32.totalorder %s134, %s136
      %p140 = scmp.eq.s32.totalorder %s37, 0
      %p141 = por %p139, %p140
      %p142 = scmp.ne.s32.totalorder %s134, %s136
      %p143 = scmp.eq.s32.totalorder %s42, 1
      %p144 = por %p142, %p143
      %p145 = scmp.ne.s32.totalorder %s136, %s137
      %p146 = scmp.eq.s32.totalorder %s42, 0
      %p147 = por %p145, %p146
      %p148 = scmp.ne.s32.totalorder %s136, %s137
      %p149 = scmp.eq.s32.totalorder %s43, 1
      %p150 = por %p148, %p149
      %p152 = scmp.ne.s32.totalorder %s137, %s151
      %p153 = scmp.eq.s32.totalorder %s43, 0
      %p154 = por %p152, %p153
      %s156 = sadd.s32 %s155, 1
      %p159 = scmp.eq.s32.totalorder %s37, 1
      %p160 = scmp.ne.s32.totalorder %s155, %s157
      %p161 = scmp.eq.s32.totalorder %s37, 0
      %p162 = por %p160, %p161
      %p163 = scmp.ne.s32.totalorder %s155, %s157
      %p164 = scmp.eq.s32.totalorder %s42, 1
      %p165 = por %p163, %p164
      %p166 = scmp.ne.s32.totalorder %s157, %s158
      %p167 = scmp.eq.s32.totalorder %s42, 0
      %p168 = por %p166, %p167
      %p169 = scmp.ne.s32.totalorder %s157, %s158
      %p170 = scmp.eq.s32.totalorder %s43, 1
      %p171 = por %p169, %p170
      %p173 = scmp.ne.s32.totalorder %s158, %s172
      %p174 = scmp.eq.s32.totalorder %s43, 0
      %p175 = por %p173, %p174
      %s177 = sadd.s32 %s176, 1
      %p180 = scmp.eq.s32.totalorder %s37, 1
      %p181 = scmp.ne.s32.totalorder %s176, %s178
      %p182 = scmp.eq.s32.totalorder %s37, 0
      %p183 = por %p181, %p182
      %p184 = scmp.ne.s32.totalorder %s176, %s178
      %p185 = scmp.eq.s32.totalorder %s42, 1
      %p186 = por %p184, %p185
      %p187 = scmp.ne.s32.totalorder %s178, %s179
      %p188 = scmp.eq.s32.totalorder %s42, 0
      %p189 = por %p187, %p188
      %p190 = scmp.ne.s32.totalorder %s178, %s179
      %p191 = scmp.eq.s32.totalorder %s43, 1
      %p192 = por %p190, %p191
      %p194 = scmp.ne.s32.totalorder %s179, %s193
      %p195 = scmp.eq.s32.totalorder %s43, 0
      %p196 = por %p194, %p195
      %s198 = sadd.s32 %s197, 1
      %p201 = scmp.eq.s32.totalorder %s37, 1
      %p202 = scmp.ne.s32.totalorder %s197, %s199
      %p203 = scmp.eq.s32.totalorder %s37, 0
      %p204 = por %p202, %p203
      %p205 = scmp.ne.s32.totalorder %s197, %s199
      %p206 = scmp.eq.s32.totalorder %s42, 1
      %p207 = por %p205, %p206
      %p208 = scmp.ne.s32.totalorder %s199, %s200
      %p209 = scmp.eq.s32.totalorder %s42, 0
      %p210 = por %p208, %p209
      %p211 = scmp.ne.s32.totalorder %s199, %s200
      %p212 = scmp.eq.s32.totalorder %s43, 1
      %p213 = por %p211, %p212
      %p215 = scmp.ne.s32.totalorder %s200, %s214
      %p216 = scmp.eq.s32.totalorder %s43, 0
      %p217 = por %p215, %p216
      %s219 = sadd.s32 %s218, 1
      %p222 = scmp.eq.s32.totalorder %s37, 1
      %p223 = scmp.ne.s32.totalorder %s218, %s220
      %p224 = scmp.eq.s32.totalorder %s37, 0
      %p225 = por %p223, %p224
      %p226 = scmp.ne.s32.totalorder %s218, %s220
      %p227 = scmp.eq.s32.totalorder %s42, 1
      %p228 = por %p226, %p227
      %p229 = scmp.ne.s32.totalorder %s220, %s221
      %p230 = scmp.eq.s32.totalorder %s42, 0
      %p231 = por %p229, %p230
      %p232 = scmp.ne.s32.totalorder %s220, %s221
      %p233 = scmp.eq.s32.totalorder %s43, 1
      %p234 = por %p232, %p233
      %p236 = scmp.ne.s32.totalorder %s221, %s235
      %p237 = scmp.eq.s32.totalorder %s43, 0
      %p238 = por %p236, %p237
      %s240 = sadd.s32 %s239, 1
      %p243 = scmp.eq.s32.totalorder %s37, 1
      %p244 = scmp.ne.s32.totalorder %s239, %s241
      %p245 = scmp.eq.s32.totalorder %s37, 0
      %p246 = por %p244, %p245
      %p247 = scmp.ne.s32.totalorder %s239, %s241
      %p248 = scmp.eq.s32.totalorder %s42, 1
      %p249 = por %p247, %p248
      %p250 = scmp.ne.s32.totalorder %s241, %s242
      %p251 = scmp.eq.s32.totalorder %s42, 0
      %p252 = por %p250, %p251
      %p253 = scmp.ne.s32.totalorder %s241, %s242
      %p254 = scmp.eq.s32.totalorder %s43, 1
      %p255 = por %p253, %p254
      %p257 = scmp.ne.s32.totalorder %s242, %s256
      %p258 = scmp.eq.s32.totalorder %s43, 0
      %p259 = por %p257, %p258
      %s261 = sadd.s32 %s260, 1
      %p264 = scmp.eq.s32.totalorder %s37, 1
      %p265 = scmp.ne.s32.totalorder %s260, %s262
      %p266 = scmp.eq.s32.totalorder %s37, 0
      %p267 = por %p265, %p266
      %p268 = scmp.ne.s32.totalorder %s260, %s262
      %p269 = scmp.eq.s32.totalorder %s42, 1
      %p270 = por %p268, %p269
      %p271 = scmp.ne.s32.totalorder %s262, %s263
      %p272 = scmp.eq.s32.totalorder %s42, 0
      %p273 = por %p271, %p272
      %p274 = scmp.ne.s32.totalorder %s262, %s263
      %p275 = scmp.eq.s32.totalorder %s43, 1
      %p276 = por %p274, %p275
      %p278 = scmp.ne.s32.totalorder %s263, %s277
      %p279 = scmp.eq.s32.totalorder %s43, 0
      %p280 = por %p278, %p279
      %s282 = sadd.s32 %s281, 1
      %p285 = scmp.eq.s32.totalorder %s37, 1
      %p286 = scmp.ne.s32.totalorder %s281, %s283
      %p287 = scmp.eq.s32.totalorder %s37, 0
      %p288 = por %p286, %p287
      %p289 = scmp.ne.s32.totalorder %s281, %s283
      %p290 = scmp.eq.s32.totalorder %s42, 1
      %p291 = por %p289, %p290
      %p292 = scmp.ne.s32.totalorder %s283, %s284
      %p293 = scmp.eq.s32.totalorder %s42, 0
      %p294 = por %p292, %p293
      %p295 = scmp.ne.s32.totalorder %s283, %s284
      %p296 = scmp.eq.s32.totalorder %s43, 1
      %p297 = por %p295, %p296
      %p299 = scmp.ne.s32.totalorder %s284, %s298
      %p300 = scmp.eq.s32.totalorder %s43, 0
      %p301 = por %p299, %p300
      %s303 = sadd.s32 %s302, 1
      %p306 = scmp.eq.s32.totalorder %s37, 1
      %p307 = scmp.ne.s32.totalorder %s302, %s304
      %p308 = scmp.eq.s32.totalorder %s37, 0
      %p309 = por %p307, %p308
      %p310 = scmp.ne.s32.totalorder %s302, %s304
      %p311 = scmp.eq.s32.totalorder %s42, 1
      %p312 = por %p310, %p311
      %p313 = scmp.ne.s32.totalorder %s304, %s305
      %p314 = scmp.eq.s32.totalorder %s42, 0
      %p315 = por %p313, %p314
      %p316 = scmp.ne.s32.totalorder %s304, %s305
      %p317 = scmp.eq.s32.totalorder %s43, 1
      %p318 = por %p316, %p317
      %p320 = scmp.ne.s32.totalorder %s305, %s319
      %p321 = scmp.eq.s32.totalorder %s43, 0
      %p322 = por %p320, %p321
      %s324 = sadd.s32 %s323, 1
      %p327 = scmp.eq.s32.totalorder %s37, 1
      %p328 = scmp.ne.s32.totalorder %s323, %s325
      %p329 = scmp.eq.s32.totalorder %s37, 0
      %p330 = por %p328, %p329
      %p331 = scmp.ne.s32.totalorder %s323, %s325
      %p332 = scmp.eq.s32.totalorder %s42, 1
      %p333 = por %p331, %p332
      %p334 = scmp.ne.s32.totalorder %s325, %s326
      %p335 = scmp.eq.s32.totalorder %s42, 0
      %p336 = por %p334, %p335
      %p337 = scmp.ne.s32.totalorder %s325, %s326
      %p338 = scmp.eq.s32.totalorder %s43, 1
      %p339 = por %p337, %p338
      %p341 = scmp.ne.s32.totalorder %s326, %s340
      %p342 = scmp.eq.s32.totalorder %s43, 0
      %p343 = por %p341, %p342
      %s345 = sadd.s32 %s344, 1
      %p348 = scmp.eq.s32.totalorder %s37, 1
      %p349 = scmp.ne.s32.totalorder %s344, %s346
      %p350 = scmp.eq.s32.totalorder %s37, 0
      %p351 = por %p349, %p350
      %p352 = scmp.ne.s32.totalorder %s344, %s346
      %p353 = scmp.eq.s32.totalorder %s42, 1
      %p354 = por %p352, %p353
      %p355 = scmp.ne.s32.totalorder %s346, %s347
      %p356 = scmp.eq.s32.totalorder %s42, 0
      %p357 = por %p355, %p356
      %p358 = scmp.ne.s32.totalorder %s346, %s347
      %p359 = scmp.eq.s32.totalorder %s43, 1
      %p360 = por %p358, %p359
      %p362 = scmp.ne.s32.totalorder %s347, %s361
      %p363 = scmp.eq.s32.totalorder %s43, 0
      %p364 = por %p362, %p363
      %s366 = sadd.s32 %s365, 1
      %p369 = scmp.eq.s32.totalorder %s37, 1
      %p370 = scmp.ne.s32.totalorder %s365, %s367
      %p371 = scmp.eq.s32.totalorder %s37, 0
      %p372 = por %p370, %p371
      %p373 = scmp.ne.s32.totalorder %s365, %s367
      %p374 = scmp.eq.s32.totalorder %s42, 1
      %p375 = por %p373, %p374
      %p376 = scmp.ne.s32.totalorder %s367, %s368
      %p377 = scmp.eq.s32.totalorder %s42, 0
      %p378 = por %p376, %p377
      %p379 = scmp.ne.s32.totalorder %s367, %s368
      %p380 = scmp.eq.s32.totalorder %s43, 1
      %p381 = por %p379, %p380
      %p383 = scmp.ne.s32.totalorder %s368, %s382
      %p384 = scmp.eq.s32.totalorder %s43, 0
      %p385 = por %p383, %p384
      %s387 = sadd.s32 %s386, 1
      %p390 = scmp.eq.s32.totalorder %s37, 1
      %p391 = scmp.ne.s32.totalorder %s386, %s388
      %p392 = scmp.eq.s32.totalorder %s37, 0
      %p393 = por %p391, %p392
      %p394 = scmp.ne.s32.totalorder %s386, %s388
      %p395 = scmp.eq.s32.totalorder %s42, 1
      %p396 = por %p394, %p395
      %p397 = scmp.ne.s32.totalorder %s388, %s389
      %p398 = scmp.eq.s32.totalorder %s42, 0
      %p399 = por %p397, %p398
      %p400 = scmp.ne.s32.totalorder %s388, %s389
      %p401 = scmp.eq.s32.totalorder %s43, 1
      %p402 = por %p400, %p401
      %p404 = scmp.ne.s32.totalorder %s389, %s403
      %p405 = scmp.eq.s32.totalorder %s43, 0
      %p406 = por %p404, %p405
      %s408 = sadd.s32 %s407, 1
      %p411 = scmp.eq.s32.totalorder %s37, 1
      %p412 = scmp.ne.s32.totalorder %s407, %s409
      %p413 = scmp.eq.s32.totalorder %s37, 0
      %p414 = por %p412, %p413
      %p415 = scmp.ne.s32.totalorder %s407, %s409
      %p416 = scmp.eq.s32.totalorder %s42, 1
      %p417 = por %p415, %p416
      %p418 = scmp.ne.s32.totalorder %s409, %s410
      %p419 = scmp.eq.s32.totalorder %s42, 0
      %p420 = por %p418, %p419
      %p421 = scmp.ne.s32.totalorder %s409, %s410
      %p422 = scmp.eq.s32.totalorder %s43, 1
      %p423 = por %p421, %p422
      %p425 = scmp.ne.s32.totalorder %s410, %s424
      %p426 = scmp.eq.s32.totalorder %s43, 0
      %p427 = por %p425, %p426
      %s429 = sadd.s32 %s428, 1
      %p432 = scmp.eq.s32.totalorder %s37, 1
      %p433 = scmp.ne.s32.totalorder %s428, %s430
      %p434 = scmp.eq.s32.totalorder %s37, 0
      %p435 = por %p433, %p434
      %p436 = scmp.ne.s32.totalorder %s428, %s430
      %p437 = scmp.eq.s32.totalorder %s42, 1
      %p438 = por %p436, %p437
      %p439 = scmp.ne.s32.totalorder %s430, %s431
      %p440 = scmp.eq.s32.totalorder %s42, 0
      %p441 = por %p439, %p440
      %p442 = scmp.ne.s32.totalorder %s430, %s431
      %p443 = scmp.eq.s32.totalorder %s43, 1
      %p444 = por %p442, %p443
      %p446 = scmp.ne.s32.totalorder %s431, %s445
      %p447 = scmp.eq.s32.totalorder %s43, 0
      %p448 = por %p446, %p447
      %s450 = sadd.s32 %s449, 1
      %p453 = scmp.eq.s32.totalorder %s37, 1
      %p454 = scmp.ne.s32.totalorder %s449, %s451
      %p455 = scmp.eq.s32.totalorder %s37, 0
      %p456 = por %p454, %p455
      %p457 = scmp.ne.s32.totalorder %s449, %s451
      %p458 = scmp.eq.s32.totalorder %s42, 1
      %p459 = por %p457, %p458
      %p460 = scmp.ne.s32.totalorder %s451, %s452
      %p461 = scmp.eq.s32.totalorder %s42, 0
      %p462 = por %p460, %p461
      %p463 = scmp.ne.s32.totalorder %s451, %s452
      %p464 = scmp.eq.s32.totalorder %s43, 1
      %p465 = por %p463, %p464
      %p467 = scmp.ne.s32.totalorder %s452, %s466
      %p468 = scmp.eq.s32.totalorder %s43, 0
      %p469 = por %p467, %p468
      %s471 = sadd.s32 %s470, 1
      %p474 = scmp.eq.s32.totalorder %s37, 1
      %p475 = scmp.ne.s32.totalorder %s470, %s472
      %p476 = scmp.eq.s32.totalorder %s37, 0
      %p477 = por %p475, %p476
      %p478 = scmp.ne.s32.totalorder %s470, %s472
      %p479 = scmp.eq.s32.totalorder %s42, 1
      %p480 = por %p478, %p479
      %p481 = scmp.ne.s32.totalorder %s472, %s473
      %p482 = scmp.eq.s32.totalorder %s42, 0
      %p483 = por %p481, %p482
      %p484 = scmp.ne.s32.totalorder %s472, %s473
      %p485 = scmp.eq.s32.totalorder %s43, 1
      %p486 = por %p484, %p485
      %p488 = scmp.ne.s32.totalorder %s473, %s487
      %p489 = scmp.eq.s32.totalorder %s43, 0
      %p490 = por %p488, %p489
      %s492 = sadd.s32 %s491, 1
      %p495 = scmp.eq.s32.totalorder %s37, 1
      %p496 = scmp.ne.s32.totalorder %s491, %s493
      %p497 = scmp.eq.s32.totalorder %s37, 0
      %p498 = por %p496, %p497
      %p499 = scmp.ne.s32.totalorder %s491, %s493
      %p500 = scmp.eq.s32.totalorder %s42, 1
      %p501 = por %p499, %p500
      %p502 = scmp.ne.s32.totalorder %s493, %s494
      %p503 = scmp.eq.s32.totalorder %s42, 0
      %p504 = por %p502, %p503
      %p505 = scmp.ne.s32.totalorder %s493, %s494
      %p506 = scmp.eq.s32.totalorder %s43, 1
      %p507 = por %p505, %p506
      %p509 = scmp.ne.s32.totalorder %s494, %s508
      %p510 = scmp.eq.s32.totalorder %s43, 0
      %p511 = por %p509, %p510
      %s512 = ssub.s32 %s37, %s44
      %p513 = scmp.eq.s32.totalorder %s512, 0
      %s515 = sadd.s32 %s514, 1
      %s516 = scalar_select %p513, %s514, %s515
      %p519 = pneg %p513
      %p520 = scmp.eq.s32.totalorder %s37, 1
      %p521 = por %p519, %p520
      %p522 = scmp.ne.s32.totalorder %s514, %s517
      %p523 = scmp.eq.s32.totalorder %s37, 0
      %p524 = por %p522, %p523
      %p525 = scmp.ne.s32.totalorder %s514, %s517
      %p526 = scmp.eq.s32.totalorder %s42, 1
      %p527 = por %p525, %p526
      %p528 = scmp.ne.s32.totalorder %s517, %s518
      %p529 = scmp.eq.s32.totalorder %s42, 0
      %p530 = por %p528, %p529
      %p531 = scmp.ne.s32.totalorder %s517, %s518
      %p532 = scmp.eq.s32.totalorder %s43, 1
      %p533 = por %p531, %p532
      %p535 = scmp.ne.s32.totalorder %s518, %s534
      %p536 = scmp.eq.s32.totalorder %s43, 0
      %p537 = por %p535, %p536
      %p538 = scmp.le.s32.totalorder 1, %s37
      %p539 = scmp.lt.s32.totalorder %s37, 3
      %p540 = pnand %p538, %p539
      %p541 = pneg %p540
      // Predicated region
      $region9: #{tpu_custom_call.1} parent=5 // pred_check
        _
      $region10: #{tpu_custom_call.1} parent=5 // pred_check_branch
        %543 = sbr.rel (%p540) target = $region12
      $region11: #{tpu_custom_call.1} parent=5 // pred_region
        %s544 = ssub.s32 %s37, 1
        // Predicated region
        $region13: #{tpu_custom_call.1} parent=11 // pred_check
          %p545 = pneg %p84
        $region14: #{tpu_custom_call.1} parent=11 // pred_check_branch
          %547 = sbr.rel (%p545) target = $region16
        $region15: #{tpu_custom_call.1} parent=11 // pred_region
          _
        $region16: #{tpu_custom_call.1} parent=11 // pred_fallthru
          _
        // Predicated region
        $region17: #{tpu_custom_call.1} parent=11 // pred_check
          %p548 = pneg %p105
        $region18: #{tpu_custom_call.1} parent=11 // pred_check_branch
          %550 = sbr.rel (%p548) target = $region20
        $region19: #{tpu_custom_call.1} parent=11 // pred_region
          _
        $region20: #{tpu_custom_call.1} parent=11 // pred_fallthru
          _
        // Predicated region
        $region21: #{tpu_custom_call.1} parent=11 // pred_check
          %p551 = pneg %p126
        $region22: #{tpu_custom_call.1} parent=11 // pred_check_branch
          %553 = sbr.rel (%p551) target = $region24
        $region23: #{tpu_custom_call.1} parent=11 // pred_region
          %s555 = ssub.s32 64, 64
          %556 = vsyncadd [#allocation3], %s555
          %s558 = sshll.u32 [#allocation2], 4
          %s559 = int_to_ptr.vmem [resolvable:$true] %s558
          %561 = dma.hbm_to_vmem [thread:$0]  %s3, 64, %s559, [#allocation3]
        $region24: #{tpu_custom_call.1} parent=11 // pred_fallthru
          _
        // Predicated region
        $region25: #{tpu_custom_call.1} parent=11 // pred_check
          %p562 = pneg %p147
        $region26: #{tpu_custom_call.1} parent=11 // pred_check_branch
          %564 = sbr.rel (%p562) target = $region28
        $region27: #{tpu_custom_call.1} parent=11 // pred_region
          %s566 = ssub.s32 768, 768
          %567 = vsyncadd [#allocation6], %s566
          %s568 = sshll.u32 [#allocation5], 4
          %s569 = int_to_ptr.vmem [resolvable:$true] %s568
          %574 = dma.hbm_to_vmem [thread:$0]  %s4, 768, %s569, [#allocation6], 64, 64, 4
        $region28: #{tpu_custom_call.1} parent=11 // pred_fallthru
          _
        // Predicated region
        $region29: #{tpu_custom_call.1} parent=11 // pred_check
          %p575 = pneg %p168
        $region30: #{tpu_custom_call.1} parent=11 // pred_check_branch
          %577 = sbr.rel (%p575) target = $region32
        $region31: #{tpu_custom_call.1} parent=11 // pred_region
          %s579 = ssub.s32 16, 16
          %580 = vsyncadd [#allocation6], %s579
          %s582 = sshll.u32 [#allocation7], 4
          %s583 = int_to_ptr.vmem [resolvable:$true] %s582
          %585 = dma.hbm_to_vmem [thread:$0]  %s5, 16, %s583, [#allocation6]
        $region32: #{tpu_custom_call.1} parent=11 // pred_fallthru
          _
        // Predicated region
        $region33: #{tpu_custom_call.1} parent=11 // pred_check
          %p586 = pneg %p189
        $region34: #{tpu_custom_call.1} parent=11 // pred_check_branch
          %588 = sbr.rel (%p586) target = $region36
        $region35: #{tpu_custom_call.1} parent=11 // pred_region
          %s590 = ssub.s32 1536, 1536
          %591 = vsyncadd [#allocation9], %s590
          %s592 = sshll.u32 [#allocation8], 4
          %s593 = int_to_ptr.vmem [resolvable:$true] %s592
          %598 = dma.hbm_to_vmem [thread:$0]  %s6, 1536, %s593, [#allocation9], 64, 64, 4
        $region36: #{tpu_custom_call.1} parent=11 // pred_fallthru
          _
        // Predicated region
        $region37: #{tpu_custom_call.1} parent=11 // pred_check
          %p599 = pneg %p210
        $region38: #{tpu_custom_call.1} parent=11 // pred_check_branch
          %601 = sbr.rel (%p599) target = $region40
        $region39: #{tpu_custom_call.1} parent=11 // pred_region
          %s603 = ssub.s32 16, 16
          %604 = vsyncadd [#allocation9], %s603
          %s606 = sshll.u32 [#allocation10], 4
          %s607 = int_to_ptr.vmem [resolvable:$true] %s606
          %609 = dma.hbm_to_vmem [thread:$0]  %s7, 16, %s607, [#allocation9]
        $region40: #{tpu_custom_call.1} parent=11 // pred_fallthru
          _
        // Predicated region
        $region41: #{tpu_custom_call.1} parent=11 // pred_check
          %p610 = pneg %p231
        $region42: #{tpu_custom_call.1} parent=11 // pred_check_branch
          %612 = sbr.rel (%p610) target = $region44
        $region43: #{tpu_custom_call.1} parent=11 // pred_region
          _
        $region44: #{tpu_custom_call.1} parent=11 // pred_fallthru
          _
        // Predicated region
        $region45: #{tpu_custom_call.1} parent=11 // pred_check
          %p613 = pneg %p252
        $region46: #{tpu_custom_call.1} parent=11 // pred_check_branch
          %615 = sbr.rel (%p613) target = $region48
        $region47: #{tpu_custom_call.1} parent=11 // pred_region
          %s617 = ssub.s32 32, 32
          %618 = vsyncadd [#allocation12], %s617
          %s620 = sshll.u32 [#allocation11], 4
          %s621 = int_to_ptr.vmem [resolvable:$true] %s620
          %623 = dma.hbm_to_vmem [thread:$0]  %s9, 32, %s621, [#allocation12]
        $region48: #{tpu_custom_call.1} parent=11 // pred_fallthru
          _
        // Predicated region
        $region49: #{tpu_custom_call.1} parent=11 // pred_check
          %p624 = pneg %p273
        $region50: #{tpu_custom_call.1} parent=11 // pred_check_branch
          %626 = sbr.rel (%p624) target = $region52
        $region51: #{tpu_custom_call.1} parent=11 // pred_region
          %s628 = ssub.s32 12288, 12288
          %629 = vsyncadd [#allocation12], %s628
          %s630 = sshll.u32 [#allocation13], 4
          %s631 = int_to_ptr.vmem [resolvable:$true] %s630
          %636 = dma.hbm_to_vmem [thread:$0]  %s10, 12288, %s631, [#allocation12], 128, 128, 8
        $region52: #{tpu_custom_call.1} parent=11 // pred_fallthru
          _
        // Predicated region
        $region53: #{tpu_custom_call.1} parent=11 // pred_check
          %p637 = pneg %p294
        $region54: #{tpu_custom_call.1} parent=11 // pred_check_branch
          %639 = sbr.rel (%p637) target = $region56
        $region55: #{tpu_custom_call.1} parent=11 // pred_region
          _
        $region56: #{tpu_custom_call.1} parent=11 // pred_fallthru
          _
        // Predicated region
        $region57: #{tpu_custom_call.1} parent=11 // pred_check
          %p640 = pneg %p315
        $region58: #{tpu_custom_call.1} parent=11 // pred_check_branch
          %642 = sbr.rel (%p640) target = $region60
        $region59: #{tpu_custom_call.1} parent=11 // pred_region
          %s644 = ssub.s32 12288, 12288
          %645 = vsyncadd [#allocation15], %s644
          %s646 = sshll.u32 [#allocation14], 4
          %s647 = int_to_ptr.vmem [resolvable:$true] %s646
          %652 = dma.hbm_to_vmem [thread:$0]  %s12, 12288, %s647, [#allocation15], 128, 128, 8
        $region60: #{tpu_custom_call.1} parent=11 // pred_fallthru
          _
        // Predicated region
        $region61: #{tpu_custom_call.1} parent=11 // pred_check
          %p653 = pneg %p336
        $region62: #{tpu_custom_call.1} parent=11 // pred_check_branch
          %655 = sbr.rel (%p653) target = $region64
        $region63: #{tpu_custom_call.1} parent=11 // pred_region
          _
        $region64: #{tpu_custom_call.1} parent=11 // pred_fallthru
          _
        // Predicated region
        $region65: #{tpu_custom_call.1} parent=11 // pred_check
          %p656 = pneg %p357
        $region66: #{tpu_custom_call.1} parent=11 // pred_check_branch
          %658 = sbr.rel (%p656) target = $region68
        $region67: #{tpu_custom_call.1} parent=11 // pred_region
          %s660 = ssub.s32 12288, 12288
          %661 = vsyncadd [#allocation15], %s660
          %s662 = sshll.u32 [#allocation16], 4
          %s663 = int_to_ptr.vmem [resolvable:$true] %s662
          %668 = dma.hbm_to_vmem [thread:$0]  %s14, 12288, %s663, [#allocation15], 128, 128, 8
        $region68: #{tpu_custom_call.1} parent=11 // pred_fallthru
          _
        // Predicated region
        $region69: #{tpu_custom_call.1} parent=11 // pred_check
          %p669 = pneg %p378
        $region70: #{tpu_custom_call.1} parent=11 // pred_check_branch
          %671 = sbr.rel (%p669) target = $region72
        $region71: #{tpu_custom_call.1} parent=11 // pred_region
          _
        $region72: #{tpu_custom_call.1} parent=11 // pred_fallthru
          _
        // Predicated region
        $region73: #{tpu_custom_call.1} parent=11 // pred_check
          %p672 = pneg %p399
        $region74: #{tpu_custom_call.1} parent=11 // pred_check_branch
          %674 = sbr.rel (%p672) target = $region76
        $region75: #{tpu_custom_call.1} parent=11 // pred_region
          %s676 = ssub.s32 12288, 12288
          %677 = vsyncadd [#allocation18], %s676
          %s678 = sshll.u32 [#allocation17], 4
          %s679 = int_to_ptr.vmem [resolvable:$true] %s678
          %684 = dma.hbm_to_vmem [thread:$0]  %s16, 12288, %s679, [#allocation18], 128, 128, 8
        $region76: #{tpu_custom_call.1} parent=11 // pred_fallthru
          _
        // Predicated region
        $region77: #{tpu_custom_call.1} parent=11 // pred_check
          %p685 = pneg %p420
        $region78: #{tpu_custom_call.1} parent=11 // pred_check_branch
          %687 = sbr.rel (%p685) target = $region80
        $region79: #{tpu_custom_call.1} parent=11 // pred_region
          _
        $region80: #{tpu_custom_call.1} parent=11 // pred_fallthru
          _
        // Predicated region
        $region81: #{tpu_custom_call.1} parent=11 // pred_check
          %p688 = pneg %p441
        $region82: #{tpu_custom_call.1} parent=11 // pred_check_branch
          %690 = sbr.rel (%p688) target = $region84
        $region83: #{tpu_custom_call.1} parent=11 // pred_region
          %s692 = ssub.s32 2048, 2048
          %693 = vsyncadd [#allocation18], %s692
          %s694 = sshll.u32 [#allocation19], 4
          %s695 = int_to_ptr.vmem [resolvable:$true] %s694
          %700 = dma.hbm_to_vmem [thread:$0]  %s18, 2048, %s695, [#allocation18], 64, 64, 4
        $region84: #{tpu_custom_call.1} parent=11 // pred_fallthru
          _
        // Predicated region
        $region85: #{tpu_custom_call.1} parent=11 // pred_check
          %p701 = pneg %p462
        $region86: #{tpu_custom_call.1} parent=11 // pred_check_branch
          %703 = sbr.rel (%p701) target = $region88
        $region87: #{tpu_custom_call.1} parent=11 // pred_region
          _
        $region88: #{tpu_custom_call.1} parent=11 // pred_fallthru
          _
        // Predicated region
        $region89: #{tpu_custom_call.1} parent=11 // pred_check
          %p704 = pneg %p483
        $region90: #{tpu_custom_call.1} parent=11 // pred_check_branch
          %706 = sbr.rel (%p704) target = $region92
        $region91: #{tpu_custom_call.1} parent=11 // pred_region
          _
        $region92: #{tpu_custom_call.1} parent=11 // pred_fallthru
          _
        // Predicated region
        $region93: #{tpu_custom_call.1} parent=11 // pred_check
          %p707 = pneg %p504
        $region94: #{tpu_custom_call.1} parent=11 // pred_check_branch
          %709 = sbr.rel (%p707) target = $region96
        $region95: #{tpu_custom_call.1} parent=11 // pred_region
          _
        $region96: #{tpu_custom_call.1} parent=11 // pred_fallthru
          _
      $region12: #{tpu_custom_call.1} parent=5 // pred_fallthru
        _
      %p710 = scmp.lt.s32.totalorder %s37, 2
      // Predicated region
      $region97: #{tpu_custom_call.1} parent=5 // pred_check
        %p711 = pneg %p710
      $region98: #{tpu_custom_call.1} parent=5 // pred_check_branch
        %713 = sbr.rel (%p711) target = $region100
      $region99: #{tpu_custom_call.1} parent=5 // pred_region
        // Predicated region
        $region101: #{tpu_custom_call.1} parent=99 // pred_check
          %p714 = pneg %p57
        $region102: #{tpu_custom_call.1} parent=99 // pred_check_branch
          %716 = sbr.rel (%p714) target = $region104
        $region103: #{tpu_custom_call.1} parent=99 // pred_region
          %s717 = smul.u32 16, %s37
          %p718 = scmp.lt.s32.totalorder %s717, 31
          %s719 = scalar_select %p718, %s717, 31
          %s720 = smul.addr %s719, 4
          %s721 = scalar_lea.vmem %s0, %s720
          %s722 = smul.u32 16, %s37
        $region104: #{tpu_custom_call.1} parent=99 // pred_fallthru
          _
      $region100: #{tpu_custom_call.1} parent=5 // pred_fallthru
        _
      %p723 = scmp.le.s32.totalorder 1, %s37
      %p724 = scmp.lt.s32.totalorder %s37, 3
      %p725 = pnand %p723, %p724
      %p726 = pneg %p725
      // Predicated region
      $region105: #{tpu_custom_call.1} parent=5 // pred_check
        _
      $region106: #{tpu_custom_call.1} parent=5 // pred_check_branch
        %728 = sbr.rel (%p725) target = $region108
      $region107: #{tpu_custom_call.1} parent=5 // pred_region
        %s729 = ssub.s32 %s37, 1
        // Predicated region
        $region109: #{tpu_custom_call.1} parent=107 // pred_check
          %p730 = pneg %p126
        $region110: #{tpu_custom_call.1} parent=107 // pred_check_branch
          %732 = sbr.rel (%p730) target = $region112
        $region111: #{tpu_custom_call.1} parent=107 // pred_region
          %733 = dma.done [#allocation3], 64
        $region112: #{tpu_custom_call.1} parent=107 // pred_fallthru
          _
        // Predicated region
        $region113: #{tpu_custom_call.1} parent=107 // pred_check
          %p734 = pneg %p147
        $region114: #{tpu_custom_call.1} parent=107 // pred_check_branch
          %736 = sbr.rel (%p734) target = $region116
        $region115: #{tpu_custom_call.1} parent=107 // pred_region
          %737 = dma.done [#allocation6], 768
        $region116: #{tpu_custom_call.1} parent=107 // pred_fallthru
          _
        // Predicated region
        $region117: #{tpu_custom_call.1} parent=107 // pred_check
          %p738 = pneg %p168
        $region118: #{tpu_custom_call.1} parent=107 // pred_check_branch
          %740 = sbr.rel (%p738) target = $region120
        $region119: #{tpu_custom_call.1} parent=107 // pred_region
          %741 = dma.done [#allocation6], 16
        $region120: #{tpu_custom_call.1} parent=107 // pred_fallthru
          _
        // Predicated region
        $region121: #{tpu_custom_call.1} parent=107 // pred_check
          %p742 = pneg %p189
        $region122: #{tpu_custom_call.1} parent=107 // pred_check_branch
          %744 = sbr.rel (%p742) target = $region124
        $region123: #{tpu_custom_call.1} parent=107 // pred_region
          %745 = dma.done [#allocation9], 1536
        $region124: #{tpu_custom_call.1} parent=107 // pred_fallthru
          _
        // Predicated region
        $region125: #{tpu_custom_call.1} parent=107 // pred_check
          %p746 = pneg %p210
        $region126: #{tpu_custom_call.1} parent=107 // pred_check_branch
          %748 = sbr.rel (%p746) target = $region128
        $region127: #{tpu_custom_call.1} parent=107 // pred_region
          %749 = dma.done [#allocation9], 16
        $region128: #{tpu_custom_call.1} parent=107 // pred_fallthru
          _
        // Predicated region
        $region129: #{tpu_custom_call.1} parent=107 // pred_check
          %p750 = pneg %p252
        $region130: #{tpu_custom_call.1} parent=107 // pred_check_branch
          %752 = sbr.rel (%p750) target = $region132
        $region131: #{tpu_custom_call.1} parent=107 // pred_region
          %753 = dma.done [#allocation12], 32
        $region132: #{tpu_custom_call.1} parent=107 // pred_fallthru
          _
        // Predicated region
        $region133: #{tpu_custom_call.1} parent=107 // pred_check
          %p754 = pneg %p273
        $region134: #{tpu_custom_call.1} parent=107 // pred_check_branch
          %756 = sbr.rel (%p754) target = $region136
        $region135: #{tpu_custom_call.1} parent=107 // pred_region
          %757 = dma.done [#allocation12], 12288
        $region136: #{tpu_custom_call.1} parent=107 // pred_fallthru
          _
        // Predicated region
        $region137: #{tpu_custom_call.1} parent=107 // pred_check
          %p758 = pneg %p315
        $region138: #{tpu_custom_call.1} parent=107 // pred_check_branch
          %760 = sbr.rel (%p758) target = $region140
        $region139: #{tpu_custom_call.1} parent=107 // pred_region
          %761 = dma.done [#allocation15], 12288
        $region140: #{tpu_custom_call.1} parent=107 // pred_fallthru
          _
        // Predicated region
        $region141: #{tpu_custom_call.1} parent=107 // pred_check
          %p762 = pneg %p357
        $region142: #{tpu_custom_call.1} parent=107 // pred_check_branch
          %764 = sbr.rel (%p762) target = $region144
        $region143: #{tpu_custom_call.1} parent=107 // pred_region
          %765 = dma.done [#allocation15], 12288
        $region144: #{tpu_custom_call.1} parent=107 // pred_fallthru
          _
        // Predicated region
        $region145: #{tpu_custom_call.1} parent=107 // pred_check
          %p766 = pneg %p399
        $region146: #{tpu_custom_call.1} parent=107 // pred_check_branch
          %768 = sbr.rel (%p766) target = $region148
        $region147: #{tpu_custom_call.1} parent=107 // pred_region
          %769 = dma.done [#allocation18], 12288
        $region148: #{tpu_custom_call.1} parent=107 // pred_fallthru
          _
        // Predicated region
        $region149: #{tpu_custom_call.1} parent=107 // pred_check
          %p770 = pneg %p441
        $region150: #{tpu_custom_call.1} parent=107 // pred_check_branch
          %772 = sbr.rel (%p770) target = $region152
        $region151: #{tpu_custom_call.1} parent=107 // pred_region
          %773 = dma.done [#allocation18], 2048
        $region152: #{tpu_custom_call.1} parent=107 // pred_fallthru
          _
        %s774 = smul.u32 16, %s42
        %p775 = scmp.lt.s32.totalorder %s774, 31
        %s776 = scalar_select %p775, %s774, 31
        %s777 = smul.addr %s776, 4
        %s778 = scalar_lea.vmem %s0, %s777
        %p779 = pneg %p63
        %p780 = pneg %p60
        %p781 = pneg %p84
        %p782 = pneg %p81
        %p783 = pneg %p105
        %p784 = pneg %p102
        %p785 = pneg %p126
        %p786 = pneg %p123
        %p787 = pneg %p147
        %p788 = pneg %p144
        %p789 = pneg %p168
        %p790 = pneg %p165
        %p791 = pneg %p189
        %p792 = pneg %p186
        %p793 = pneg %p210
        %p794 = pneg %p207
        %p795 = pneg %p231
        %p796 = pneg %p228
        %p797 = pneg %p252
        %p798 = pneg %p249
        %p799 = pneg %p273
        %p800 = pneg %p270
        %p801 = pneg %p294
        %p802 = pneg %p291
        %p803 = pneg %p315
        %p804 = pneg %p312
        %p805 = pneg %p336
        %p806 = pneg %p333
        %p807 = pneg %p357
        %p808 = pneg %p354
        %p809 = pneg %p378
        %p810 = pneg %p375
        %p811 = pneg %p399
        %p812 = pneg %p396
        %p813 = pneg %p420
        %p814 = pneg %p417
        %p815 = pneg %p441
        %p816 = pneg %p438
        %p817 = pneg %p462
        %p818 = pneg %p459
        %p819 = pneg %p483
        %p820 = pneg %p480
        %p821 = pneg %p504
        %p822 = pneg %p501
        %p823 = pneg %p530
        %p824 = pneg %p527
        %s825 = sand.u32 %s517, 1
        %s826 = scalar_lea.sflag [#allocation4], %s825
        %s827 = sand.u32 %s517, 1
        %s828 = smul.addr %s827, 8
        %s829 = scalar_lea.vmem [#allocation20], %s828
        %s830 = smul.u32 16, %s42
        %p831 = scmp.lt.s32.totalorder %s830, 31
        %s832 = scalar_select %p831, %s830, 31
        %s833 = smul.addr %s832, 4
        %s834 = scalar_lea.vmem %s0, %s833
        %s835 = smul.u32 16, %s42
        %v837 = vld [vmem:[%s834] sm:$0xf]
        %v838 = vld [vmem:[%s834 + $0x4] sm:$0xf]
        %v839 = vld [vmem:[%s834 + $0x8] sm:$0xf]
        %v840 = vld [vmem:[%s834 + $0xc] sm:$0xf]
        %v841 = vld [vmem:[%s834 + $0x10] sm:$0xf]
        %v842 = vld [vmem:[%s834 + $0x14] sm:$0xf]
        %v843 = vld [vmem:[%s834 + $0x18] sm:$0xf]
        %v844 = vld [vmem:[%s834 + $0x1c] sm:$0xf]
        %v845 = vld [vmem:[%s834 + $0x20] sm:$0xf]
        %v846 = vld [vmem:[%s834 + $0x24] sm:$0xf]
        %v847 = vld [vmem:[%s834 + $0x28] sm:$0xf]
        %v848 = vld [vmem:[%s834 + $0x2c] sm:$0xf]
        %v849 = vld [vmem:[%s834 + $0x30] sm:$0xf]
        %v850 = vld [vmem:[%s834 + $0x34] sm:$0xf]
        %v851 = vld [vmem:[%s834 + $0x38] sm:$0xf]
        %v852 = vld [vmem:[%s834 + $0x3c] sm:$0xf]
        %v853 = vld [vmem:[%s1] sm:$0xff]
        %v854 = vld [vmem:[%s1 + $0x8] sm:$0xff]
        %v855 = vld [vmem:[%s1 + $0x10] sm:$0xff]
        %v856 = vld [vmem:[%s1 + $0x18] sm:$0xff]
        %v857 = vld [vmem:[%s1 + $0x20] sm:$0xff]
        %v858 = vld [vmem:[%s1 + $0x28] sm:$0xff]
        %v859 = vld [vmem:[%s1 + $0x30] sm:$0xff]
        %v860 = vld [vmem:[%s1 + $0x38] sm:$0xff]
        %v861 = vld [vmem:[%s1 + $0x40] sm:$0xff]
        %v862 = vld [vmem:[%s1 + $0x48] sm:$0xff]
        %v863 = vld [vmem:[%s1 + $0x50] sm:$0xff]
        %v864 = vld [vmem:[%s1 + $0x58] sm:$0xff]
        %v865 = vld [vmem:[%s1 + $0x60] sm:$0xff]
        %v866 = vld [vmem:[%s1 + $0x68] sm:$0xff]
        %v867 = vld [vmem:[%s1 + $0x70] sm:$0xff]
        %v868 = vld [vmem:[%s1 + $0x78] sm:$0xff]
        %v869 = vld [vmem:[%s2] sm:$0xff]
        %v870 = vld [vmem:[%s2 + $0x8] sm:$0xff]
        %v871 = vld [vmem:[%s2 + $0x10] sm:$0xff]
        %v872 = vld [vmem:[%s2 + $0x18] sm:$0xff]
        %v873 = vld [vmem:[%s2 + $0x20] sm:$0xff]
        %v874 = vld [vmem:[%s2 + $0x28] sm:$0xff]
        %v875 = vld [vmem:[%s2 + $0x30] sm:$0xff]
        %v876 = vld [vmem:[%s2 + $0x38] sm:$0xff]
        %v877 = vld [vmem:[%s2 + $0x40] sm:$0xff]
        %v878 = vld [vmem:[%s2 + $0x48] sm:$0xff]
        %v879 = vld [vmem:[%s2 + $0x50] sm:$0xff]
        %v880 = vld [vmem:[%s2 + $0x58] sm:$0xff]
        %v881 = vld [vmem:[%s2 + $0x60] sm:$0xff]
        %v882 = vld [vmem:[%s2 + $0x68] sm:$0xff]
        %v883 = vld [vmem:[%s2 + $0x70] sm:$0xff]
        %v884 = vld [vmem:[%s2 + $0x78] sm:$0xff]
        %v885 = vld [vmem:[#allocation5] sm:$0xf]
        %v886 = vld [vmem:[#allocation5 + $0x4] sm:$0xf]
        %v887 = vld [vmem:[#allocation5 + $0x8] sm:$0xf]
        %v888 = vld [vmem:[#allocation5 + $0xc] sm:$0xf]
        %v905 = vunpack.c.l.b16 %v837
        %v906 = vunpack.c.l.b16 %v838
        %v907 = vunpack.c.l.b16 %v839
        %v908 = vunpack.c.l.b16 %v840
        %v909 = vunpack.c.l.b16 %v841
        %v910 = vunpack.c.l.b16 %v842
        %v911 = vunpack.c.l.b16 %v843
        %v912 = vunpack.c.l.b16 %v844
        %v913 = vunpack.c.l.b16 %v845
        %v914 = vunpack.c.l.b16 %v846
        %v915 = vunpack.c.l.b16 %v847
        %v916 = vunpack.c.l.b16 %v848
        %v917 = vunpack.c.l.b16 %v849
        %v918 = vunpack.c.l.b16 %v850
        %v919 = vunpack.c.l.b16 %v851
        %v920 = vunpack.c.l.b16 %v852
        %v921 = vpack.c.b16 %v906, %v905
        %v922 = vpack.c.b16 %v908, %v907
        %v923 = vpack.c.b16 %v910, %v909
        %v924 = vpack.c.b16 %v912, %v911
        %v925 = vpack.c.b16 %v914, %v913
        %v926 = vpack.c.b16 %v916, %v915
        %v927 = vpack.c.b16 %v918, %v917
        %v928 = vpack.c.b16 %v920, %v919
        %v933 = vunpack.c.l.b16 %v885
        %v934 = vunpack.c.l.b16 %v886
        %v935 = vunpack.c.l.b16 %v887
        %v936 = vunpack.c.l.b16 %v888
        %v937 = vpack.c.b16 %v934, %v933
        %v938 = vpack.c.b16 %v936, %v935
        %vm941 = vcmask 261120
        %v943 = vsel %vm941, %v921, 0
        %v946 = vsel %vm941, %v922, 0
        %v949 = vsel %vm941, %v923, 0
        %v952 = vsel %vm941, %v924, 0
        %v955 = vsel %vm941, %v925, 0
        %v958 = vsel %vm941, %v926, 0
        %v961 = vsel %vm941, %v927, 0
        %v964 = vsel %vm941, %v928, 0
        %966 = vmatprep.subr.bf16.mxu0 0
        %967 = vmatpush1.bf16.msra.mxu0 %v937
        %968 = vmatprep.subr.bf16.mxu0 0
        %969 = vmatpush1.bf16.msra.mxu0 %v938
        %970 = vmatprep.subr.bf16.mxu0 0
        %971 = vmatpush1.bf16.msra.mxu0 0
        %972 = vmatprep.subr.bf16.mxu0 0
        %973 = vmatpush1.bf16.msra.mxu0 0
        %974 = vmatprep.subr.bf16.mxu0 0
        %975 = vmatpush1.bf16.msra.mxu0 0
        %976 = vmatprep.subr.bf16.mxu0 0
        %977 = vmatpush1.bf16.msra.mxu0 0
        %978 = vmatprep.subr.bf16.mxu0 0
        %979 = vmatpush1.bf16.msra.mxu0 0
        %980 = vmatprep.subr.bf16.mxu0 0
        %981 = vmatpush1.bf16.msra.mxu0 0
        %982 = vmatprep.subr.bf16.mxu0 0
        %983 = vmatpush1.bf16.msra.mxu0 0
        %984 = vmatprep.subr.bf16.mxu0 0
        %985 = vmatpush1.bf16.msra.mxu0 0
        %986 = vmatprep.subr.bf16.mxu0 0
        %987 = vmatpush1.bf16.msra.mxu0 0
        %988 = vmatprep.subr.bf16.mxu0 0
        %989 = vmatpush1.bf16.msra.mxu0 0
        %990 = vmatprep.subr.bf16.mxu0 0
        %991 = vmatpush1.bf16.msra.mxu0 0
        %992 = vmatprep.subr.bf16.mxu0 0
        %993 = vmatpush1.bf16.msra.mxu0 0
        %994 = vmatprep.subr.bf16.mxu0 0
        %995 = vmatpush1.bf16.msra.mxu0 0
        %996 = vmatprep.subr.bf16.mxu0 0
        %997 = vmatpush1.bf16.msra.mxu0 0
        %998 = vmatprep.mubr.bf16.mxu0 0
        %999 = vmatmul.mubr.bf16.gmra.mrb[0].mxu0 %v943
        %v1000 = vpop.f32.mrb[0].mxu0
        %v1001 = vadd.f32 0.0, %v1000
        %v1002 = vpop.f32.mrb[0].mxu0
        %v1003 = vpop.f32.mrb[0].mxu0
        %v1004 = vadd.f32 0.0, %v1003
        %v1005 = vpop.f32.mrb[0].mxu0
        %1006 = vmatprep.mubr.bf16.mxu0 0
        %1007 = vmatmul.mubr.bf16.gmra.mrb[0].mxu0 %v946
        %v1008 = vpop.f32.mrb[0].mxu0
        %v1009 = vadd.f32 0.0, %v1008
        %v1010 = vpop.f32.mrb[0].mxu0
        %v1011 = vpop.f32.mrb[0].mxu0
        %v1012 = vadd.f32 0.0, %v1011
        %v1013 = vpop.f32.mrb[0].mxu0
        %1014 = vmatprep.mubr.bf16.mxu0 0
        %1015 = vmatmul.mubr.bf16.gmra.mrb[0].mxu0 %v949
        %v1016 = vpop.f32.mrb[0].mxu0
        %v1017 = vadd.f32 0.0, %v1016
        %v1018 = vpop.f32.mrb[0].mxu0
        %v1019 = vpop.f32.mrb[0].mxu0
        %v1020 = vadd.f32 0.0, %v1019
        %v1021 = vpop.f32.mrb[0].mxu0
        %1022 = vmatprep.mubr.bf16.mxu0 0
        %1023 = vmatmul.mubr.bf16.gmra.mrb[0].mxu0 %v952
        %v1024 = vpop.f32.mrb[0].mxu0
        %v1025 = vadd.f32 0.0, %v1024
        %v1026 = vpop.f32.mrb[0].mxu0
        %v1027 = vpop.f32.mrb[0].mxu0
        %v1028 = vadd.f32 0.0, %v1027
        %v1029 = vpop.f32.mrb[0].mxu0
        %1030 = vmatprep.mubr.bf16.mxu0 0
        %1031 = vmatmul.mubr.bf16.gmra.mrb[0].mxu0 %v955
        %v1032 = vpop.f32.mrb[0].mxu0
        %v1033 = vadd.f32 0.0, %v1032
        %v1034 = vpop.f32.mrb[0].mxu0
        %v1035 = vpop.f32.mrb[0].mxu0
        %v1036 = vadd.f32 0.0, %v1035
        %v1037 = vpop.f32.mrb[0].mxu0
        %1038 = vmatprep.mubr.bf16.mxu0 0
        %1039 = vmatmul.mubr.bf16.gmra.mrb[0].mxu0 %v958
        %v1040 = vpop.f32.mrb[0].mxu0
        %v1041 = vadd.f32 0.0, %v1040
        %v1042 = vpop.f32.mrb[0].mxu0
        %v1043 = vpop.f32.mrb[0].mxu0
        %v1044 = vadd.f32 0.0, %v1043
        %v1045 = vpop.f32.mrb[0].mxu0
        %1046 = vmatprep.mubr.bf16.mxu0 0
        %1047 = vmatmul.mubr.bf16.gmra.mrb[0].mxu0 %v961
        %v1048 = vpop.f32.mrb[0].mxu0
        %v1049 = vadd.f32 0.0, %v1048
        %v1050 = vpop.f32.mrb[0].mxu0
        %v1051 = vpop.f32.mrb[0].mxu0
        %v1052 = vadd.f32 0.0, %v1051
        %v1053 = vpop.f32.mrb[0].mxu0
        %1054 = vmatprep.mubr.bf16.mxu0 0
        %1055 = vmatmul.mubr.bf16.gmra.mrb[0].mxu0 %v964
        %v1056 = vpop.f32.mrb[0].mxu0
        %v1057 = vadd.f32 0.0, %v1056
        %v1058 = vpop.f32.mrb[0].mxu0
        %v1059 = vpop.f32.mrb[0].mxu0
        %v1060 = vadd.f32 0.0, %v1059
        %v1061 = vpop.f32.mrb[0].mxu0
        %1062 = vdwg.mxu0
        %s1063 = scalar_lea.vmem [#allocation5], 16
        %v1064 = vld [vmem:[%s1063] sm:$0xf]
        %v1065 = vld [vmem:[%s1063 + $0x4] sm:$0xf]
        %v1066 = vld [vmem:[%s1063 + $0x8] sm:$0xf]
        %v1067 = vld [vmem:[%s1063 + $0xc] sm:$0xf]
        %v1072 = vunpack.c.l.b16 %v1064
        %v1073 = vunpack.c.l.b16 %v1065
        %v1074 = vunpack.c.l.b16 %v1066
        %v1075 = vunpack.c.l.b16 %v1067
        %v1076 = vpack.c.b16 %v1073, %v1072
        %v1077 = vpack.c.b16 %v1075, %v1074
        %1080 = vmatprep.subr.bf16.mxu0 0
        %1081 = vmatpush1.bf16.msra.mxu0 %v1076
        %1082 = vmatprep.subr.bf16.mxu0 0
        %1083 = vmatpush1.bf16.msra.mxu0 %v1077
        %1084 = vmatprep.subr.bf16.mxu0 0
        %1085 = vmatpush1.bf16.msra.mxu0 0
        %1086 = vmatprep.subr.bf16.mxu0 0
        %1087 = vmatpush1.bf16.msra.mxu0 0
        %1088 = vmatprep.subr.bf16.mxu0 0
        %1089 = vmatpush1.bf16.msra.mxu0 0
        %1090 = vmatprep.subr.bf16.mxu0 0
        %1091 = vmatpush1.bf16.msra.mxu0 0
        %1092 = vmatprep.subr.bf16.mxu0 0
        %1093 = vmatpush1.bf16.msra.mxu0 0
        %1094 = vmatprep.subr.bf16.mxu0 0
        %1095 = vmatpush1.bf16.msra.mxu0 0
        %1096 = vmatprep.subr.bf16.mxu0 0
        %1097 = vmatpush1.bf16.msra.mxu0 0
        %1098 = vmatprep.subr.bf16.mxu0 0
        %1099 = vmatpush1.bf16.msra.mxu0 0
        %1100 = vmatprep.subr.bf16.mxu0 0
        %1101 = vmatpush1.bf16.msra.mxu0 0
        %1102 = vmatprep.subr.bf16.mxu0 0
        %1103 = vmatpush1.bf16.msra.mxu0 0
        %1104 = vmatprep.subr.bf16.mxu0 0
        %1105 = vmatpush1.bf16.msra.mxu0 0
        %1106 = vmatprep.subr.bf16.mxu0 0
        %1107 = vmatpush1.bf16.msra.mxu0 0
        %1108 = vmatprep.subr.bf16.mxu0 0
        %1109 = vmatpush1.bf16.msra.mxu0 0
        %1110 = vmatprep.subr.bf16.mxu0 0
        %1111 = vmatpush1.bf16.msra.mxu0 0
        %1112 = vmatprep.mubr.bf16.mxu0 0
        %1113 = vmatmul.mubr.bf16.gmra.mrb[0].mxu0 %v943
        %v1114 = vpop.f32.mrb[0].mxu0
        %v1115 = vadd.f32 0.0, %v1114
        %v1116 = vpop.f32.mrb[0].mxu0
        %v1117 = vpop.f32.mrb[0].mxu0
        %v1118 = vadd.f32 0.0, %v1117
        %v1119 = vpop.f32.mrb[0].mxu0
        %1120 = vmatprep.mubr.bf16.mxu0 0
        %1121 = vmatmul.mubr.bf16.gmra.mrb[0].mxu0 %v946
        %v1122 = vpop.f32.mrb[0].mxu0
        %v1123 = vadd.f32 0.0, %v1122
        %v1124 = vpop.f32.mrb[0].mxu0
        %v1125 = vpop.f32.mrb[0].mxu0
        %v1126 = vadd.f32 0.0, %v1125
        %v1127 = vpop.f32.mrb[0].mxu0
        %1128 = vmatprep.mubr.bf16.mxu0 0
        %1129 = vmatmul.mubr.bf16.gmra.mrb[0].mxu0 %v949
        %v1130 = vpop.f32.mrb[0].mxu0
        %v1131 = vadd.f32 0.0, %v1130
        %v1132 = vpop.f32.mrb[0].mxu0
        %v1133 = vpop.f32.mrb[0].mxu0
        %v1134 = vadd.f32 0.0, %v1133
        %v1135 = vpop.f32.mrb[0].mxu0
        %1136 = vmatprep.mubr.bf16.mxu0 0
        %1137 = vmatmul.mubr.bf16.gmra.mrb[0].mxu0 %v952
        %v1138 = vpop.f32.mrb[0].mxu0
        %v1139 = vadd.f32 0.0, %v1138
        %v1140 = vpop.f32.mrb[0].mxu0
        %v1141 = vpop.f32.mrb[0].mxu0
        %v1142 = vadd.f32 0.0, %v1141
        %v1143 = vpop.f32.mrb[0].mxu0
        %1144 = vmatprep.mubr.bf16.mxu0 0
        %1145 = vmatmul.mubr.bf16.gmra.mrb[0].mxu0 %v955
        %v1146 = vpop.f32.mrb[0].mxu0
        %v1147 = vadd.f32 0.0, %v1146
        %v1148 = vpop.f32.mrb[0].mxu0
        %v1149 = vpop.f32.mrb[0].mxu0
        %v1150 = vadd.f32 0.0, %v1149
        %v1151 = vpop.f32.mrb[0].mxu0
        %1152 = vmatprep.mubr.bf16.mxu0 0
        %1153 = vmatmul.mubr.bf16.gmra.mrb[0].mxu0 %v958
        %v1154 = vpop.f32.mrb[0].mxu0
        %v1155 = vadd.f32 0.0, %v1154
        %v1156 = vpop.f32.mrb[0].mxu0
        %v1157 = vpop.f32.mrb[0].mxu0
        %v1158 = vadd.f32 0.0, %v1157
        %v1159 = vpop.f32.mrb[0].mxu0
        %1160 = vmatprep.mubr.bf16.mxu0 0
        %1161 = vmatmul.mubr.bf16.gmra.mrb[0].mxu0 %v961
        %v1162 = vpop.f32.mrb[0].mxu0
        %v1163 = vadd.f32 0.0, %v1162
        %v1164 = vpop.f32.mrb[0].mxu0
        %v1165 = vpop.f32.mrb[0].mxu0
        %v1166 = vadd.f32 0.0, %v1165
        %v1167 = vpop.f32.mrb[0].mxu0
        %1168 = vmatprep.mubr.bf16.mxu0 0
        %1169 = vmatmul.mubr.bf16.gmra.mrb[0].mxu0 %v964
        %v1170 = vpop.f32.mrb[0].mxu0
        %v1171 = vadd.f32 0.0, %v1170
        %v1172 = vpop.f32.mrb[0].mxu0
        %v1173 = vpop.f32.mrb[0].mxu0
        %v1174 = vadd.f32 0.0, %v1173
        %v1175 = vpop.f32.mrb[0].mxu0
        %1176 = vdwg.mxu0
        %s1177 = scalar_lea.vmem [#allocation5], 32
        %v1178 = vld [vmem:[%s1177] sm:$0xf]
        %v1179 = vld [vmem:[%s1177 + $0x4] sm:$0xf]
        %v1180 = vld [vmem:[%s1177 + $0x8] sm:$0xf]
        %v1181 = vld [vmem:[%s1177 + $0xc] sm:$0xf]
        %v1186 = vunpack.c.l.b16 %v1178
        %v1187 = vunpack.c.l.b16 %v1179
        %v1188 = vunpack.c.l.b16 %v1180
        %v1189 = vunpack.c.l.b16 %v1181
        %v1190 = vpack.c.b16 %v1187, %v1186
        %v1191 = vpack.c.b16 %v1189, %v1188
        %1194 = vmatprep.subr.bf16.mxu0 0
        %1195 = vmatpush1.bf16.msra.mxu0 %v1190
        %1196 = vmatprep.subr.bf16.mxu0 0
        %1197 = vmatpush1.bf16.msra.mxu0 %v1191
        %1198 = vmatprep.subr.bf16.mxu0 0
        %1199 = vmatpush1.bf16.msra.mxu0 0
        %1200 = vmatprep.subr.bf16.mxu0 0
        %1201 = vmatpush1.bf16.msra.mxu0 0
        %1202 = vmatprep.subr.bf16.mxu0 0
        %1203 = vmatpush1.bf16.msra.mxu0 0
        %1204 = vmatprep.subr.bf16.mxu0 0
        %1205 = vmatpush1.bf16.msra.mxu0 0
        %1206 = vmatprep.subr.bf16.mxu0 0
        %1207 = vmatpush1.bf16.msra.mxu0 0
        %1208 = vmatprep.subr.bf16.mxu0 0
        %1209 = vmatpush1.bf16.msra.mxu0 0
        %1210 = vmatprep.subr.bf16.mxu0 0
        %1211 = vmatpush1.bf16.msra.mxu0 0
        %1212 = vmatprep.subr.bf16.mxu0 0
        %1213 = vmatpush1.bf16.msra.mxu0 0
        %1214 = vmatprep.subr.bf16.mxu0 0
        %1215 = vmatpush1.bf16.msra.mxu0 0
        %1216 = vmatprep.subr.bf16.mxu0 0
        %1217 = vmatpush1.bf16.msra.mxu0 0
        %1218 = vmatprep.subr.bf16.mxu0 0
        %1219 = vmatpush1.bf16.msra.mxu0 0
        %1220 = vmatprep.subr.bf16.mxu0 0
        %1221 = vmatpush1.bf16.msra.mxu0 0
        %1222 = vmatprep.subr.bf16.mxu0 0
        %1223 = vmatpush1.bf16.msra.mxu0 0
        %1224 = vmatprep.subr.bf16.mxu0 0
        %1225 = vmatpush1.bf16.msra.mxu0 0
        %1226 = vmatprep.mubr.bf16.mxu0 0
        %1227 = vmatmul.mubr.bf16.gmra.mrb[0].mxu0 %v943
        %v1228 = vpop.f32.mrb[0].mxu0
        %v1229 = vadd.f32 0.0, %v1228
        %v1230 = vpop.f32.mrb[0].mxu0
        %v1231 = vpop.f32.mrb[0].mxu0
        %v1232 = vadd.f32 0.0, %v1231
        %v1233 = vpop.f32.mrb[0].mxu0
        %1234 = vmatprep.mubr.bf16.mxu0 0
        %1235 = vmatmul.mubr.bf16.gmra.mrb[0].mxu0 %v946
        %v1236 = vpop.f32.mrb[0].mxu0
        %v1237 = vadd.f32 0.0, %v1236
        %v1238 = vpop.f32.mrb[0].mxu0
        %v1239 = vpop.f32.mrb[0].mxu0
        %v1240 = vadd.f32 0.0, %v1239
        %v1241 = vpop.f32.mrb[0].mxu0
        %1242 = vmatprep.mubr.bf16.mxu0 0
        %1243 = vmatmul.mubr.bf16.gmra.mrb[0].mxu0 %v949
        %v1244 = vpop.f32.mrb[0].mxu0
        %v1245 = vadd.f32 0.0, %v1244
        %v1246 = vpop.f32.mrb[0].mxu0
        %v1247 = vpop.f32.mrb[0].mxu0
        %v1248 = vadd.f32 0.0, %v1247
        %v1249 = vpop.f32.mrb[0].mxu0
        %1250 = vmatprep.mubr.bf16.mxu0 0
        %1251 = vmatmul.mubr.bf16.gmra.mrb[0].mxu0 %v952
        %v1252 = vpop.f32.mrb[0].mxu0
        %v1253 = vadd.f32 0.0, %v1252
        %v1254 = vpop.f32.mrb[0].mxu0
        %v1255 = vpop.f32.mrb[0].mxu0
        %v1256 = vadd.f32 0.0, %v1255
        %v1257 = vpop.f32.mrb[0].mxu0
        %1258 = vmatprep.mubr.bf16.mxu0 0
        %1259 = vmatmul.mubr.bf16.gmra.mrb[0].mxu0 %v955
        %v1260 = vpop.f32.mrb[0].mxu0
        %v1261 = vadd.f32 0.0, %v1260
        %v1262 = vpop.f32.mrb[0].mxu0
        %v1263 = vpop.f32.mrb[0].mxu0
        %v1264 = vadd.f32 0.0, %v1263
        %v1265 = vpop.f32.mrb[0].mxu0
        %1266 = vmatprep.mubr.bf16.mxu0 0
        %1267 = vmatmul.mubr.bf16.gmra.mrb[0].mxu0 %v958
        %v1268 = vpop.f32.mrb[0].mxu0
        %v1269 = vadd.f32 0.0, %v1268
        %v1270 = vpop.f32.mrb[0].mxu0
        %v1271 = vpop.f32.mrb[0].mxu0
        %v1272 = vadd.f32 0.0, %v1271
        %v1273 = vpop.f32.mrb[0].mxu0
        %1274 = vmatprep.mubr.bf16.mxu0 0
        %1275 = vmatmul.mubr.bf16.gmra.mrb[0].mxu0 %v961
        %v1276 = vpop.f32.mrb[0].mxu0
        %v1277 = vadd.f32 0.0, %v1276
        %v1278 = vpop.f32.mrb[0].mxu0
        %v1279 = vpop.f32.mrb[0].mxu0
        %v1280 = vadd.f32 0.0, %v1279
        %v1281 = vpop.f32.mrb[0].mxu0
        %1282 = vmatprep.mubr.bf16.mxu0 0
        %1283 = vmatmul.mubr.bf16.gmra.mrb[0].mxu0 %v964
        %v1284 = vpop.f32.mrb[0].mxu0
        %v1285 = vadd.f32 0.0, %v1284
        %v1286 = vpop.f32.mrb[0].mxu0
        %v1287 = vpop.f32.mrb[0].mxu0
        %v1288 = vadd.f32 0.0, %v1287
        %v1289 = vpop.f32.mrb[0].mxu0
        %1290 = vdwg.mxu0
        %v1292 = vrot.slane %v1060, 7
        %vm1309 = vcmask 1040384
        %v1310 = vrot.slane %v1001, 7
        %v1311 = vrot.slane %v1004, 7
        %v1312 = vsel %vm1309, %v1310, %v1311
        %v1313 = vrot.slane %v1009, 7
        %v1314 = vsel %vm1309, %v1311, %v1313
        %v1315 = vrot.slane %v1012, 7
        %v1316 = vsel %vm1309, %v1313, %v1315
        %v1317 = vrot.slane %v1017, 7
        %v1318 = vsel %vm1309, %v1315, %v1317
        %v1319 = vrot.slane %v1020, 7
        %v1320 = vsel %vm1309, %v1317, %v1319
        %v1321 = vrot.slane %v1025, 7
        %v1322 = vsel %vm1309, %v1319, %v1321
        %v1323 = vrot.slane %v1028, 7
        %v1324 = vsel %vm1309, %v1321, %v1323
        %v1325 = vrot.slane %v1033, 7
        %v1326 = vsel %vm1309, %v1323, %v1325
        %v1327 = vrot.slane %v1036, 7
        %v1328 = vsel %vm1309, %v1325, %v1327
        %v1329 = vrot.slane %v1041, 7
        %v1330 = vsel %vm1309, %v1327, %v1329
        %v1331 = vrot.slane %v1044, 7
        %v1332 = vsel %vm1309, %v1329, %v1331
        %v1333 = vrot.slane %v1049, 7
        %v1334 = vsel %vm1309, %v1331, %v1333
        %v1335 = vrot.slane %v1052, 7
        %v1336 = vsel %vm1309, %v1333, %v1335
        %v1337 = vrot.slane %v1057, 7
        %v1338 = vsel %vm1309, %v1335, %v1337
        %v1339 = vsel %vm1309, %v1337, %v1292
        %v1356 = vsel %vm1309, %v1292, %v1310
        %1358 = vset.pattern.permute.xlu0 0
        %1359 = vperm.xlu0 %1358, %v853
        %v1360 = vpop.permute.xlu0 %1359
        %1363 = vset.pattern.permute.xlu0 0
        %1364 = vperm.xlu0 %1363, %v854
        %v1365 = vpop.permute.xlu0 %1364
        %1368 = vset.pattern.permute.xlu0 0
        %1369 = vperm.xlu0 %1368, %v855
        %v1370 = vpop.permute.xlu0 %1369
        %1373 = vset.pattern.permute.xlu0 0
        %1374 = vperm.xlu0 %1373, %v856
        %v1375 = vpop.permute.xlu0 %1374
        %1378 = vset.pattern.permute.xlu0 0
        %1379 = vperm.xlu0 %1378, %v857
        %v1380 = vpop.permute.xlu0 %1379
        %1383 = vset.pattern.permute.xlu0 0
        %1384 = vperm.xlu0 %1383, %v858
        %v1385 = vpop.permute.xlu0 %1384
        %1388 = vset.pattern.permute.xlu0 0
        %1389 = vperm.xlu0 %1388, %v859
        %v1390 = vpop.permute.xlu0 %1389
        %1393 = vset.pattern.permute.xlu0 0
        %1394 = vperm.xlu0 %1393, %v860
        %v1395 = vpop.permute.xlu0 %1394
        %1398 = vset.pattern.permute.xlu0 0
        %1399 = vperm.xlu0 %1398, %v861
        %v1400 = vpop.permute.xlu0 %1399
        %1403 = vset.pattern.permute.xlu0 0
        %1404 = vperm.xlu0 %1403, %v862
        %v1405 = vpop.permute.xlu0 %1404
        %1408 = vset.pattern.permute.xlu0 0
        %1409 = vperm.xlu0 %1408, %v863
        %v1410 = vpop.permute.xlu0 %1409
        %1413 = vset.pattern.permute.xlu0 0
        %1414 = vperm.xlu0 %1413, %v864
        %v1415 = vpop.permute.xlu0 %1414
        %1418 = vset.pattern.permute.xlu0 0
        %1419 = vperm.xlu0 %1418, %v865
        %v1420 = vpop.permute.xlu0 %1419
        %1423 = vset.pattern.permute.xlu0 0
        %1424 = vperm.xlu0 %1423, %v866
        %v1425 = vpop.permute.xlu0 %1424
        %1428 = vset.pattern.permute.xlu0 0
        %1429 = vperm.xlu0 %1428, %v867
        %v1430 = vpop.permute.xlu0 %1429
        %1433 = vset.pattern.permute.xlu0 0
        %1434 = vperm.xlu0 %1433, %v868
        %v1435 = vpop.permute.xlu0 %1434
        %v1437 = vmul.f32 %v1356, %v1360
        %v1438 = vmul.f32 %v1312, %v1365
        %v1439 = vmul.f32 %v1314, %v1370
        %v1440 = vmul.f32 %v1316, %v1375
        %v1441 = vmul.f32 %v1318, %v1380
        %v1442 = vmul.f32 %v1320, %v1385
        %v1443 = vmul.f32 %v1322, %v1390
        %v1444 = vmul.f32 %v1324, %v1395
        %v1445 = vmul.f32 %v1326, %v1400
        %v1446 = vmul.f32 %v1328, %v1405
        %v1447 = vmul.f32 %v1330, %v1410
        %v1448 = vmul.f32 %v1332, %v1415
        %v1449 = vmul.f32 %v1334, %v1420
        %v1450 = vmul.f32 %v1336, %v1425
        %v1451 = vmul.f32 %v1338, %v1430
        %v1452 = vmul.f32 %v1339, %v1435
        %v1453 = vadd.f32 %v1437, %v1115
        %v1454 = vadd.f32 %v1438, %v1118
        %v1455 = vadd.f32 %v1439, %v1123
        %v1456 = vadd.f32 %v1440, %v1126
        %v1457 = vadd.f32 %v1441, %v1131
        %v1458 = vadd.f32 %v1442, %v1134
        %v1459 = vadd.f32 %v1443, %v1139
        %v1460 = vadd.f32 %v1444, %v1142
        %v1461 = vadd.f32 %v1445, %v1147
        %v1462 = vadd.f32 %v1446, %v1150
        %v1463 = vadd.f32 %v1447, %v1155
        %v1464 = vadd.f32 %v1448, %v1158
        %v1465 = vadd.f32 %v1449, %v1163
        %v1466 = vadd.f32 %v1450, %v1166
        %v1467 = vadd.f32 %v1451, %v1171
        %v1468 = vadd.f32 %v1452, %v1174
        %vm1485 = vcmask 1046528
        %v1486 = vrot.slane %v1229, 1
        %v1487 = vrot.slane %v1232, 1
        %v1488 = vsel %vm1485, %v1486, %v1487
        %v1489 = vrot.slane %v1237, 1
        %v1490 = vsel %vm1485, %v1487, %v1489
        %v1491 = vrot.slane %v1240, 1
        %v1492 = vsel %vm1485, %v1489, %v1491
        %v1493 = vrot.slane %v1245, 1
        %v1494 = vsel %vm1485, %v1491, %v1493
        %v1495 = vrot.slane %v1248, 1
        %v1496 = vsel %vm1485, %v1493, %v1495
        %v1497 = vrot.slane %v1253, 1
        %v1498 = vsel %vm1485, %v1495, %v1497
        %v1499 = vrot.slane %v1256, 1
        %v1500 = vsel %vm1485, %v1497, %v1499
        %v1501 = vrot.slane %v1261, 1
        %v1502 = vsel %vm1485, %v1499, %v1501
        %v1503 = vrot.slane %v1264, 1
        %v1504 = vsel %vm1485, %v1501, %v1503
        %v1505 = vrot.slane %v1269, 1
        %v1506 = vsel %vm1485, %v1503, %v1505
        %v1507 = vrot.slane %v1272, 1
        %v1508 = vsel %vm1485, %v1505, %v1507
        %v1509 = vrot.slane %v1277, 1
        %v1510 = vsel %vm1485, %v1507, %v1509
        %v1511 = vrot.slane %v1280, 1
        %v1512 = vsel %vm1485, %v1509, %v1511
        %v1513 = vrot.slane %v1285, 1
        %v1514 = vsel %vm1485, %v1511, %v1513
        %v1515 = vrot.slane %v1288, 1
        %v1516 = vsel %vm1485, %v1513, %v1515
        %v1534 = vsel %vm1485, %v1515, %v1486
        %1536 = vset.pattern.permute.xlu0 0
        %1537 = vperm.xlu0 %1536, %v869
        %v1538 = vpop.permute.xlu0 %1537
        %1541 = vset.pattern.permute.xlu0 0
        %1542 = vperm.xlu0 %1541, %v870
        %v1543 = vpop.permute.xlu0 %1542
        %1546 = vset.pattern.permute.xlu0 0
        %1547 = vperm.xlu0 %1546, %v871
        %v1548 = vpop.permute.xlu0 %1547
        %1551 = vset.pattern.permute.xlu0 0
        %1552 = vperm.xlu0 %1551, %v872
        %v1553 = vpop.permute.xlu0 %1552
        %1556 = vset.pattern.permute.xlu0 0
        %1557 = vperm.xlu0 %1556, %v873
        %v1558 = vpop.permute.xlu0 %1557
        %1561 = vset.pattern.permute.xlu0 0
        %1562 = vperm.xlu0 %1561, %v874
        %v1563 = vpop.permute.xlu0 %1562
        %1566 = vset.pattern.permute.xlu0 0
        %1567 = vperm.xlu0 %1566, %v875
        %v1568 = vpop.permute.xlu0 %1567
        %1571 = vset.pattern.permute.xlu0 0
        %1572 = vperm.xlu0 %1571, %v876
        %v1573 = vpop.permute.xlu0 %1572
        %1576 = vset.pattern.permute.xlu0 0
        %1577 = vperm.xlu0 %1576, %v877
        %v1578 = vpop.permute.xlu0 %1577
        %1581 = vset.pattern.permute.xlu0 0
        %1582 = vperm.xlu0 %1581, %v878
        %v1583 = vpop.permute.xlu0 %1582
        %1586 = vset.pattern.permute.xlu0 0
        %1587 = vperm.xlu0 %1586, %v879
        %v1588 = vpop.permute.xlu0 %1587
        %1591 = vset.pattern.permute.xlu0 0
        %1592 = vperm.xlu0 %1591, %v880
        %v1593 = vpop.permute.xlu0 %1592
        %1596 = vset.pattern.permute.xlu0 0
        %1597 = vperm.xlu0 %1596, %v881
        %v1598 = vpop.permute.xlu0 %1597
        %1601 = vset.pattern.permute.xlu0 0
        %1602 = vperm.xlu0 %1601, %v882
        %v1603 = vpop.permute.xlu0 %1602
        %1606 = vset.pattern.permute.xlu0 0
        %1607 = vperm.xlu0 %1606, %v883
        %v1608 = vpop.permute.xlu0 %1607
        %1611 = vset.pattern.permute.xlu0 0
        %1612 = vperm.xlu0 %1611, %v884
        %v1613 = vpop.permute.xlu0 %1612
        %v1615 = vmul.f32 %v1488, %v1538
        %v1616 = vmul.f32 %v1490, %v1543
        %v1617 = vmul.f32 %v1492, %v1548
        %v1618 = vmul.f32 %v1494, %v1553
        %v1619 = vmul.f32 %v1496, %v1558
        %v1620 = vmul.f32 %v1498, %v1563
        %v1621 = vmul.f32 %v1500, %v1568
        %v1622 = vmul.f32 %v1502, %v1573
        %v1623 = vmul.f32 %v1504, %v1578
        %v1624 = vmul.f32 %v1506, %v1583
        %v1625 = vmul.f32 %v1508, %v1588
        %v1626 = vmul.f32 %v1510, %v1593
        %v1627 = vmul.f32 %v1512, %v1598
        %v1628 = vmul.f32 %v1514, %v1603
        %v1629 = vmul.f32 %v1516, %v1608
        %v1630 = vmul.f32 %v1534, %v1613
        %v1631 = vadd.f32 %v1453, %v1615
        %v1632 = vadd.f32 %v1454, %v1616
        %v1633 = vadd.f32 %v1455, %v1617
        %v1634 = vadd.f32 %v1456, %v1618
        %v1635 = vadd.f32 %v1457, %v1619
        %v1636 = vadd.f32 %v1458, %v1620
        %v1637 = vadd.f32 %v1459, %v1621
        %v1638 = vadd.f32 %v1460, %v1622
        %v1639 = vadd.f32 %v1461, %v1623
        %v1640 = vadd.f32 %v1462, %v1624
        %v1641 = vadd.f32 %v1463, %v1625
        %v1642 = vadd.f32 %v1464, %v1626
        %v1643 = vadd.f32 %v1465, %v1627
        %v1644 = vadd.f32 %v1466, %v1628
        %v1645 = vadd.f32 %v1467, %v1629
        %v1646 = vadd.f32 %v1468, %v1630
        %v1647 = vld [vmem:[#allocation7] sm:$0x1]
        %v1649 = vlaneseq
        %v1650 = vshrl.u32 %v1649, 7
        %v1651 = vsub.s32 0, %v1650
        %v1652 = vrot.slane %v1647, %v1651
        %v1654 = vadd.f32 %v1631, %v1652
        %v1655 = vadd.f32 %v1632, %v1652
        %v1656 = vadd.f32 %v1633, %v1652
        %v1657 = vadd.f32 %v1634, %v1652
        %v1658 = vadd.f32 %v1635, %v1652
        %v1659 = vadd.f32 %v1636, %v1652
        %v1660 = vadd.f32 %v1637, %v1652
        %v1661 = vadd.f32 %v1638, %v1652
        %v1662 = vadd.f32 %v1639, %v1652
        %v1663 = vadd.f32 %v1640, %v1652
        %v1664 = vadd.f32 %v1641, %v1652
        %v1665 = vadd.f32 %v1642, %v1652
        %v1666 = vadd.f32 %v1643, %v1652
        %v1667 = vadd.f32 %v1644, %v1652
        %v1668 = vadd.f32 %v1645, %v1652
        %v1669 = vadd.f32 %v1646, %v1652
        %v1670 = vmax.f32 %v1654, 0.0
        %v1671 = vmax.f32 %v1655, 0.0
        %v1672 = vmax.f32 %v1656, 0.0
        %v1673 = vmax.f32 %v1657, 0.0
        %v1674 = vmax.f32 %v1658, 0.0
        %v1675 = vmax.f32 %v1659, 0.0
        %v1676 = vmax.f32 %v1660, 0.0
        %v1677 = vmax.f32 %v1661, 0.0
        %v1678 = vmax.f32 %v1662, 0.0
        %v1679 = vmax.f32 %v1663, 0.0
        %v1680 = vmax.f32 %v1664, 0.0
        %v1681 = vmax.f32 %v1665, 0.0
        %v1682 = vmax.f32 %v1666, 0.0
        %v1683 = vmax.f32 %v1667, 0.0
        %v1684 = vmax.f32 %v1668, 0.0
        %v1685 = vmax.f32 %v1669, 0.0
        %v1686 = vpack.c.bf16 %v1671, %v1670
        %v1687 = vpack.c.bf16 %v1673, %v1672
        %v1688 = vpack.c.bf16 %v1675, %v1674
        %v1689 = vpack.c.bf16 %v1677, %v1676
        %v1690 = vpack.c.bf16 %v1679, %v1678
        %v1691 = vpack.c.bf16 %v1681, %v1680
        %v1692 = vpack.c.bf16 %v1683, %v1682
        %v1693 = vpack.c.bf16 %v1685, %v1684
        %v1694 = vld [vmem:[#allocation8] sm:$0xf]
        %v1695 = vld [vmem:[#allocation8 + $0x4] sm:$0xf]
        %v1696 = vld [vmem:[#allocation8 + $0x8] sm:$0xf]
        %v1697 = vld [vmem:[#allocation8 + $0xc] sm:$0xf]
        %v1698 = vld [vmem:[#allocation8 + $0x10] sm:$0xf]
        %v1699 = vld [vmem:[#allocation8 + $0x14] sm:$0xf]
        %v1700 = vld [vmem:[#allocation8 + $0x18] sm:$0xf]
        %v1701 = vld [vmem:[#allocation8 + $0x1c] sm:$0xf]
        %v1710 = vunpack.c.l.b16 %v1694
        %v1711 = vunpack.c.l.b16 %v1695
        %v1712 = vunpack.c.l.b16 %v1696
        %v1713 = vunpack.c.l.b16 %v1697
        %v1714 = vunpack.c.l.b16 %v1698
        %v1715 = vunpack.c.l.b16 %v1699
        %v1716 = vunpack.c.l.b16 %v1700
        %v1717 = vunpack.c.l.b16 %v1701
        %v1718 = vpack.c.b16 %v1711, %v1710
        %v1719 = vpack.c.b16 %v1713, %v1712
        %v1720 = vpack.c.b16 %v1715, %v1714
        %v1721 = vpack.c.b16 %v1717, %v1716
        %vm1726 = vcmask 523264
        %v1728 = vsel %vm1726, %v1686, 0
        %v1731 = vsel %vm1726, %v1687, 0
        %v1734 = vsel %vm1726, %v1688, 0
        %v1737 = vsel %vm1726, %v1689, 0
        %v1740 = vsel %vm1726, %v1690, 0
        %v1743 = vsel %vm1726, %v1691, 0
        %v1746 = vsel %vm1726, %v1692, 0
        %v1749 = vsel %vm1726, %v1693, 0
        %1751 = vmatprep.subr.bf16.mxu0 0
        %1752 = vmatpush1.bf16.msra.mxu0 %v1718
        %1753 = vmatprep.subr.bf16.mxu0 0
        %1754 = vmatpush1.bf16.msra.mxu0 %v1719
        %1755 = vmatprep.subr.bf16.mxu0 0
        %1756 = vmatpush1.bf16.msra.mxu0 %v1720
        %1757 = vmatprep.subr.bf16.mxu0 0
        %1758 = vmatpush1.bf16.msra.mxu0 %v1721
        %1759 = vmatprep.subr.bf16.mxu0 0
        %1760 = vmatpush1.bf16.msra.mxu0 0
        %1761 = vmatprep.subr.bf16.mxu0 0
        %1762 = vmatpush1.bf16.msra.mxu0 0
        %1763 = vmatprep.subr.bf16.mxu0 0
        %1764 = vmatpush1.bf16.msra.mxu0 0
        %1765 = vmatprep.subr.bf16.mxu0 0
        %1766 = vmatpush1.bf16.msra.mxu0 0
        %1767 = vmatprep.subr.bf16.mxu0 0
        %1768 = vmatpush1.bf16.msra.mxu0 0
        %1769 = vmatprep.subr.bf16.mxu0 0
        %1770 = vmatpush1.bf16.msra.mxu0 0
        %1771 = vmatprep.subr.bf16.mxu0 0
        %1772 = vmatpush1.bf16.msra.mxu0 0
        %1773 = vmatprep.subr.bf16.mxu0 0
        %1774 = vmatpush1.bf16.msra.mxu0 0
        %1775 = vmatprep.subr.bf16.mxu0 0
        %1776 = vmatpush1.bf16.msra.mxu0 0
        %1777 = vmatprep.subr.bf16.mxu0 0
        %1778 = vmatpush1.bf16.msra.mxu0 0
        %1779 = vmatprep.subr.bf16.mxu0 0
        %1780 = vmatpush1.bf16.msra.mxu0 0
        %1781 = vmatprep.subr.bf16.mxu0 0
        %1782 = vmatpush1.bf16.msra.mxu0 0
        %1783 = vmatprep.mubr.bf16.mxu0 0
        %1784 = vmatmul.mubr.bf16.gmra.mrb[0].mxu0 %v1728
        %v1785 = vpop.f32.mrb[0].mxu0
        %v1786 = vadd.f32 0.0, %v1785
        %v1787 = vpop.f32.mrb[0].mxu0
        %v1788 = vpop.f32.mrb[0].mxu0
        %v1789 = vadd.f32 0.0, %v1788
        %v1790 = vpop.f32.mrb[0].mxu0
        %1791 = vmatprep.mubr.bf16.mxu0 0
        %1792 = vmatmul.mubr.bf16.gmra.mrb[0].mxu0 %v1731
        %v1793 = vpop.f32.mrb[0].mxu0
        %v1794 = vadd.f32 0.0, %v1793
        %v1795 = vpop.f32.mrb[0].mxu0
        %v1796 = vpop.f32.mrb[0].mxu0
        %v1797 = vadd.f32 0.0, %v1796
        %v1798 = vpop.f32.mrb[0].mxu0
        %1799 = vmatprep.mubr.bf16.mxu0 0
        %1800 = vmatmul.mubr.bf16.gmra.mrb[0].mxu0 %v1734
        %v1801 = vpop.f32.mrb[0].mxu0
        %v1802 = vadd.f32 0.0, %v1801
        %v1803 = vpop.f32.mrb[0].mxu0
        %v1804 = vpop.f32.mrb[0].mxu0
        %v1805 = vadd.f32 0.0, %v1804
        %v1806 = vpop.f32.mrb[0].mxu0
        %1807 = vmatprep.mubr.bf16.mxu0 0
        %1808 = vmatmul.mubr.bf16.gmra.mrb[0].mxu0 %v1737
        %v1809 = vpop.f32.mrb[0].mxu0
        %v1810 = vadd.f32 0.0, %v1809
        %v1811 = vpop.f32.mrb[0].mxu0
        %v1812 = vpop.f32.mrb[0].mxu0
        %v1813 = vadd.f32 0.0, %v1812
        %v1814 = vpop.f32.mrb[0].mxu0
        %1815 = vmatprep.mubr.bf16.mxu0 0
        %1816 = vmatmul.mubr.bf16.gmra.mrb[0].mxu0 %v1740
        %v1817 = vpop.f32.mrb[0].mxu0
        %v1818 = vadd.f32 0.0, %v1817
        %v1819 = vpop.f32.mrb[0].mxu0
        %v1820 = vpop.f32.mrb[0].mxu0
        %v1821 = vadd.f32 0.0, %v1820
        %v1822 = vpop.f32.mrb[0].mxu0
        %1823 = vmatprep.mubr.bf16.mxu0 0
        %1824 = vmatmul.mubr.bf16.gmra.mrb[0].mxu0 %v1743
        %v1825 = vpop.f32.mrb[0].mxu0
        %v1826 = vadd.f32 0.0, %v1825
        %v1827 = vpop.f32.mrb[0].mxu0
        %v1828 = vpop.f32.mrb[0].mxu0
        %v1829 = vadd.f32 0.0, %v1828
        %v1830 = vpop.f32.mrb[0].mxu0
        %1831 = vmatprep.mubr.bf16.mxu0 0
        %1832 = vmatmul.mubr.bf16.gmra.mrb[0].mxu0 %v1746
        %v1833 = vpop.f32.mrb[0].mxu0
        %v1834 = vadd.f32 0.0, %v1833
        %v1835 = vpop.f32.mrb[0].mxu0
        %v1836 = vpop.f32.mrb[0].mxu0
        %v1837 = vadd.f32 0.0, %v1836
        %v1838 = vpop.f32.mrb[0].mxu0
        %1839 = vmatprep.mubr.bf16.mxu0 0
        %1840 = vmatmul.mubr.bf16.gmra.mrb[0].mxu0 %v1749
        %v1841 = vpop.f32.mrb[0].mxu0
        %v1842 = vadd.f32 0.0, %v1841
        %v1843 = vpop.f32.mrb[0].mxu0
        %v1844 = vpop.f32.mrb[0].mxu0
        %v1845 = vadd.f32 0.0, %v1844
        %v1846 = vpop.f32.mrb[0].mxu0
        %1847 = vdwg.mxu0
        %s1848 = scalar_lea.vmem [#allocation8], 32
        %v1849 = vld [vmem:[%s1848] sm:$0xf]
        %v1850 = vld [vmem:[%s1848 + $0x4] sm:$0xf]
        %v1851 = vld [vmem:[%s1848 + $0x8] sm:$0xf]
        %v1852 = vld [vmem:[%s1848 + $0xc] sm:$0xf]
        %v1853 = vld [vmem:[%s1848 + $0x10] sm:$0xf]
        %v1854 = vld [vmem:[%s1848 + $0x14] sm:$0xf]
        %v1855 = vld [vmem:[%s1848 + $0x18] sm:$0xf]
        %v1856 = vld [vmem:[%s1848 + $0x1c] sm:$0xf]
        %v1865 = vunpack.c.l.b16 %v1849
        %v1866 = vunpack.c.l.b16 %v1850
        %v1867 = vunpack.c.l.b16 %v1851
        %v1868 = vunpack.c.l.b16 %v1852
        %v1869 = vunpack.c.l.b16 %v1853
        %v1870 = vunpack.c.l.b16 %v1854
        %v1871 = vunpack.c.l.b16 %v1855
        %v1872 = vunpack.c.l.b16 %v1856
        %v1873 = vpack.c.b16 %v1866, %v1865
        %v1874 = vpack.c.b16 %v1868, %v1867
        %v1875 = vpack.c.b16 %v1870, %v1869
        %v1876 = vpack.c.b16 %v1872, %v1871
        %1881 = vmatprep.subr.bf16.mxu0 0
        %1882 = vmatpush1.bf16.msra.mxu0 %v1873
        %1883 = vmatprep.subr.bf16.mxu0 0
        %1884 = vmatpush1.bf16.msra.mxu0 %v1874
        %1885 = vmatprep.subr.bf16.mxu0 0
        %1886 = vmatpush1.bf16.msra.mxu0 %v1875
        %1887 = vmatprep.subr.bf16.mxu0 0
        %1888 = vmatpush1.bf16.msra.mxu0 %v1876
        %1889 = vmatprep.subr.bf16.mxu0 0
        %1890 = vmatpush1.bf16.msra.mxu0 0
        %1891 = vmatprep.subr.bf16.mxu0 0
        %1892 = vmatpush1.bf16.msra.mxu0 0
        %1893 = vmatprep.subr.bf16.mxu0 0
        %1894 = vmatpush1.bf16.msra.mxu0 0
        %1895 = vmatprep.subr.bf16.mxu0 0
        %1896 = vmatpush1.bf16.msra.mxu0 0
        %1897 = vmatprep.subr.bf16.mxu0 0
        %1898 = vmatpush1.bf16.msra.mxu0 0
        %1899 = vmatprep.subr.bf16.mxu0 0
        %1900 = vmatpush1.bf16.msra.mxu0 0
        %1901 = vmatprep.subr.bf16.mxu0 0
        %1902 = vmatpush1.bf16.msra.mxu0 0
        %1903 = vmatprep.subr.bf16.mxu0 0
        %1904 = vmatpush1.bf16.msra.mxu0 0
        %1905 = vmatprep.subr.bf16.mxu0 0
        %1906 = vmatpush1.bf16.msra.mxu0 0
        %1907 = vmatprep.subr.bf16.mxu0 0
        %1908 = vmatpush1.bf16.msra.mxu0 0
        %1909 = vmatprep.subr.bf16.mxu0 0
        %1910 = vmatpush1.bf16.msra.mxu0 0
        %1911 = vmatprep.subr.bf16.mxu0 0
        %1912 = vmatpush1.bf16.msra.mxu0 0
        %1913 = vmatprep.mubr.bf16.mxu0 0
        %1914 = vmatmul.mubr.bf16.gmra.mrb[0].mxu0 %v1728
        %v1915 = vpop.f32.mrb[0].mxu0
        %v1916 = vadd.f32 0.0, %v1915
        %v1917 = vpop.f32.mrb[0].mxu0
        %v1918 = vpop.f32.mrb[0].mxu0
        %v1919 = vadd.f32 0.0, %v1918
        %v1920 = vpop.f32.mrb[0].mxu0
        %1921 = vmatprep.mubr.bf16.mxu0 0
        %1922 = vmatmul.mubr.bf16.gmra.mrb[0].mxu0 %v1731
        %v1923 = vpop.f32.mrb[0].mxu0
        %v1924 = vadd.f32 0.0, %v1923
        %v1925 = vpop.f32.mrb[0].mxu0
        %v1926 = vpop.f32.mrb[0].mxu0
        %v1927 = vadd.f32 0.0, %v1926
        %v1928 = vpop.f32.mrb[0].mxu0
        %1929 = vmatprep.mubr.bf16.mxu0 0
        %1930 = vmatmul.mubr.bf16.gmra.mrb[0].mxu0 %v1734
        %v1931 = vpop.f32.mrb[0].mxu0
        %v1932 = vadd.f32 0.0, %v1931
        %v1933 = vpop.f32.mrb[0].mxu0
        %v1934 = vpop.f32.mrb[0].mxu0
        %v1935 = vadd.f32 0.0, %v1934
        %v1936 = vpop.f32.mrb[0].mxu0
        %1937 = vmatprep.mubr.bf16.mxu0 0
        %1938 = vmatmul.mubr.bf16.gmra.mrb[0].mxu0 %v1737
        %v1939 = vpop.f32.mrb[0].mxu0
        %v1940 = vadd.f32 0.0, %v1939
        %v1941 = vpop.f32.mrb[0].mxu0
        %v1942 = vpop.f32.mrb[0].mxu0
        %v1943 = vadd.f32 0.0, %v1942
        %v1944 = vpop.f32.mrb[0].mxu0
        %1945 = vmatprep.mubr.bf16.mxu0 0
        %1946 = vmatmul.mubr.bf16.gmra.mrb[0].mxu0 %v1740
        %v1947 = vpop.f32.mrb[0].mxu0
        %v1948 = vadd.f32 0.0, %v1947
        %v1949 = vpop.f32.mrb[0].mxu0
        %v1950 = vpop.f32.mrb[0].mxu0
        %v1951 = vadd.f32 0.0, %v1950
        %v1952 = vpop.f32.mrb[0].mxu0
        %1953 = vmatprep.mubr.bf16.mxu0 0
        %1954 = vmatmul.mubr.bf16.gmra.mrb[0].mxu0 %v1743
        %v1955 = vpop.f32.mrb[0].mxu0
        %v1956 = vadd.f32 0.0, %v1955
        %v1957 = vpop.f32.mrb[0].mxu0
        %v1958 = vpop.f32.mrb[0].mxu0
        %v1959 = vadd.f32 0.0, %v1958
        %v1960 = vpop.f32.mrb[0].mxu0
        %1961 = vmatprep.mubr.bf16.mxu0 0
        %1962 = vmatmul.mubr.bf16.gmra.mrb[0].mxu0 %v1746
        %v1963 = vpop.f32.mrb[0].mxu0
        %v1964 = vadd.f32 0.0, %v1963
        %v1965 = vpop.f32.mrb[0].mxu0
        %v1966 = vpop.f32.mrb[0].mxu0
        %v1967 = vadd.f32 0.0, %v1966
        %v1968 = vpop.f32.mrb[0].mxu0
        %1969 = vmatprep.mubr.bf16.mxu0 0
        %1970 = vmatmul.mubr.bf16.gmra.mrb[0].mxu0 %v1749
        %v1971 = vpop.f32.mrb[0].mxu0
        %v1972 = vadd.f32 0.0, %v1971
        %v1973 = vpop.f32.mrb[0].mxu0
        %v1974 = vpop.f32.mrb[0].mxu0
        %v1975 = vadd.f32 0.0, %v1974
        %v1976 = vpop.f32.mrb[0].mxu0
        %1977 = vdwg.mxu0
        %s1978 = scalar_lea.vmem [#allocation8], 64
        %v1979 = vld [vmem:[%s1978] sm:$0xf]
        %v1980 = vld [vmem:[%s1978 + $0x4] sm:$0xf]
        %v1981 = vld [vmem:[%s1978 + $0x8] sm:$0xf]
        %v1982 = vld [vmem:[%s1978 + $0xc] sm:$0xf]
        %v1983 = vld [vmem:[%s1978 + $0x10] sm:$0xf]
        %v1984 = vld [vmem:[%s1978 + $0x14] sm:$0xf]
        %v1985 = vld [vmem:[%s1978 + $0x18] sm:$0xf]
        %v1986 = vld [vmem:[%s1978 + $0x1c] sm:$0xf]
        %v1995 = vunpack.c.l.b16 %v1979
        %v1996 = vunpack.c.l.b16 %v1980
        %v1997 = vunpack.c.l.b16 %v1981
        %v1998 = vunpack.c.l.b16 %v1982
        %v1999 = vunpack.c.l.b16 %v1983
        %v2000 = vunpack.c.l.b16 %v1984
        %v2001 = vunpack.c.l.b16 %v1985
        %v2002 = vunpack.c.l.b16 %v1986
        %v2003 = vpack.c.b16 %v1996, %v1995
        %v2004 = vpack.c.b16 %v1998, %v1997
        %v2005 = vpack.c.b16 %v2000, %v1999
        %v2006 = vpack.c.b16 %v2002, %v2001
        %2011 = vmatprep.subr.bf16.mxu0 0
        %2012 = vmatpush1.bf16.msra.mxu0 %v2003
        %2013 = vmatprep.subr.bf16.mxu0 0
        %2014 = vmatpush1.bf16.msra.mxu0 %v2004
        %2015 = vmatprep.subr.bf16.mxu0 0
        %2016 = vmatpush1.bf16.msra.mxu0 %v2005
        %2017 = vmatprep.subr.bf16.mxu0 0
        %2018 = vmatpush1.bf16.msra.mxu0 %v2006
        %2019 = vmatprep.subr.bf16.mxu0 0
        %2020 = vmatpush1.bf16.msra.mxu0 0
        %2021 = vmatprep.subr.bf16.mxu0 0
        %2022 = vmatpush1.bf16.msra.mxu0 0
        %2023 = vmatprep.subr.bf16.mxu0 0
        %2024 = vmatpush1.bf16.msra.mxu0 0
        %2025 = vmatprep.subr.bf16.mxu0 0
        %2026 = vmatpush1.bf16.msra.mxu0 0
        %2027 = vmatprep.subr.bf16.mxu0 0
        %2028 = vmatpush1.bf16.msra.mxu0 0
        %2029 = vmatprep.subr.bf16.mxu0 0
        %2030 = vmatpush1.bf16.msra.mxu0 0
        %2031 = vmatprep.subr.bf16.mxu0 0
        %2032 = vmatpush1.bf16.msra.mxu0 0
        %2033 = vmatprep.subr.bf16.mxu0 0
        %2034 = vmatpush1.bf16.msra.mxu0 0
        %2035 = vmatprep.subr.bf16.mxu0 0
        %2036 = vmatpush1.bf16.msra.mxu0 0
        %2037 = vmatprep.subr.bf16.mxu0 0
        %2038 = vmatpush1.bf16.msra.mxu0 0
        %2039 = vmatprep.subr.bf16.mxu0 0
        %2040 = vmatpush1.bf16.msra.mxu0 0
        %2041 = vmatprep.subr.bf16.mxu0 0
        %2042 = vmatpush1.bf16.msra.mxu0 0
        %2043 = vmatprep.mubr.bf16.mxu0 0
        %2044 = vmatmul.mubr.bf16.gmra.mrb[0].mxu0 %v1728
        %v2045 = vpop.f32.mrb[0].mxu0
        %v2046 = vadd.f32 0.0, %v2045
        %v2047 = vpop.f32.mrb[0].mxu0
        %v2048 = vpop.f32.mrb[0].mxu0
        %v2049 = vadd.f32 0.0, %v2048
        %v2050 = vpop.f32.mrb[0].mxu0
        %2051 = vmatprep.mubr.bf16.mxu0 0
        %2052 = vmatmul.mubr.bf16.gmra.mrb[0].mxu0 %v1731
        %v2053 = vpop.f32.mrb[0].mxu0
        %v2054 = vadd.f32 0.0, %v2053
        %v2055 = vpop.f32.mrb[0].mxu0
        %v2056 = vpop.f32.mrb[0].mxu0
        %v2057 = vadd.f32 0.0, %v2056
        %v2058 = vpop.f32.mrb[0].mxu0
        %2059 = vmatprep.mubr.bf16.mxu0 0
        %2060 = vmatmul.mubr.bf16.gmra.mrb[0].mxu0 %v1734
        %v2061 = vpop.f32.mrb[0].mxu0
        %v2062 = vadd.f32 0.0, %v2061
        %v2063 = vpop.f32.mrb[0].mxu0
        %v2064 = vpop.f32.mrb[0].mxu0
        %v2065 = vadd.f32 0.0, %v2064
        %v2066 = vpop.f32.mrb[0].mxu0
        %2067 = vmatprep.mubr.bf16.mxu0 0
        %2068 = vmatmul.mubr.bf16.gmra.mrb[0].mxu0 %v1737
        %v2069 = vpop.f32.mrb[0].mxu0
        %v2070 = vadd.f32 0.0, %v2069
        %v2071 = vpop.f32.mrb[0].mxu0
        %v2072 = vpop.f32.mrb[0].mxu0
        %v2073 = vadd.f32 0.0, %v2072
        %v2074 = vpop.f32.mrb[0].mxu0
        %2075 = vmatprep.mubr.bf16.mxu0 0
        %2076 = vmatmul.mubr.bf16.gmra.mrb[0].mxu0 %v1740
        %v2077 = vpop.f32.mrb[0].mxu0
        %v2078 = vadd.f32 0.0, %v2077
        %v2079 = vpop.f32.mrb[0].mxu0
        %v2080 = vpop.f32.mrb[0].mxu0
        %v2081 = vadd.f32 0.0, %v2080
        %v2082 = vpop.f32.mrb[0].mxu0
        %2083 = vmatprep.mubr.bf16.mxu0 0
        %2084 = vmatmul.mubr.bf16.gmra.mrb[0].mxu0 %v1743
        %v2085 = vpop.f32.mrb[0].mxu0
        %v2086 = vadd.f32 0.0, %v2085
        %v2087 = vpop.f32.mrb[0].mxu0
        %v2088 = vpop.f32.mrb[0].mxu0
        %v2089 = vadd.f32 0.0, %v2088
        %v2090 = vpop.f32.mrb[0].mxu0
        %2091 = vmatprep.mubr.bf16.mxu0 0
        %2092 = vmatmul.mubr.bf16.gmra.mrb[0].mxu0 %v1746
        %v2093 = vpop.f32.mrb[0].mxu0
        %v2094 = vadd.f32 0.0, %v2093
        %v2095 = vpop.f32.mrb[0].mxu0
        %v2096 = vpop.f32.mrb[0].mxu0
        %v2097 = vadd.f32 0.0, %v2096
        %v2098 = vpop.f32.mrb[0].mxu0
        %2099 = vmatprep.mubr.bf16.mxu0 0
        %2100 = vmatmul.mubr.bf16.gmra.mrb[0].mxu0 %v1749
        %v2101 = vpop.f32.mrb[0].mxu0
        %v2102 = vadd.f32 0.0, %v2101
        %v2103 = vpop.f32.mrb[0].mxu0
        %v2104 = vpop.f32.mrb[0].mxu0
        %v2105 = vadd.f32 0.0, %v2104
        %v2106 = vpop.f32.mrb[0].mxu0
        %2107 = vdwg.mxu0
        %v2109 = vrot.slane %v1845, 7
        %v2126 = vrot.slane %v1786, 7
        %v2127 = vrot.slane %v1789, 7
        %v2128 = vsel %vm1309, %v2126, %v2127
        %v2129 = vrot.slane %v1794, 7
        %v2130 = vsel %vm1309, %v2127, %v2129
        %v2131 = vrot.slane %v1797, 7
        %v2132 = vsel %vm1309, %v2129, %v2131
        %v2133 = vrot.slane %v1802, 7
        %v2134 = vsel %vm1309, %v2131, %v2133
        %v2135 = vrot.slane %v1805, 7
        %v2136 = vsel %vm1309, %v2133, %v2135
        %v2137 = vrot.slane %v1810, 7
        %v2138 = vsel %vm1309, %v2135, %v2137
        %v2139 = vrot.slane %v1813, 7
        %v2140 = vsel %vm1309, %v2137, %v2139
        %v2141 = vrot.slane %v1818, 7
        %v2142 = vsel %vm1309, %v2139, %v2141
        %v2143 = vrot.slane %v1821, 7
        %v2144 = vsel %vm1309, %v2141, %v2143
        %v2145 = vrot.slane %v1826, 7
        %v2146 = vsel %vm1309, %v2143, %v2145
        %v2147 = vrot.slane %v1829, 7
        %v2148 = vsel %vm1309, %v2145, %v2147
        %v2149 = vrot.slane %v1834, 7
        %v2150 = vsel %vm1309, %v2147, %v2149
        %v2151 = vrot.slane %v1837, 7
        %v2152 = vsel %vm1309, %v2149, %v2151
        %v2153 = vrot.slane %v1842, 7
        %v2154 = vsel %vm1309, %v2151, %v2153
        %v2155 = vsel %vm1309, %v2153, %v2109
        %v2172 = vsel %vm1309, %v2109, %v2126
        %v2173 = vmul.f32 %v2172, %v1360
        %v2174 = vmul.f32 %v2128, %v1365
        %v2175 = vmul.f32 %v2130, %v1370
        %v2176 = vmul.f32 %v2132, %v1375
        %v2177 = vmul.f32 %v2134, %v1380
        %v2178 = vmul.f32 %v2136, %v1385
        %v2179 = vmul.f32 %v2138, %v1390
        %v2180 = vmul.f32 %v2140, %v1395
        %v2181 = vmul.f32 %v2142, %v1400
        %v2182 = vmul.f32 %v2144, %v1405
        %v2183 = vmul.f32 %v2146, %v1410
        %v2184 = vmul.f32 %v2148, %v1415
        %v2185 = vmul.f32 %v2150, %v1420
        %v2186 = vmul.f32 %v2152, %v1425
        %v2187 = vmul.f32 %v2154, %v1430
        %v2188 = vmul.f32 %v2155, %v1435
        %v2189 = vadd.f32 %v2173, %v1916
        %v2190 = vadd.f32 %v2174, %v1919
        %v2191 = vadd.f32 %v2175, %v1924
        %v2192 = vadd.f32 %v2176, %v1927
        %v2193 = vadd.f32 %v2177, %v1932
        %v2194 = vadd.f32 %v2178, %v1935
        %v2195 = vadd.f32 %v2179, %v1940
        %v2196 = vadd.f32 %v2180, %v1943
        %v2197 = vadd.f32 %v2181, %v1948
        %v2198 = vadd.f32 %v2182, %v1951
        %v2199 = vadd.f32 %v2183, %v1956
        %v2200 = vadd.f32 %v2184, %v1959
        %v2201 = vadd.f32 %v2185, %v1964
        %v2202 = vadd.f32 %v2186, %v1967
        %v2203 = vadd.f32 %v2187, %v1972
        %v2204 = vadd.f32 %v2188, %v1975
        %v2221 = vrot.slane %v2046, 1
        %v2222 = vrot.slane %v2049, 1
        %v2223 = vsel %vm1485, %v2221, %v2222
        %v2224 = vrot.slane %v2054, 1
        %v2225 = vsel %vm1485, %v2222, %v2224
        %v2226 = vrot.slane %v2057, 1
        %v2227 = vsel %vm1485, %v2224, %v2226
        %v2228 = vrot.slane %v2062, 1
        %v2229 = vsel %vm1485, %v2226, %v2228
        %v2230 = vrot.slane %v2065, 1
        %v2231 = vsel %vm1485, %v2228, %v2230
        %v2232 = vrot.slane %v2070, 1
        %v2233 = vsel %vm1485, %v2230, %v2232
        %v2234 = vrot.slane %v2073, 1
        %v2235 = vsel %vm1485, %v2232, %v2234
        %v2236 = vrot.slane %v2078, 1
        %v2237 = vsel %vm1485, %v2234, %v2236
        %v2238 = vrot.slane %v2081, 1
        %v2239 = vsel %vm1485, %v2236, %v2238
        %v2240 = vrot.slane %v2086, 1
        %v2241 = vsel %vm1485, %v2238, %v2240
        %v2242 = vrot.slane %v2089, 1
        %v2243 = vsel %vm1485, %v2240, %v2242
        %v2244 = vrot.slane %v2094, 1
        %v2245 = vsel %vm1485, %v2242, %v2244
        %v2246 = vrot.slane %v2097, 1
        %v2247 = vsel %vm1485, %v2244, %v2246
        %v2248 = vrot.slane %v2102, 1
        %v2249 = vsel %vm1485, %v2246, %v2248
        %v2250 = vrot.slane %v2105, 1
        %v2251 = vsel %vm1485, %v2248, %v2250
        %v2269 = vsel %vm1485, %v2250, %v2221
        %v2270 = vmul.f32 %v2223, %v1538
        %v2271 = vmul.f32 %v2225, %v1543
        %v2272 = vmul.f32 %v2227, %v1548
        %v2273 = vmul.f32 %v2229, %v1553
        %v2274 = vmul.f32 %v2231, %v1558
        %v2275 = vmul.f32 %v2233, %v1563
        %v2276 = vmul.f32 %v2235, %v1568
        %v2277 = vmul.f32 %v2237, %v1573
        %v2278 = vmul.f32 %v2239, %v1578
        %v2279 = vmul.f32 %v2241, %v1583
        %v2280 = vmul.f32 %v2243, %v1588
        %v2281 = vmul.f32 %v2245, %v1593
        %v2282 = vmul.f32 %v2247, %v1598
        %v2283 = vmul.f32 %v2249, %v1603
        %v2284 = vmul.f32 %v2251, %v1608
        %v2285 = vmul.f32 %v2269, %v1613
        %v2286 = vadd.f32 %v2189, %v2270
        %v2287 = vadd.f32 %v2190, %v2271
        %v2288 = vadd.f32 %v2191, %v2272
        %v2289 = vadd.f32 %v2192, %v2273
        %v2290 = vadd.f32 %v2193, %v2274
        %v2291 = vadd.f32 %v2194, %v2275
        %v2292 = vadd.f32 %v2195, %v2276
        %v2293 = vadd.f32 %v2196, %v2277
        %v2294 = vadd.f32 %v2197, %v2278
        %v2295 = vadd.f32 %v2198, %v2279
        %v2296 = vadd.f32 %v2199, %v2280
        %v2297 = vadd.f32 %v2200, %v2281
        %v2298 = vadd.f32 %v2201, %v2282
        %v2299 = vadd.f32 %v2202, %v2283
        %v2300 = vadd.f32 %v2203, %v2284
        %v2301 = vadd.f32 %v2204, %v2285
        %v2302 = vld [vmem:[#allocation10] sm:$0x1]
        %v2304 = vlaneseq
        %v2305 = vshrl.u32 %v2304, 7
        %v2306 = vsub.s32 0, %v2305
        %v2307 = vrot.slane %v2302, %v2306
        %v2309 = vadd.f32 %v2286, %v2307
        %v2310 = vadd.f32 %v2287, %v2307
        %v2311 = vadd.f32 %v2288, %v2307
        %v2312 = vadd.f32 %v2289, %v2307
        %v2313 = vadd.f32 %v2290, %v2307
        %v2314 = vadd.f32 %v2291, %v2307
        %v2315 = vadd.f32 %v2292, %v2307
        %v2316 = vadd.f32 %v2293, %v2307
        %v2317 = vadd.f32 %v2294, %v2307
        %v2318 = vadd.f32 %v2295, %v2307
        %v2319 = vadd.f32 %v2296, %v2307
        %v2320 = vadd.f32 %v2297, %v2307
        %v2321 = vadd.f32 %v2298, %v2307
        %v2322 = vadd.f32 %v2299, %v2307
        %v2323 = vadd.f32 %v2300, %v2307
        %v2324 = vadd.f32 %v2301, %v2307
        %v2325 = vmax.f32 %v2309, 0.0
        %v2326 = vmax.f32 %v2310, 0.0
        %v2327 = vmax.f32 %v2311, 0.0
        %v2328 = vmax.f32 %v2312, 0.0
        %v2329 = vmax.f32 %v2313, 0.0
        %v2330 = vmax.f32 %v2314, 0.0
        %v2331 = vmax.f32 %v2315, 0.0
        %v2332 = vmax.f32 %v2316, 0.0
        %v2333 = vmax.f32 %v2317, 0.0
        %v2334 = vmax.f32 %v2318, 0.0
        %v2335 = vmax.f32 %v2319, 0.0
        %v2336 = vmax.f32 %v2320, 0.0
        %v2337 = vmax.f32 %v2321, 0.0
        %v2338 = vmax.f32 %v2322, 0.0
        %v2339 = vmax.f32 %v2323, 0.0
        %v2340 = vmax.f32 %v2324, 0.0
        %v2341 = vpack.c.bf16 %v2326, %v2325
        %v2342 = vpack.c.bf16 %v2328, %v2327
        %v2343 = vpack.c.bf16 %v2330, %v2329
        %v2344 = vpack.c.bf16 %v2332, %v2331
        %v2345 = vpack.c.bf16 %v2334, %v2333
        %v2346 = vpack.c.bf16 %v2336, %v2335
        %v2347 = vpack.c.bf16 %v2338, %v2337
        %v2348 = vpack.c.bf16 %v2340, %v2339
        %v2349 = vld [vmem:[%s8] sm:$0xff]
        %v2350 = vld [vmem:[%s8 + $0x8] sm:$0xff]
        %v2351 = vld [vmem:[%s8 + $0x10] sm:$0xff]
        %v2352 = vld [vmem:[%s8 + $0x18] sm:$0xff]
        %v2353 = vld [vmem:[%s8 + $0x20] sm:$0xff]
        %v2354 = vld [vmem:[%s8 + $0x28] sm:$0xff]
        %v2355 = vld [vmem:[%s8 + $0x30] sm:$0xff]
        %v2356 = vld [vmem:[%s8 + $0x38] sm:$0xff]
        %v2357 = vld [vmem:[%s8 + $0x40] sm:$0xff]
        %v2358 = vld [vmem:[%s8 + $0x48] sm:$0xff]
        %v2359 = vld [vmem:[%s8 + $0x50] sm:$0xff]
        %v2360 = vld [vmem:[%s8 + $0x58] sm:$0xff]
        %v2361 = vld [vmem:[%s8 + $0x60] sm:$0xff]
        %v2362 = vld [vmem:[%s8 + $0x68] sm:$0xff]
        %v2363 = vld [vmem:[%s8 + $0x70] sm:$0xff]
        %v2364 = vld [vmem:[%s8 + $0x78] sm:$0xff]
        %v2381 = vunpack.c.l.b16 %v2349
        %v2382 = vunpack.c.h.b16 %v2349
        %v2383 = vunpack.c.l.b16 %v2350
        %v2384 = vunpack.c.h.b16 %v2350
        %v2385 = vunpack.c.l.b16 %v2351
        %v2386 = vunpack.c.h.b16 %v2351
        %v2387 = vunpack.c.l.b16 %v2352
        %v2388 = vunpack.c.h.b16 %v2352
        %v2389 = vunpack.c.l.b16 %v2353
        %v2390 = vunpack.c.h.b16 %v2353
        %v2391 = vunpack.c.l.b16 %v2354
        %v2392 = vunpack.c.h.b16 %v2354
        %v2393 = vunpack.c.l.b16 %v2355
        %v2394 = vunpack.c.h.b16 %v2355
        %v2395 = vunpack.c.l.b16 %v2356
        %v2396 = vunpack.c.h.b16 %v2356
        %v2397 = vunpack.c.l.b16 %v2357
        %v2398 = vunpack.c.h.b16 %v2357
        %v2399 = vunpack.c.l.b16 %v2358
        %v2400 = vunpack.c.h.b16 %v2358
        %v2401 = vunpack.c.l.b16 %v2359
        %v2402 = vunpack.c.h.b16 %v2359
        %v2403 = vunpack.c.l.b16 %v2360
        %v2404 = vunpack.c.h.b16 %v2360
        %v2405 = vunpack.c.l.b16 %v2361
        %v2406 = vunpack.c.h.b16 %v2361
        %v2407 = vunpack.c.l.b16 %v2362
        %v2408 = vunpack.c.h.b16 %v2362
        %v2409 = vunpack.c.l.b16 %v2363
        %v2410 = vunpack.c.h.b16 %v2363
        %v2411 = vunpack.c.l.b16 %v2364
        %v2412 = vunpack.c.h.b16 %v2364
        %v2413 = vpack.c.b16 %v2383, %v2381
        %v2414 = vpack.c.b16 %v2384, %v2382
        %v2415 = vpack.c.b16 %v2387, %v2385
        %v2416 = vpack.c.b16 %v2388, %v2386
        %v2417 = vpack.c.b16 %v2391, %v2389
        %v2418 = vpack.c.b16 %v2392, %v2390
        %v2419 = vpack.c.b16 %v2395, %v2393
        %v2420 = vpack.c.b16 %v2396, %v2394
        %v2421 = vpack.c.b16 %v2399, %v2397
        %v2422 = vpack.c.b16 %v2400, %v2398
        %v2423 = vpack.c.b16 %v2403, %v2401
        %v2424 = vpack.c.b16 %v2404, %v2402
        %v2425 = vpack.c.b16 %v2407, %v2405
        %v2426 = vpack.c.b16 %v2408, %v2406
        %v2427 = vpack.c.b16 %v2411, %v2409
        %v2428 = vpack.c.b16 %v2412, %v2410
        %2445 = vmatprep.subr.bf16.mxu0 %v2414
        %2446 = vmatpush1.bf16.msra.mxu0 %v2413
        %2447 = vmatprep.subr.bf16.mxu0 %v2416
        %2448 = vmatpush1.bf16.msra.mxu0 %v2415
        %2449 = vmatprep.subr.bf16.mxu0 %v2418
        %2450 = vmatpush1.bf16.msra.mxu0 %v2417
        %2451 = vmatprep.subr.bf16.mxu0 %v2420
        %2452 = vmatpush1.bf16.msra.mxu0 %v2419
        %2453 = vmatprep.subr.bf16.mxu0 %v2422
        %2454 = vmatpush1.bf16.msra.mxu0 %v2421
        %2455 = vmatprep.subr.bf16.mxu0 %v2424
        %2456 = vmatpush1.bf16.msra.mxu0 %v2423
        %2457 = vmatprep.subr.bf16.mxu0 %v2426
        %2458 = vmatpush1.bf16.msra.mxu0 %v2425
        %2459 = vmatprep.subr.bf16.mxu0 %v2428
        %2460 = vmatpush1.bf16.msra.mxu0 %v2427
        %2461 = vmatprep.subr.bf16.mxu0 0
        %2462 = vmatpush1.bf16.msra.mxu0 0
        %2463 = vmatprep.subr.bf16.mxu0 0
        %2464 = vmatpush1.bf16.msra.mxu0 0
        %2465 = vmatprep.subr.bf16.mxu0 0
        %2466 = vmatpush1.bf16.msra.mxu0 0
        %2467 = vmatprep.subr.bf16.mxu0 0
        %2468 = vmatpush1.bf16.msra.mxu0 0
        %2469 = vmatprep.subr.bf16.mxu0 0
        %2470 = vmatpush1.bf16.msra.mxu0 0
        %2471 = vmatprep.subr.bf16.mxu0 0
        %2472 = vmatpush1.bf16.msra.mxu0 0
        %2473 = vmatprep.subr.bf16.mxu0 0
        %2474 = vmatpush1.bf16.msra.mxu0 0
        %2475 = vmatprep.subr.bf16.mxu0 0
        %2476 = vmatpush1.bf16.msra.mxu0 0
        %2477 = vmatprep.mubr.bf16.mxu0 0
        %2478 = vmatmul.mubr.bf16.gmra.mrb[0].mxu0 %v2341
        %v2479 = vpop.f32.mrb[0].mxu0
        %v2480 = vadd.f32 0.0, %v2479
        %v2481 = vpop.f32.mrb[0].mxu0
        %v2482 = vadd.f32 0.0, %v2481
        %v2483 = vpop.f32.mrb[0].mxu0
        %v2484 = vadd.f32 0.0, %v2483
        %v2485 = vpop.f32.mrb[0].mxu0
        %v2486 = vadd.f32 0.0, %v2485
        %2487 = vmatprep.mubr.bf16.mxu0 0
        %2488 = vmatmul.mubr.bf16.gmra.mrb[0].mxu0 %v2342
        %v2489 = vpop.f32.mrb[0].mxu0
        %v2490 = vadd.f32 0.0, %v2489
        %v2491 = vpop.f32.mrb[0].mxu0
        %v2492 = vadd.f32 0.0, %v2491
        %v2493 = vpop.f32.mrb[0].mxu0
        %v2494 = vadd.f32 0.0, %v2493
        %v2495 = vpop.f32.mrb[0].mxu0
        %v2496 = vadd.f32 0.0, %v2495
        %2497 = vmatprep.mubr.bf16.mxu0 0
        %2498 = vmatmul.mubr.bf16.gmra.mrb[0].mxu0 %v2343
        %v2499 = vpop.f32.mrb[0].mxu0
        %v2500 = vadd.f32 0.0, %v2499
        %v2501 = vpop.f32.mrb[0].mxu0
        %v2502 = vadd.f32 0.0, %v2501
        %v2503 = vpop.f32.mrb[0].mxu0
        %v2504 = vadd.f32 0.0, %v2503
        %v2505 = vpop.f32.mrb[0].mxu0
        %v2506 = vadd.f32 0.0, %v2505
        %2507 = vmatprep.mubr.bf16.mxu0 0
        %2508 = vmatmul.mubr.bf16.gmra.mrb[0].mxu0 %v2344
        %v2509 = vpop.f32.mrb[0].mxu0
        %v2510 = vadd.f32 0.0, %v2509
        %v2511 = vpop.f32.mrb[0].mxu0
        %v2512 = vadd.f32 0.0, %v2511
        %v2513 = vpop.f32.mrb[0].mxu0
        %v2514 = vadd.f32 0.0, %v2513
        %v2515 = vpop.f32.mrb[0].mxu0
        %v2516 = vadd.f32 0.0, %v2515
        %2517 = vmatprep.mubr.bf16.mxu0 0
        %2518 = vmatmul.mubr.bf16.gmra.mrb[0].mxu0 %v2345
        %v2519 = vpop.f32.mrb[0].mxu0
        %v2520 = vadd.f32 0.0, %v2519
        %v2521 = vpop.f32.mrb[0].mxu0
        %v2522 = vadd.f32 0.0, %v2521
        %v2523 = vpop.f32.mrb[0].mxu0
        %v2524 = vadd.f32 0.0, %v2523
        %v2525 = vpop.f32.mrb[0].mxu0
        %v2526 = vadd.f32 0.0, %v2525
        %2527 = vmatprep.mubr.bf16.mxu0 0
        %2528 = vmatmul.mubr.bf16.gmra.mrb[0].mxu0 %v2346
        %v2529 = vpop.f32.mrb[0].mxu0
        %v2530 = vadd.f32 0.0, %v2529
        %v2531 = vpop.f32.mrb[0].mxu0
        %v2532 = vadd.f32 0.0, %v2531
        %v2533 = vpop.f32.mrb[0].mxu0
        %v2534 = vadd.f32 0.0, %v2533
        %v2535 = vpop.f32.mrb[0].mxu0
        %v2536 = vadd.f32 0.0, %v2535
        %2537 = vmatprep.mubr.bf16.mxu0 0
        %2538 = vmatmul.mubr.bf16.gmra.mrb[0].mxu0 %v2347
        %v2539 = vpop.f32.mrb[0].mxu0
        %v2540 = vadd.f32 0.0, %v2539
        %v2541 = vpop.f32.mrb[0].mxu0
        %v2542 = vadd.f32 0.0, %v2541
        %v2543 = vpop.f32.mrb[0].mxu0
        %v2544 = vadd.f32 0.0, %v2543
        %v2545 = vpop.f32.mrb[0].mxu0
        %v2546 = vadd.f32 0.0, %v2545
        %2547 = vmatprep.mubr.bf16.mxu0 0
        %2548 = vmatmul.mubr.bf16.gmra.mrb[0].mxu0 %v2348
        %v2549 = vpop.f32.mrb[0].mxu0
        %v2550 = vadd.f32 0.0, %v2549
        %v2551 = vpop.f32.mrb[0].mxu0
        %v2552 = vadd.f32 0.0, %v2551
        %v2553 = vpop.f32.mrb[0].mxu0
        %v2554 = vadd.f32 0.0, %v2553
        %v2555 = vpop.f32.mrb[0].mxu0
        %v2556 = vadd.f32 0.0, %v2555
        %2557 = vdwg.mxu0
        %s2558 = scalar_lea.vmem %s8, 128
        %v2559 = vld [vmem:[%s2558] sm:$0xff]
        %v2560 = vld [vmem:[%s2558 + $0x8] sm:$0xff]
        %v2561 = vld [vmem:[%s2558 + $0x10] sm:$0xff]
        %v2562 = vld [vmem:[%s2558 + $0x18] sm:$0xff]
        %v2563 = vld [vmem:[%s2558 + $0x20] sm:$0xff]
        %v2564 = vld [vmem:[%s2558 + $0x28] sm:$0xff]
        %v2565 = vld [vmem:[%s2558 + $0x30] sm:$0xff]
        %v2566 = vld [vmem:[%s2558 + $0x38] sm:$0xff]
        %v2567 = vld [vmem:[%s2558 + $0x40] sm:$0xff]
        %v2568 = vld [vmem:[%s2558 + $0x48] sm:$0xff]
        %v2569 = vld [vmem:[%s2558 + $0x50] sm:$0xff]
        %v2570 = vld [vmem:[%s2558 + $0x58] sm:$0xff]
        %v2571 = vld [vmem:[%s2558 + $0x60] sm:$0xff]
        %v2572 = vld [vmem:[%s2558 + $0x68] sm:$0xff]
        %v2573 = vld [vmem:[%s2558 + $0x70] sm:$0xff]
        %v2574 = vld [vmem:[%s2558 + $0x78] sm:$0xff]
        %v2591 = vunpack.c.l.b16 %v2559
        %v2592 = vunpack.c.h.b16 %v2559
        %v2593 = vunpack.c.l.b16 %v2560
        %v2594 = vunpack.c.h.b16 %v2560
        %v2595 = vunpack.c.l.b16 %v2561
        %v2596 = vunpack.c.h.b16 %v2561
        %v2597 = vunpack.c.l.b16 %v2562
        %v2598 = vunpack.c.h.b16 %v2562
        %v2599 = vunpack.c.l.b16 %v2563
        %v2600 = vunpack.c.h.b16 %v2563
        %v2601 = vunpack.c.l.b16 %v2564
        %v2602 = vunpack.c.h.b16 %v2564
        %v2603 = vunpack.c.l.b16 %v2565
        %v2604 = vunpack.c.h.b16 %v2565
        %v2605 = vunpack.c.l.b16 %v2566
        %v2606 = vunpack.c.h.b16 %v2566
        %v2607 = vunpack.c.l.b16 %v2567
        %v2608 = vunpack.c.h.b16 %v2567
        %v2609 = vunpack.c.l.b16 %v2568
        %v2610 = vunpack.c.h.b16 %v2568
        %v2611 = vunpack.c.l.b16 %v2569
        %v2612 = vunpack.c.h.b16 %v2569
        %v2613 = vunpack.c.l.b16 %v2570
        %v2614 = vunpack.c.h.b16 %v2570
        %v2615 = vunpack.c.l.b16 %v2571
        %v2616 = vunpack.c.h.b16 %v2571
        %v2617 = vunpack.c.l.b16 %v2572
        %v2618 = vunpack.c.h.b16 %v2572
        %v2619 = vunpack.c.l.b16 %v2573
        %v2620 = vunpack.c.h.b16 %v2573
        %v2621 = vunpack.c.l.b16 %v2574
        %v2622 = vunpack.c.h.b16 %v2574
        %v2623 = vpack.c.b16 %v2593, %v2591
        %v2624 = vpack.c.b16 %v2594, %v2592
        %v2625 = vpack.c.b16 %v2597, %v2595
        %v2626 = vpack.c.b16 %v2598, %v2596
        %v2627 = vpack.c.b16 %v2601, %v2599
        %v2628 = vpack.c.b16 %v2602, %v2600
        %v2629 = vpack.c.b16 %v2605, %v2603
        %v2630 = vpack.c.b16 %v2606, %v2604
        %v2631 = vpack.c.b16 %v2609, %v2607
        %v2632 = vpack.c.b16 %v2610, %v2608
        %v2633 = vpack.c.b16 %v2613, %v2611
        %v2634 = vpack.c.b16 %v2614, %v2612
        %v2635 = vpack.c.b16 %v2617, %v2615
        %v2636 = vpack.c.b16 %v2618, %v2616
        %v2637 = vpack.c.b16 %v2621, %v2619
        %v2638 = vpack.c.b16 %v2622, %v2620
        %2655 = vmatprep.subr.bf16.mxu0 %v2624
        %2656 = vmatpush1.bf16.msra.mxu0 %v2623
        %2657 = vmatprep.subr.bf16.mxu0 %v2626
        %2658 = vmatpush1.bf16.msra.mxu0 %v2625
        %2659 = vmatprep.subr.bf16.mxu0 %v2628
        %2660 = vmatpush1.bf16.msra.mxu0 %v2627
        %2661 = vmatprep.subr.bf16.mxu0 %v2630
        %2662 = vmatpush1.bf16.msra.mxu0 %v2629
        %2663 = vmatprep.subr.bf16.mxu0 %v2632
        %2664 = vmatpush1.bf16.msra.mxu0 %v2631
        %2665 = vmatprep.subr.bf16.mxu0 %v2634
        %2666 = vmatpush1.bf16.msra.mxu0 %v2633
        %2667 = vmatprep.subr.bf16.mxu0 %v2636
        %2668 = vmatpush1.bf16.msra.mxu0 %v2635
        %2669 = vmatprep.subr.bf16.mxu0 %v2638
        %2670 = vmatpush1.bf16.msra.mxu0 %v2637
        %2671 = vmatprep.subr.bf16.mxu0 0
        %2672 = vmatpush1.bf16.msra.mxu0 0
        %2673 = vmatprep.subr.bf16.mxu0 0
        %2674 = vmatpush1.bf16.msra.mxu0 0
        %2675 = vmatprep.subr.bf16.mxu0 0
        %2676 = vmatpush1.bf16.msra.mxu0 0
        %2677 = vmatprep.subr.bf16.mxu0 0
        %2678 = vmatpush1.bf16.msra.mxu0 0
        %2679 = vmatprep.subr.bf16.mxu0 0
        %2680 = vmatpush1.bf16.msra.mxu0 0
        %2681 = vmatprep.subr.bf16.mxu0 0
        %2682 = vmatpush1.bf16.msra.mxu0 0
        %2683 = vmatprep.subr.bf16.mxu0 0
        %2684 = vmatpush1.bf16.msra.mxu0 0
        %2685 = vmatprep.subr.bf16.mxu0 0
        %2686 = vmatpush1.bf16.msra.mxu0 0
        %2687 = vmatprep.mubr.bf16.mxu0 0
        %2688 = vmatmul.mubr.bf16.gmra.mrb[0].mxu0 %v2341
        %v2689 = vpop.f32.mrb[0].mxu0
        %v2690 = vadd.f32 0.0, %v2689
        %v2691 = vpop.f32.mrb[0].mxu0
        %v2692 = vadd.f32 0.0, %v2691
        %v2693 = vpop.f32.mrb[0].mxu0
        %v2694 = vadd.f32 0.0, %v2693
        %v2695 = vpop.f32.mrb[0].mxu0
        %v2696 = vadd.f32 0.0, %v2695
        %2697 = vmatprep.mubr.bf16.mxu0 0
        %2698 = vmatmul.mubr.bf16.gmra.mrb[0].mxu0 %v2342
        %v2699 = vpop.f32.mrb[0].mxu0
        %v2700 = vadd.f32 0.0, %v2699
        %v2701 = vpop.f32.mrb[0].mxu0
        %v2702 = vadd.f32 0.0, %v2701
        %v2703 = vpop.f32.mrb[0].mxu0
        %v2704 = vadd.f32 0.0, %v2703
        %v2705 = vpop.f32.mrb[0].mxu0
        %v2706 = vadd.f32 0.0, %v2705
        %2707 = vmatprep.mubr.bf16.mxu0 0
        %2708 = vmatmul.mubr.bf16.gmra.mrb[0].mxu0 %v2343
        %v2709 = vpop.f32.mrb[0].mxu0
        %v2710 = vadd.f32 0.0, %v2709
        %v2711 = vpop.f32.mrb[0].mxu0
        %v2712 = vadd.f32 0.0, %v2711
        %v2713 = vpop.f32.mrb[0].mxu0
        %v2714 = vadd.f32 0.0, %v2713
        %v2715 = vpop.f32.mrb[0].mxu0
        %v2716 = vadd.f32 0.0, %v2715
        %2717 = vmatprep.mubr.bf16.mxu0 0
        %2718 = vmatmul.mubr.bf16.gmra.mrb[0].mxu0 %v2344
        %v2719 = vpop.f32.mrb[0].mxu0
        %v2720 = vadd.f32 0.0, %v2719
        %v2721 = vpop.f32.mrb[0].mxu0
        %v2722 = vadd.f32 0.0, %v2721
        %v2723 = vpop.f32.mrb[0].mxu0
        %v2724 = vadd.f32 0.0, %v2723
        %v2725 = vpop.f32.mrb[0].mxu0
        %v2726 = vadd.f32 0.0, %v2725
        %2727 = vmatprep.mubr.bf16.mxu0 0
        %2728 = vmatmul.mubr.bf16.gmra.mrb[0].mxu0 %v2345
        %v2729 = vpop.f32.mrb[0].mxu0
        %v2730 = vadd.f32 0.0, %v2729
        %v2731 = vpop.f32.mrb[0].mxu0
        %v2732 = vadd.f32 0.0, %v2731
        %v2733 = vpop.f32.mrb[0].mxu0
        %v2734 = vadd.f32 0.0, %v2733
        %v2735 = vpop.f32.mrb[0].mxu0
        %v2736 = vadd.f32 0.0, %v2735
        %2737 = vmatprep.mubr.bf16.mxu0 0
        %2738 = vmatmul.mubr.bf16.gmra.mrb[0].mxu0 %v2346
        %v2739 = vpop.f32.mrb[0].mxu0
        %v2740 = vadd.f32 0.0, %v2739
        %v2741 = vpop.f32.mrb[0].mxu0
        %v2742 = vadd.f32 0.0, %v2741
        %v2743 = vpop.f32.mrb[0].mxu0
        %v2744 = vadd.f32 0.0, %v2743
        %v2745 = vpop.f32.mrb[0].mxu0
        %v2746 = vadd.f32 0.0, %v2745
        %2747 = vmatprep.mubr.bf16.mxu0 0
        %2748 = vmatmul.mubr.bf16.gmra.mrb[0].mxu0 %v2347
        %v2749 = vpop.f32.mrb[0].mxu0
        %v2750 = vadd.f32 0.0, %v2749
        %v2751 = vpop.f32.mrb[0].mxu0
        %v2752 = vadd.f32 0.0, %v2751
        %v2753 = vpop.f32.mrb[0].mxu0
        %v2754 = vadd.f32 0.0, %v2753
        %v2755 = vpop.f32.mrb[0].mxu0
        %v2756 = vadd.f32 0.0, %v2755
        %2757 = vmatprep.mubr.bf16.mxu0 0
        %2758 = vmatmul.mubr.bf16.gmra.mrb[0].mxu0 %v2348
        %v2759 = vpop.f32.mrb[0].mxu0
        %v2760 = vadd.f32 0.0, %v2759
        %v2761 = vpop.f32.mrb[0].mxu0
        %v2762 = vadd.f32 0.0, %v2761
        %v2763 = vpop.f32.mrb[0].mxu0
        %v2764 = vadd.f32 0.0, %v2763
        %v2765 = vpop.f32.mrb[0].mxu0
        %v2766 = vadd.f32 0.0, %v2765
        %2767 = vdwg.mxu0
        %s2768 = scalar_lea.vmem %s8, 256
        %v2769 = vld [vmem:[%s2768] sm:$0xff]
        %v2770 = vld [vmem:[%s2768 + $0x8] sm:$0xff]
        %v2771 = vld [vmem:[%s2768 + $0x10] sm:$0xff]
        %v2772 = vld [vmem:[%s2768 + $0x18] sm:$0xff]
        %v2773 = vld [vmem:[%s2768 + $0x20] sm:$0xff]
        %v2774 = vld [vmem:[%s2768 + $0x28] sm:$0xff]
        %v2775 = vld [vmem:[%s2768 + $0x30] sm:$0xff]
        %v2776 = vld [vmem:[%s2768 + $0x38] sm:$0xff]
        %v2777 = vld [vmem:[%s2768 + $0x40] sm:$0xff]
        %v2778 = vld [vmem:[%s2768 + $0x48] sm:$0xff]
        %v2779 = vld [vmem:[%s2768 + $0x50] sm:$0xff]
        %v2780 = vld [vmem:[%s2768 + $0x58] sm:$0xff]
        %v2781 = vld [vmem:[%s2768 + $0x60] sm:$0xff]
        %v2782 = vld [vmem:[%s2768 + $0x68] sm:$0xff]
        %v2783 = vld [vmem:[%s2768 + $0x70] sm:$0xff]
        %v2784 = vld [vmem:[%s2768 + $0x78] sm:$0xff]
        %v2801 = vunpack.c.l.b16 %v2769
        %v2802 = vunpack.c.h.b16 %v2769
        %v2803 = vunpack.c.l.b16 %v2770
        %v2804 = vunpack.c.h.b16 %v2770
        %v2805 = vunpack.c.l.b16 %v2771
        %v2806 = vunpack.c.h.b16 %v2771
        %v2807 = vunpack.c.l.b16 %v2772
        %v2808 = vunpack.c.h.b16 %v2772
        %v2809 = vunpack.c.l.b16 %v2773
        %v2810 = vunpack.c.h.b16 %v2773
        %v2811 = vunpack.c.l.b16 %v2774
        %v2812 = vunpack.c.h.b16 %v2774
        %v2813 = vunpack.c.l.b16 %v2775
        %v2814 = vunpack.c.h.b16 %v2775
        %v2815 = vunpack.c.l.b16 %v2776
        %v2816 = vunpack.c.h.b16 %v2776
        %v2817 = vunpack.c.l.b16 %v2777
        %v2818 = vunpack.c.h.b16 %v2777
        %v2819 = vunpack.c.l.b16 %v2778
        %v2820 = vunpack.c.h.b16 %v2778
        %v2821 = vunpack.c.l.b16 %v2779
        %v2822 = vunpack.c.h.b16 %v2779
        %v2823 = vunpack.c.l.b16 %v2780
        %v2824 = vunpack.c.h.b16 %v2780
        %v2825 = vunpack.c.l.b16 %v2781
        %v2826 = vunpack.c.h.b16 %v2781
        %v2827 = vunpack.c.l.b16 %v2782
        %v2828 = vunpack.c.h.b16 %v2782
        %v2829 = vunpack.c.l.b16 %v2783
        %v2830 = vunpack.c.h.b16 %v2783
        %v2831 = vunpack.c.l.b16 %v2784
        %v2832 = vunpack.c.h.b16 %v2784
        %v2833 = vpack.c.b16 %v2803, %v2801
        %v2834 = vpack.c.b16 %v2804, %v2802
        %v2835 = vpack.c.b16 %v2807, %v2805
        %v2836 = vpack.c.b16 %v2808, %v2806
        %v2837 = vpack.c.b16 %v2811, %v2809
        %v2838 = vpack.c.b16 %v2812, %v2810
        %v2839 = vpack.c.b16 %v2815, %v2813
        %v2840 = vpack.c.b16 %v2816, %v2814
        %v2841 = vpack.c.b16 %v2819, %v2817
        %v2842 = vpack.c.b16 %v2820, %v2818
        %v2843 = vpack.c.b16 %v2823, %v2821
        %v2844 = vpack.c.b16 %v2824, %v2822
        %v2845 = vpack.c.b16 %v2827, %v2825
        %v2846 = vpack.c.b16 %v2828, %v2826
        %v2847 = vpack.c.b16 %v2831, %v2829
        %v2848 = vpack.c.b16 %v2832, %v2830
        %2865 = vmatprep.subr.bf16.mxu0 %v2834
        %2866 = vmatpush1.bf16.msra.mxu0 %v2833
        %2867 = vmatprep.subr.bf16.mxu0 %v2836
        %2868 = vmatpush1.bf16.msra.mxu0 %v2835
        %2869 = vmatprep.subr.bf16.mxu0 %v2838
        %2870 = vmatpush1.bf16.msra.mxu0 %v2837
        %2871 = vmatprep.subr.bf16.mxu0 %v2840
        %2872 = vmatpush1.bf16.msra.mxu0 %v2839
        %2873 = vmatprep.subr.bf16.mxu0 %v2842
        %2874 = vmatpush1.bf16.msra.mxu0 %v2841
        %2875 = vmatprep.subr.bf16.mxu0 %v2844
        %2876 = vmatpush1.bf16.msra.mxu0 %v2843
        %2877 = vmatprep.subr.bf16.mxu0 %v2846
        %2878 = vmatpush1.bf16.msra.mxu0 %v2845
        %2879 = vmatprep.subr.bf16.mxu0 %v2848
        %2880 = vmatpush1.bf16.msra.mxu0 %v2847
        %2881 = vmatprep.subr.bf16.mxu0 0
        %2882 = vmatpush1.bf16.msra.mxu0 0
        %2883 = vmatprep.subr.bf16.mxu0 0
        %2884 = vmatpush1.bf16.msra.mxu0 0
        %2885 = vmatprep.subr.bf16.mxu0 0
        %2886 = vmatpush1.bf16.msra.mxu0 0
        %2887 = vmatprep.subr.bf16.mxu0 0
        %2888 = vmatpush1.bf16.msra.mxu0 0
        %2889 = vmatprep.subr.bf16.mxu0 0
        %2890 = vmatpush1.bf16.msra.mxu0 0
        %2891 = vmatprep.subr.bf16.mxu0 0
        %2892 = vmatpush1.bf16.msra.mxu0 0
        %2893 = vmatprep.subr.bf16.mxu0 0
        %2894 = vmatpush1.bf16.msra.mxu0 0
        %2895 = vmatprep.subr.bf16.mxu0 0
        %2896 = vmatpush1.bf16.msra.mxu0 0
        %2897 = vmatprep.mubr.bf16.mxu0 0
        %2898 = vmatmul.mubr.bf16.gmra.mrb[0].mxu0 %v2341
        %v2899 = vpop.f32.mrb[0].mxu0
        %v2900 = vadd.f32 0.0, %v2899
        %v2901 = vpop.f32.mrb[0].mxu0
        %v2902 = vadd.f32 0.0, %v2901
        %v2903 = vpop.f32.mrb[0].mxu0
        %v2904 = vadd.f32 0.0, %v2903
        %v2905 = vpop.f32.mrb[0].mxu0
        %v2906 = vadd.f32 0.0, %v2905
        %2907 = vmatprep.mubr.bf16.mxu0 0
        %2908 = vmatmul.mubr.bf16.gmra.mrb[0].mxu0 %v2342
        %v2909 = vpop.f32.mrb[0].mxu0
        %v2910 = vadd.f32 0.0, %v2909
        %v2911 = vpop.f32.mrb[0].mxu0
        %v2912 = vadd.f32 0.0, %v2911
        %v2913 = vpop.f32.mrb[0].mxu0
        %v2914 = vadd.f32 0.0, %v2913
        %v2915 = vpop.f32.mrb[0].mxu0
        %v2916 = vadd.f32 0.0, %v2915
        %2917 = vmatprep.mubr.bf16.mxu0 0
        %2918 = vmatmul.mubr.bf16.gmra.mrb[0].mxu0 %v2343
        %v2919 = vpop.f32.mrb[0].mxu0
        %v2920 = vadd.f32 0.0, %v2919
        %v2921 = vpop.f32.mrb[0].mxu0
        %v2922 = vadd.f32 0.0, %v2921
        %v2923 = vpop.f32.mrb[0].mxu0
        %v2924 = vadd.f32 0.0, %v2923
        %v2925 = vpop.f32.mrb[0].mxu0
        %v2926 = vadd.f32 0.0, %v2925
        %2927 = vmatprep.mubr.bf16.mxu0 0
        %2928 = vmatmul.mubr.bf16.gmra.mrb[0].mxu0 %v2344
        %v2929 = vpop.f32.mrb[0].mxu0
        %v2930 = vadd.f32 0.0, %v2929
        %v2931 = vpop.f32.mrb[0].mxu0
        %v2932 = vadd.f32 0.0, %v2931
        %v2933 = vpop.f32.mrb[0].mxu0
        %v2934 = vadd.f32 0.0, %v2933
        %v2935 = vpop.f32.mrb[0].mxu0
        %v2936 = vadd.f32 0.0, %v2935
        %2937 = vmatprep.mubr.bf16.mxu0 0
        %2938 = vmatmul.mubr.bf16.gmra.mrb[0].mxu0 %v2345
        %v2939 = vpop.f32.mrb[0].mxu0
        %v2940 = vadd.f32 0.0, %v2939
        %v2941 = vpop.f32.mrb[0].mxu0
        %v2942 = vadd.f32 0.0, %v2941
        %v2943 = vpop.f32.mrb[0].mxu0
        %v2944 = vadd.f32 0.0, %v2943
        %v2945 = vpop.f32.mrb[0].mxu0
        %v2946 = vadd.f32 0.0, %v2945
        %2947 = vmatprep.mubr.bf16.mxu0 0
        %2948 = vmatmul.mubr.bf16.gmra.mrb[0].mxu0 %v2346
        %v2949 = vpop.f32.mrb[0].mxu0
        %v2950 = vadd.f32 0.0, %v2949
        %v2951 = vpop.f32.mrb[0].mxu0
        %v2952 = vadd.f32 0.0, %v2951
        %v2953 = vpop.f32.mrb[0].mxu0
        %v2954 = vadd.f32 0.0, %v2953
        %v2955 = vpop.f32.mrb[0].mxu0
        %v2956 = vadd.f32 0.0, %v2955
        %2957 = vmatprep.mubr.bf16.mxu0 0
        %2958 = vmatmul.mubr.bf16.gmra.mrb[0].mxu0 %v2347
        %v2959 = vpop.f32.mrb[0].mxu0
        %v2960 = vadd.f32 0.0, %v2959
        %v2961 = vpop.f32.mrb[0].mxu0
        %v2962 = vadd.f32 0.0, %v2961
        %v2963 = vpop.f32.mrb[0].mxu0
        %v2964 = vadd.f32 0.0, %v2963
        %v2965 = vpop.f32.mrb[0].mxu0
        %v2966 = vadd.f32 0.0, %v2965
        %2967 = vmatprep.mubr.bf16.mxu0 0
        %2968 = vmatmul.mubr.bf16.gmra.mrb[0].mxu0 %v2348
        %v2969 = vpop.f32.mrb[0].mxu0
        %v2970 = vadd.f32 0.0, %v2969
        %v2971 = vpop.f32.mrb[0].mxu0
        %v2972 = vadd.f32 0.0, %v2971
        %v2973 = vpop.f32.mrb[0].mxu0
        %v2974 = vadd.f32 0.0, %v2973
        %v2975 = vpop.f32.mrb[0].mxu0
        %v2976 = vadd.f32 0.0, %v2975
        %2977 = vdwg.mxu0
        %v2980 = vrot.slane %v2554, 7
        %v2981 = vrot.slane %v2556, 7
        %v3014 = vrot.slane %v2480, 7
        %v3015 = vrot.slane %v2482, 7
        %v3016 = vrot.slane %v2484, 7
        %v3017 = vsel %vm1309, %v3014, %v3016
        %v3018 = vrot.slane %v2486, 7
        %v3019 = vsel %vm1309, %v3015, %v3018
        %v3020 = vrot.slane %v2490, 7
        %v3021 = vsel %vm1309, %v3016, %v3020
        %v3022 = vrot.slane %v2492, 7
        %v3023 = vsel %vm1309, %v3018, %v3022
        %v3024 = vrot.slane %v2494, 7
        %v3025 = vsel %vm1309, %v3020, %v3024
        %v3026 = vrot.slane %v2496, 7
        %v3027 = vsel %vm1309, %v3022, %v3026
        %v3028 = vrot.slane %v2500, 7
        %v3029 = vsel %vm1309, %v3024, %v3028
        %v3030 = vrot.slane %v2502, 7
        %v3031 = vsel %vm1309, %v3026, %v3030
        %v3032 = vrot.slane %v2504, 7
        %v3033 = vsel %vm1309, %v3028, %v3032
        %v3034 = vrot.slane %v2506, 7
        %v3035 = vsel %vm1309, %v3030, %v3034
        %v3036 = vrot.slane %v2510, 7
        %v3037 = vsel %vm1309, %v3032, %v3036
        %v3038 = vrot.slane %v2512, 7
        %v3039 = vsel %vm1309, %v3034, %v3038
        %v3040 = vrot.slane %v2514, 7
        %v3041 = vsel %vm1309, %v3036, %v3040
        %v3042 = vrot.slane %v2516, 7
        %v3043 = vsel %vm1309, %v3038, %v3042
        %v3044 = vrot.slane %v2520, 7
        %v3045 = vsel %vm1309, %v3040, %v3044
        %v3046 = vrot.slane %v2522, 7
        %v3047 = vsel %vm1309, %v3042, %v3046
        %v3048 = vrot.slane %v2524, 7
        %v3049 = vsel %vm1309, %v3044, %v3048
        %v3050 = vrot.slane %v2526, 7
        %v3051 = vsel %vm1309, %v3046, %v3050
        %v3052 = vrot.slane %v2530, 7
        %v3053 = vsel %vm1309, %v3048, %v3052
        %v3054 = vrot.slane %v2532, 7
        %v3055 = vsel %vm1309, %v3050, %v3054
        %v3056 = vrot.slane %v2534, 7
        %v3057 = vsel %vm1309, %v3052, %v3056
        %v3058 = vrot.slane %v2536, 7
        %v3059 = vsel %vm1309, %v3054, %v3058
        %v3060 = vrot.slane %v2540, 7
        %v3061 = vsel %vm1309, %v3056, %v3060
        %v3062 = vrot.slane %v2542, 7
        %v3063 = vsel %vm1309, %v3058, %v3062
        %v3064 = vrot.slane %v2544, 7
        %v3065 = vsel %vm1309, %v3060, %v3064
        %v3066 = vrot.slane %v2546, 7
        %v3067 = vsel %vm1309, %v3062, %v3066
        %v3068 = vrot.slane %v2550, 7
        %v3069 = vsel %vm1309, %v3064, %v3068
        %v3070 = vrot.slane %v2552, 7
        %v3071 = vsel %vm1309, %v3066, %v3070
        %v3072 = vsel %vm1309, %v3068, %v2980
        %v3073 = vsel %vm1309, %v3070, %v2981
        %v3106 = vsel %vm1309, %v2980, %v3014
        %v3107 = vsel %vm1309, %v2981, %v3015
        %v3108 = vmul.f32 %v3106, %v1360
        %v3109 = vmul.f32 %v3107, %v1360
        %v3110 = vmul.f32 %v3017, %v1365
        %v3111 = vmul.f32 %v3019, %v1365
        %v3112 = vmul.f32 %v3021, %v1370
        %v3113 = vmul.f32 %v3023, %v1370
        %v3114 = vmul.f32 %v3025, %v1375
        %v3115 = vmul.f32 %v3027, %v1375
        %v3116 = vmul.f32 %v3029, %v1380
        %v3117 = vmul.f32 %v3031, %v1380
        %v3118 = vmul.f32 %v3033, %v1385
        %v3119 = vmul.f32 %v3035, %v1385
        %v3120 = vmul.f32 %v3037, %v1390
        %v3121 = vmul.f32 %v3039, %v1390
        %v3122 = vmul.f32 %v3041, %v1395
        %v3123 = vmul.f32 %v3043, %v1395
        %v3124 = vmul.f32 %v3045, %v1400
        %v3125 = vmul.f32 %v3047, %v1400
        %v3126 = vmul.f32 %v3049, %v1405
        %v3127 = vmul.f32 %v3051, %v1405
        %v3128 = vmul.f32 %v3053, %v1410
        %v3129 = vmul.f32 %v3055, %v1410
        %v3130 = vmul.f32 %v3057, %v1415
        %v3131 = vmul.f32 %v3059, %v1415
        %v3132 = vmul.f32 %v3061, %v1420
        %v3133 = vmul.f32 %v3063, %v1420
        %v3134 = vmul.f32 %v3065, %v1425
        %v3135 = vmul.f32 %v3067, %v1425
        %v3136 = vmul.f32 %v3069, %v1430
        %v3137 = vmul.f32 %v3071, %v1430
        %v3138 = vmul.f32 %v3072, %v1435
        %v3139 = vmul.f32 %v3073, %v1435
        %v3140 = vadd.f32 %v3108, %v2690
        %v3141 = vadd.f32 %v3109, %v2692
        %v3142 = vadd.f32 %v3110, %v2694
        %v3143 = vadd.f32 %v3111, %v2696
        %v3144 = vadd.f32 %v3112, %v2700
        %v3145 = vadd.f32 %v3113, %v2702
        %v3146 = vadd.f32 %v3114, %v2704
        %v3147 = vadd.f32 %v3115, %v2706
        %v3148 = vadd.f32 %v3116, %v2710
        %v3149 = vadd.f32 %v3117, %v2712
        %v3150 = vadd.f32 %v3118, %v2714
        %v3151 = vadd.f32 %v3119, %v2716
        %v3152 = vadd.f32 %v3120, %v2720
        %v3153 = vadd.f32 %v3121, %v2722
        %v3154 = vadd.f32 %v3122, %v2724
        %v3155 = vadd.f32 %v3123, %v2726
        %v3156 = vadd.f32 %v3124, %v2730
        %v3157 = vadd.f32 %v3125, %v2732
        %v3158 = vadd.f32 %v3126, %v2734
        %v3159 = vadd.f32 %v3127, %v2736
        %v3160 = vadd.f32 %v3128, %v2740
        %v3161 = vadd.f32 %v3129, %v2742
        %v3162 = vadd.f32 %v3130, %v2744
        %v3163 = vadd.f32 %v3131, %v2746
        %v3164 = vadd.f32 %v3132, %v2750
        %v3165 = vadd.f32 %v3133, %v2752
        %v3166 = vadd.f32 %v3134, %v2754
        %v3167 = vadd.f32 %v3135, %v2756
        %v3168 = vadd.f32 %v3136, %v2760
        %v3169 = vadd.f32 %v3137, %v2762
        %v3170 = vadd.f32 %v3138, %v2764
        %v3171 = vadd.f32 %v3139, %v2766
        %v3204 = vrot.slane %v2900, 1
        %v3205 = vrot.slane %v2904, 1
        %v3206 = vsel %vm1485, %v3204, %v3205
        %v3207 = vrot.slane %v2902, 1
        %v3208 = vrot.slane %v2906, 1
        %v3209 = vsel %vm1485, %v3207, %v3208
        %v3210 = vrot.slane %v2910, 1
        %v3211 = vsel %vm1485, %v3205, %v3210
        %v3212 = vrot.slane %v2912, 1
        %v3213 = vsel %vm1485, %v3208, %v3212
        %v3214 = vrot.slane %v2914, 1
        %v3215 = vsel %vm1485, %v3210, %v3214
        %v3216 = vrot.slane %v2916, 1
        %v3217 = vsel %vm1485, %v3212, %v3216
        %v3218 = vrot.slane %v2920, 1
        %v3219 = vsel %vm1485, %v3214, %v3218
        %v3220 = vrot.slane %v2922, 1
        %v3221 = vsel %vm1485, %v3216, %v3220
        %v3222 = vrot.slane %v2924, 1
        %v3223 = vsel %vm1485, %v3218, %v3222
        %v3224 = vrot.slane %v2926, 1
        %v3225 = vsel %vm1485, %v3220, %v3224
        %v3226 = vrot.slane %v2930, 1
        %v3227 = vsel %vm1485, %v3222, %v3226
        %v3228 = vrot.slane %v2932, 1
        %v3229 = vsel %vm1485, %v3224, %v3228
        %v3230 = vrot.slane %v2934, 1
        %v3231 = vsel %vm1485, %v3226, %v3230
        %v3232 = vrot.slane %v2936, 1
        %v3233 = vsel %vm1485, %v3228, %v3232
        %v3234 = vrot.slane %v2940, 1
        %v3235 = vsel %vm1485, %v3230, %v3234
        %v3236 = vrot.slane %v2942, 1
        %v3237 = vsel %vm1485, %v3232, %v3236
        %v3238 = vrot.slane %v2944, 1
        %v3239 = vsel %vm1485, %v3234, %v3238
        %v3240 = vrot.slane %v2946, 1
        %v3241 = vsel %vm1485, %v3236, %v3240
        %v3242 = vrot.slane %v2950, 1
        %v3243 = vsel %vm1485, %v3238, %v3242
        %v3244 = vrot.slane %v2952, 1
        %v3245 = vsel %vm1485, %v3240, %v3244
        %v3246 = vrot.slane %v2954, 1
        %v3247 = vsel %vm1485, %v3242, %v3246
        %v3248 = vrot.slane %v2956, 1
        %v3249 = vsel %vm1485, %v3244, %v3248
        %v3250 = vrot.slane %v2960, 1
        %v3251 = vsel %vm1485, %v3246, %v3250
        %v3252 = vrot.slane %v2962, 1
        %v3253 = vsel %vm1485, %v3248, %v3252
        %v3254 = vrot.slane %v2964, 1
        %v3255 = vsel %vm1485, %v3250, %v3254
        %v3256 = vrot.slane %v2966, 1
        %v3257 = vsel %vm1485, %v3252, %v3256
        %v3258 = vrot.slane %v2970, 1
        %v3259 = vsel %vm1485, %v3254, %v3258
        %v3260 = vrot.slane %v2972, 1
        %v3261 = vsel %vm1485, %v3256, %v3260
        %v3262 = vrot.slane %v2974, 1
        %v3263 = vsel %vm1485, %v3258, %v3262
        %v3264 = vrot.slane %v2976, 1
        %v3265 = vsel %vm1485, %v3260, %v3264
        %v3300 = vsel %vm1485, %v3262, %v3204
        %v3301 = vsel %vm1485, %v3264, %v3207
        %v3302 = vmul.f32 %v3206, %v1538
        %v3303 = vmul.f32 %v3209, %v1538
        %v3304 = vmul.f32 %v3211, %v1543
        %v3305 = vmul.f32 %v3213, %v1543
        %v3306 = vmul.f32 %v3215, %v1548
        %v3307 = vmul.f32 %v3217, %v1548
        %v3308 = vmul.f32 %v3219, %v1553
        %v3309 = vmul.f32 %v3221, %v1553
        %v3310 = vmul.f32 %v3223, %v1558
        %v3311 = vmul.f32 %v3225, %v1558
        %v3312 = vmul.f32 %v3227, %v1563
        %v3313 = vmul.f32 %v3229, %v1563
        %v3314 = vmul.f32 %v3231, %v1568
        %v3315 = vmul.f32 %v3233, %v1568
        %v3316 = vmul.f32 %v3235, %v1573
        %v3317 = vmul.f32 %v3237, %v1573
        %v3318 = vmul.f32 %v3239, %v1578
        %v3319 = vmul.f32 %v3241, %v1578
        %v3320 = vmul.f32 %v3243, %v1583
        %v3321 = vmul.f32 %v3245, %v1583
        %v3322 = vmul.f32 %v3247, %v1588
        %v3323 = vmul.f32 %v3249, %v1588
        %v3324 = vmul.f32 %v3251, %v1593
        %v3325 = vmul.f32 %v3253, %v1593
        %v3326 = vmul.f32 %v3255, %v1598
        %v3327 = vmul.f32 %v3257, %v1598
        %v3328 = vmul.f32 %v3259, %v1603
        %v3329 = vmul.f32 %v3261, %v1603
        %v3330 = vmul.f32 %v3263, %v1608
        %v3331 = vmul.f32 %v3265, %v1608
        %v3332 = vmul.f32 %v3300, %v1613
        %v3333 = vmul.f32 %v3301, %v1613
        %v3334 = vadd.f32 %v3140, %v3302
        %v3335 = vadd.f32 %v3141, %v3303
        %v3336 = vadd.f32 %v3142, %v3304
        %v3337 = vadd.f32 %v3143, %v3305
        %v3338 = vadd.f32 %v3144, %v3306
        %v3339 = vadd.f32 %v3145, %v3307
        %v3340 = vadd.f32 %v3146, %v3308
        %v3341 = vadd.f32 %v3147, %v3309
        %v3342 = vadd.f32 %v3148, %v3310
        %v3343 = vadd.f32 %v3149, %v3311
        %v3344 = vadd.f32 %v3150, %v3312
        %v3345 = vadd.f32 %v3151, %v3313
        %v3346 = vadd.f32 %v3152, %v3314
        %v3347 = vadd.f32 %v3153, %v3315
        %v3348 = vadd.f32 %v3154, %v3316
        %v3349 = vadd.f32 %v3155, %v3317
        %v3350 = vadd.f32 %v3156, %v3318
        %v3351 = vadd.f32 %v3157, %v3319
        %v3352 = vadd.f32 %v3158, %v3320
        %v3353 = vadd.f32 %v3159, %v3321
        %v3354 = vadd.f32 %v3160, %v3322
        %v3355 = vadd.f32 %v3161, %v3323
        %v3356 = vadd.f32 %v3162, %v3324
        %v3357 = vadd.f32 %v3163, %v3325
        %v3358 = vadd.f32 %v3164, %v3326
        %v3359 = vadd.f32 %v3165, %v3327
        %v3360 = vadd.f32 %v3166, %v3328
        %v3361 = vadd.f32 %v3167, %v3329
        %v3362 = vadd.f32 %v3168, %v3330
        %v3363 = vadd.f32 %v3169, %v3331
        %v3364 = vadd.f32 %v3170, %v3332
        %v3365 = vadd.f32 %v3171, %v3333
        %v3366 = vld [vmem:[#allocation11] sm:$0x3]
        %v3368 = vlaneseq
        %v3369 = vshrl.u32 %v3368, 7
        %v3370 = vsub.s32 0, %v3369
        %v3371 = vrot.slane %v3366, %v3370
        %v3372 = vlaneseq
        %v3373 = vshrl.u32 %v3372, 7
        %v3374 = vsub.s32 1, %v3373
        %v3375 = vrot.slane %v3366, %v3374
        %v3378 = vadd.f32 %v3334, %v3371
        %v3379 = vadd.f32 %v3335, %v3375
        %v3380 = vadd.f32 %v3336, %v3371
        %v3381 = vadd.f32 %v3337, %v3375
        %v3382 = vadd.f32 %v3338, %v3371
        %v3383 = vadd.f32 %v3339, %v3375
        %v3384 = vadd.f32 %v3340, %v3371
        %v3385 = vadd.f32 %v3341, %v3375
        %v3386 = vadd.f32 %v3342, %v3371
        %v3387 = vadd.f32 %v3343, %v3375
        %v3388 = vadd.f32 %v3344, %v3371
        %v3389 = vadd.f32 %v3345, %v3375
        %v3390 = vadd.f32 %v3346, %v3371
        %v3391 = vadd.f32 %v3347, %v3375
        %v3392 = vadd.f32 %v3348, %v3371
        %v3393 = vadd.f32 %v3349, %v3375
        %v3394 = vadd.f32 %v3350, %v3371
        %v3395 = vadd.f32 %v3351, %v3375
        %v3396 = vadd.f32 %v3352, %v3371
        %v3397 = vadd.f32 %v3353, %v3375
        %v3398 = vadd.f32 %v3354, %v3371
        %v3399 = vadd.f32 %v3355, %v3375
        %v3400 = vadd.f32 %v3356, %v3371
        %v3401 = vadd.f32 %v3357, %v3375
        %v3402 = vadd.f32 %v3358, %v3371
        %v3403 = vadd.f32 %v3359, %v3375
        %v3404 = vadd.f32 %v3360, %v3371
        %v3405 = vadd.f32 %v3361, %v3375
        %v3406 = vadd.f32 %v3362, %v3371
        %v3407 = vadd.f32 %v3363, %v3375
        %v3408 = vadd.f32 %v3364, %v3371
        %v3409 = vadd.f32 %v3365, %v3375
        %v3410 = vmax.f32 %v3378, 0.0
        %v3411 = vmax.f32 %v3379, 0.0
        %v3412 = vmax.f32 %v3380, 0.0
        %v3413 = vmax.f32 %v3381, 0.0
        %v3414 = vmax.f32 %v3382, 0.0
        %v3415 = vmax.f32 %v3383, 0.0
        %v3416 = vmax.f32 %v3384, 0.0
        %v3417 = vmax.f32 %v3385, 0.0
        %v3418 = vmax.f32 %v3386, 0.0
        %v3419 = vmax.f32 %v3387, 0.0
        %v3420 = vmax.f32 %v3388, 0.0
        %v3421 = vmax.f32 %v3389, 0.0
        %v3422 = vmax.f32 %v3390, 0.0
        %v3423 = vmax.f32 %v3391, 0.0
        %v3424 = vmax.f32 %v3392, 0.0
        %v3425 = vmax.f32 %v3393, 0.0
        %v3426 = vmax.f32 %v3394, 0.0
        %v3427 = vmax.f32 %v3395, 0.0
        %v3428 = vmax.f32 %v3396, 0.0
        %v3429 = vmax.f32 %v3397, 0.0
        %v3430 = vmax.f32 %v3398, 0.0
        %v3431 = vmax.f32 %v3399, 0.0
        %v3432 = vmax.f32 %v3400, 0.0
        %v3433 = vmax.f32 %v3401, 0.0
        %v3434 = vmax.f32 %v3402, 0.0
        %v3435 = vmax.f32 %v3403, 0.0
        %v3436 = vmax.f32 %v3404, 0.0
        %v3437 = vmax.f32 %v3405, 0.0
        %v3438 = vmax.f32 %v3406, 0.0
        %v3439 = vmax.f32 %v3407, 0.0
        %v3440 = vmax.f32 %v3408, 0.0
        %v3441 = vmax.f32 %v3409, 0.0
        %v3442 = vpack.c.bf16 %v3412, %v3410
        %v3443 = vpack.c.bf16 %v3413, %v3411
        %v3444 = vpack.c.bf16 %v3416, %v3414
        %v3445 = vpack.c.bf16 %v3417, %v3415
        %v3446 = vpack.c.bf16 %v3420, %v3418
        %v3447 = vpack.c.bf16 %v3421, %v3419
        %v3448 = vpack.c.bf16 %v3424, %v3422
        %v3449 = vpack.c.bf16 %v3425, %v3423
        %v3450 = vpack.c.bf16 %v3428, %v3426
        %v3451 = vpack.c.bf16 %v3429, %v3427
        %v3452 = vpack.c.bf16 %v3432, %v3430
        %v3453 = vpack.c.bf16 %v3433, %v3431
        %v3454 = vpack.c.bf16 %v3436, %v3434
        %v3455 = vpack.c.bf16 %v3437, %v3435
        %v3456 = vpack.c.bf16 %v3440, %v3438
        %v3457 = vpack.c.bf16 %v3441, %v3439
        %v3458 = vld [vmem:[#allocation13] sm:$0xff]
        %v3459 = vld [vmem:[#allocation13 + $0x8] sm:$0xff]
        %v3460 = vld [vmem:[#allocation13 + $0x10] sm:$0xff]
        %v3461 = vld [vmem:[#allocation13 + $0x18] sm:$0xff]
        %v3462 = vld [vmem:[#allocation13 + $0x20] sm:$0xff]
        %v3463 = vld [vmem:[#allocation13 + $0x28] sm:$0xff]
        %v3464 = vld [vmem:[#allocation13 + $0x30] sm:$0xff]
        %v3465 = vld [vmem:[#allocation13 + $0x38] sm:$0xff]
        %v3466 = vld [vmem:[#allocation13 + $0x40] sm:$0xff]
        %v3467 = vld [vmem:[#allocation13 + $0x48] sm:$0xff]
        %v3468 = vld [vmem:[#allocation13 + $0x50] sm:$0xff]
        %v3469 = vld [vmem:[#allocation13 + $0x58] sm:$0xff]
        %v3470 = vld [vmem:[#allocation13 + $0x60] sm:$0xff]
        %v3471 = vld [vmem:[#allocation13 + $0x68] sm:$0xff]
        %v3472 = vld [vmem:[#allocation13 + $0x70] sm:$0xff]
        %v3473 = vld [vmem:[#allocation13 + $0x78] sm:$0xff]
        %v3474 = vld [vmem:[#allocation13 + $0x80] sm:$0xff]
        %v3475 = vld [vmem:[#allocation13 + $0x88] sm:$0xff]
        %v3476 = vld [vmem:[#allocation13 + $0x90] sm:$0xff]
        %v3477 = vld [vmem:[#allocation13 + $0x98] sm:$0xff]
        %v3478 = vld [vmem:[#allocation13 + $0xa0] sm:$0xff]
        %v3479 = vld [vmem:[#allocation13 + $0xa8] sm:$0xff]
        %v3480 = vld [vmem:[#allocation13 + $0xb0] sm:$0xff]
        %v3481 = vld [vmem:[#allocation13 + $0xb8] sm:$0xff]
        %v3482 = vld [vmem:[#allocation13 + $0xc0] sm:$0xff]
        %v3483 = vld [vmem:[#allocation13 + $0xc8] sm:$0xff]
        %v3484 = vld [vmem:[#allocation13 + $0xd0] sm:$0xff]
        %v3485 = vld [vmem:[#allocation13 + $0xd8] sm:$0xff]
        %v3486 = vld [vmem:[#allocation13 + $0xe0] sm:$0xff]
        %v3487 = vld [vmem:[#allocation13 + $0xe8] sm:$0xff]
        %v3488 = vld [vmem:[#allocation13 + $0xf0] sm:$0xff]
        %v3489 = vld [vmem:[#allocation13 + $0xf8] sm:$0xff]
        %v3522 = vunpack.c.l.b16 %v3458
        %v3523 = vunpack.c.h.b16 %v3458
        %v3524 = vunpack.c.l.b16 %v3459
        %v3525 = vunpack.c.h.b16 %v3459
        %v3526 = vunpack.c.l.b16 %v3460
        %v3527 = vunpack.c.h.b16 %v3460
        %v3528 = vunpack.c.l.b16 %v3461
        %v3529 = vunpack.c.h.b16 %v3461
        %v3530 = vunpack.c.l.b16 %v3462
        %v3531 = vunpack.c.h.b16 %v3462
        %v3532 = vunpack.c.l.b16 %v3463
        %v3533 = vunpack.c.h.b16 %v3463
        %v3534 = vunpack.c.l.b16 %v3464
        %v3535 = vunpack.c.h.b16 %v3464
        %v3536 = vunpack.c.l.b16 %v3465
        %v3537 = vunpack.c.h.b16 %v3465
        %v3538 = vunpack.c.l.b16 %v3466
        %v3539 = vunpack.c.h.b16 %v3466
        %v3540 = vunpack.c.l.b16 %v3467
        %v3541 = vunpack.c.h.b16 %v3467
        %v3542 = vunpack.c.l.b16 %v3468
        %v3543 = vunpack.c.h.b16 %v3468
        %v3544 = vunpack.c.l.b16 %v3469
        %v3545 = vunpack.c.h.b16 %v3469
        %v3546 = vunpack.c.l.b16 %v3470
        %v3547 = vunpack.c.h.b16 %v3470
        %v3548 = vunpack.c.l.b16 %v3471
        %v3549 = vunpack.c.h.b16 %v3471
        %v3550 = vunpack.c.l.b16 %v3472
        %v3551 = vunpack.c.h.b16 %v3472
        %v3552 = vunpack.c.l.b16 %v3473
        %v3553 = vunpack.c.h.b16 %v3473
        %v3554 = vunpack.c.l.b16 %v3474
        %v3555 = vunpack.c.h.b16 %v3474
        %v3556 = vunpack.c.l.b16 %v3475
        %v3557 = vunpack.c.h.b16 %v3475
        %v3558 = vunpack.c.l.b16 %v3476
        %v3559 = vunpack.c.h.b16 %v3476
        %v3560 = vunpack.c.l.b16 %v3477
        %v3561 = vunpack.c.h.b16 %v3477
        %v3562 = vunpack.c.l.b16 %v3478
        %v3563 = vunpack.c.h.b16 %v3478
        %v3564 = vunpack.c.l.b16 %v3479
        %v3565 = vunpack.c.h.b16 %v3479
        %v3566 = vunpack.c.l.b16 %v3480
        %v3567 = vunpack.c.h.b16 %v3480
        %v3568 = vunpack.c.l.b16 %v3481
        %v3569 = vunpack.c.h.b16 %v3481
        %v3570 = vunpack.c.l.b16 %v3482
        %v3571 = vunpack.c.h.b16 %v3482
        %v3572 = vunpack.c.l.b16 %v3483
        %v3573 = vunpack.c.h.b16 %v3483
        %v3574 = vunpack.c.l.b16 %v3484
        %v3575 = vunpack.c.h.b16 %v3484
        %v3576 = vunpack.c.l.b16 %v3485
        %v3577 = vunpack.c.h.b16 %v3485
        %v3578 = vunpack.c.l.b16 %v3486
        %v3579 = vunpack.c.h.b16 %v3486
        %v3580 = vunpack.c.l.b16 %v3487
        %v3581 = vunpack.c.h.b16 %v3487
        %v3582 = vunpack.c.l.b16 %v3488
        %v3583 = vunpack.c.h.b16 %v3488
        %v3584 = vunpack.c.l.b16 %v3489
        %v3585 = vunpack.c.h.b16 %v3489
        %v3586 = vpack.c.b16 %v3524, %v3522
        %v3587 = vpack.c.b16 %v3525, %v3523
        %v3588 = vpack.c.b16 %v3528, %v3526
        %v3589 = vpack.c.b16 %v3529, %v3527
        %v3590 = vpack.c.b16 %v3532, %v3530
        %v3591 = vpack.c.b16 %v3533, %v3531
        %v3592 = vpack.c.b16 %v3536, %v3534
        %v3593 = vpack.c.b16 %v3537, %v3535
        %v3594 = vpack.c.b16 %v3540, %v3538
        %v3595 = vpack.c.b16 %v3541, %v3539
        %v3596 = vpack.c.b16 %v3544, %v3542
        %v3597 = vpack.c.b16 %v3545, %v3543
        %v3598 = vpack.c.b16 %v3548, %v3546
        %v3599 = vpack.c.b16 %v3549, %v3547
        %v3600 = vpack.c.b16 %v3552, %v3550
        %v3601 = vpack.c.b16 %v3553, %v3551
        %v3602 = vpack.c.b16 %v3556, %v3554
        %v3603 = vpack.c.b16 %v3557, %v3555
        %v3604 = vpack.c.b16 %v3560, %v3558
        %v3605 = vpack.c.b16 %v3561, %v3559
        %v3606 = vpack.c.b16 %v3564, %v3562
        %v3607 = vpack.c.b16 %v3565, %v3563
        %v3608 = vpack.c.b16 %v3568, %v3566
        %v3609 = vpack.c.b16 %v3569, %v3567
        %v3610 = vpack.c.b16 %v3572, %v3570
        %v3611 = vpack.c.b16 %v3573, %v3571
        %v3612 = vpack.c.b16 %v3576, %v3574
        %v3613 = vpack.c.b16 %v3577, %v3575
        %v3614 = vpack.c.b16 %v3580, %v3578
        %v3615 = vpack.c.b16 %v3581, %v3579
        %v3616 = vpack.c.b16 %v3584, %v3582
        %v3617 = vpack.c.b16 %v3585, %v3583
        %3650 = vmatprep.subr.bf16.mxu0 %v3587
        %3651 = vmatpush1.bf16.msra.mxu0 %v3586
        %3652 = vmatprep.subr.bf16.mxu0 %v3589
        %3653 = vmatpush1.bf16.msra.mxu0 %v3588
        %3654 = vmatprep.subr.bf16.mxu0 %v3591
        %3655 = vmatpush1.bf16.msra.mxu0 %v3590
        %3656 = vmatprep.subr.bf16.mxu0 %v3593
        %3657 = vmatpush1.bf16.msra.mxu0 %v3592
        %3658 = vmatprep.subr.bf16.mxu0 %v3595
        %3659 = vmatpush1.bf16.msra.mxu0 %v3594
        %3660 = vmatprep.subr.bf16.mxu0 %v3597
        %3661 = vmatpush1.bf16.msra.mxu0 %v3596
        %3662 = vmatprep.subr.bf16.mxu0 %v3599
        %3663 = vmatpush1.bf16.msra.mxu0 %v3598
        %3664 = vmatprep.subr.bf16.mxu0 %v3601
        %3665 = vmatpush1.bf16.msra.mxu0 %v3600
        %3666 = vmatprep.subr.bf16.mxu0 %v3603
        %3667 = vmatpush1.bf16.msra.mxu0 %v3602
        %3668 = vmatprep.subr.bf16.mxu0 %v3605
        %3669 = vmatpush1.bf16.msra.mxu0 %v3604
        %3670 = vmatprep.subr.bf16.mxu0 %v3607
        %3671 = vmatpush1.bf16.msra.mxu0 %v3606
        %3672 = vmatprep.subr.bf16.mxu0 %v3609
        %3673 = vmatpush1.bf16.msra.mxu0 %v3608
        %3674 = vmatprep.subr.bf16.mxu0 %v3611
        %3675 = vmatpush1.bf16.msra.mxu0 %v3610
        %3676 = vmatprep.subr.bf16.mxu0 %v3613
        %3677 = vmatpush1.bf16.msra.mxu0 %v3612
        %3678 = vmatprep.subr.bf16.mxu0 %v3615
        %3679 = vmatpush1.bf16.msra.mxu0 %v3614
        %3680 = vmatprep.subr.bf16.mxu0 %v3617
        %3681 = vmatpush1.bf16.msra.mxu0 %v3616
        %3682 = vmatprep.mubr.bf16.mxu0 %v3443
        %3683 = vmatmul.mubr.bf16.gmra.mrb[0].mxu0 %v3442
        %v3684 = vpop.f32.mrb[0].mxu0
        %v3685 = vadd.f32 0.0, %v3684
        %v3686 = vpop.f32.mrb[0].mxu0
        %v3687 = vadd.f32 0.0, %v3686
        %v3688 = vpop.f32.mrb[0].mxu0
        %v3689 = vadd.f32 0.0, %v3688
        %v3690 = vpop.f32.mrb[0].mxu0
        %v3691 = vadd.f32 0.0, %v3690
        %3692 = vmatprep.mubr.bf16.mxu0 %v3445
        %3693 = vmatmul.mubr.bf16.gmra.mrb[0].mxu0 %v3444
        %v3694 = vpop.f32.mrb[0].mxu0
        %v3695 = vadd.f32 0.0, %v3694
        %v3696 = vpop.f32.mrb[0].mxu0
        %v3697 = vadd.f32 0.0, %v3696
        %v3698 = vpop.f32.mrb[0].mxu0
        %v3699 = vadd.f32 0.0, %v3698
        %v3700 = vpop.f32.mrb[0].mxu0
        %v3701 = vadd.f32 0.0, %v3700
        %3702 = vmatprep.mubr.bf16.mxu0 %v3447
        %3703 = vmatmul.mubr.bf16.gmra.mrb[0].mxu0 %v3446
        %v3704 = vpop.f32.mrb[0].mxu0
        %v3705 = vadd.f32 0.0, %v3704
        %v3706 = vpop.f32.mrb[0].mxu0
        %v3707 = vadd.f32 0.0, %v3706
        %v3708 = vpop.f32.mrb[0].mxu0
        %v3709 = vadd.f32 0.0, %v3708
        %v3710 = vpop.f32.mrb[0].mxu0
        %v3711 = vadd.f32 0.0, %v3710
        %3712 = vmatprep.mubr.bf16.mxu0 %v3449
        %3713 = vmatmul.mubr.bf16.gmra.mrb[0].mxu0 %v3448
        %v3714 = vpop.f32.mrb[0].mxu0
        %v3715 = vadd.f32 0.0, %v3714
        %v3716 = vpop.f32.mrb[0].mxu0
        %v3717 = vadd.f32 0.0, %v3716
        %v3718 = vpop.f32.mrb[0].mxu0
        %v3719 = vadd.f32 0.0, %v3718
        %v3720 = vpop.f32.mrb[0].mxu0
        %v3721 = vadd.f32 0.0, %v3720
        %3722 = vmatprep.mubr.bf16.mxu0 %v3451
        %3723 = vmatmul.mubr.bf16.gmra.mrb[0].mxu0 %v3450
        %v3724 = vpop.f32.mrb[0].mxu0
        %v3725 = vadd.f32 0.0, %v3724
        %v3726 = vpop.f32.mrb[0].mxu0
        %v3727 = vadd.f32 0.0, %v3726
        %v3728 = vpop.f32.mrb[0].mxu0
        %v3729 = vadd.f32 0.0, %v3728
        %v3730 = vpop.f32.mrb[0].mxu0
        %v3731 = vadd.f32 0.0, %v3730
        %3732 = vmatprep.mubr.bf16.mxu0 %v3453
        %3733 = vmatmul.mubr.bf16.gmra.mrb[0].mxu0 %v3452
        %v3734 = vpop.f32.mrb[0].mxu0
        %v3735 = vadd.f32 0.0, %v3734
        %v3736 = vpop.f32.mrb[0].mxu0
        %v3737 = vadd.f32 0.0, %v3736
        %v3738 = vpop.f32.mrb[0].mxu0
        %v3739 = vadd.f32 0.0, %v3738
        %v3740 = vpop.f32.mrb[0].mxu0
        %v3741 = vadd.f32 0.0, %v3740
        %3742 = vmatprep.mubr.bf16.mxu0 %v3455
        %3743 = vmatmul.mubr.bf16.gmra.mrb[0].mxu0 %v3454
        %v3744 = vpop.f32.mrb[0].mxu0
        %v3745 = vadd.f32 0.0, %v3744
        %v3746 = vpop.f32.mrb[0].mxu0
        %v3747 = vadd.f32 0.0, %v3746
        %v3748 = vpop.f32.mrb[0].mxu0
        %v3749 = vadd.f32 0.0, %v3748
        %v3750 = vpop.f32.mrb[0].mxu0
        %v3751 = vadd.f32 0.0, %v3750
        %3752 = vmatprep.mubr.bf16.mxu0 %v3457
        %3753 = vmatmul.mubr.bf16.gmra.mrb[0].mxu0 %v3456
        %v3754 = vpop.f32.mrb[0].mxu0
        %v3755 = vadd.f32 0.0, %v3754
        %v3756 = vpop.f32.mrb[0].mxu0
        %v3757 = vadd.f32 0.0, %v3756
        %v3758 = vpop.f32.mrb[0].mxu0
        %v3759 = vadd.f32 0.0, %v3758
        %v3760 = vpop.f32.mrb[0].mxu0
        %v3761 = vadd.f32 0.0, %v3760
        %3762 = vdwg.mxu0
        %s3763 = scalar_lea.vmem [#allocation13], 256
        %v3764 = vld [vmem:[%s3763] sm:$0xff]
        %v3765 = vld [vmem:[%s3763 + $0x8] sm:$0xff]
        %v3766 = vld [vmem:[%s3763 + $0x10] sm:$0xff]
        %v3767 = vld [vmem:[%s3763 + $0x18] sm:$0xff]
        %v3768 = vld [vmem:[%s3763 + $0x20] sm:$0xff]
        %v3769 = vld [vmem:[%s3763 + $0x28] sm:$0xff]
        %v3770 = vld [vmem:[%s3763 + $0x30] sm:$0xff]
        %v3771 = vld [vmem:[%s3763 + $0x38] sm:$0xff]
        %v3772 = vld [vmem:[%s3763 + $0x40] sm:$0xff]
        %v3773 = vld [vmem:[%s3763 + $0x48] sm:$0xff]
        %v3774 = vld [vmem:[%s3763 + $0x50] sm:$0xff]
        %v3775 = vld [vmem:[%s3763 + $0x58] sm:$0xff]
        %v3776 = vld [vmem:[%s3763 + $0x60] sm:$0xff]
        %v3777 = vld [vmem:[%s3763 + $0x68] sm:$0xff]
        %v3778 = vld [vmem:[%s3763 + $0x70] sm:$0xff]
        %v3779 = vld [vmem:[%s3763 + $0x78] sm:$0xff]
        %v3780 = vld [vmem:[%s3763 + $0x80] sm:$0xff]
        %v3781 = vld [vmem:[%s3763 + $0x88] sm:$0xff]
        %v3782 = vld [vmem:[%s3763 + $0x90] sm:$0xff]
        %v3783 = vld [vmem:[%s3763 + $0x98] sm:$0xff]
        %v3784 = vld [vmem:[%s3763 + $0xa0] sm:$0xff]
        %v3785 = vld [vmem:[%s3763 + $0xa8] sm:$0xff]
        %v3786 = vld [vmem:[%s3763 + $0xb0] sm:$0xff]
        %v3787 = vld [vmem:[%s3763 + $0xb8] sm:$0xff]
        %v3788 = vld [vmem:[%s3763 + $0xc0] sm:$0xff]
        %v3789 = vld [vmem:[%s3763 + $0xc8] sm:$0xff]
        %v3790 = vld [vmem:[%s3763 + $0xd0] sm:$0xff]
        %v3791 = vld [vmem:[%s3763 + $0xd8] sm:$0xff]
        %v3792 = vld [vmem:[%s3763 + $0xe0] sm:$0xff]
        %v3793 = vld [vmem:[%s3763 + $0xe8] sm:$0xff]
        %v3794 = vld [vmem:[%s3763 + $0xf0] sm:$0xff]
        %v3795 = vld [vmem:[%s3763 + $0xf8] sm:$0xff]
        %v3828 = vunpack.c.l.b16 %v3764
        %v3829 = vunpack.c.h.b16 %v3764
        %v3830 = vunpack.c.l.b16 %v3765
        %v3831 = vunpack.c.h.b16 %v3765
        %v3832 = vunpack.c.l.b16 %v3766
        %v3833 = vunpack.c.h.b16 %v3766
        %v3834 = vunpack.c.l.b16 %v3767
        %v3835 = vunpack.c.h.b16 %v3767
        %v3836 = vunpack.c.l.b16 %v3768
        %v3837 = vunpack.c.h.b16 %v3768
        %v3838 = vunpack.c.l.b16 %v3769
        %v3839 = vunpack.c.h.b16 %v3769
        %v3840 = vunpack.c.l.b16 %v3770
        %v3841 = vunpack.c.h.b16 %v3770
        %v3842 = vunpack.c.l.b16 %v3771
        %v3843 = vunpack.c.h.b16 %v3771
        %v3844 = vunpack.c.l.b16 %v3772
        %v3845 = vunpack.c.h.b16 %v3772
        %v3846 = vunpack.c.l.b16 %v3773
        %v3847 = vunpack.c.h.b16 %v3773
        %v3848 = vunpack.c.l.b16 %v3774
        %v3849 = vunpack.c.h.b16 %v3774
        %v3850 = vunpack.c.l.b16 %v3775
        %v3851 = vunpack.c.h.b16 %v3775
        %v3852 = vunpack.c.l.b16 %v3776
        %v3853 = vunpack.c.h.b16 %v3776
        %v3854 = vunpack.c.l.b16 %v3777
        %v3855 = vunpack.c.h.b16 %v3777
        %v3856 = vunpack.c.l.b16 %v3778
        %v3857 = vunpack.c.h.b16 %v3778
        %v3858 = vunpack.c.l.b16 %v3779
        %v3859 = vunpack.c.h.b16 %v3779
        %v3860 = vunpack.c.l.b16 %v3780
        %v3861 = vunpack.c.h.b16 %v3780
        %v3862 = vunpack.c.l.b16 %v3781
        %v3863 = vunpack.c.h.b16 %v3781
        %v3864 = vunpack.c.l.b16 %v3782
        %v3865 = vunpack.c.h.b16 %v3782
        %v3866 = vunpack.c.l.b16 %v3783
        %v3867 = vunpack.c.h.b16 %v3783
        %v3868 = vunpack.c.l.b16 %v3784
        %v3869 = vunpack.c.h.b16 %v3784
        %v3870 = vunpack.c.l.b16 %v3785
        %v3871 = vunpack.c.h.b16 %v3785
        %v3872 = vunpack.c.l.b16 %v3786
        %v3873 = vunpack.c.h.b16 %v3786
        %v3874 = vunpack.c.l.b16 %v3787
        %v3875 = vunpack.c.h.b16 %v3787
        %v3876 = vunpack.c.l.b16 %v3788
        %v3877 = vunpack.c.h.b16 %v3788
        %v3878 = vunpack.c.l.b16 %v3789
        %v3879 = vunpack.c.h.b16 %v3789
        %v3880 = vunpack.c.l.b16 %v3790
        %v3881 = vunpack.c.h.b16 %v3790
        %v3882 = vunpack.c.l.b16 %v3791
        %v3883 = vunpack.c.h.b16 %v3791
        %v3884 = vunpack.c.l.b16 %v3792
        %v3885 = vunpack.c.h.b16 %v3792
        %v3886 = vunpack.c.l.b16 %v3793
        %v3887 = vunpack.c.h.b16 %v3793
        %v3888 = vunpack.c.l.b16 %v3794
        %v3889 = vunpack.c.h.b16 %v3794
        %v3890 = vunpack.c.l.b16 %v3795
        %v3891 = vunpack.c.h.b16 %v3795
        %v3892 = vpack.c.b16 %v3830, %v3828
        %v3893 = vpack.c.b16 %v3831, %v3829
        %v3894 = vpack.c.b16 %v3834, %v3832
        %v3895 = vpack.c.b16 %v3835, %v3833
        %v3896 = vpack.c.b16 %v3838, %v3836
        %v3897 = vpack.c.b16 %v3839, %v3837
        %v3898 = vpack.c.b16 %v3842, %v3840
        %v3899 = vpack.c.b16 %v3843, %v3841
        %v3900 = vpack.c.b16 %v3846, %v3844
        %v3901 = vpack.c.b16 %v3847, %v3845
        %v3902 = vpack.c.b16 %v3850, %v3848
        %v3903 = vpack.c.b16 %v3851, %v3849
        %v3904 = vpack.c.b16 %v3854, %v3852
        %v3905 = vpack.c.b16 %v3855, %v3853
        %v3906 = vpack.c.b16 %v3858, %v3856
        %v3907 = vpack.c.b16 %v3859, %v3857
        %v3908 = vpack.c.b16 %v3862, %v3860
        %v3909 = vpack.c.b16 %v3863, %v3861
        %v3910 = vpack.c.b16 %v3866, %v3864
        %v3911 = vpack.c.b16 %v3867, %v3865
        %v3912 = vpack.c.b16 %v3870, %v3868
        %v3913 = vpack.c.b16 %v3871, %v3869
        %v3914 = vpack.c.b16 %v3874, %v3872
        %v3915 = vpack.c.b16 %v3875, %v3873
        %v3916 = vpack.c.b16 %v3878, %v3876
        %v3917 = vpack.c.b16 %v3879, %v3877
        %v3918 = vpack.c.b16 %v3882, %v3880
        %v3919 = vpack.c.b16 %v3883, %v3881
        %v3920 = vpack.c.b16 %v3886, %v3884
        %v3921 = vpack.c.b16 %v3887, %v3885
        %v3922 = vpack.c.b16 %v3890, %v3888
        %v3923 = vpack.c.b16 %v3891, %v3889
        %3956 = vmatprep.subr.bf16.mxu0 %v3893
        %3957 = vmatpush1.bf16.msra.mxu0 %v3892
        %3958 = vmatprep.subr.bf16.mxu0 %v3895
        %3959 = vmatpush1.bf16.msra.mxu0 %v3894
        %3960 = vmatprep.subr.bf16.mxu0 %v3897
        %3961 = vmatpush1.bf16.msra.mxu0 %v3896
        %3962 = vmatprep.subr.bf16.mxu0 %v3899
        %3963 = vmatpush1.bf16.msra.mxu0 %v3898
        %3964 = vmatprep.subr.bf16.mxu0 %v3901
        %3965 = vmatpush1.bf16.msra.mxu0 %v3900
        %3966 = vmatprep.subr.bf16.mxu0 %v3903
        %3967 = vmatpush1.bf16.msra.mxu0 %v3902
        %3968 = vmatprep.subr.bf16.mxu0 %v3905
        %3969 = vmatpush1.bf16.msra.mxu0 %v3904
        %3970 = vmatprep.subr.bf16.mxu0 %v3907
        %3971 = vmatpush1.bf16.msra.mxu0 %v3906
        %3972 = vmatprep.subr.bf16.mxu0 %v3909
        %3973 = vmatpush1.bf16.msra.mxu0 %v3908
        %3974 = vmatprep.subr.bf16.mxu0 %v3911
        %3975 = vmatpush1.bf16.msra.mxu0 %v3910
        %3976 = vmatprep.subr.bf16.mxu0 %v3913
        %3977 = vmatpush1.bf16.msra.mxu0 %v3912
        %3978 = vmatprep.subr.bf16.mxu0 %v3915
        %3979 = vmatpush1.bf16.msra.mxu0 %v3914
        %3980 = vmatprep.subr.bf16.mxu0 %v3917
        %3981 = vmatpush1.bf16.msra.mxu0 %v3916
        %3982 = vmatprep.subr.bf16.mxu0 %v3919
        %3983 = vmatpush1.bf16.msra.mxu0 %v3918
        %3984 = vmatprep.subr.bf16.mxu0 %v3921
        %3985 = vmatpush1.bf16.msra.mxu0 %v3920
        %3986 = vmatprep.subr.bf16.mxu0 %v3923
        %3987 = vmatpush1.bf16.msra.mxu0 %v3922
        %3988 = vmatprep.mubr.bf16.mxu0 %v3443
        %3989 = vmatmul.mubr.bf16.gmra.mrb[0].mxu0 %v3442
        %v3990 = vpop.f32.mrb[0].mxu0
        %v3991 = vadd.f32 0.0, %v3990
        %v3992 = vpop.f32.mrb[0].mxu0
        %v3993 = vadd.f32 0.0, %v3992
        %v3994 = vpop.f32.mrb[0].mxu0
        %v3995 = vadd.f32 0.0, %v3994
        %v3996 = vpop.f32.mrb[0].mxu0
        %v3997 = vadd.f32 0.0, %v3996
        %3998 = vmatprep.mubr.bf16.mxu0 %v3445
        %3999 = vmatmul.mubr.bf16.gmra.mrb[0].mxu0 %v3444
        %v4000 = vpop.f32.mrb[0].mxu0
        %v4001 = vadd.f32 0.0, %v4000
        %v4002 = vpop.f32.mrb[0].mxu0
        %v4003 = vadd.f32 0.0, %v4002
        %v4004 = vpop.f32.mrb[0].mxu0
        %v4005 = vadd.f32 0.0, %v4004
        %v4006 = vpop.f32.mrb[0].mxu0
        %v4007 = vadd.f32 0.0, %v4006
        %4008 = vmatprep.mubr.bf16.mxu0 %v3447
        %4009 = vmatmul.mubr.bf16.gmra.mrb[0].mxu0 %v3446
        %v4010 = vpop.f32.mrb[0].mxu0
        %v4011 = vadd.f32 0.0, %v4010
        %v4012 = vpop.f32.mrb[0].mxu0
        %v4013 = vadd.f32 0.0, %v4012
        %v4014 = vpop.f32.mrb[0].mxu0
        %v4015 = vadd.f32 0.0, %v4014
        %v4016 = vpop.f32.mrb[0].mxu0
        %v4017 = vadd.f32 0.0, %v4016
        %4018 = vmatprep.mubr.bf16.mxu0 %v3449
        %4019 = vmatmul.mubr.bf16.gmra.mrb[0].mxu0 %v3448
        %v4020 = vpop.f32.mrb[0].mxu0
        %v4021 = vadd.f32 0.0, %v4020
        %v4022 = vpop.f32.mrb[0].mxu0
        %v4023 = vadd.f32 0.0, %v4022
        %v4024 = vpop.f32.mrb[0].mxu0
        %v4025 = vadd.f32 0.0, %v4024
        %v4026 = vpop.f32.mrb[0].mxu0
        %v4027 = vadd.f32 0.0, %v4026
        %4028 = vmatprep.mubr.bf16.mxu0 %v3451
        %4029 = vmatmul.mubr.bf16.gmra.mrb[0].mxu0 %v3450
        %v4030 = vpop.f32.mrb[0].mxu0
        %v4031 = vadd.f32 0.0, %v4030
        %v4032 = vpop.f32.mrb[0].mxu0
        %v4033 = vadd.f32 0.0, %v4032
        %v4034 = vpop.f32.mrb[0].mxu0
        %v4035 = vadd.f32 0.0, %v4034
        %v4036 = vpop.f32.mrb[0].mxu0
        %v4037 = vadd.f32 0.0, %v4036
        %4038 = vmatprep.mubr.bf16.mxu0 %v3453
        %4039 = vmatmul.mubr.bf16.gmra.mrb[0].mxu0 %v3452
        %v4040 = vpop.f32.mrb[0].mxu0
        %v4041 = vadd.f32 0.0, %v4040
        %v4042 = vpop.f32.mrb[0].mxu0
        %v4043 = vadd.f32 0.0, %v4042
        %v4044 = vpop.f32.mrb[0].mxu0
        %v4045 = vadd.f32 0.0, %v4044
        %v4046 = vpop.f32.mrb[0].mxu0
        %v4047 = vadd.f32 0.0, %v4046
        %4048 = vmatprep.mubr.bf16.mxu0 %v3455
        %4049 = vmatmul.mubr.bf16.gmra.mrb[0].mxu0 %v3454
        %v4050 = vpop.f32.mrb[0].mxu0
        %v4051 = vadd.f32 0.0, %v4050
        %v4052 = vpop.f32.mrb[0].mxu0
        %v4053 = vadd.f32 0.0, %v4052
        %v4054 = vpop.f32.mrb[0].mxu0
        %v4055 = vadd.f32 0.0, %v4054
        %v4056 = vpop.f32.mrb[0].mxu0
        %v4057 = vadd.f32 0.0, %v4056
        %4058 = vmatprep.mubr.bf16.mxu0 %v3457
        %4059 = vmatmul.mubr.bf16.gmra.mrb[0].mxu0 %v3456
        %v4060 = vpop.f32.mrb[0].mxu0
        %v4061 = vadd.f32 0.0, %v4060
        %v4062 = vpop.f32.mrb[0].mxu0
        %v4063 = vadd.f32 0.0, %v4062
        %v4064 = vpop.f32.mrb[0].mxu0
        %v4065 = vadd.f32 0.0, %v4064
        %v4066 = vpop.f32.mrb[0].mxu0
        %v4067 = vadd.f32 0.0, %v4066
        %4068 = vdwg.mxu0
        %s4069 = scalar_lea.vmem [#allocation13], 512
        %v4070 = vld [vmem:[%s4069] sm:$0xff]
        %v4071 = vld [vmem:[%s4069 + $0x8] sm:$0xff]
        %v4072 = vld [vmem:[%s4069 + $0x10] sm:$0xff]
        %v4073 = vld [vmem:[%s4069 + $0x18] sm:$0xff]
        %v4074 = vld [vmem:[%s4069 + $0x20] sm:$0xff]
        %v4075 = vld [vmem:[%s4069 + $0x28] sm:$0xff]
        %v4076 = vld [vmem:[%s4069 + $0x30] sm:$0xff]
        %v4077 = vld [vmem:[%s4069 + $0x38] sm:$0xff]
        %v4078 = vld [vmem:[%s4069 + $0x40] sm:$0xff]
        %v4079 = vld [vmem:[%s4069 + $0x48] sm:$0xff]
        %v4080 = vld [vmem:[%s4069 + $0x50] sm:$0xff]
        %v4081 = vld [vmem:[%s4069 + $0x58] sm:$0xff]
        %v4082 = vld [vmem:[%s4069 + $0x60] sm:$0xff]
        %v4083 = vld [vmem:[%s4069 + $0x68] sm:$0xff]
        %v4084 = vld [vmem:[%s4069 + $0x70] sm:$0xff]
        %v4085 = vld [vmem:[%s4069 + $0x78] sm:$0xff]
        %v4086 = vld [vmem:[%s4069 + $0x80] sm:$0xff]
        %v4087 = vld [vmem:[%s4069 + $0x88] sm:$0xff]
        %v4088 = vld [vmem:[%s4069 + $0x90] sm:$0xff]
        %v4089 = vld [vmem:[%s4069 + $0x98] sm:$0xff]
        %v4090 = vld [vmem:[%s4069 + $0xa0] sm:$0xff]
        %v4091 = vld [vmem:[%s4069 + $0xa8] sm:$0xff]
        %v4092 = vld [vmem:[%s4069 + $0xb0] sm:$0xff]
        %v4093 = vld [vmem:[%s4069 + $0xb8] sm:$0xff]
        %v4094 = vld [vmem:[%s4069 + $0xc0] sm:$0xff]
        %v4095 = vld [vmem:[%s4069 + $0xc8] sm:$0xff]
        %v4096 = vld [vmem:[%s4069 + $0xd0] sm:$0xff]
        %v4097 = vld [vmem:[%s4069 + $0xd8] sm:$0xff]
        %v4098 = vld [vmem:[%s4069 + $0xe0] sm:$0xff]
        %v4099 = vld [vmem:[%s4069 + $0xe8] sm:$0xff]
        %v4100 = vld [vmem:[%s4069 + $0xf0] sm:$0xff]
        %v4101 = vld [vmem:[%s4069 + $0xf8] sm:$0xff]
        %v4134 = vunpack.c.l.b16 %v4070
        %v4135 = vunpack.c.h.b16 %v4070
        %v4136 = vunpack.c.l.b16 %v4071
        %v4137 = vunpack.c.h.b16 %v4071
        %v4138 = vunpack.c.l.b16 %v4072
        %v4139 = vunpack.c.h.b16 %v4072
        %v4140 = vunpack.c.l.b16 %v4073
        %v4141 = vunpack.c.h.b16 %v4073
        %v4142 = vunpack.c.l.b16 %v4074
        %v4143 = vunpack.c.h.b16 %v4074
        %v4144 = vunpack.c.l.b16 %v4075
        %v4145 = vunpack.c.h.b16 %v4075
        %v4146 = vunpack.c.l.b16 %v4076
        %v4147 = vunpack.c.h.b16 %v4076
        %v4148 = vunpack.c.l.b16 %v4077
        %v4149 = vunpack.c.h.b16 %v4077
        %v4150 = vunpack.c.l.b16 %v4078
        %v4151 = vunpack.c.h.b16 %v4078
        %v4152 = vunpack.c.l.b16 %v4079
        %v4153 = vunpack.c.h.b16 %v4079
        %v4154 = vunpack.c.l.b16 %v4080
        %v4155 = vunpack.c.h.b16 %v4080
        %v4156 = vunpack.c.l.b16 %v4081
        %v4157 = vunpack.c.h.b16 %v4081
        %v4158 = vunpack.c.l.b16 %v4082
        %v4159 = vunpack.c.h.b16 %v4082
        %v4160 = vunpack.c.l.b16 %v4083
        %v4161 = vunpack.c.h.b16 %v4083
        %v4162 = vunpack.c.l.b16 %v4084
        %v4163 = vunpack.c.h.b16 %v4084
        %v4164 = vunpack.c.l.b16 %v4085
        %v4165 = vunpack.c.h.b16 %v4085
        %v4166 = vunpack.c.l.b16 %v4086
        %v4167 = vunpack.c.h.b16 %v4086
        %v4168 = vunpack.c.l.b16 %v4087
        %v4169 = vunpack.c.h.b16 %v4087
        %v4170 = vunpack.c.l.b16 %v4088
        %v4171 = vunpack.c.h.b16 %v4088
        %v4172 = vunpack.c.l.b16 %v4089
        %v4173 = vunpack.c.h.b16 %v4089
        %v4174 = vunpack.c.l.b16 %v4090
        %v4175 = vunpack.c.h.b16 %v4090
        %v4176 = vunpack.c.l.b16 %v4091
        %v4177 = vunpack.c.h.b16 %v4091
        %v4178 = vunpack.c.l.b16 %v4092
        %v4179 = vunpack.c.h.b16 %v4092
        %v4180 = vunpack.c.l.b16 %v4093
        %v4181 = vunpack.c.h.b16 %v4093
        %v4182 = vunpack.c.l.b16 %v4094
        %v4183 = vunpack.c.h.b16 %v4094
        %v4184 = vunpack.c.l.b16 %v4095
        %v4185 = vunpack.c.h.b16 %v4095
        %v4186 = vunpack.c.l.b16 %v4096
        %v4187 = vunpack.c.h.b16 %v4096
        %v4188 = vunpack.c.l.b16 %v4097
        %v4189 = vunpack.c.h.b16 %v4097
        %v4190 = vunpack.c.l.b16 %v4098
        %v4191 = vunpack.c.h.b16 %v4098
        %v4192 = vunpack.c.l.b16 %v4099
        %v4193 = vunpack.c.h.b16 %v4099
        %v4194 = vunpack.c.l.b16 %v4100
        %v4195 = vunpack.c.h.b16 %v4100
        %v4196 = vunpack.c.l.b16 %v4101
        %v4197 = vunpack.c.h.b16 %v4101
        %v4198 = vpack.c.b16 %v4136, %v4134
        %v4199 = vpack.c.b16 %v4137, %v4135
        %v4200 = vpack.c.b16 %v4140, %v4138
        %v4201 = vpack.c.b16 %v4141, %v4139
        %v4202 = vpack.c.b16 %v4144, %v4142
        %v4203 = vpack.c.b16 %v4145, %v4143
        %v4204 = vpack.c.b16 %v4148, %v4146
        %v4205 = vpack.c.b16 %v4149, %v4147
        %v4206 = vpack.c.b16 %v4152, %v4150
        %v4207 = vpack.c.b16 %v4153, %v4151
        %v4208 = vpack.c.b16 %v4156, %v4154
        %v4209 = vpack.c.b16 %v4157, %v4155
        %v4210 = vpack.c.b16 %v4160, %v4158
        %v4211 = vpack.c.b16 %v4161, %v4159
        %v4212 = vpack.c.b16 %v4164, %v4162
        %v4213 = vpack.c.b16 %v4165, %v4163
        %v4214 = vpack.c.b16 %v4168, %v4166
        %v4215 = vpack.c.b16 %v4169, %v4167
        %v4216 = vpack.c.b16 %v4172, %v4170
        %v4217 = vpack.c.b16 %v4173, %v4171
        %v4218 = vpack.c.b16 %v4176, %v4174
        %v4219 = vpack.c.b16 %v4177, %v4175
        %v4220 = vpack.c.b16 %v4180, %v4178
        %v4221 = vpack.c.b16 %v4181, %v4179
        %v4222 = vpack.c.b16 %v4184, %v4182
        %v4223 = vpack.c.b16 %v4185, %v4183
        %v4224 = vpack.c.b16 %v4188, %v4186
        %v4225 = vpack.c.b16 %v4189, %v4187
        %v4226 = vpack.c.b16 %v4192, %v4190
        %v4227 = vpack.c.b16 %v4193, %v4191
        %v4228 = vpack.c.b16 %v4196, %v4194
        %v4229 = vpack.c.b16 %v4197, %v4195
        %4262 = vmatprep.subr.bf16.mxu0 %v4199
        %4263 = vmatpush1.bf16.msra.mxu0 %v4198
        %4264 = vmatprep.subr.bf16.mxu0 %v4201
        %4265 = vmatpush1.bf16.msra.mxu0 %v4200
        %4266 = vmatprep.subr.bf16.mxu0 %v4203
        %4267 = vmatpush1.bf16.msra.mxu0 %v4202
        %4268 = vmatprep.subr.bf16.mxu0 %v4205
        %4269 = vmatpush1.bf16.msra.mxu0 %v4204
        %4270 = vmatprep.subr.bf16.mxu0 %v4207
        %4271 = vmatpush1.bf16.msra.mxu0 %v4206
        %4272 = vmatprep.subr.bf16.mxu0 %v4209
        %4273 = vmatpush1.bf16.msra.mxu0 %v4208
        %4274 = vmatprep.subr.bf16.mxu0 %v4211
        %4275 = vmatpush1.bf16.msra.mxu0 %v4210
        %4276 = vmatprep.subr.bf16.mxu0 %v4213
        %4277 = vmatpush1.bf16.msra.mxu0 %v4212
        %4278 = vmatprep.subr.bf16.mxu0 %v4215
        %4279 = vmatpush1.bf16.msra.mxu0 %v4214
        %4280 = vmatprep.subr.bf16.mxu0 %v4217
        %4281 = vmatpush1.bf16.msra.mxu0 %v4216
        %4282 = vmatprep.subr.bf16.mxu0 %v4219
        %4283 = vmatpush1.bf16.msra.mxu0 %v4218
        %4284 = vmatprep.subr.bf16.mxu0 %v4221
        %4285 = vmatpush1.bf16.msra.mxu0 %v4220
        %4286 = vmatprep.subr.bf16.mxu0 %v4223
        %4287 = vmatpush1.bf16.msra.mxu0 %v4222
        %4288 = vmatprep.subr.bf16.mxu0 %v4225
        %4289 = vmatpush1.bf16.msra.mxu0 %v4224
        %4290 = vmatprep.subr.bf16.mxu0 %v4227
        %4291 = vmatpush1.bf16.msra.mxu0 %v4226
        %4292 = vmatprep.subr.bf16.mxu0 %v4229
        %4293 = vmatpush1.bf16.msra.mxu0 %v4228
        %4294 = vmatprep.mubr.bf16.mxu0 %v3443
        %4295 = vmatmul.mubr.bf16.gmra.mrb[0].mxu0 %v3442
        %v4296 = vpop.f32.mrb[0].mxu0
        %v4297 = vadd.f32 0.0, %v4296
        %v4298 = vpop.f32.mrb[0].mxu0
        %v4299 = vadd.f32 0.0, %v4298
        %v4300 = vpop.f32.mrb[0].mxu0
        %v4301 = vadd.f32 0.0, %v4300
        %v4302 = vpop.f32.mrb[0].mxu0
        %v4303 = vadd.f32 0.0, %v4302
        %4304 = vmatprep.mubr.bf16.mxu0 %v3445
        %4305 = vmatmul.mubr.bf16.gmra.mrb[0].mxu0 %v3444
        %v4306 = vpop.f32.mrb[0].mxu0
        %v4307 = vadd.f32 0.0, %v4306
        %v4308 = vpop.f32.mrb[0].mxu0
        %v4309 = vadd.f32 0.0, %v4308
        %v4310 = vpop.f32.mrb[0].mxu0
        %v4311 = vadd.f32 0.0, %v4310
        %v4312 = vpop.f32.mrb[0].mxu0
        %v4313 = vadd.f32 0.0, %v4312
        %4314 = vmatprep.mubr.bf16.mxu0 %v3447
        %4315 = vmatmul.mubr.bf16.gmra.mrb[0].mxu0 %v3446
        %v4316 = vpop.f32.mrb[0].mxu0
        %v4317 = vadd.f32 0.0, %v4316
        %v4318 = vpop.f32.mrb[0].mxu0
        %v4319 = vadd.f32 0.0, %v4318
        %v4320 = vpop.f32.mrb[0].mxu0
        %v4321 = vadd.f32 0.0, %v4320
        %v4322 = vpop.f32.mrb[0].mxu0
        %v4323 = vadd.f32 0.0, %v4322
        %4324 = vmatprep.mubr.bf16.mxu0 %v3449
        %4325 = vmatmul.mubr.bf16.gmra.mrb[0].mxu0 %v3448
        %v4326 = vpop.f32.mrb[0].mxu0
        %v4327 = vadd.f32 0.0, %v4326
        %v4328 = vpop.f32.mrb[0].mxu0
        %v4329 = vadd.f32 0.0, %v4328
        %v4330 = vpop.f32.mrb[0].mxu0
        %v4331 = vadd.f32 0.0, %v4330
        %v4332 = vpop.f32.mrb[0].mxu0
        %v4333 = vadd.f32 0.0, %v4332
        %4334 = vmatprep.mubr.bf16.mxu0 %v3451
        %4335 = vmatmul.mubr.bf16.gmra.mrb[0].mxu0 %v3450
        %v4336 = vpop.f32.mrb[0].mxu0
        %v4337 = vadd.f32 0.0, %v4336
        %v4338 = vpop.f32.mrb[0].mxu0
        %v4339 = vadd.f32 0.0, %v4338
        %v4340 = vpop.f32.mrb[0].mxu0
        %v4341 = vadd.f32 0.0, %v4340
        %v4342 = vpop.f32.mrb[0].mxu0
        %v4343 = vadd.f32 0.0, %v4342
        %4344 = vmatprep.mubr.bf16.mxu0 %v3453
        %4345 = vmatmul.mubr.bf16.gmra.mrb[0].mxu0 %v3452
        %v4346 = vpop.f32.mrb[0].mxu0
        %v4347 = vadd.f32 0.0, %v4346
        %v4348 = vpop.f32.mrb[0].mxu0
        %v4349 = vadd.f32 0.0, %v4348
        %v4350 = vpop.f32.mrb[0].mxu0
        %v4351 = vadd.f32 0.0, %v4350
        %v4352 = vpop.f32.mrb[0].mxu0
        %v4353 = vadd.f32 0.0, %v4352
        %4354 = vmatprep.mubr.bf16.mxu0 %v3455
        %4355 = vmatmul.mubr.bf16.gmra.mrb[0].mxu0 %v3454
        %v4356 = vpop.f32.mrb[0].mxu0
        %v4357 = vadd.f32 0.0, %v4356
        %v4358 = vpop.f32.mrb[0].mxu0
        %v4359 = vadd.f32 0.0, %v4358
        %v4360 = vpop.f32.mrb[0].mxu0
        %v4361 = vadd.f32 0.0, %v4360
        %v4362 = vpop.f32.mrb[0].mxu0
        %v4363 = vadd.f32 0.0, %v4362
        %4364 = vmatprep.mubr.bf16.mxu0 %v3457
        %4365 = vmatmul.mubr.bf16.gmra.mrb[0].mxu0 %v3456
        %v4366 = vpop.f32.mrb[0].mxu0
        %v4367 = vadd.f32 0.0, %v4366
        %v4368 = vpop.f32.mrb[0].mxu0
        %v4369 = vadd.f32 0.0, %v4368
        %v4370 = vpop.f32.mrb[0].mxu0
        %v4371 = vadd.f32 0.0, %v4370
        %v4372 = vpop.f32.mrb[0].mxu0
        %v4373 = vadd.f32 0.0, %v4372
        %4374 = vdwg.mxu0
        %v4377 = vrot.slane %v3759, 7
        %v4378 = vrot.slane %v3761, 7
        %v4411 = vrot.slane %v3685, 7
        %v4412 = vrot.slane %v3687, 7
        %v4413 = vrot.slane %v3689, 7
        %v4414 = vsel %vm1309, %v4411, %v4413
        %v4415 = vrot.slane %v3691, 7
        %v4416 = vsel %vm1309, %v4412, %v4415
        %v4417 = vrot.slane %v3695, 7
        %v4418 = vsel %vm1309, %v4413, %v4417
        %v4419 = vrot.slane %v3697, 7
        %v4420 = vsel %vm1309, %v4415, %v4419
        %v4421 = vrot.slane %v3699, 7
        %v4422 = vsel %vm1309, %v4417, %v4421
        %v4423 = vrot.slane %v3701, 7
        %v4424 = vsel %vm1309, %v4419, %v4423
        %v4425 = vrot.slane %v3705, 7
        %v4426 = vsel %vm1309, %v4421, %v4425
        %v4427 = vrot.slane %v3707, 7
        %v4428 = vsel %vm1309, %v4423, %v4427
        %v4429 = vrot.slane %v3709, 7
        %v4430 = vsel %vm1309, %v4425, %v4429
        %v4431 = vrot.slane %v3711, 7
        %v4432 = vsel %vm1309, %v4427, %v4431
        %v4433 = vrot.slane %v3715, 7
        %v4434 = vsel %vm1309, %v4429, %v4433
        %v4435 = vrot.slane %v3717, 7
        %v4436 = vsel %vm1309, %v4431, %v4435
        %v4437 = vrot.slane %v3719, 7
        %v4438 = vsel %vm1309, %v4433, %v4437
        %v4439 = vrot.slane %v3721, 7
        %v4440 = vsel %vm1309, %v4435, %v4439
        %v4441 = vrot.slane %v3725, 7
        %v4442 = vsel %vm1309, %v4437, %v4441
        %v4443 = vrot.slane %v3727, 7
        %v4444 = vsel %vm1309, %v4439, %v4443
        %v4445 = vrot.slane %v3729, 7
        %v4446 = vsel %vm1309, %v4441, %v4445
        %v4447 = vrot.slane %v3731, 7
        %v4448 = vsel %vm1309, %v4443, %v4447
        %v4449 = vrot.slane %v3735, 7
        %v4450 = vsel %vm1309, %v4445, %v4449
        %v4451 = vrot.slane %v3737, 7
        %v4452 = vsel %vm1309, %v4447, %v4451
        %v4453 = vrot.slane %v3739, 7
        %v4454 = vsel %vm1309, %v4449, %v4453
        %v4455 = vrot.slane %v3741, 7
        %v4456 = vsel %vm1309, %v4451, %v4455
        %v4457 = vrot.slane %v3745, 7
        %v4458 = vsel %vm1309, %v4453, %v4457
        %v4459 = vrot.slane %v3747, 7
        %v4460 = vsel %vm1309, %v4455, %v4459
        %v4461 = vrot.slane %v3749, 7
        %v4462 = vsel %vm1309, %v4457, %v4461
        %v4463 = vrot.slane %v3751, 7
        %v4464 = vsel %vm1309, %v4459, %v4463
        %v4465 = vrot.slane %v3755, 7
        %v4466 = vsel %vm1309, %v4461, %v4465
        %v4467 = vrot.slane %v3757, 7
        %v4468 = vsel %vm1309, %v4463, %v4467
        %v4469 = vsel %vm1309, %v4465, %v4377
        %v4470 = vsel %vm1309, %v4467, %v4378
        %v4503 = vsel %vm1309, %v4377, %v4411
        %v4504 = vsel %vm1309, %v4378, %v4412
        %v4505 = vmul.f32 %v4503, %v1360
        %v4506 = vmul.f32 %v4504, %v1360
        %v4507 = vmul.f32 %v4414, %v1365
        %v4508 = vmul.f32 %v4416, %v1365
        %v4509 = vmul.f32 %v4418, %v1370
        %v4510 = vmul.f32 %v4420, %v1370
        %v4511 = vmul.f32 %v4422, %v1375
        %v4512 = vmul.f32 %v4424, %v1375
        %v4513 = vmul.f32 %v4426, %v1380
        %v4514 = vmul.f32 %v4428, %v1380
        %v4515 = vmul.f32 %v4430, %v1385
        %v4516 = vmul.f32 %v4432, %v1385
        %v4517 = vmul.f32 %v4434, %v1390
        %v4518 = vmul.f32 %v4436, %v1390
        %v4519 = vmul.f32 %v4438, %v1395
        %v4520 = vmul.f32 %v4440, %v1395
        %v4521 = vmul.f32 %v4442, %v1400
        %v4522 = vmul.f32 %v4444, %v1400
        %v4523 = vmul.f32 %v4446, %v1405
        %v4524 = vmul.f32 %v4448, %v1405
        %v4525 = vmul.f32 %v4450, %v1410
        %v4526 = vmul.f32 %v4452, %v1410
        %v4527 = vmul.f32 %v4454, %v1415
        %v4528 = vmul.f32 %v4456, %v1415
        %v4529 = vmul.f32 %v4458, %v1420
        %v4530 = vmul.f32 %v4460, %v1420
        %v4531 = vmul.f32 %v4462, %v1425
        %v4532 = vmul.f32 %v4464, %v1425
        %v4533 = vmul.f32 %v4466, %v1430
        %v4534 = vmul.f32 %v4468, %v1430
        %v4535 = vmul.f32 %v4469, %v1435
        %v4536 = vmul.f32 %v4470, %v1435
        %v4537 = vadd.f32 %v4505, %v3991
        %v4538 = vadd.f32 %v4506, %v3993
        %v4539 = vadd.f32 %v4507, %v3995
        %v4540 = vadd.f32 %v4508, %v3997
        %v4541 = vadd.f32 %v4509, %v4001
        %v4542 = vadd.f32 %v4510, %v4003
        %v4543 = vadd.f32 %v4511, %v4005
        %v4544 = vadd.f32 %v4512, %v4007
        %v4545 = vadd.f32 %v4513, %v4011
        %v4546 = vadd.f32 %v4514, %v4013
        %v4547 = vadd.f32 %v4515, %v4015
        %v4548 = vadd.f32 %v4516, %v4017
        %v4549 = vadd.f32 %v4517, %v4021
        %v4550 = vadd.f32 %v4518, %v4023
        %v4551 = vadd.f32 %v4519, %v4025
        %v4552 = vadd.f32 %v4520, %v4027
        %v4553 = vadd.f32 %v4521, %v4031
        %v4554 = vadd.f32 %v4522, %v4033
        %v4555 = vadd.f32 %v4523, %v4035
        %v4556 = vadd.f32 %v4524, %v4037
        %v4557 = vadd.f32 %v4525, %v4041
        %v4558 = vadd.f32 %v4526, %v4043
        %v4559 = vadd.f32 %v4527, %v4045
        %v4560 = vadd.f32 %v4528, %v4047
        %v4561 = vadd.f32 %v4529, %v4051
        %v4562 = vadd.f32 %v4530, %v4053
        %v4563 = vadd.f32 %v4531, %v4055
        %v4564 = vadd.f32 %v4532, %v4057
        %v4565 = vadd.f32 %v4533, %v4061
        %v4566 = vadd.f32 %v4534, %v4063
        %v4567 = vadd.f32 %v4535, %v4065
        %v4568 = vadd.f32 %v4536, %v4067
        %v4601 = vrot.slane %v4297, 1
        %v4602 = vrot.slane %v4301, 1
        %v4603 = vsel %vm1485, %v4601, %v4602
        %v4604 = vrot.slane %v4299, 1
        %v4605 = vrot.slane %v4303, 1
        %v4606 = vsel %vm1485, %v4604, %v4605
        %v4607 = vrot.slane %v4307, 1
        %v4608 = vsel %vm1485, %v4602, %v4607
        %v4609 = vrot.slane %v4309, 1
        %v4610 = vsel %vm1485, %v4605, %v4609
        %v4611 = vrot.slane %v4311, 1
        %v4612 = vsel %vm1485, %v4607, %v4611
        %v4613 = vrot.slane %v4313, 1
        %v4614 = vsel %vm1485, %v4609, %v4613
        %v4615 = vrot.slane %v4317, 1
        %v4616 = vsel %vm1485, %v4611, %v4615
        %v4617 = vrot.slane %v4319, 1
        %v4618 = vsel %vm1485, %v4613, %v4617
        %v4619 = vrot.slane %v4321, 1
        %v4620 = vsel %vm1485, %v4615, %v4619
        %v4621 = vrot.slane %v4323, 1
        %v4622 = vsel %vm1485, %v4617, %v4621
        %v4623 = vrot.slane %v4327, 1
        %v4624 = vsel %vm1485, %v4619, %v4623
        %v4625 = vrot.slane %v4329, 1
        %v4626 = vsel %vm1485, %v4621, %v4625
        %v4627 = vrot.slane %v4331, 1
        %v4628 = vsel %vm1485, %v4623, %v4627
        %v4629 = vrot.slane %v4333, 1
        %v4630 = vsel %vm1485, %v4625, %v4629
        %v4631 = vrot.slane %v4337, 1
        %v4632 = vsel %vm1485, %v4627, %v4631
        %v4633 = vrot.slane %v4339, 1
        %v4634 = vsel %vm1485, %v4629, %v4633
        %v4635 = vrot.slane %v4341, 1
        %v4636 = vsel %vm1485, %v4631, %v4635
        %v4637 = vrot.slane %v4343, 1
        %v4638 = vsel %vm1485, %v4633, %v4637
        %v4639 = vrot.slane %v4347, 1
        %v4640 = vsel %vm1485, %v4635, %v4639
        %v4641 = vrot.slane %v4349, 1
        %v4642 = vsel %vm1485, %v4637, %v4641
        %v4643 = vrot.slane %v4351, 1
        %v4644 = vsel %vm1485, %v4639, %v4643
        %v4645 = vrot.slane %v4353, 1
        %v4646 = vsel %vm1485, %v4641, %v4645
        %v4647 = vrot.slane %v4357, 1
        %v4648 = vsel %vm1485, %v4643, %v4647
        %v4649 = vrot.slane %v4359, 1
        %v4650 = vsel %vm1485, %v4645, %v4649
        %v4651 = vrot.slane %v4361, 1
        %v4652 = vsel %vm1485, %v4647, %v4651
        %v4653 = vrot.slane %v4363, 1
        %v4654 = vsel %vm1485, %v4649, %v4653
        %v4655 = vrot.slane %v4367, 1
        %v4656 = vsel %vm1485, %v4651, %v4655
        %v4657 = vrot.slane %v4369, 1
        %v4658 = vsel %vm1485, %v4653, %v4657
        %v4659 = vrot.slane %v4371, 1
        %v4660 = vsel %vm1485, %v4655, %v4659
        %v4661 = vrot.slane %v4373, 1
        %v4662 = vsel %vm1485, %v4657, %v4661
        %v4697 = vsel %vm1485, %v4659, %v4601
        %v4698 = vsel %vm1485, %v4661, %v4604
        %v4699 = vmul.f32 %v4603, %v1538
        %v4700 = vmul.f32 %v4606, %v1538
        %v4701 = vmul.f32 %v4608, %v1543
        %v4702 = vmul.f32 %v4610, %v1543
        %v4703 = vmul.f32 %v4612, %v1548
        %v4704 = vmul.f32 %v4614, %v1548
        %v4705 = vmul.f32 %v4616, %v1553
        %v4706 = vmul.f32 %v4618, %v1553
        %v4707 = vmul.f32 %v4620, %v1558
        %v4708 = vmul.f32 %v4622, %v1558
        %v4709 = vmul.f32 %v4624, %v1563
        %v4710 = vmul.f32 %v4626, %v1563
        %v4711 = vmul.f32 %v4628, %v1568
        %v4712 = vmul.f32 %v4630, %v1568
        %v4713 = vmul.f32 %v4632, %v1573
        %v4714 = vmul.f32 %v4634, %v1573
        %v4715 = vmul.f32 %v4636, %v1578
        %v4716 = vmul.f32 %v4638, %v1578
        %v4717 = vmul.f32 %v4640, %v1583
        %v4718 = vmul.f32 %v4642, %v1583
        %v4719 = vmul.f32 %v4644, %v1588
        %v4720 = vmul.f32 %v4646, %v1588
        %v4721 = vmul.f32 %v4648, %v1593
        %v4722 = vmul.f32 %v4650, %v1593
        %v4723 = vmul.f32 %v4652, %v1598
        %v4724 = vmul.f32 %v4654, %v1598
        %v4725 = vmul.f32 %v4656, %v1603
        %v4726 = vmul.f32 %v4658, %v1603
        %v4727 = vmul.f32 %v4660, %v1608
        %v4728 = vmul.f32 %v4662, %v1608
        %v4729 = vmul.f32 %v4697, %v1613
        %v4730 = vmul.f32 %v4698, %v1613
        %v4731 = vadd.f32 %v4537, %v4699
        %v4732 = vadd.f32 %v4538, %v4700
        %v4733 = vadd.f32 %v4539, %v4701
        %v4734 = vadd.f32 %v4540, %v4702
        %v4735 = vadd.f32 %v4541, %v4703
        %v4736 = vadd.f32 %v4542, %v4704
        %v4737 = vadd.f32 %v4543, %v4705
        %v4738 = vadd.f32 %v4544, %v4706
        %v4739 = vadd.f32 %v4545, %v4707
        %v4740 = vadd.f32 %v4546, %v4708
        %v4741 = vadd.f32 %v4547, %v4709
        %v4742 = vadd.f32 %v4548, %v4710
        %v4743 = vadd.f32 %v4549, %v4711
        %v4744 = vadd.f32 %v4550, %v4712
        %v4745 = vadd.f32 %v4551, %v4713
        %v4746 = vadd.f32 %v4552, %v4714
        %v4747 = vadd.f32 %v4553, %v4715
        %v4748 = vadd.f32 %v4554, %v4716
        %v4749 = vadd.f32 %v4555, %v4717
        %v4750 = vadd.f32 %v4556, %v4718
        %v4751 = vadd.f32 %v4557, %v4719
        %v4752 = vadd.f32 %v4558, %v4720
        %v4753 = vadd.f32 %v4559, %v4721
        %v4754 = vadd.f32 %v4560, %v4722
        %v4755 = vadd.f32 %v4561, %v4723
        %v4756 = vadd.f32 %v4562, %v4724
        %v4757 = vadd.f32 %v4563, %v4725
        %v4758 = vadd.f32 %v4564, %v4726
        %v4759 = vadd.f32 %v4565, %v4727
        %v4760 = vadd.f32 %v4566, %v4728
        %v4761 = vadd.f32 %v4567, %v4729
        %v4762 = vadd.f32 %v4568, %v4730
        %v4763 = vld [vmem:[%s11] sm:$0x3]
        %v4765 = vlaneseq
        %v4766 = vshrl.u32 %v4765, 7
        %v4767 = vsub.s32 0, %v4766
        %v4768 = vrot.slane %v4763, %v4767
        %v4769 = vlaneseq
        %v4770 = vshrl.u32 %v4769, 7
        %v4771 = vsub.s32 1, %v4770
        %v4772 = vrot.slane %v4763, %v4771
        %v4775 = vadd.f32 %v4731, %v4768
        %v4776 = vadd.f32 %v4732, %v4772
        %v4777 = vadd.f32 %v4733, %v4768
        %v4778 = vadd.f32 %v4734, %v4772
        %v4779 = vadd.f32 %v4735, %v4768
        %v4780 = vadd.f32 %v4736, %v4772
        %v4781 = vadd.f32 %v4737, %v4768
        %v4782 = vadd.f32 %v4738, %v4772
        %v4783 = vadd.f32 %v4739, %v4768
        %v4784 = vadd.f32 %v4740, %v4772
        %v4785 = vadd.f32 %v4741, %v4768
        %v4786 = vadd.f32 %v4742, %v4772
        %v4787 = vadd.f32 %v4743, %v4768
        %v4788 = vadd.f32 %v4744, %v4772
        %v4789 = vadd.f32 %v4745, %v4768
        %v4790 = vadd.f32 %v4746, %v4772
        %v4791 = vadd.f32 %v4747, %v4768
        %v4792 = vadd.f32 %v4748, %v4772
        %v4793 = vadd.f32 %v4749, %v4768
        %v4794 = vadd.f32 %v4750, %v4772
        %v4795 = vadd.f32 %v4751, %v4768
        %v4796 = vadd.f32 %v4752, %v4772
        %v4797 = vadd.f32 %v4753, %v4768
        %v4798 = vadd.f32 %v4754, %v4772
        %v4799 = vadd.f32 %v4755, %v4768
        %v4800 = vadd.f32 %v4756, %v4772
        %v4801 = vadd.f32 %v4757, %v4768
        %v4802 = vadd.f32 %v4758, %v4772
        %v4803 = vadd.f32 %v4759, %v4768
        %v4804 = vadd.f32 %v4760, %v4772
        %v4805 = vadd.f32 %v4761, %v4768
        %v4806 = vadd.f32 %v4762, %v4772
        %v4807 = vmax.f32 %v4775, 0.0
        %v4808 = vmax.f32 %v4776, 0.0
        %v4809 = vmax.f32 %v4777, 0.0
        %v4810 = vmax.f32 %v4778, 0.0
        %v4811 = vmax.f32 %v4779, 0.0
        %v4812 = vmax.f32 %v4780, 0.0
        %v4813 = vmax.f32 %v4781, 0.0
        %v4814 = vmax.f32 %v4782, 0.0
        %v4815 = vmax.f32 %v4783, 0.0
        %v4816 = vmax.f32 %v4784, 0.0
        %v4817 = vmax.f32 %v4785, 0.0
        %v4818 = vmax.f32 %v4786, 0.0
        %v4819 = vmax.f32 %v4787, 0.0
        %v4820 = vmax.f32 %v4788, 0.0
        %v4821 = vmax.f32 %v4789, 0.0
        %v4822 = vmax.f32 %v4790, 0.0
        %v4823 = vmax.f32 %v4791, 0.0
        %v4824 = vmax.f32 %v4792, 0.0
        %v4825 = vmax.f32 %v4793, 0.0
        %v4826 = vmax.f32 %v4794, 0.0
        %v4827 = vmax.f32 %v4795, 0.0
        %v4828 = vmax.f32 %v4796, 0.0
        %v4829 = vmax.f32 %v4797, 0.0
        %v4830 = vmax.f32 %v4798, 0.0
        %v4831 = vmax.f32 %v4799, 0.0
        %v4832 = vmax.f32 %v4800, 0.0
        %v4833 = vmax.f32 %v4801, 0.0
        %v4834 = vmax.f32 %v4802, 0.0
        %v4835 = vmax.f32 %v4803, 0.0
        %v4836 = vmax.f32 %v4804, 0.0
        %v4837 = vmax.f32 %v4805, 0.0
        %v4838 = vmax.f32 %v4806, 0.0
        %v4839 = vpack.c.bf16 %v4809, %v4807
        %v4840 = vpack.c.bf16 %v4810, %v4808
        %v4841 = vpack.c.bf16 %v4813, %v4811
        %v4842 = vpack.c.bf16 %v4814, %v4812
        %v4843 = vpack.c.bf16 %v4817, %v4815
        %v4844 = vpack.c.bf16 %v4818, %v4816
        %v4845 = vpack.c.bf16 %v4821, %v4819
        %v4846 = vpack.c.bf16 %v4822, %v4820
        %v4847 = vpack.c.bf16 %v4825, %v4823
        %v4848 = vpack.c.bf16 %v4826, %v4824
        %v4849 = vpack.c.bf16 %v4829, %v4827
        %v4850 = vpack.c.bf16 %v4830, %v4828
        %v4851 = vpack.c.bf16 %v4833, %v4831
        %v4852 = vpack.c.bf16 %v4834, %v4832
        %v4853 = vpack.c.bf16 %v4837, %v4835
        %v4854 = vpack.c.bf16 %v4838, %v4836
        %v4855 = vld [vmem:[#allocation14] sm:$0xff]
        %v4856 = vld [vmem:[#allocation14 + $0x8] sm:$0xff]
        %v4857 = vld [vmem:[#allocation14 + $0x10] sm:$0xff]
        %v4858 = vld [vmem:[#allocation14 + $0x18] sm:$0xff]
        %v4859 = vld [vmem:[#allocation14 + $0x20] sm:$0xff]
        %v4860 = vld [vmem:[#allocation14 + $0x28] sm:$0xff]
        %v4861 = vld [vmem:[#allocation14 + $0x30] sm:$0xff]
        %v4862 = vld [vmem:[#allocation14 + $0x38] sm:$0xff]
        %v4863 = vld [vmem:[#allocation14 + $0x40] sm:$0xff]
        %v4864 = vld [vmem:[#allocation14 + $0x48] sm:$0xff]
        %v4865 = vld [vmem:[#allocation14 + $0x50] sm:$0xff]
        %v4866 = vld [vmem:[#allocation14 + $0x58] sm:$0xff]
        %v4867 = vld [vmem:[#allocation14 + $0x60] sm:$0xff]
        %v4868 = vld [vmem:[#allocation14 + $0x68] sm:$0xff]
        %v4869 = vld [vmem:[#allocation14 + $0x70] sm:$0xff]
        %v4870 = vld [vmem:[#allocation14 + $0x78] sm:$0xff]
        %v4871 = vld [vmem:[#allocation14 + $0x80] sm:$0xff]
        %v4872 = vld [vmem:[#allocation14 + $0x88] sm:$0xff]
        %v4873 = vld [vmem:[#allocation14 + $0x90] sm:$0xff]
        %v4874 = vld [vmem:[#allocation14 + $0x98] sm:$0xff]
        %v4875 = vld [vmem:[#allocation14 + $0xa0] sm:$0xff]
        %v4876 = vld [vmem:[#allocation14 + $0xa8] sm:$0xff]
        %v4877 = vld [vmem:[#allocation14 + $0xb0] sm:$0xff]
        %v4878 = vld [vmem:[#allocation14 + $0xb8] sm:$0xff]
        %v4879 = vld [vmem:[#allocation14 + $0xc0] sm:$0xff]
        %v4880 = vld [vmem:[#allocation14 + $0xc8] sm:$0xff]
        %v4881 = vld [vmem:[#allocation14 + $0xd0] sm:$0xff]
        %v4882 = vld [vmem:[#allocation14 + $0xd8] sm:$0xff]
        %v4883 = vld [vmem:[#allocation14 + $0xe0] sm:$0xff]
        %v4884 = vld [vmem:[#allocation14 + $0xe8] sm:$0xff]
        %v4885 = vld [vmem:[#allocation14 + $0xf0] sm:$0xff]
        %v4886 = vld [vmem:[#allocation14 + $0xf8] sm:$0xff]
        %v4919 = vunpack.c.l.b16 %v4855
        %v4920 = vunpack.c.h.b16 %v4855
        %v4921 = vunpack.c.l.b16 %v4856
        %v4922 = vunpack.c.h.b16 %v4856
        %v4923 = vunpack.c.l.b16 %v4857
        %v4924 = vunpack.c.h.b16 %v4857
        %v4925 = vunpack.c.l.b16 %v4858
        %v4926 = vunpack.c.h.b16 %v4858
        %v4927 = vunpack.c.l.b16 %v4859
        %v4928 = vunpack.c.h.b16 %v4859
        %v4929 = vunpack.c.l.b16 %v4860
        %v4930 = vunpack.c.h.b16 %v4860
        %v4931 = vunpack.c.l.b16 %v4861
        %v4932 = vunpack.c.h.b16 %v4861
        %v4933 = vunpack.c.l.b16 %v4862
        %v4934 = vunpack.c.h.b16 %v4862
        %v4935 = vunpack.c.l.b16 %v4863
        %v4936 = vunpack.c.h.b16 %v4863
        %v4937 = vunpack.c.l.b16 %v4864
        %v4938 = vunpack.c.h.b16 %v4864
        %v4939 = vunpack.c.l.b16 %v4865
        %v4940 = vunpack.c.h.b16 %v4865
        %v4941 = vunpack.c.l.b16 %v4866
        %v4942 = vunpack.c.h.b16 %v4866
        %v4943 = vunpack.c.l.b16 %v4867
        %v4944 = vunpack.c.h.b16 %v4867
        %v4945 = vunpack.c.l.b16 %v4868
        %v4946 = vunpack.c.h.b16 %v4868
        %v4947 = vunpack.c.l.b16 %v4869
        %v4948 = vunpack.c.h.b16 %v4869
        %v4949 = vunpack.c.l.b16 %v4870
        %v4950 = vunpack.c.h.b16 %v4870
        %v4951 = vunpack.c.l.b16 %v4871
        %v4952 = vunpack.c.h.b16 %v4871
        %v4953 = vunpack.c.l.b16 %v4872
        %v4954 = vunpack.c.h.b16 %v4872
        %v4955 = vunpack.c.l.b16 %v4873
        %v4956 = vunpack.c.h.b16 %v4873
        %v4957 = vunpack.c.l.b16 %v4874
        %v4958 = vunpack.c.h.b16 %v4874
        %v4959 = vunpack.c.l.b16 %v4875
        %v4960 = vunpack.c.h.b16 %v4875
        %v4961 = vunpack.c.l.b16 %v4876
        %v4962 = vunpack.c.h.b16 %v4876
        %v4963 = vunpack.c.l.b16 %v4877
        %v4964 = vunpack.c.h.b16 %v4877
        %v4965 = vunpack.c.l.b16 %v4878
        %v4966 = vunpack.c.h.b16 %v4878
        %v4967 = vunpack.c.l.b16 %v4879
        %v4968 = vunpack.c.h.b16 %v4879
        %v4969 = vunpack.c.l.b16 %v4880
        %v4970 = vunpack.c.h.b16 %v4880
        %v4971 = vunpack.c.l.b16 %v4881
        %v4972 = vunpack.c.h.b16 %v4881
        %v4973 = vunpack.c.l.b16 %v4882
        %v4974 = vunpack.c.h.b16 %v4882
        %v4975 = vunpack.c.l.b16 %v4883
        %v4976 = vunpack.c.h.b16 %v4883
        %v4977 = vunpack.c.l.b16 %v4884
        %v4978 = vunpack.c.h.b16 %v4884
        %v4979 = vunpack.c.l.b16 %v4885
        %v4980 = vunpack.c.h.b16 %v4885
        %v4981 = vunpack.c.l.b16 %v4886
        %v4982 = vunpack.c.h.b16 %v4886
        %v4983 = vpack.c.b16 %v4921, %v4919
        %v4984 = vpack.c.b16 %v4922, %v4920
        %v4985 = vpack.c.b16 %v4925, %v4923
        %v4986 = vpack.c.b16 %v4926, %v4924
        %v4987 = vpack.c.b16 %v4929, %v4927
        %v4988 = vpack.c.b16 %v4930, %v4928
        %v4989 = vpack.c.b16 %v4933, %v4931
        %v4990 = vpack.c.b16 %v4934, %v4932
        %v4991 = vpack.c.b16 %v4937, %v4935
        %v4992 = vpack.c.b16 %v4938, %v4936
        %v4993 = vpack.c.b16 %v4941, %v4939
        %v4994 = vpack.c.b16 %v4942, %v4940
        %v4995 = vpack.c.b16 %v4945, %v4943
        %v4996 = vpack.c.b16 %v4946, %v4944
        %v4997 = vpack.c.b16 %v4949, %v4947
        %v4998 = vpack.c.b16 %v4950, %v4948
        %v4999 = vpack.c.b16 %v4953, %v4951
        %v5000 = vpack.c.b16 %v4954, %v4952
        %v5001 = vpack.c.b16 %v4957, %v4955
        %v5002 = vpack.c.b16 %v4958, %v4956
        %v5003 = vpack.c.b16 %v4961, %v4959
        %v5004 = vpack.c.b16 %v4962, %v4960
        %v5005 = vpack.c.b16 %v4965, %v4963
        %v5006 = vpack.c.b16 %v4966, %v4964
        %v5007 = vpack.c.b16 %v4969, %v4967
        %v5008 = vpack.c.b16 %v4970, %v4968
        %v5009 = vpack.c.b16 %v4973, %v4971
        %v5010 = vpack.c.b16 %v4974, %v4972
        %v5011 = vpack.c.b16 %v4977, %v4975
        %v5012 = vpack.c.b16 %v4978, %v4976
        %v5013 = vpack.c.b16 %v4981, %v4979
        %v5014 = vpack.c.b16 %v4982, %v4980
        %5047 = vmatprep.subr.bf16.mxu0 %v4984
        %5048 = vmatpush1.bf16.msra.mxu0 %v4983
        %5049 = vmatprep.subr.bf16.mxu0 %v4986
        %5050 = vmatpush1.bf16.msra.mxu0 %v4985
        %5051 = vmatprep.subr.bf16.mxu0 %v4988
        %5052 = vmatpush1.bf16.msra.mxu0 %v4987
        %5053 = vmatprep.subr.bf16.mxu0 %v4990
        %5054 = vmatpush1.bf16.msra.mxu0 %v4989
        %5055 = vmatprep.subr.bf16.mxu0 %v4992
        %5056 = vmatpush1.bf16.msra.mxu0 %v4991
        %5057 = vmatprep.subr.bf16.mxu0 %v4994
        %5058 = vmatpush1.bf16.msra.mxu0 %v4993
        %5059 = vmatprep.subr.bf16.mxu0 %v4996
        %5060 = vmatpush1.bf16.msra.mxu0 %v4995
        %5061 = vmatprep.subr.bf16.mxu0 %v4998
        %5062 = vmatpush1.bf16.msra.mxu0 %v4997
        %5063 = vmatprep.subr.bf16.mxu0 %v5000
        %5064 = vmatpush1.bf16.msra.mxu0 %v4999
        %5065 = vmatprep.subr.bf16.mxu0 %v5002
        %5066 = vmatpush1.bf16.msra.mxu0 %v5001
        %5067 = vmatprep.subr.bf16.mxu0 %v5004
        %5068 = vmatpush1.bf16.msra.mxu0 %v5003
        %5069 = vmatprep.subr.bf16.mxu0 %v5006
        %5070 = vmatpush1.bf16.msra.mxu0 %v5005
        %5071 = vmatprep.subr.bf16.mxu0 %v5008
        %5072 = vmatpush1.bf16.msra.mxu0 %v5007
        %5073 = vmatprep.subr.bf16.mxu0 %v5010
        %5074 = vmatpush1.bf16.msra.mxu0 %v5009
        %5075 = vmatprep.subr.bf16.mxu0 %v5012
        %5076 = vmatpush1.bf16.msra.mxu0 %v5011
        %5077 = vmatprep.subr.bf16.mxu0 %v5014
        %5078 = vmatpush1.bf16.msra.mxu0 %v5013
        %5079 = vmatprep.mubr.bf16.mxu0 %v4840
        %5080 = vmatmul.mubr.bf16.gmra.mrb[0].mxu0 %v4839
        %v5081 = vpop.f32.mrb[0].mxu0
        %v5082 = vadd.f32 0.0, %v5081
        %v5083 = vpop.f32.mrb[0].mxu0
        %v5084 = vadd.f32 0.0, %v5083
        %v5085 = vpop.f32.mrb[0].mxu0
        %v5086 = vadd.f32 0.0, %v5085
        %v5087 = vpop.f32.mrb[0].mxu0
        %v5088 = vadd.f32 0.0, %v5087
        %5089 = vmatprep.mubr.bf16.mxu0 %v4842
        %5090 = vmatmul.mubr.bf16.gmra.mrb[0].mxu0 %v4841
        %v5091 = vpop.f32.mrb[0].mxu0
        %v5092 = vadd.f32 0.0, %v5091
        %v5093 = vpop.f32.mrb[0].mxu0
        %v5094 = vadd.f32 0.0, %v5093
        %v5095 = vpop.f32.mrb[0].mxu0
        %v5096 = vadd.f32 0.0, %v5095
        %v5097 = vpop.f32.mrb[0].mxu0
        %v5098 = vadd.f32 0.0, %v5097
        %5099 = vmatprep.mubr.bf16.mxu0 %v4844
        %5100 = vmatmul.mubr.bf16.gmra.mrb[0].mxu0 %v4843
        %v5101 = vpop.f32.mrb[0].mxu0
        %v5102 = vadd.f32 0.0, %v5101
        %v5103 = vpop.f32.mrb[0].mxu0
        %v5104 = vadd.f32 0.0, %v5103
        %v5105 = vpop.f32.mrb[0].mxu0
        %v5106 = vadd.f32 0.0, %v5105
        %v5107 = vpop.f32.mrb[0].mxu0
        %v5108 = vadd.f32 0.0, %v5107
        %5109 = vmatprep.mubr.bf16.mxu0 %v4846
        %5110 = vmatmul.mubr.bf16.gmra.mrb[0].mxu0 %v4845
        %v5111 = vpop.f32.mrb[0].mxu0
        %v5112 = vadd.f32 0.0, %v5111
        %v5113 = vpop.f32.mrb[0].mxu0
        %v5114 = vadd.f32 0.0, %v5113
        %v5115 = vpop.f32.mrb[0].mxu0
        %v5116 = vadd.f32 0.0, %v5115
        %v5117 = vpop.f32.mrb[0].mxu0
        %v5118 = vadd.f32 0.0, %v5117
        %5119 = vmatprep.mubr.bf16.mxu0 %v4848
        %5120 = vmatmul.mubr.bf16.gmra.mrb[0].mxu0 %v4847
        %v5121 = vpop.f32.mrb[0].mxu0
        %v5122 = vadd.f32 0.0, %v5121
        %v5123 = vpop.f32.mrb[0].mxu0
        %v5124 = vadd.f32 0.0, %v5123
        %v5125 = vpop.f32.mrb[0].mxu0
        %v5126 = vadd.f32 0.0, %v5125
        %v5127 = vpop.f32.mrb[0].mxu0
        %v5128 = vadd.f32 0.0, %v5127
        %5129 = vmatprep.mubr.bf16.mxu0 %v4850
        %5130 = vmatmul.mubr.bf16.gmra.mrb[0].mxu0 %v4849
        %v5131 = vpop.f32.mrb[0].mxu0
        %v5132 = vadd.f32 0.0, %v5131
        %v5133 = vpop.f32.mrb[0].mxu0
        %v5134 = vadd.f32 0.0, %v5133
        %v5135 = vpop.f32.mrb[0].mxu0
        %v5136 = vadd.f32 0.0, %v5135
        %v5137 = vpop.f32.mrb[0].mxu0
        %v5138 = vadd.f32 0.0, %v5137
        %5139 = vmatprep.mubr.bf16.mxu0 %v4852
        %5140 = vmatmul.mubr.bf16.gmra.mrb[0].mxu0 %v4851
        %v5141 = vpop.f32.mrb[0].mxu0
        %v5142 = vadd.f32 0.0, %v5141
        %v5143 = vpop.f32.mrb[0].mxu0
        %v5144 = vadd.f32 0.0, %v5143
        %v5145 = vpop.f32.mrb[0].mxu0
        %v5146 = vadd.f32 0.0, %v5145
        %v5147 = vpop.f32.mrb[0].mxu0
        %v5148 = vadd.f32 0.0, %v5147
        %5149 = vmatprep.mubr.bf16.mxu0 %v4854
        %5150 = vmatmul.mubr.bf16.gmra.mrb[0].mxu0 %v4853
        %v5151 = vpop.f32.mrb[0].mxu0
        %v5152 = vadd.f32 0.0, %v5151
        %v5153 = vpop.f32.mrb[0].mxu0
        %v5154 = vadd.f32 0.0, %v5153
        %v5155 = vpop.f32.mrb[0].mxu0
        %v5156 = vadd.f32 0.0, %v5155
        %v5157 = vpop.f32.mrb[0].mxu0
        %v5158 = vadd.f32 0.0, %v5157
        %5159 = vdwg.mxu0
        %s5160 = scalar_lea.vmem [#allocation14], 256
        %v5161 = vld [vmem:[%s5160] sm:$0xff]
        %v5162 = vld [vmem:[%s5160 + $0x8] sm:$0xff]
        %v5163 = vld [vmem:[%s5160 + $0x10] sm:$0xff]
        %v5164 = vld [vmem:[%s5160 + $0x18] sm:$0xff]
        %v5165 = vld [vmem:[%s5160 + $0x20] sm:$0xff]
        %v5166 = vld [vmem:[%s5160 + $0x28] sm:$0xff]
        %v5167 = vld [vmem:[%s5160 + $0x30] sm:$0xff]
        %v5168 = vld [vmem:[%s5160 + $0x38] sm:$0xff]
        %v5169 = vld [vmem:[%s5160 + $0x40] sm:$0xff]
        %v5170 = vld [vmem:[%s5160 + $0x48] sm:$0xff]
        %v5171 = vld [vmem:[%s5160 + $0x50] sm:$0xff]
        %v5172 = vld [vmem:[%s5160 + $0x58] sm:$0xff]
        %v5173 = vld [vmem:[%s5160 + $0x60] sm:$0xff]
        %v5174 = vld [vmem:[%s5160 + $0x68] sm:$0xff]
        %v5175 = vld [vmem:[%s5160 + $0x70] sm:$0xff]
        %v5176 = vld [vmem:[%s5160 + $0x78] sm:$0xff]
        %v5177 = vld [vmem:[%s5160 + $0x80] sm:$0xff]
        %v5178 = vld [vmem:[%s5160 + $0x88] sm:$0xff]
        %v5179 = vld [vmem:[%s5160 + $0x90] sm:$0xff]
        %v5180 = vld [vmem:[%s5160 + $0x98] sm:$0xff]
        %v5181 = vld [vmem:[%s5160 + $0xa0] sm:$0xff]
        %v5182 = vld [vmem:[%s5160 + $0xa8] sm:$0xff]
        %v5183 = vld [vmem:[%s5160 + $0xb0] sm:$0xff]
        %v5184 = vld [vmem:[%s5160 + $0xb8] sm:$0xff]
        %v5185 = vld [vmem:[%s5160 + $0xc0] sm:$0xff]
        %v5186 = vld [vmem:[%s5160 + $0xc8] sm:$0xff]
        %v5187 = vld [vmem:[%s5160 + $0xd0] sm:$0xff]
        %v5188 = vld [vmem:[%s5160 + $0xd8] sm:$0xff]
        %v5189 = vld [vmem:[%s5160 + $0xe0] sm:$0xff]
        %v5190 = vld [vmem:[%s5160 + $0xe8] sm:$0xff]
        %v5191 = vld [vmem:[%s5160 + $0xf0] sm:$0xff]
        %v5192 = vld [vmem:[%s5160 + $0xf8] sm:$0xff]
        %v5225 = vunpack.c.l.b16 %v5161
        %v5226 = vunpack.c.h.b16 %v5161
        %v5227 = vunpack.c.l.b16 %v5162
        %v5228 = vunpack.c.h.b16 %v5162
        %v5229 = vunpack.c.l.b16 %v5163
        %v5230 = vunpack.c.h.b16 %v5163
        %v5231 = vunpack.c.l.b16 %v5164
        %v5232 = vunpack.c.h.b16 %v5164
        %v5233 = vunpack.c.l.b16 %v5165
        %v5234 = vunpack.c.h.b16 %v5165
        %v5235 = vunpack.c.l.b16 %v5166
        %v5236 = vunpack.c.h.b16 %v5166
        %v5237 = vunpack.c.l.b16 %v5167
        %v5238 = vunpack.c.h.b16 %v5167
        %v5239 = vunpack.c.l.b16 %v5168
        %v5240 = vunpack.c.h.b16 %v5168
        %v5241 = vunpack.c.l.b16 %v5169
        %v5242 = vunpack.c.h.b16 %v5169
        %v5243 = vunpack.c.l.b16 %v5170
        %v5244 = vunpack.c.h.b16 %v5170
        %v5245 = vunpack.c.l.b16 %v5171
        %v5246 = vunpack.c.h.b16 %v5171
        %v5247 = vunpack.c.l.b16 %v5172
        %v5248 = vunpack.c.h.b16 %v5172
        %v5249 = vunpack.c.l.b16 %v5173
        %v5250 = vunpack.c.h.b16 %v5173
        %v5251 = vunpack.c.l.b16 %v5174
        %v5252 = vunpack.c.h.b16 %v5174
        %v5253 = vunpack.c.l.b16 %v5175
        %v5254 = vunpack.c.h.b16 %v5175
        %v5255 = vunpack.c.l.b16 %v5176
        %v5256 = vunpack.c.h.b16 %v5176
        %v5257 = vunpack.c.l.b16 %v5177
        %v5258 = vunpack.c.h.b16 %v5177
        %v5259 = vunpack.c.l.b16 %v5178
        %v5260 = vunpack.c.h.b16 %v5178
        %v5261 = vunpack.c.l.b16 %v5179
        %v5262 = vunpack.c.h.b16 %v5179
        %v5263 = vunpack.c.l.b16 %v5180
        %v5264 = vunpack.c.h.b16 %v5180
        %v5265 = vunpack.c.l.b16 %v5181
        %v5266 = vunpack.c.h.b16 %v5181
        %v5267 = vunpack.c.l.b16 %v5182
        %v5268 = vunpack.c.h.b16 %v5182
        %v5269 = vunpack.c.l.b16 %v5183
        %v5270 = vunpack.c.h.b16 %v5183
        %v5271 = vunpack.c.l.b16 %v5184
        %v5272 = vunpack.c.h.b16 %v5184
        %v5273 = vunpack.c.l.b16 %v5185
        %v5274 = vunpack.c.h.b16 %v5185
        %v5275 = vunpack.c.l.b16 %v5186
        %v5276 = vunpack.c.h.b16 %v5186
        %v5277 = vunpack.c.l.b16 %v5187
        %v5278 = vunpack.c.h.b16 %v5187
        %v5279 = vunpack.c.l.b16 %v5188
        %v5280 = vunpack.c.h.b16 %v5188
        %v5281 = vunpack.c.l.b16 %v5189
        %v5282 = vunpack.c.h.b16 %v5189
        %v5283 = vunpack.c.l.b16 %v5190
        %v5284 = vunpack.c.h.b16 %v5190
        %v5285 = vunpack.c.l.b16 %v5191
        %v5286 = vunpack.c.h.b16 %v5191
        %v5287 = vunpack.c.l.b16 %v5192
        %v5288 = vunpack.c.h.b16 %v5192
        %v5289 = vpack.c.b16 %v5227, %v5225
        %v5290 = vpack.c.b16 %v5228, %v5226
        %v5291 = vpack.c.b16 %v5231, %v5229
        %v5292 = vpack.c.b16 %v5232, %v5230
        %v5293 = vpack.c.b16 %v5235, %v5233
        %v5294 = vpack.c.b16 %v5236, %v5234
        %v5295 = vpack.c.b16 %v5239, %v5237
        %v5296 = vpack.c.b16 %v5240, %v5238
        %v5297 = vpack.c.b16 %v5243, %v5241
        %v5298 = vpack.c.b16 %v5244, %v5242
        %v5299 = vpack.c.b16 %v5247, %v5245
        %v5300 = vpack.c.b16 %v5248, %v5246
        %v5301 = vpack.c.b16 %v5251, %v5249
        %v5302 = vpack.c.b16 %v5252, %v5250
        %v5303 = vpack.c.b16 %v5255, %v5253
        %v5304 = vpack.c.b16 %v5256, %v5254
        %v5305 = vpack.c.b16 %v5259, %v5257
        %v5306 = vpack.c.b16 %v5260, %v5258
        %v5307 = vpack.c.b16 %v5263, %v5261
        %v5308 = vpack.c.b16 %v5264, %v5262
        %v5309 = vpack.c.b16 %v5267, %v5265
        %v5310 = vpack.c.b16 %v5268, %v5266
        %v5311 = vpack.c.b16 %v5271, %v5269
        %v5312 = vpack.c.b16 %v5272, %v5270
        %v5313 = vpack.c.b16 %v5275, %v5273
        %v5314 = vpack.c.b16 %v5276, %v5274
        %v5315 = vpack.c.b16 %v5279, %v5277
        %v5316 = vpack.c.b16 %v5280, %v5278
        %v5317 = vpack.c.b16 %v5283, %v5281
        %v5318 = vpack.c.b16 %v5284, %v5282
        %v5319 = vpack.c.b16 %v5287, %v5285
        %v5320 = vpack.c.b16 %v5288, %v5286
        %5353 = vmatprep.subr.bf16.mxu0 %v5290
        %5354 = vmatpush1.bf16.msra.mxu0 %v5289
        %5355 = vmatprep.subr.bf16.mxu0 %v5292
        %5356 = vmatpush1.bf16.msra.mxu0 %v5291
        %5357 = vmatprep.subr.bf16.mxu0 %v5294
        %5358 = vmatpush1.bf16.msra.mxu0 %v5293
        %5359 = vmatprep.subr.bf16.mxu0 %v5296
        %5360 = vmatpush1.bf16.msra.mxu0 %v5295
        %5361 = vmatprep.subr.bf16.mxu0 %v5298
        %5362 = vmatpush1.bf16.msra.mxu0 %v5297
        %5363 = vmatprep.subr.bf16.mxu0 %v5300
        %5364 = vmatpush1.bf16.msra.mxu0 %v5299
        %5365 = vmatprep.subr.bf16.mxu0 %v5302
        %5366 = vmatpush1.bf16.msra.mxu0 %v5301
        %5367 = vmatprep.subr.bf16.mxu0 %v5304
        %5368 = vmatpush1.bf16.msra.mxu0 %v5303
        %5369 = vmatprep.subr.bf16.mxu0 %v5306
        %5370 = vmatpush1.bf16.msra.mxu0 %v5305
        %5371 = vmatprep.subr.bf16.mxu0 %v5308
        %5372 = vmatpush1.bf16.msra.mxu0 %v5307
        %5373 = vmatprep.subr.bf16.mxu0 %v5310
        %5374 = vmatpush1.bf16.msra.mxu0 %v5309
        %5375 = vmatprep.subr.bf16.mxu0 %v5312
        %5376 = vmatpush1.bf16.msra.mxu0 %v5311
        %5377 = vmatprep.subr.bf16.mxu0 %v5314
        %5378 = vmatpush1.bf16.msra.mxu0 %v5313
        %5379 = vmatprep.subr.bf16.mxu0 %v5316
        %5380 = vmatpush1.bf16.msra.mxu0 %v5315
        %5381 = vmatprep.subr.bf16.mxu0 %v5318
        %5382 = vmatpush1.bf16.msra.mxu0 %v5317
        %5383 = vmatprep.subr.bf16.mxu0 %v5320
        %5384 = vmatpush1.bf16.msra.mxu0 %v5319
        %5385 = vmatprep.mubr.bf16.mxu0 %v4840
        %5386 = vmatmul.mubr.bf16.gmra.mrb[0].mxu0 %v4839
        %v5387 = vpop.f32.mrb[0].mxu0
        %v5388 = vadd.f32 0.0, %v5387
        %v5389 = vpop.f32.mrb[0].mxu0
        %v5390 = vadd.f32 0.0, %v5389
        %v5391 = vpop.f32.mrb[0].mxu0
        %v5392 = vadd.f32 0.0, %v5391
        %v5393 = vpop.f32.mrb[0].mxu0
        %v5394 = vadd.f32 0.0, %v5393
        %5395 = vmatprep.mubr.bf16.mxu0 %v4842
        %5396 = vmatmul.mubr.bf16.gmra.mrb[0].mxu0 %v4841
        %v5397 = vpop.f32.mrb[0].mxu0
        %v5398 = vadd.f32 0.0, %v5397
        %v5399 = vpop.f32.mrb[0].mxu0
        %v5400 = vadd.f32 0.0, %v5399
        %v5401 = vpop.f32.mrb[0].mxu0
        %v5402 = vadd.f32 0.0, %v5401
        %v5403 = vpop.f32.mrb[0].mxu0
        %v5404 = vadd.f32 0.0, %v5403
        %5405 = vmatprep.mubr.bf16.mxu0 %v4844
        %5406 = vmatmul.mubr.bf16.gmra.mrb[0].mxu0 %v4843
        %v5407 = vpop.f32.mrb[0].mxu0
        %v5408 = vadd.f32 0.0, %v5407
        %v5409 = vpop.f32.mrb[0].mxu0
        %v5410 = vadd.f32 0.0, %v5409
        %v5411 = vpop.f32.mrb[0].mxu0
        %v5412 = vadd.f32 0.0, %v5411
        %v5413 = vpop.f32.mrb[0].mxu0
        %v5414 = vadd.f32 0.0, %v5413
        %5415 = vmatprep.mubr.bf16.mxu0 %v4846
        %5416 = vmatmul.mubr.bf16.gmra.mrb[0].mxu0 %v4845
        %v5417 = vpop.f32.mrb[0].mxu0
        %v5418 = vadd.f32 0.0, %v5417
        %v5419 = vpop.f32.mrb[0].mxu0
        %v5420 = vadd.f32 0.0, %v5419
        %v5421 = vpop.f32.mrb[0].mxu0
        %v5422 = vadd.f32 0.0, %v5421
        %v5423 = vpop.f32.mrb[0].mxu0
        %v5424 = vadd.f32 0.0, %v5423
        %5425 = vmatprep.mubr.bf16.mxu0 %v4848
        %5426 = vmatmul.mubr.bf16.gmra.mrb[0].mxu0 %v4847
        %v5427 = vpop.f32.mrb[0].mxu0
        %v5428 = vadd.f32 0.0, %v5427
        %v5429 = vpop.f32.mrb[0].mxu0
        %v5430 = vadd.f32 0.0, %v5429
        %v5431 = vpop.f32.mrb[0].mxu0
        %v5432 = vadd.f32 0.0, %v5431
        %v5433 = vpop.f32.mrb[0].mxu0
        %v5434 = vadd.f32 0.0, %v5433
        %5435 = vmatprep.mubr.bf16.mxu0 %v4850
        %5436 = vmatmul.mubr.bf16.gmra.mrb[0].mxu0 %v4849
        %v5437 = vpop.f32.mrb[0].mxu0
        %v5438 = vadd.f32 0.0, %v5437
        %v5439 = vpop.f32.mrb[0].mxu0
        %v5440 = vadd.f32 0.0, %v5439
        %v5441 = vpop.f32.mrb[0].mxu0
        %v5442 = vadd.f32 0.0, %v5441
        %v5443 = vpop.f32.mrb[0].mxu0
        %v5444 = vadd.f32 0.0, %v5443
        %5445 = vmatprep.mubr.bf16.mxu0 %v4852
        %5446 = vmatmul.mubr.bf16.gmra.mrb[0].mxu0 %v4851
        %v5447 = vpop.f32.mrb[0].mxu0
        %v5448 = vadd.f32 0.0, %v5447
        %v5449 = vpop.f32.mrb[0].mxu0
        %v5450 = vadd.f32 0.0, %v5449
        %v5451 = vpop.f32.mrb[0].mxu0
        %v5452 = vadd.f32 0.0, %v5451
        %v5453 = vpop.f32.mrb[0].mxu0
        %v5454 = vadd.f32 0.0, %v5453
        %5455 = vmatprep.mubr.bf16.mxu0 %v4854
        %5456 = vmatmul.mubr.bf16.gmra.mrb[0].mxu0 %v4853
        %v5457 = vpop.f32.mrb[0].mxu0
        %v5458 = vadd.f32 0.0, %v5457
        %v5459 = vpop.f32.mrb[0].mxu0
        %v5460 = vadd.f32 0.0, %v5459
        %v5461 = vpop.f32.mrb[0].mxu0
        %v5462 = vadd.f32 0.0, %v5461
        %v5463 = vpop.f32.mrb[0].mxu0
        %v5464 = vadd.f32 0.0, %v5463
        %5465 = vdwg.mxu0
        %s5466 = scalar_lea.vmem [#allocation14], 512
        %v5467 = vld [vmem:[%s5466] sm:$0xff]
        %v5468 = vld [vmem:[%s5466 + $0x8] sm:$0xff]
        %v5469 = vld [vmem:[%s5466 + $0x10] sm:$0xff]
        %v5470 = vld [vmem:[%s5466 + $0x18] sm:$0xff]
        %v5471 = vld [vmem:[%s5466 + $0x20] sm:$0xff]
        %v5472 = vld [vmem:[%s5466 + $0x28] sm:$0xff]
        %v5473 = vld [vmem:[%s5466 + $0x30] sm:$0xff]
        %v5474 = vld [vmem:[%s5466 + $0x38] sm:$0xff]
        %v5475 = vld [vmem:[%s5466 + $0x40] sm:$0xff]
        %v5476 = vld [vmem:[%s5466 + $0x48] sm:$0xff]
        %v5477 = vld [vmem:[%s5466 + $0x50] sm:$0xff]
        %v5478 = vld [vmem:[%s5466 + $0x58] sm:$0xff]
        %v5479 = vld [vmem:[%s5466 + $0x60] sm:$0xff]
        %v5480 = vld [vmem:[%s5466 + $0x68] sm:$0xff]
        %v5481 = vld [vmem:[%s5466 + $0x70] sm:$0xff]
        %v5482 = vld [vmem:[%s5466 + $0x78] sm:$0xff]
        %v5483 = vld [vmem:[%s5466 + $0x80] sm:$0xff]
        %v5484 = vld [vmem:[%s5466 + $0x88] sm:$0xff]
        %v5485 = vld [vmem:[%s5466 + $0x90] sm:$0xff]
        %v5486 = vld [vmem:[%s5466 + $0x98] sm:$0xff]
        %v5487 = vld [vmem:[%s5466 + $0xa0] sm:$0xff]
        %v5488 = vld [vmem:[%s5466 + $0xa8] sm:$0xff]
        %v5489 = vld [vmem:[%s5466 + $0xb0] sm:$0xff]
        %v5490 = vld [vmem:[%s5466 + $0xb8] sm:$0xff]
        %v5491 = vld [vmem:[%s5466 + $0xc0] sm:$0xff]
        %v5492 = vld [vmem:[%s5466 + $0xc8] sm:$0xff]
        %v5493 = vld [vmem:[%s5466 + $0xd0] sm:$0xff]
        %v5494 = vld [vmem:[%s5466 + $0xd8] sm:$0xff]
        %v5495 = vld [vmem:[%s5466 + $0xe0] sm:$0xff]
        %v5496 = vld [vmem:[%s5466 + $0xe8] sm:$0xff]
        %v5497 = vld [vmem:[%s5466 + $0xf0] sm:$0xff]
        %v5498 = vld [vmem:[%s5466 + $0xf8] sm:$0xff]
        %v5531 = vunpack.c.l.b16 %v5467
        %v5532 = vunpack.c.h.b16 %v5467
        %v5533 = vunpack.c.l.b16 %v5468
        %v5534 = vunpack.c.h.b16 %v5468
        %v5535 = vunpack.c.l.b16 %v5469
        %v5536 = vunpack.c.h.b16 %v5469
        %v5537 = vunpack.c.l.b16 %v5470
        %v5538 = vunpack.c.h.b16 %v5470
        %v5539 = vunpack.c.l.b16 %v5471
        %v5540 = vunpack.c.h.b16 %v5471
        %v5541 = vunpack.c.l.b16 %v5472
        %v5542 = vunpack.c.h.b16 %v5472
        %v5543 = vunpack.c.l.b16 %v5473
        %v5544 = vunpack.c.h.b16 %v5473
        %v5545 = vunpack.c.l.b16 %v5474
        %v5546 = vunpack.c.h.b16 %v5474
        %v5547 = vunpack.c.l.b16 %v5475
        %v5548 = vunpack.c.h.b16 %v5475
        %v5549 = vunpack.c.l.b16 %v5476
        %v5550 = vunpack.c.h.b16 %v5476
        %v5551 = vunpack.c.l.b16 %v5477
        %v5552 = vunpack.c.h.b16 %v5477
        %v5553 = vunpack.c.l.b16 %v5478
        %v5554 = vunpack.c.h.b16 %v5478
        %v5555 = vunpack.c.l.b16 %v5479
        %v5556 = vunpack.c.h.b16 %v5479
        %v5557 = vunpack.c.l.b16 %v5480
        %v5558 = vunpack.c.h.b16 %v5480
        %v5559 = vunpack.c.l.b16 %v5481
        %v5560 = vunpack.c.h.b16 %v5481
        %v5561 = vunpack.c.l.b16 %v5482
        %v5562 = vunpack.c.h.b16 %v5482
        %v5563 = vunpack.c.l.b16 %v5483
        %v5564 = vunpack.c.h.b16 %v5483
        %v5565 = vunpack.c.l.b16 %v5484
        %v5566 = vunpack.c.h.b16 %v5484
        %v5567 = vunpack.c.l.b16 %v5485
        %v5568 = vunpack.c.h.b16 %v5485
        %v5569 = vunpack.c.l.b16 %v5486
        %v5570 = vunpack.c.h.b16 %v5486
        %v5571 = vunpack.c.l.b16 %v5487
        %v5572 = vunpack.c.h.b16 %v5487
        %v5573 = vunpack.c.l.b16 %v5488
        %v5574 = vunpack.c.h.b16 %v5488
        %v5575 = vunpack.c.l.b16 %v5489
        %v5576 = vunpack.c.h.b16 %v5489
        %v5577 = vunpack.c.l.b16 %v5490
        %v5578 = vunpack.c.h.b16 %v5490
        %v5579 = vunpack.c.l.b16 %v5491
        %v5580 = vunpack.c.h.b16 %v5491
        %v5581 = vunpack.c.l.b16 %v5492
        %v5582 = vunpack.c.h.b16 %v5492
        %v5583 = vunpack.c.l.b16 %v5493
        %v5584 = vunpack.c.h.b16 %v5493
        %v5585 = vunpack.c.l.b16 %v5494
        %v5586 = vunpack.c.h.b16 %v5494
        %v5587 = vunpack.c.l.b16 %v5495
        %v5588 = vunpack.c.h.b16 %v5495
        %v5589 = vunpack.c.l.b16 %v5496
        %v5590 = vunpack.c.h.b16 %v5496
        %v5591 = vunpack.c.l.b16 %v5497
        %v5592 = vunpack.c.h.b16 %v5497
        %v5593 = vunpack.c.l.b16 %v5498
        %v5594 = vunpack.c.h.b16 %v5498
        %v5595 = vpack.c.b16 %v5533, %v5531
        %v5596 = vpack.c.b16 %v5534, %v5532
        %v5597 = vpack.c.b16 %v5537, %v5535
        %v5598 = vpack.c.b16 %v5538, %v5536
        %v5599 = vpack.c.b16 %v5541, %v5539
        %v5600 = vpack.c.b16 %v5542, %v5540
        %v5601 = vpack.c.b16 %v5545, %v5543
        %v5602 = vpack.c.b16 %v5546, %v5544
        %v5603 = vpack.c.b16 %v5549, %v5547
        %v5604 = vpack.c.b16 %v5550, %v5548
        %v5605 = vpack.c.b16 %v5553, %v5551
        %v5606 = vpack.c.b16 %v5554, %v5552
        %v5607 = vpack.c.b16 %v5557, %v5555
        %v5608 = vpack.c.b16 %v5558, %v5556
        %v5609 = vpack.c.b16 %v5561, %v5559
        %v5610 = vpack.c.b16 %v5562, %v5560
        %v5611 = vpack.c.b16 %v5565, %v5563
        %v5612 = vpack.c.b16 %v5566, %v5564
        %v5613 = vpack.c.b16 %v5569, %v5567
        %v5614 = vpack.c.b16 %v5570, %v5568
        %v5615 = vpack.c.b16 %v5573, %v5571
        %v5616 = vpack.c.b16 %v5574, %v5572
        %v5617 = vpack.c.b16 %v5577, %v5575
        %v5618 = vpack.c.b16 %v5578, %v5576
        %v5619 = vpack.c.b16 %v5581, %v5579
        %v5620 = vpack.c.b16 %v5582, %v5580
        %v5621 = vpack.c.b16 %v5585, %v5583
        %v5622 = vpack.c.b16 %v5586, %v5584
        %v5623 = vpack.c.b16 %v5589, %v5587
        %v5624 = vpack.c.b16 %v5590, %v5588
        %v5625 = vpack.c.b16 %v5593, %v5591
        %v5626 = vpack.c.b16 %v5594, %v5592
        %5659 = vmatprep.subr.bf16.mxu0 %v5596
        %5660 = vmatpush1.bf16.msra.mxu0 %v5595
        %5661 = vmatprep.subr.bf16.mxu0 %v5598
        %5662 = vmatpush1.bf16.msra.mxu0 %v5597
        %5663 = vmatprep.subr.bf16.mxu0 %v5600
        %5664 = vmatpush1.bf16.msra.mxu0 %v5599
        %5665 = vmatprep.subr.bf16.mxu0 %v5602
        %5666 = vmatpush1.bf16.msra.mxu0 %v5601
        %5667 = vmatprep.subr.bf16.mxu0 %v5604
        %5668 = vmatpush1.bf16.msra.mxu0 %v5603
        %5669 = vmatprep.subr.bf16.mxu0 %v5606
        %5670 = vmatpush1.bf16.msra.mxu0 %v5605
        %5671 = vmatprep.subr.bf16.mxu0 %v5608
        %5672 = vmatpush1.bf16.msra.mxu0 %v5607
        %5673 = vmatprep.subr.bf16.mxu0 %v5610
        %5674 = vmatpush1.bf16.msra.mxu0 %v5609
        %5675 = vmatprep.subr.bf16.mxu0 %v5612
        %5676 = vmatpush1.bf16.msra.mxu0 %v5611
        %5677 = vmatprep.subr.bf16.mxu0 %v5614
        %5678 = vmatpush1.bf16.msra.mxu0 %v5613
        %5679 = vmatprep.subr.bf16.mxu0 %v5616
        %5680 = vmatpush1.bf16.msra.mxu0 %v5615
        %5681 = vmatprep.subr.bf16.mxu0 %v5618
        %5682 = vmatpush1.bf16.msra.mxu0 %v5617
        %5683 = vmatprep.subr.bf16.mxu0 %v5620
        %5684 = vmatpush1.bf16.msra.mxu0 %v5619
        %5685 = vmatprep.subr.bf16.mxu0 %v5622
        %5686 = vmatpush1.bf16.msra.mxu0 %v5621
        %5687 = vmatprep.subr.bf16.mxu0 %v5624
        %5688 = vmatpush1.bf16.msra.mxu0 %v5623
        %5689 = vmatprep.subr.bf16.mxu0 %v5626
        %5690 = vmatpush1.bf16.msra.mxu0 %v5625
        %5691 = vmatprep.mubr.bf16.mxu0 %v4840
        %5692 = vmatmul.mubr.bf16.gmra.mrb[0].mxu0 %v4839
        %v5693 = vpop.f32.mrb[0].mxu0
        %v5694 = vadd.f32 0.0, %v5693
        %v5695 = vpop.f32.mrb[0].mxu0
        %v5696 = vadd.f32 0.0, %v5695
        %v5697 = vpop.f32.mrb[0].mxu0
        %v5698 = vadd.f32 0.0, %v5697
        %v5699 = vpop.f32.mrb[0].mxu0
        %v5700 = vadd.f32 0.0, %v5699
        %5701 = vmatprep.mubr.bf16.mxu0 %v4842
        %5702 = vmatmul.mubr.bf16.gmra.mrb[0].mxu0 %v4841
        %v5703 = vpop.f32.mrb[0].mxu0
        %v5704 = vadd.f32 0.0, %v5703
        %v5705 = vpop.f32.mrb[0].mxu0
        %v5706 = vadd.f32 0.0, %v5705
        %v5707 = vpop.f32.mrb[0].mxu0
        %v5708 = vadd.f32 0.0, %v5707
        %v5709 = vpop.f32.mrb[0].mxu0
        %v5710 = vadd.f32 0.0, %v5709
        %5711 = vmatprep.mubr.bf16.mxu0 %v4844
        %5712 = vmatmul.mubr.bf16.gmra.mrb[0].mxu0 %v4843
        %v5713 = vpop.f32.mrb[0].mxu0
        %v5714 = vadd.f32 0.0, %v5713
        %v5715 = vpop.f32.mrb[0].mxu0
        %v5716 = vadd.f32 0.0, %v5715
        %v5717 = vpop.f32.mrb[0].mxu0
        %v5718 = vadd.f32 0.0, %v5717
        %v5719 = vpop.f32.mrb[0].mxu0
        %v5720 = vadd.f32 0.0, %v5719
        %5721 = vmatprep.mubr.bf16.mxu0 %v4846
        %5722 = vmatmul.mubr.bf16.gmra.mrb[0].mxu0 %v4845
        %v5723 = vpop.f32.mrb[0].mxu0
        %v5724 = vadd.f32 0.0, %v5723
        %v5725 = vpop.f32.mrb[0].mxu0
        %v5726 = vadd.f32 0.0, %v5725
        %v5727 = vpop.f32.mrb[0].mxu0
        %v5728 = vadd.f32 0.0, %v5727
        %v5729 = vpop.f32.mrb[0].mxu0
        %v5730 = vadd.f32 0.0, %v5729
        %5731 = vmatprep.mubr.bf16.mxu0 %v4848
        %5732 = vmatmul.mubr.bf16.gmra.mrb[0].mxu0 %v4847
        %v5733 = vpop.f32.mrb[0].mxu0
        %v5734 = vadd.f32 0.0, %v5733
        %v5735 = vpop.f32.mrb[0].mxu0
        %v5736 = vadd.f32 0.0, %v5735
        %v5737 = vpop.f32.mrb[0].mxu0
        %v5738 = vadd.f32 0.0, %v5737
        %v5739 = vpop.f32.mrb[0].mxu0
        %v5740 = vadd.f32 0.0, %v5739
        %5741 = vmatprep.mubr.bf16.mxu0 %v4850
        %5742 = vmatmul.mubr.bf16.gmra.mrb[0].mxu0 %v4849
        %v5743 = vpop.f32.mrb[0].mxu0
        %v5744 = vadd.f32 0.0, %v5743
        %v5745 = vpop.f32.mrb[0].mxu0
        %v5746 = vadd.f32 0.0, %v5745
        %v5747 = vpop.f32.mrb[0].mxu0
        %v5748 = vadd.f32 0.0, %v5747
        %v5749 = vpop.f32.mrb[0].mxu0
        %v5750 = vadd.f32 0.0, %v5749
        %5751 = vmatprep.mubr.bf16.mxu0 %v4852
        %5752 = vmatmul.mubr.bf16.gmra.mrb[0].mxu0 %v4851
        %v5753 = vpop.f32.mrb[0].mxu0
        %v5754 = vadd.f32 0.0, %v5753
        %v5755 = vpop.f32.mrb[0].mxu0
        %v5756 = vadd.f32 0.0, %v5755
        %v5757 = vpop.f32.mrb[0].mxu0
        %v5758 = vadd.f32 0.0, %v5757
        %v5759 = vpop.f32.mrb[0].mxu0
        %v5760 = vadd.f32 0.0, %v5759
        %5761 = vmatprep.mubr.bf16.mxu0 %v4854
        %5762 = vmatmul.mubr.bf16.gmra.mrb[0].mxu0 %v4853
        %v5763 = vpop.f32.mrb[0].mxu0
        %v5764 = vadd.f32 0.0, %v5763
        %v5765 = vpop.f32.mrb[0].mxu0
        %v5766 = vadd.f32 0.0, %v5765
        %v5767 = vpop.f32.mrb[0].mxu0
        %v5768 = vadd.f32 0.0, %v5767
        %v5769 = vpop.f32.mrb[0].mxu0
        %v5770 = vadd.f32 0.0, %v5769
        %5771 = vdwg.mxu0
        %v5774 = vrot.slane %v5156, 7
        %v5775 = vrot.slane %v5158, 7
        %v5808 = vrot.slane %v5082, 7
        %v5809 = vrot.slane %v5084, 7
        %v5810 = vrot.slane %v5086, 7
        %v5811 = vsel %vm1309, %v5808, %v5810
        %v5812 = vrot.slane %v5088, 7
        %v5813 = vsel %vm1309, %v5809, %v5812
        %v5814 = vrot.slane %v5092, 7
        %v5815 = vsel %vm1309, %v5810, %v5814
        %v5816 = vrot.slane %v5094, 7
        %v5817 = vsel %vm1309, %v5812, %v5816
        %v5818 = vrot.slane %v5096, 7
        %v5819 = vsel %vm1309, %v5814, %v5818
        %v5820 = vrot.slane %v5098, 7
        %v5821 = vsel %vm1309, %v5816, %v5820
        %v5822 = vrot.slane %v5102, 7
        %v5823 = vsel %vm1309, %v5818, %v5822
        %v5824 = vrot.slane %v5104, 7
        %v5825 = vsel %vm1309, %v5820, %v5824
        %v5826 = vrot.slane %v5106, 7
        %v5827 = vsel %vm1309, %v5822, %v5826
        %v5828 = vrot.slane %v5108, 7
        %v5829 = vsel %vm1309, %v5824, %v5828
        %v5830 = vrot.slane %v5112, 7
        %v5831 = vsel %vm1309, %v5826, %v5830
        %v5832 = vrot.slane %v5114, 7
        %v5833 = vsel %vm1309, %v5828, %v5832
        %v5834 = vrot.slane %v5116, 7
        %v5835 = vsel %vm1309, %v5830, %v5834
        %v5836 = vrot.slane %v5118, 7
        %v5837 = vsel %vm1309, %v5832, %v5836
        %v5838 = vrot.slane %v5122, 7
        %v5839 = vsel %vm1309, %v5834, %v5838
        %v5840 = vrot.slane %v5124, 7
        %v5841 = vsel %vm1309, %v5836, %v5840
        %v5842 = vrot.slane %v5126, 7
        %v5843 = vsel %vm1309, %v5838, %v5842
        %v5844 = vrot.slane %v5128, 7
        %v5845 = vsel %vm1309, %v5840, %v5844
        %v5846 = vrot.slane %v5132, 7
        %v5847 = vsel %vm1309, %v5842, %v5846
        %v5848 = vrot.slane %v5134, 7
        %v5849 = vsel %vm1309, %v5844, %v5848
        %v5850 = vrot.slane %v5136, 7
        %v5851 = vsel %vm1309, %v5846, %v5850
        %v5852 = vrot.slane %v5138, 7
        %v5853 = vsel %vm1309, %v5848, %v5852
        %v5854 = vrot.slane %v5142, 7
        %v5855 = vsel %vm1309, %v5850, %v5854
        %v5856 = vrot.slane %v5144, 7
        %v5857 = vsel %vm1309, %v5852, %v5856
        %v5858 = vrot.slane %v5146, 7
        %v5859 = vsel %vm1309, %v5854, %v5858
        %v5860 = vrot.slane %v5148, 7
        %v5861 = vsel %vm1309, %v5856, %v5860
        %v5862 = vrot.slane %v5152, 7
        %v5863 = vsel %vm1309, %v5858, %v5862
        %v5864 = vrot.slane %v5154, 7
        %v5865 = vsel %vm1309, %v5860, %v5864
        %v5866 = vsel %vm1309, %v5862, %v5774
        %v5867 = vsel %vm1309, %v5864, %v5775
        %v5900 = vsel %vm1309, %v5774, %v5808
        %v5901 = vsel %vm1309, %v5775, %v5809
        %v5902 = vmul.f32 %v5900, %v1360
        %v5903 = vmul.f32 %v5901, %v1360
        %v5904 = vmul.f32 %v5811, %v1365
        %v5905 = vmul.f32 %v5813, %v1365
        %v5906 = vmul.f32 %v5815, %v1370
        %v5907 = vmul.f32 %v5817, %v1370
        %v5908 = vmul.f32 %v5819, %v1375
        %v5909 = vmul.f32 %v5821, %v1375
        %v5910 = vmul.f32 %v5823, %v1380
        %v5911 = vmul.f32 %v5825, %v1380
        %v5912 = vmul.f32 %v5827, %v1385
        %v5913 = vmul.f32 %v5829, %v1385
        %v5914 = vmul.f32 %v5831, %v1390
        %v5915 = vmul.f32 %v5833, %v1390
        %v5916 = vmul.f32 %v5835, %v1395
        %v5917 = vmul.f32 %v5837, %v1395
        %v5918 = vmul.f32 %v5839, %v1400
        %v5919 = vmul.f32 %v5841, %v1400
        %v5920 = vmul.f32 %v5843, %v1405
        %v5921 = vmul.f32 %v5845, %v1405
        %v5922 = vmul.f32 %v5847, %v1410
        %v5923 = vmul.f32 %v5849, %v1410
        %v5924 = vmul.f32 %v5851, %v1415
        %v5925 = vmul.f32 %v5853, %v1415
        %v5926 = vmul.f32 %v5855, %v1420
        %v5927 = vmul.f32 %v5857, %v1420
        %v5928 = vmul.f32 %v5859, %v1425
        %v5929 = vmul.f32 %v5861, %v1425
        %v5930 = vmul.f32 %v5863, %v1430
        %v5931 = vmul.f32 %v5865, %v1430
        %v5932 = vmul.f32 %v5866, %v1435
        %v5933 = vmul.f32 %v5867, %v1435
        %v5934 = vadd.f32 %v5902, %v5388
        %v5935 = vadd.f32 %v5903, %v5390
        %v5936 = vadd.f32 %v5904, %v5392
        %v5937 = vadd.f32 %v5905, %v5394
        %v5938 = vadd.f32 %v5906, %v5398
        %v5939 = vadd.f32 %v5907, %v5400
        %v5940 = vadd.f32 %v5908, %v5402
        %v5941 = vadd.f32 %v5909, %v5404
        %v5942 = vadd.f32 %v5910, %v5408
        %v5943 = vadd.f32 %v5911, %v5410
        %v5944 = vadd.f32 %v5912, %v5412
        %v5945 = vadd.f32 %v5913, %v5414
        %v5946 = vadd.f32 %v5914, %v5418
        %v5947 = vadd.f32 %v5915, %v5420
        %v5948 = vadd.f32 %v5916, %v5422
        %v5949 = vadd.f32 %v5917, %v5424
        %v5950 = vadd.f32 %v5918, %v5428
        %v5951 = vadd.f32 %v5919, %v5430
        %v5952 = vadd.f32 %v5920, %v5432
        %v5953 = vadd.f32 %v5921, %v5434
        %v5954 = vadd.f32 %v5922, %v5438
        %v5955 = vadd.f32 %v5923, %v5440
        %v5956 = vadd.f32 %v5924, %v5442
        %v5957 = vadd.f32 %v5925, %v5444
        %v5958 = vadd.f32 %v5926, %v5448
        %v5959 = vadd.f32 %v5927, %v5450
        %v5960 = vadd.f32 %v5928, %v5452
        %v5961 = vadd.f32 %v5929, %v5454
        %v5962 = vadd.f32 %v5930, %v5458
        %v5963 = vadd.f32 %v5931, %v5460
        %v5964 = vadd.f32 %v5932, %v5462
        %v5965 = vadd.f32 %v5933, %v5464
        %v5998 = vrot.slane %v5694, 1
        %v5999 = vrot.slane %v5698, 1
        %v6000 = vsel %vm1485, %v5998, %v5999
        %v6001 = vrot.slane %v5696, 1
        %v6002 = vrot.slane %v5700, 1
        %v6003 = vsel %vm1485, %v6001, %v6002
        %v6004 = vrot.slane %v5704, 1
        %v6005 = vsel %vm1485, %v5999, %v6004
        %v6006 = vrot.slane %v5706, 1
        %v6007 = vsel %vm1485, %v6002, %v6006
        %v6008 = vrot.slane %v5708, 1
        %v6009 = vsel %vm1485, %v6004, %v6008
        %v6010 = vrot.slane %v5710, 1
        %v6011 = vsel %vm1485, %v6006, %v6010
        %v6012 = vrot.slane %v5714, 1
        %v6013 = vsel %vm1485, %v6008, %v6012
        %v6014 = vrot.slane %v5716, 1
        %v6015 = vsel %vm1485, %v6010, %v6014
        %v6016 = vrot.slane %v5718, 1
        %v6017 = vsel %vm1485, %v6012, %v6016
        %v6018 = vrot.slane %v5720, 1
        %v6019 = vsel %vm1485, %v6014, %v6018
        %v6020 = vrot.slane %v5724, 1
        %v6021 = vsel %vm1485, %v6016, %v6020
        %v6022 = vrot.slane %v5726, 1
        %v6023 = vsel %vm1485, %v6018, %v6022
        %v6024 = vrot.slane %v5728, 1
        %v6025 = vsel %vm1485, %v6020, %v6024
        %v6026 = vrot.slane %v5730, 1
        %v6027 = vsel %vm1485, %v6022, %v6026
        %v6028 = vrot.slane %v5734, 1
        %v6029 = vsel %vm1485, %v6024, %v6028
        %v6030 = vrot.slane %v5736, 1
        %v6031 = vsel %vm1485, %v6026, %v6030
        %v6032 = vrot.slane %v5738, 1
        %v6033 = vsel %vm1485, %v6028, %v6032
        %v6034 = vrot.slane %v5740, 1
        %v6035 = vsel %vm1485, %v6030, %v6034
        %v6036 = vrot.slane %v5744, 1
        %v6037 = vsel %vm1485, %v6032, %v6036
        %v6038 = vrot.slane %v5746, 1
        %v6039 = vsel %vm1485, %v6034, %v6038
        %v6040 = vrot.slane %v5748, 1
        %v6041 = vsel %vm1485, %v6036, %v6040
        %v6042 = vrot.slane %v5750, 1
        %v6043 = vsel %vm1485, %v6038, %v6042
        %v6044 = vrot.slane %v5754, 1
        %v6045 = vsel %vm1485, %v6040, %v6044
        %v6046 = vrot.slane %v5756, 1
        %v6047 = vsel %vm1485, %v6042, %v6046
        %v6048 = vrot.slane %v5758, 1
        %v6049 = vsel %vm1485, %v6044, %v6048
        %v6050 = vrot.slane %v5760, 1
        %v6051 = vsel %vm1485, %v6046, %v6050
        %v6052 = vrot.slane %v5764, 1
        %v6053 = vsel %vm1485, %v6048, %v6052
        %v6054 = vrot.slane %v5766, 1
        %v6055 = vsel %vm1485, %v6050, %v6054
        %v6056 = vrot.slane %v5768, 1
        %v6057 = vsel %vm1485, %v6052, %v6056
        %v6058 = vrot.slane %v5770, 1
        %v6059 = vsel %vm1485, %v6054, %v6058
        %v6094 = vsel %vm1485, %v6056, %v5998
        %v6095 = vsel %vm1485, %v6058, %v6001
        %v6096 = vmul.f32 %v6000, %v1538
        %v6097 = vmul.f32 %v6003, %v1538
        %v6098 = vmul.f32 %v6005, %v1543
        %v6099 = vmul.f32 %v6007, %v1543
        %v6100 = vmul.f32 %v6009, %v1548
        %v6101 = vmul.f32 %v6011, %v1548
        %v6102 = vmul.f32 %v6013, %v1553
        %v6103 = vmul.f32 %v6015, %v1553
        %v6104 = vmul.f32 %v6017, %v1558
        %v6105 = vmul.f32 %v6019, %v1558
        %v6106 = vmul.f32 %v6021, %v1563
        %v6107 = vmul.f32 %v6023, %v1563
        %v6108 = vmul.f32 %v6025, %v1568
        %v6109 = vmul.f32 %v6027, %v1568
        %v6110 = vmul.f32 %v6029, %v1573
        %v6111 = vmul.f32 %v6031, %v1573
        %v6112 = vmul.f32 %v6033, %v1578
        %v6113 = vmul.f32 %v6035, %v1578
        %v6114 = vmul.f32 %v6037, %v1583
        %v6115 = vmul.f32 %v6039, %v1583
        %v6116 = vmul.f32 %v6041, %v1588
        %v6117 = vmul.f32 %v6043, %v1588
        %v6118 = vmul.f32 %v6045, %v1593
        %v6119 = vmul.f32 %v6047, %v1593
        %v6120 = vmul.f32 %v6049, %v1598
        %v6121 = vmul.f32 %v6051, %v1598
        %v6122 = vmul.f32 %v6053, %v1603
        %v6123 = vmul.f32 %v6055, %v1603
        %v6124 = vmul.f32 %v6057, %v1608
        %v6125 = vmul.f32 %v6059, %v1608
        %v6126 = vmul.f32 %v6094, %v1613
        %v6127 = vmul.f32 %v6095, %v1613
        %v6128 = vadd.f32 %v5934, %v6096
        %v6129 = vadd.f32 %v5935, %v6097
        %v6130 = vadd.f32 %v5936, %v6098
        %v6131 = vadd.f32 %v5937, %v6099
        %v6132 = vadd.f32 %v5938, %v6100
        %v6133 = vadd.f32 %v5939, %v6101
        %v6134 = vadd.f32 %v5940, %v6102
        %v6135 = vadd.f32 %v5941, %v6103
        %v6136 = vadd.f32 %v5942, %v6104
        %v6137 = vadd.f32 %v5943, %v6105
        %v6138 = vadd.f32 %v5944, %v6106
        %v6139 = vadd.f32 %v5945, %v6107
        %v6140 = vadd.f32 %v5946, %v6108
        %v6141 = vadd.f32 %v5947, %v6109
        %v6142 = vadd.f32 %v5948, %v6110
        %v6143 = vadd.f32 %v5949, %v6111
        %v6144 = vadd.f32 %v5950, %v6112
        %v6145 = vadd.f32 %v5951, %v6113
        %v6146 = vadd.f32 %v5952, %v6114
        %v6147 = vadd.f32 %v5953, %v6115
        %v6148 = vadd.f32 %v5954, %v6116
        %v6149 = vadd.f32 %v5955, %v6117
        %v6150 = vadd.f32 %v5956, %v6118
        %v6151 = vadd.f32 %v5957, %v6119
        %v6152 = vadd.f32 %v5958, %v6120
        %v6153 = vadd.f32 %v5959, %v6121
        %v6154 = vadd.f32 %v5960, %v6122
        %v6155 = vadd.f32 %v5961, %v6123
        %v6156 = vadd.f32 %v5962, %v6124
        %v6157 = vadd.f32 %v5963, %v6125
        %v6158 = vadd.f32 %v5964, %v6126
        %v6159 = vadd.f32 %v5965, %v6127
        %v6160 = vld [vmem:[%s13] sm:$0x3]
        %v6162 = vlaneseq
        %v6163 = vshrl.u32 %v6162, 7
        %v6164 = vsub.s32 0, %v6163
        %v6165 = vrot.slane %v6160, %v6164
        %v6166 = vlaneseq
        %v6167 = vshrl.u32 %v6166, 7
        %v6168 = vsub.s32 1, %v6167
        %v6169 = vrot.slane %v6160, %v6168
        %v6172 = vadd.f32 %v6128, %v6165
        %v6173 = vadd.f32 %v6129, %v6169
        %v6174 = vadd.f32 %v6130, %v6165
        %v6175 = vadd.f32 %v6131, %v6169
        %v6176 = vadd.f32 %v6132, %v6165
        %v6177 = vadd.f32 %v6133, %v6169
        %v6178 = vadd.f32 %v6134, %v6165
        %v6179 = vadd.f32 %v6135, %v6169
        %v6180 = vadd.f32 %v6136, %v6165
        %v6181 = vadd.f32 %v6137, %v6169
        %v6182 = vadd.f32 %v6138, %v6165
        %v6183 = vadd.f32 %v6139, %v6169
        %v6184 = vadd.f32 %v6140, %v6165
        %v6185 = vadd.f32 %v6141, %v6169
        %v6186 = vadd.f32 %v6142, %v6165
        %v6187 = vadd.f32 %v6143, %v6169
        %v6188 = vadd.f32 %v6144, %v6165
        %v6189 = vadd.f32 %v6145, %v6169
        %v6190 = vadd.f32 %v6146, %v6165
        %v6191 = vadd.f32 %v6147, %v6169
        %v6192 = vadd.f32 %v6148, %v6165
        %v6193 = vadd.f32 %v6149, %v6169
        %v6194 = vadd.f32 %v6150, %v6165
        %v6195 = vadd.f32 %v6151, %v6169
        %v6196 = vadd.f32 %v6152, %v6165
        %v6197 = vadd.f32 %v6153, %v6169
        %v6198 = vadd.f32 %v6154, %v6165
        %v6199 = vadd.f32 %v6155, %v6169
        %v6200 = vadd.f32 %v6156, %v6165
        %v6201 = vadd.f32 %v6157, %v6169
        %v6202 = vadd.f32 %v6158, %v6165
        %v6203 = vadd.f32 %v6159, %v6169
        %v6204 = vmax.f32 %v6172, 0.0
        %v6205 = vmax.f32 %v6173, 0.0
        %v6206 = vmax.f32 %v6174, 0.0
        %v6207 = vmax.f32 %v6175, 0.0
        %v6208 = vmax.f32 %v6176, 0.0
        %v6209 = vmax.f32 %v6177, 0.0
        %v6210 = vmax.f32 %v6178, 0.0
        %v6211 = vmax.f32 %v6179, 0.0
        %v6212 = vmax.f32 %v6180, 0.0
        %v6213 = vmax.f32 %v6181, 0.0
        %v6214 = vmax.f32 %v6182, 0.0
        %v6215 = vmax.f32 %v6183, 0.0
        %v6216 = vmax.f32 %v6184, 0.0
        %v6217 = vmax.f32 %v6185, 0.0
        %v6218 = vmax.f32 %v6186, 0.0
        %v6219 = vmax.f32 %v6187, 0.0
        %v6220 = vmax.f32 %v6188, 0.0
        %v6221 = vmax.f32 %v6189, 0.0
        %v6222 = vmax.f32 %v6190, 0.0
        %v6223 = vmax.f32 %v6191, 0.0
        %v6224 = vmax.f32 %v6192, 0.0
        %v6225 = vmax.f32 %v6193, 0.0
        %v6226 = vmax.f32 %v6194, 0.0
        %v6227 = vmax.f32 %v6195, 0.0
        %v6228 = vmax.f32 %v6196, 0.0
        %v6229 = vmax.f32 %v6197, 0.0
        %v6230 = vmax.f32 %v6198, 0.0
        %v6231 = vmax.f32 %v6199, 0.0
        %v6232 = vmax.f32 %v6200, 0.0
        %v6233 = vmax.f32 %v6201, 0.0
        %v6234 = vmax.f32 %v6202, 0.0
        %v6235 = vmax.f32 %v6203, 0.0
        %v6236 = vpack.c.bf16 %v6206, %v6204
        %v6237 = vpack.c.bf16 %v6207, %v6205
        %v6238 = vpack.c.bf16 %v6210, %v6208
        %v6239 = vpack.c.bf16 %v6211, %v6209
        %v6240 = vpack.c.bf16 %v6214, %v6212
        %v6241 = vpack.c.bf16 %v6215, %v6213
        %v6242 = vpack.c.bf16 %v6218, %v6216
        %v6243 = vpack.c.bf16 %v6219, %v6217
        %v6244 = vpack.c.bf16 %v6222, %v6220
        %v6245 = vpack.c.bf16 %v6223, %v6221
        %v6246 = vpack.c.bf16 %v6226, %v6224
        %v6247 = vpack.c.bf16 %v6227, %v6225
        %v6248 = vpack.c.bf16 %v6230, %v6228
        %v6249 = vpack.c.bf16 %v6231, %v6229
        %v6250 = vpack.c.bf16 %v6234, %v6232
        %v6251 = vpack.c.bf16 %v6235, %v6233
        %v6252 = vadd.bf16 %v3442, %v6236
        %v6253 = vadd.bf16 %v3443, %v6237
        %v6254 = vadd.bf16 %v3444, %v6238
        %v6255 = vadd.bf16 %v3445, %v6239
        %v6256 = vadd.bf16 %v3446, %v6240
        %v6257 = vadd.bf16 %v3447, %v6241
        %v6258 = vadd.bf16 %v3448, %v6242
        %v6259 = vadd.bf16 %v3449, %v6243
        %v6260 = vadd.bf16 %v3450, %v6244
        %v6261 = vadd.bf16 %v3451, %v6245
        %v6262 = vadd.bf16 %v3452, %v6246
        %v6263 = vadd.bf16 %v3453, %v6247
        %v6264 = vadd.bf16 %v3454, %v6248
        %v6265 = vadd.bf16 %v3455, %v6249
        %v6266 = vadd.bf16 %v3456, %v6250
        %v6267 = vadd.bf16 %v3457, %v6251
        %v6268 = vld [vmem:[#allocation16] sm:$0xff]
        %v6269 = vld [vmem:[#allocation16 + $0x8] sm:$0xff]
        %v6270 = vld [vmem:[#allocation16 + $0x10] sm:$0xff]
        %v6271 = vld [vmem:[#allocation16 + $0x18] sm:$0xff]
        %v6272 = vld [vmem:[#allocation16 + $0x20] sm:$0xff]
        %v6273 = vld [vmem:[#allocation16 + $0x28] sm:$0xff]
        %v6274 = vld [vmem:[#allocation16 + $0x30] sm:$0xff]
        %v6275 = vld [vmem:[#allocation16 + $0x38] sm:$0xff]
        %v6276 = vld [vmem:[#allocation16 + $0x40] sm:$0xff]
        %v6277 = vld [vmem:[#allocation16 + $0x48] sm:$0xff]
        %v6278 = vld [vmem:[#allocation16 + $0x50] sm:$0xff]
        %v6279 = vld [vmem:[#allocation16 + $0x58] sm:$0xff]
        %v6280 = vld [vmem:[#allocation16 + $0x60] sm:$0xff]
        %v6281 = vld [vmem:[#allocation16 + $0x68] sm:$0xff]
        %v6282 = vld [vmem:[#allocation16 + $0x70] sm:$0xff]
        %v6283 = vld [vmem:[#allocation16 + $0x78] sm:$0xff]
        %v6284 = vld [vmem:[#allocation16 + $0x80] sm:$0xff]
        %v6285 = vld [vmem:[#allocation16 + $0x88] sm:$0xff]
        %v6286 = vld [vmem:[#allocation16 + $0x90] sm:$0xff]
        %v6287 = vld [vmem:[#allocation16 + $0x98] sm:$0xff]
        %v6288 = vld [vmem:[#allocation16 + $0xa0] sm:$0xff]
        %v6289 = vld [vmem:[#allocation16 + $0xa8] sm:$0xff]
        %v6290 = vld [vmem:[#allocation16 + $0xb0] sm:$0xff]
        %v6291 = vld [vmem:[#allocation16 + $0xb8] sm:$0xff]
        %v6292 = vld [vmem:[#allocation16 + $0xc0] sm:$0xff]
        %v6293 = vld [vmem:[#allocation16 + $0xc8] sm:$0xff]
        %v6294 = vld [vmem:[#allocation16 + $0xd0] sm:$0xff]
        %v6295 = vld [vmem:[#allocation16 + $0xd8] sm:$0xff]
        %v6296 = vld [vmem:[#allocation16 + $0xe0] sm:$0xff]
        %v6297 = vld [vmem:[#allocation16 + $0xe8] sm:$0xff]
        %v6298 = vld [vmem:[#allocation16 + $0xf0] sm:$0xff]
        %v6299 = vld [vmem:[#allocation16 + $0xf8] sm:$0xff]
        %v6332 = vunpack.c.l.b16 %v6268
        %v6333 = vunpack.c.h.b16 %v6268
        %v6334 = vunpack.c.l.b16 %v6269
        %v6335 = vunpack.c.h.b16 %v6269
        %v6336 = vunpack.c.l.b16 %v6270
        %v6337 = vunpack.c.h.b16 %v6270
        %v6338 = vunpack.c.l.b16 %v6271
        %v6339 = vunpack.c.h.b16 %v6271
        %v6340 = vunpack.c.l.b16 %v6272
        %v6341 = vunpack.c.h.b16 %v6272
        %v6342 = vunpack.c.l.b16 %v6273
        %v6343 = vunpack.c.h.b16 %v6273
        %v6344 = vunpack.c.l.b16 %v6274
        %v6345 = vunpack.c.h.b16 %v6274
        %v6346 = vunpack.c.l.b16 %v6275
        %v6347 = vunpack.c.h.b16 %v6275
        %v6348 = vunpack.c.l.b16 %v6276
        %v6349 = vunpack.c.h.b16 %v6276
        %v6350 = vunpack.c.l.b16 %v6277
        %v6351 = vunpack.c.h.b16 %v6277
        %v6352 = vunpack.c.l.b16 %v6278
        %v6353 = vunpack.c.h.b16 %v6278
        %v6354 = vunpack.c.l.b16 %v6279
        %v6355 = vunpack.c.h.b16 %v6279
        %v6356 = vunpack.c.l.b16 %v6280
        %v6357 = vunpack.c.h.b16 %v6280
        %v6358 = vunpack.c.l.b16 %v6281
        %v6359 = vunpack.c.h.b16 %v6281
        %v6360 = vunpack.c.l.b16 %v6282
        %v6361 = vunpack.c.h.b16 %v6282
        %v6362 = vunpack.c.l.b16 %v6283
        %v6363 = vunpack.c.h.b16 %v6283
        %v6364 = vunpack.c.l.b16 %v6284
        %v6365 = vunpack.c.h.b16 %v6284
        %v6366 = vunpack.c.l.b16 %v6285
        %v6367 = vunpack.c.h.b16 %v6285
        %v6368 = vunpack.c.l.b16 %v6286
        %v6369 = vunpack.c.h.b16 %v6286
        %v6370 = vunpack.c.l.b16 %v6287
        %v6371 = vunpack.c.h.b16 %v6287
        %v6372 = vunpack.c.l.b16 %v6288
        %v6373 = vunpack.c.h.b16 %v6288
        %v6374 = vunpack.c.l.b16 %v6289
        %v6375 = vunpack.c.h.b16 %v6289
        %v6376 = vunpack.c.l.b16 %v6290
        %v6377 = vunpack.c.h.b16 %v6290
        %v6378 = vunpack.c.l.b16 %v6291
        %v6379 = vunpack.c.h.b16 %v6291
        %v6380 = vunpack.c.l.b16 %v6292
        %v6381 = vunpack.c.h.b16 %v6292
        %v6382 = vunpack.c.l.b16 %v6293
        %v6383 = vunpack.c.h.b16 %v6293
        %v6384 = vunpack.c.l.b16 %v6294
        %v6385 = vunpack.c.h.b16 %v6294
        %v6386 = vunpack.c.l.b16 %v6295
        %v6387 = vunpack.c.h.b16 %v6295
        %v6388 = vunpack.c.l.b16 %v6296
        %v6389 = vunpack.c.h.b16 %v6296
        %v6390 = vunpack.c.l.b16 %v6297
        %v6391 = vunpack.c.h.b16 %v6297
        %v6392 = vunpack.c.l.b16 %v6298
        %v6393 = vunpack.c.h.b16 %v6298
        %v6394 = vunpack.c.l.b16 %v6299
        %v6395 = vunpack.c.h.b16 %v6299
        %v6396 = vpack.c.b16 %v6334, %v6332
        %v6397 = vpack.c.b16 %v6335, %v6333
        %v6398 = vpack.c.b16 %v6338, %v6336
        %v6399 = vpack.c.b16 %v6339, %v6337
        %v6400 = vpack.c.b16 %v6342, %v6340
        %v6401 = vpack.c.b16 %v6343, %v6341
        %v6402 = vpack.c.b16 %v6346, %v6344
        %v6403 = vpack.c.b16 %v6347, %v6345
        %v6404 = vpack.c.b16 %v6350, %v6348
        %v6405 = vpack.c.b16 %v6351, %v6349
        %v6406 = vpack.c.b16 %v6354, %v6352
        %v6407 = vpack.c.b16 %v6355, %v6353
        %v6408 = vpack.c.b16 %v6358, %v6356
        %v6409 = vpack.c.b16 %v6359, %v6357
        %v6410 = vpack.c.b16 %v6362, %v6360
        %v6411 = vpack.c.b16 %v6363, %v6361
        %v6412 = vpack.c.b16 %v6366, %v6364
        %v6413 = vpack.c.b16 %v6367, %v6365
        %v6414 = vpack.c.b16 %v6370, %v6368
        %v6415 = vpack.c.b16 %v6371, %v6369
        %v6416 = vpack.c.b16 %v6374, %v6372
        %v6417 = vpack.c.b16 %v6375, %v6373
        %v6418 = vpack.c.b16 %v6378, %v6376
        %v6419 = vpack.c.b16 %v6379, %v6377
        %v6420 = vpack.c.b16 %v6382, %v6380
        %v6421 = vpack.c.b16 %v6383, %v6381
        %v6422 = vpack.c.b16 %v6386, %v6384
        %v6423 = vpack.c.b16 %v6387, %v6385
        %v6424 = vpack.c.b16 %v6390, %v6388
        %v6425 = vpack.c.b16 %v6391, %v6389
        %v6426 = vpack.c.b16 %v6394, %v6392
        %v6427 = vpack.c.b16 %v6395, %v6393
        %6460 = vmatprep.subr.bf16.mxu0 %v6397
        %6461 = vmatpush1.bf16.msra.mxu0 %v6396
        %6462 = vmatprep.subr.bf16.mxu0 %v6399
        %6463 = vmatpush1.bf16.msra.mxu0 %v6398
        %6464 = vmatprep.subr.bf16.mxu0 %v6401
        %6465 = vmatpush1.bf16.msra.mxu0 %v6400
        %6466 = vmatprep.subr.bf16.mxu0 %v6403
        %6467 = vmatpush1.bf16.msra.mxu0 %v6402
        %6468 = vmatprep.subr.bf16.mxu0 %v6405
        %6469 = vmatpush1.bf16.msra.mxu0 %v6404
        %6470 = vmatprep.subr.bf16.mxu0 %v6407
        %6471 = vmatpush1.bf16.msra.mxu0 %v6406
        %6472 = vmatprep.subr.bf16.mxu0 %v6409
        %6473 = vmatpush1.bf16.msra.mxu0 %v6408
        %6474 = vmatprep.subr.bf16.mxu0 %v6411
        %6475 = vmatpush1.bf16.msra.mxu0 %v6410
        %6476 = vmatprep.subr.bf16.mxu0 %v6413
        %6477 = vmatpush1.bf16.msra.mxu0 %v6412
        %6478 = vmatprep.subr.bf16.mxu0 %v6415
        %6479 = vmatpush1.bf16.msra.mxu0 %v6414
        %6480 = vmatprep.subr.bf16.mxu0 %v6417
        %6481 = vmatpush1.bf16.msra.mxu0 %v6416
        %6482 = vmatprep.subr.bf16.mxu0 %v6419
        %6483 = vmatpush1.bf16.msra.mxu0 %v6418
        %6484 = vmatprep.subr.bf16.mxu0 %v6421
        %6485 = vmatpush1.bf16.msra.mxu0 %v6420
        %6486 = vmatprep.subr.bf16.mxu0 %v6423
        %6487 = vmatpush1.bf16.msra.mxu0 %v6422
        %6488 = vmatprep.subr.bf16.mxu0 %v6425
        %6489 = vmatpush1.bf16.msra.mxu0 %v6424
        %6490 = vmatprep.subr.bf16.mxu0 %v6427
        %6491 = vmatpush1.bf16.msra.mxu0 %v6426
        %6492 = vmatprep.mubr.bf16.mxu0 %v6253
        %6493 = vmatmul.mubr.bf16.gmra.mrb[0].mxu0 %v6252
        %v6494 = vpop.f32.mrb[0].mxu0
        %v6495 = vadd.f32 0.0, %v6494
        %v6496 = vpop.f32.mrb[0].mxu0
        %v6497 = vadd.f32 0.0, %v6496
        %v6498 = vpop.f32.mrb[0].mxu0
        %v6499 = vadd.f32 0.0, %v6498
        %v6500 = vpop.f32.mrb[0].mxu0
        %v6501 = vadd.f32 0.0, %v6500
        %6502 = vmatprep.mubr.bf16.mxu0 %v6255
        %6503 = vmatmul.mubr.bf16.gmra.mrb[0].mxu0 %v6254
        %v6504 = vpop.f32.mrb[0].mxu0
        %v6505 = vadd.f32 0.0, %v6504
        %v6506 = vpop.f32.mrb[0].mxu0
        %v6507 = vadd.f32 0.0, %v6506
        %v6508 = vpop.f32.mrb[0].mxu0
        %v6509 = vadd.f32 0.0, %v6508
        %v6510 = vpop.f32.mrb[0].mxu0
        %v6511 = vadd.f32 0.0, %v6510
        %6512 = vmatprep.mubr.bf16.mxu0 %v6257
        %6513 = vmatmul.mubr.bf16.gmra.mrb[0].mxu0 %v6256
        %v6514 = vpop.f32.mrb[0].mxu0
        %v6515 = vadd.f32 0.0, %v6514
        %v6516 = vpop.f32.mrb[0].mxu0
        %v6517 = vadd.f32 0.0, %v6516
        %v6518 = vpop.f32.mrb[0].mxu0
        %v6519 = vadd.f32 0.0, %v6518
        %v6520 = vpop.f32.mrb[0].mxu0
        %v6521 = vadd.f32 0.0, %v6520
        %6522 = vmatprep.mubr.bf16.mxu0 %v6259
        %6523 = vmatmul.mubr.bf16.gmra.mrb[0].mxu0 %v6258
        %v6524 = vpop.f32.mrb[0].mxu0
        %v6525 = vadd.f32 0.0, %v6524
        %v6526 = vpop.f32.mrb[0].mxu0
        %v6527 = vadd.f32 0.0, %v6526
        %v6528 = vpop.f32.mrb[0].mxu0
        %v6529 = vadd.f32 0.0, %v6528
        %v6530 = vpop.f32.mrb[0].mxu0
        %v6531 = vadd.f32 0.0, %v6530
        %6532 = vmatprep.mubr.bf16.mxu0 %v6261
        %6533 = vmatmul.mubr.bf16.gmra.mrb[0].mxu0 %v6260
        %v6534 = vpop.f32.mrb[0].mxu0
        %v6535 = vadd.f32 0.0, %v6534
        %v6536 = vpop.f32.mrb[0].mxu0
        %v6537 = vadd.f32 0.0, %v6536
        %v6538 = vpop.f32.mrb[0].mxu0
        %v6539 = vadd.f32 0.0, %v6538
        %v6540 = vpop.f32.mrb[0].mxu0
        %v6541 = vadd.f32 0.0, %v6540
        %6542 = vmatprep.mubr.bf16.mxu0 %v6263
        %6543 = vmatmul.mubr.bf16.gmra.mrb[0].mxu0 %v6262
        %v6544 = vpop.f32.mrb[0].mxu0
        %v6545 = vadd.f32 0.0, %v6544
        %v6546 = vpop.f32.mrb[0].mxu0
        %v6547 = vadd.f32 0.0, %v6546
        %v6548 = vpop.f32.mrb[0].mxu0
        %v6549 = vadd.f32 0.0, %v6548
        %v6550 = vpop.f32.mrb[0].mxu0
        %v6551 = vadd.f32 0.0, %v6550
        %6552 = vmatprep.mubr.bf16.mxu0 %v6265
        %6553 = vmatmul.mubr.bf16.gmra.mrb[0].mxu0 %v6264
        %v6554 = vpop.f32.mrb[0].mxu0
        %v6555 = vadd.f32 0.0, %v6554
        %v6556 = vpop.f32.mrb[0].mxu0
        %v6557 = vadd.f32 0.0, %v6556
        %v6558 = vpop.f32.mrb[0].mxu0
        %v6559 = vadd.f32 0.0, %v6558
        %v6560 = vpop.f32.mrb[0].mxu0
        %v6561 = vadd.f32 0.0, %v6560
        %6562 = vmatprep.mubr.bf16.mxu0 %v6267
        %6563 = vmatmul.mubr.bf16.gmra.mrb[0].mxu0 %v6266
        %v6564 = vpop.f32.mrb[0].mxu0
        %v6565 = vadd.f32 0.0, %v6564
        %v6566 = vpop.f32.mrb[0].mxu0
        %v6567 = vadd.f32 0.0, %v6566
        %v6568 = vpop.f32.mrb[0].mxu0
        %v6569 = vadd.f32 0.0, %v6568
        %v6570 = vpop.f32.mrb[0].mxu0
        %v6571 = vadd.f32 0.0, %v6570
        %6572 = vdwg.mxu0
        %s6573 = scalar_lea.vmem [#allocation16], 256
        %v6574 = vld [vmem:[%s6573] sm:$0xff]
        %v6575 = vld [vmem:[%s6573 + $0x8] sm:$0xff]
        %v6576 = vld [vmem:[%s6573 + $0x10] sm:$0xff]
        %v6577 = vld [vmem:[%s6573 + $0x18] sm:$0xff]
        %v6578 = vld [vmem:[%s6573 + $0x20] sm:$0xff]
        %v6579 = vld [vmem:[%s6573 + $0x28] sm:$0xff]
        %v6580 = vld [vmem:[%s6573 + $0x30] sm:$0xff]
        %v6581 = vld [vmem:[%s6573 + $0x38] sm:$0xff]
        %v6582 = vld [vmem:[%s6573 + $0x40] sm:$0xff]
        %v6583 = vld [vmem:[%s6573 + $0x48] sm:$0xff]
        %v6584 = vld [vmem:[%s6573 + $0x50] sm:$0xff]
        %v6585 = vld [vmem:[%s6573 + $0x58] sm:$0xff]
        %v6586 = vld [vmem:[%s6573 + $0x60] sm:$0xff]
        %v6587 = vld [vmem:[%s6573 + $0x68] sm:$0xff]
        %v6588 = vld [vmem:[%s6573 + $0x70] sm:$0xff]
        %v6589 = vld [vmem:[%s6573 + $0x78] sm:$0xff]
        %v6590 = vld [vmem:[%s6573 + $0x80] sm:$0xff]
        %v6591 = vld [vmem:[%s6573 + $0x88] sm:$0xff]
        %v6592 = vld [vmem:[%s6573 + $0x90] sm:$0xff]
        %v6593 = vld [vmem:[%s6573 + $0x98] sm:$0xff]
        %v6594 = vld [vmem:[%s6573 + $0xa0] sm:$0xff]
        %v6595 = vld [vmem:[%s6573 + $0xa8] sm:$0xff]
        %v6596 = vld [vmem:[%s6573 + $0xb0] sm:$0xff]
        %v6597 = vld [vmem:[%s6573 + $0xb8] sm:$0xff]
        %v6598 = vld [vmem:[%s6573 + $0xc0] sm:$0xff]
        %v6599 = vld [vmem:[%s6573 + $0xc8] sm:$0xff]
        %v6600 = vld [vmem:[%s6573 + $0xd0] sm:$0xff]
        %v6601 = vld [vmem:[%s6573 + $0xd8] sm:$0xff]
        %v6602 = vld [vmem:[%s6573 + $0xe0] sm:$0xff]
        %v6603 = vld [vmem:[%s6573 + $0xe8] sm:$0xff]
        %v6604 = vld [vmem:[%s6573 + $0xf0] sm:$0xff]
        %v6605 = vld [vmem:[%s6573 + $0xf8] sm:$0xff]
        %v6638 = vunpack.c.l.b16 %v6574
        %v6639 = vunpack.c.h.b16 %v6574
        %v6640 = vunpack.c.l.b16 %v6575
        %v6641 = vunpack.c.h.b16 %v6575
        %v6642 = vunpack.c.l.b16 %v6576
        %v6643 = vunpack.c.h.b16 %v6576
        %v6644 = vunpack.c.l.b16 %v6577
        %v6645 = vunpack.c.h.b16 %v6577
        %v6646 = vunpack.c.l.b16 %v6578
        %v6647 = vunpack.c.h.b16 %v6578
        %v6648 = vunpack.c.l.b16 %v6579
        %v6649 = vunpack.c.h.b16 %v6579
        %v6650 = vunpack.c.l.b16 %v6580
        %v6651 = vunpack.c.h.b16 %v6580
        %v6652 = vunpack.c.l.b16 %v6581
        %v6653 = vunpack.c.h.b16 %v6581
        %v6654 = vunpack.c.l.b16 %v6582
        %v6655 = vunpack.c.h.b16 %v6582
        %v6656 = vunpack.c.l.b16 %v6583
        %v6657 = vunpack.c.h.b16 %v6583
        %v6658 = vunpack.c.l.b16 %v6584
        %v6659 = vunpack.c.h.b16 %v6584
        %v6660 = vunpack.c.l.b16 %v6585
        %v6661 = vunpack.c.h.b16 %v6585
        %v6662 = vunpack.c.l.b16 %v6586
        %v6663 = vunpack.c.h.b16 %v6586
        %v6664 = vunpack.c.l.b16 %v6587
        %v6665 = vunpack.c.h.b16 %v6587
        %v6666 = vunpack.c.l.b16 %v6588
        %v6667 = vunpack.c.h.b16 %v6588
        %v6668 = vunpack.c.l.b16 %v6589
        %v6669 = vunpack.c.h.b16 %v6589
        %v6670 = vunpack.c.l.b16 %v6590
        %v6671 = vunpack.c.h.b16 %v6590
        %v6672 = vunpack.c.l.b16 %v6591
        %v6673 = vunpack.c.h.b16 %v6591
        %v6674 = vunpack.c.l.b16 %v6592
        %v6675 = vunpack.c.h.b16 %v6592
        %v6676 = vunpack.c.l.b16 %v6593
        %v6677 = vunpack.c.h.b16 %v6593
        %v6678 = vunpack.c.l.b16 %v6594
        %v6679 = vunpack.c.h.b16 %v6594
        %v6680 = vunpack.c.l.b16 %v6595
        %v6681 = vunpack.c.h.b16 %v6595
        %v6682 = vunpack.c.l.b16 %v6596
        %v6683 = vunpack.c.h.b16 %v6596
        %v6684 = vunpack.c.l.b16 %v6597
        %v6685 = vunpack.c.h.b16 %v6597
        %v6686 = vunpack.c.l.b16 %v6598
        %v6687 = vunpack.c.h.b16 %v6598
        %v6688 = vunpack.c.l.b16 %v6599
        %v6689 = vunpack.c.h.b16 %v6599
        %v6690 = vunpack.c.l.b16 %v6600
        %v6691 = vunpack.c.h.b16 %v6600
        %v6692 = vunpack.c.l.b16 %v6601
        %v6693 = vunpack.c.h.b16 %v6601
        %v6694 = vunpack.c.l.b16 %v6602
        %v6695 = vunpack.c.h.b16 %v6602
        %v6696 = vunpack.c.l.b16 %v6603
        %v6697 = vunpack.c.h.b16 %v6603
        %v6698 = vunpack.c.l.b16 %v6604
        %v6699 = vunpack.c.h.b16 %v6604
        %v6700 = vunpack.c.l.b16 %v6605
        %v6701 = vunpack.c.h.b16 %v6605
        %v6702 = vpack.c.b16 %v6640, %v6638
        %v6703 = vpack.c.b16 %v6641, %v6639
        %v6704 = vpack.c.b16 %v6644, %v6642
        %v6705 = vpack.c.b16 %v6645, %v6643
        %v6706 = vpack.c.b16 %v6648, %v6646
        %v6707 = vpack.c.b16 %v6649, %v6647
        %v6708 = vpack.c.b16 %v6652, %v6650
        %v6709 = vpack.c.b16 %v6653, %v6651
        %v6710 = vpack.c.b16 %v6656, %v6654
        %v6711 = vpack.c.b16 %v6657, %v6655
        %v6712 = vpack.c.b16 %v6660, %v6658
        %v6713 = vpack.c.b16 %v6661, %v6659
        %v6714 = vpack.c.b16 %v6664, %v6662
        %v6715 = vpack.c.b16 %v6665, %v6663
        %v6716 = vpack.c.b16 %v6668, %v6666
        %v6717 = vpack.c.b16 %v6669, %v6667
        %v6718 = vpack.c.b16 %v6672, %v6670
        %v6719 = vpack.c.b16 %v6673, %v6671
        %v6720 = vpack.c.b16 %v6676, %v6674
        %v6721 = vpack.c.b16 %v6677, %v6675
        %v6722 = vpack.c.b16 %v6680, %v6678
        %v6723 = vpack.c.b16 %v6681, %v6679
        %v6724 = vpack.c.b16 %v6684, %v6682
        %v6725 = vpack.c.b16 %v6685, %v6683
        %v6726 = vpack.c.b16 %v6688, %v6686
        %v6727 = vpack.c.b16 %v6689, %v6687
        %v6728 = vpack.c.b16 %v6692, %v6690
        %v6729 = vpack.c.b16 %v6693, %v6691
        %v6730 = vpack.c.b16 %v6696, %v6694
        %v6731 = vpack.c.b16 %v6697, %v6695
        %v6732 = vpack.c.b16 %v6700, %v6698
        %v6733 = vpack.c.b16 %v6701, %v6699
        %6766 = vmatprep.subr.bf16.mxu0 %v6703
        %6767 = vmatpush1.bf16.msra.mxu0 %v6702
        %6768 = vmatprep.subr.bf16.mxu0 %v6705
        %6769 = vmatpush1.bf16.msra.mxu0 %v6704
        %6770 = vmatprep.subr.bf16.mxu0 %v6707
        %6771 = vmatpush1.bf16.msra.mxu0 %v6706
        %6772 = vmatprep.subr.bf16.mxu0 %v6709
        %6773 = vmatpush1.bf16.msra.mxu0 %v6708
        %6774 = vmatprep.subr.bf16.mxu0 %v6711
        %6775 = vmatpush1.bf16.msra.mxu0 %v6710
        %6776 = vmatprep.subr.bf16.mxu0 %v6713
        %6777 = vmatpush1.bf16.msra.mxu0 %v6712
        %6778 = vmatprep.subr.bf16.mxu0 %v6715
        %6779 = vmatpush1.bf16.msra.mxu0 %v6714
        %6780 = vmatprep.subr.bf16.mxu0 %v6717
        %6781 = vmatpush1.bf16.msra.mxu0 %v6716
        %6782 = vmatprep.subr.bf16.mxu0 %v6719
        %6783 = vmatpush1.bf16.msra.mxu0 %v6718
        %6784 = vmatprep.subr.bf16.mxu0 %v6721
        %6785 = vmatpush1.bf16.msra.mxu0 %v6720
        %6786 = vmatprep.subr.bf16.mxu0 %v6723
        %6787 = vmatpush1.bf16.msra.mxu0 %v6722
        %6788 = vmatprep.subr.bf16.mxu0 %v6725
        %6789 = vmatpush1.bf16.msra.mxu0 %v6724
        %6790 = vmatprep.subr.bf16.mxu0 %v6727
        %6791 = vmatpush1.bf16.msra.mxu0 %v6726
        %6792 = vmatprep.subr.bf16.mxu0 %v6729
        %6793 = vmatpush1.bf16.msra.mxu0 %v6728
        %6794 = vmatprep.subr.bf16.mxu0 %v6731
        %6795 = vmatpush1.bf16.msra.mxu0 %v6730
        %6796 = vmatprep.subr.bf16.mxu0 %v6733
        %6797 = vmatpush1.bf16.msra.mxu0 %v6732
        %6798 = vmatprep.mubr.bf16.mxu0 %v6253
        %6799 = vmatmul.mubr.bf16.gmra.mrb[0].mxu0 %v6252
        %v6800 = vpop.f32.mrb[0].mxu0
        %v6801 = vadd.f32 0.0, %v6800
        %v6802 = vpop.f32.mrb[0].mxu0
        %v6803 = vadd.f32 0.0, %v6802
        %v6804 = vpop.f32.mrb[0].mxu0
        %v6805 = vadd.f32 0.0, %v6804
        %v6806 = vpop.f32.mrb[0].mxu0
        %v6807 = vadd.f32 0.0, %v6806
        %6808 = vmatprep.mubr.bf16.mxu0 %v6255
        %6809 = vmatmul.mubr.bf16.gmra.mrb[0].mxu0 %v6254
        %v6810 = vpop.f32.mrb[0].mxu0
        %v6811 = vadd.f32 0.0, %v6810
        %v6812 = vpop.f32.mrb[0].mxu0
        %v6813 = vadd.f32 0.0, %v6812
        %v6814 = vpop.f32.mrb[0].mxu0
        %v6815 = vadd.f32 0.0, %v6814
        %v6816 = vpop.f32.mrb[0].mxu0
        %v6817 = vadd.f32 0.0, %v6816
        %6818 = vmatprep.mubr.bf16.mxu0 %v6257
        %6819 = vmatmul.mubr.bf16.gmra.mrb[0].mxu0 %v6256
        %v6820 = vpop.f32.mrb[0].mxu0
        %v6821 = vadd.f32 0.0, %v6820
        %v6822 = vpop.f32.mrb[0].mxu0
        %v6823 = vadd.f32 0.0, %v6822
        %v6824 = vpop.f32.mrb[0].mxu0
        %v6825 = vadd.f32 0.0, %v6824
        %v6826 = vpop.f32.mrb[0].mxu0
        %v6827 = vadd.f32 0.0, %v6826
        %6828 = vmatprep.mubr.bf16.mxu0 %v6259
        %6829 = vmatmul.mubr.bf16.gmra.mrb[0].mxu0 %v6258
        %v6830 = vpop.f32.mrb[0].mxu0
        %v6831 = vadd.f32 0.0, %v6830
        %v6832 = vpop.f32.mrb[0].mxu0
        %v6833 = vadd.f32 0.0, %v6832
        %v6834 = vpop.f32.mrb[0].mxu0
        %v6835 = vadd.f32 0.0, %v6834
        %v6836 = vpop.f32.mrb[0].mxu0
        %v6837 = vadd.f32 0.0, %v6836
        %6838 = vmatprep.mubr.bf16.mxu0 %v6261
        %6839 = vmatmul.mubr.bf16.gmra.mrb[0].mxu0 %v6260
        %v6840 = vpop.f32.mrb[0].mxu0
        %v6841 = vadd.f32 0.0, %v6840
        %v6842 = vpop.f32.mrb[0].mxu0
        %v6843 = vadd.f32 0.0, %v6842
        %v6844 = vpop.f32.mrb[0].mxu0
        %v6845 = vadd.f32 0.0, %v6844
        %v6846 = vpop.f32.mrb[0].mxu0
        %v6847 = vadd.f32 0.0, %v6846
        %6848 = vmatprep.mubr.bf16.mxu0 %v6263
        %6849 = vmatmul.mubr.bf16.gmra.mrb[0].mxu0 %v6262
        %v6850 = vpop.f32.mrb[0].mxu0
        %v6851 = vadd.f32 0.0, %v6850
        %v6852 = vpop.f32.mrb[0].mxu0
        %v6853 = vadd.f32 0.0, %v6852
        %v6854 = vpop.f32.mrb[0].mxu0
        %v6855 = vadd.f32 0.0, %v6854
        %v6856 = vpop.f32.mrb[0].mxu0
        %v6857 = vadd.f32 0.0, %v6856
        %6858 = vmatprep.mubr.bf16.mxu0 %v6265
        %6859 = vmatmul.mubr.bf16.gmra.mrb[0].mxu0 %v6264
        %v6860 = vpop.f32.mrb[0].mxu0
        %v6861 = vadd.f32 0.0, %v6860
        %v6862 = vpop.f32.mrb[0].mxu0
        %v6863 = vadd.f32 0.0, %v6862
        %v6864 = vpop.f32.mrb[0].mxu0
        %v6865 = vadd.f32 0.0, %v6864
        %v6866 = vpop.f32.mrb[0].mxu0
        %v6867 = vadd.f32 0.0, %v6866
        %6868 = vmatprep.mubr.bf16.mxu0 %v6267
        %6869 = vmatmul.mubr.bf16.gmra.mrb[0].mxu0 %v6266
        %v6870 = vpop.f32.mrb[0].mxu0
        %v6871 = vadd.f32 0.0, %v6870
        %v6872 = vpop.f32.mrb[0].mxu0
        %v6873 = vadd.f32 0.0, %v6872
        %v6874 = vpop.f32.mrb[0].mxu0
        %v6875 = vadd.f32 0.0, %v6874
        %v6876 = vpop.f32.mrb[0].mxu0
        %v6877 = vadd.f32 0.0, %v6876
        %6878 = vdwg.mxu0
        %s6879 = scalar_lea.vmem [#allocation16], 512
        %v6880 = vld [vmem:[%s6879] sm:$0xff]
        %v6881 = vld [vmem:[%s6879 + $0x8] sm:$0xff]
        %v6882 = vld [vmem:[%s6879 + $0x10] sm:$0xff]
        %v6883 = vld [vmem:[%s6879 + $0x18] sm:$0xff]
        %v6884 = vld [vmem:[%s6879 + $0x20] sm:$0xff]
        %v6885 = vld [vmem:[%s6879 + $0x28] sm:$0xff]
        %v6886 = vld [vmem:[%s6879 + $0x30] sm:$0xff]
        %v6887 = vld [vmem:[%s6879 + $0x38] sm:$0xff]
        %v6888 = vld [vmem:[%s6879 + $0x40] sm:$0xff]
        %v6889 = vld [vmem:[%s6879 + $0x48] sm:$0xff]
        %v6890 = vld [vmem:[%s6879 + $0x50] sm:$0xff]
        %v6891 = vld [vmem:[%s6879 + $0x58] sm:$0xff]
        %v6892 = vld [vmem:[%s6879 + $0x60] sm:$0xff]
        %v6893 = vld [vmem:[%s6879 + $0x68] sm:$0xff]
        %v6894 = vld [vmem:[%s6879 + $0x70] sm:$0xff]
        %v6895 = vld [vmem:[%s6879 + $0x78] sm:$0xff]
        %v6896 = vld [vmem:[%s6879 + $0x80] sm:$0xff]
        %v6897 = vld [vmem:[%s6879 + $0x88] sm:$0xff]
        %v6898 = vld [vmem:[%s6879 + $0x90] sm:$0xff]
        %v6899 = vld [vmem:[%s6879 + $0x98] sm:$0xff]
        %v6900 = vld [vmem:[%s6879 + $0xa0] sm:$0xff]
        %v6901 = vld [vmem:[%s6879 + $0xa8] sm:$0xff]
        %v6902 = vld [vmem:[%s6879 + $0xb0] sm:$0xff]
        %v6903 = vld [vmem:[%s6879 + $0xb8] sm:$0xff]
        %v6904 = vld [vmem:[%s6879 + $0xc0] sm:$0xff]
        %v6905 = vld [vmem:[%s6879 + $0xc8] sm:$0xff]
        %v6906 = vld [vmem:[%s6879 + $0xd0] sm:$0xff]
        %v6907 = vld [vmem:[%s6879 + $0xd8] sm:$0xff]
        %v6908 = vld [vmem:[%s6879 + $0xe0] sm:$0xff]
        %v6909 = vld [vmem:[%s6879 + $0xe8] sm:$0xff]
        %v6910 = vld [vmem:[%s6879 + $0xf0] sm:$0xff]
        %v6911 = vld [vmem:[%s6879 + $0xf8] sm:$0xff]
        %v6944 = vunpack.c.l.b16 %v6880
        %v6945 = vunpack.c.h.b16 %v6880
        %v6946 = vunpack.c.l.b16 %v6881
        %v6947 = vunpack.c.h.b16 %v6881
        %v6948 = vunpack.c.l.b16 %v6882
        %v6949 = vunpack.c.h.b16 %v6882
        %v6950 = vunpack.c.l.b16 %v6883
        %v6951 = vunpack.c.h.b16 %v6883
        %v6952 = vunpack.c.l.b16 %v6884
        %v6953 = vunpack.c.h.b16 %v6884
        %v6954 = vunpack.c.l.b16 %v6885
        %v6955 = vunpack.c.h.b16 %v6885
        %v6956 = vunpack.c.l.b16 %v6886
        %v6957 = vunpack.c.h.b16 %v6886
        %v6958 = vunpack.c.l.b16 %v6887
        %v6959 = vunpack.c.h.b16 %v6887
        %v6960 = vunpack.c.l.b16 %v6888
        %v6961 = vunpack.c.h.b16 %v6888
        %v6962 = vunpack.c.l.b16 %v6889
        %v6963 = vunpack.c.h.b16 %v6889
        %v6964 = vunpack.c.l.b16 %v6890
        %v6965 = vunpack.c.h.b16 %v6890
        %v6966 = vunpack.c.l.b16 %v6891
        %v6967 = vunpack.c.h.b16 %v6891
        %v6968 = vunpack.c.l.b16 %v6892
        %v6969 = vunpack.c.h.b16 %v6892
        %v6970 = vunpack.c.l.b16 %v6893
        %v6971 = vunpack.c.h.b16 %v6893
        %v6972 = vunpack.c.l.b16 %v6894
        %v6973 = vunpack.c.h.b16 %v6894
        %v6974 = vunpack.c.l.b16 %v6895
        %v6975 = vunpack.c.h.b16 %v6895
        %v6976 = vunpack.c.l.b16 %v6896
        %v6977 = vunpack.c.h.b16 %v6896
        %v6978 = vunpack.c.l.b16 %v6897
        %v6979 = vunpack.c.h.b16 %v6897
        %v6980 = vunpack.c.l.b16 %v6898
        %v6981 = vunpack.c.h.b16 %v6898
        %v6982 = vunpack.c.l.b16 %v6899
        %v6983 = vunpack.c.h.b16 %v6899
        %v6984 = vunpack.c.l.b16 %v6900
        %v6985 = vunpack.c.h.b16 %v6900
        %v6986 = vunpack.c.l.b16 %v6901
        %v6987 = vunpack.c.h.b16 %v6901
        %v6988 = vunpack.c.l.b16 %v6902
        %v6989 = vunpack.c.h.b16 %v6902
        %v6990 = vunpack.c.l.b16 %v6903
        %v6991 = vunpack.c.h.b16 %v6903
        %v6992 = vunpack.c.l.b16 %v6904
        %v6993 = vunpack.c.h.b16 %v6904
        %v6994 = vunpack.c.l.b16 %v6905
        %v6995 = vunpack.c.h.b16 %v6905
        %v6996 = vunpack.c.l.b16 %v6906
        %v6997 = vunpack.c.h.b16 %v6906
        %v6998 = vunpack.c.l.b16 %v6907
        %v6999 = vunpack.c.h.b16 %v6907
        %v7000 = vunpack.c.l.b16 %v6908
        %v7001 = vunpack.c.h.b16 %v6908
        %v7002 = vunpack.c.l.b16 %v6909
        %v7003 = vunpack.c.h.b16 %v6909
        %v7004 = vunpack.c.l.b16 %v6910
        %v7005 = vunpack.c.h.b16 %v6910
        %v7006 = vunpack.c.l.b16 %v6911
        %v7007 = vunpack.c.h.b16 %v6911
        %v7008 = vpack.c.b16 %v6946, %v6944
        %v7009 = vpack.c.b16 %v6947, %v6945
        %v7010 = vpack.c.b16 %v6950, %v6948
        %v7011 = vpack.c.b16 %v6951, %v6949
        %v7012 = vpack.c.b16 %v6954, %v6952
        %v7013 = vpack.c.b16 %v6955, %v6953
        %v7014 = vpack.c.b16 %v6958, %v6956
        %v7015 = vpack.c.b16 %v6959, %v6957
        %v7016 = vpack.c.b16 %v6962, %v6960
        %v7017 = vpack.c.b16 %v6963, %v6961
        %v7018 = vpack.c.b16 %v6966, %v6964
        %v7019 = vpack.c.b16 %v6967, %v6965
        %v7020 = vpack.c.b16 %v6970, %v6968
        %v7021 = vpack.c.b16 %v6971, %v6969
        %v7022 = vpack.c.b16 %v6974, %v6972
        %v7023 = vpack.c.b16 %v6975, %v6973
        %v7024 = vpack.c.b16 %v6978, %v6976
        %v7025 = vpack.c.b16 %v6979, %v6977
        %v7026 = vpack.c.b16 %v6982, %v6980
        %v7027 = vpack.c.b16 %v6983, %v6981
        %v7028 = vpack.c.b16 %v6986, %v6984
        %v7029 = vpack.c.b16 %v6987, %v6985
        %v7030 = vpack.c.b16 %v6990, %v6988
        %v7031 = vpack.c.b16 %v6991, %v6989
        %v7032 = vpack.c.b16 %v6994, %v6992
        %v7033 = vpack.c.b16 %v6995, %v6993
        %v7034 = vpack.c.b16 %v6998, %v6996
        %v7035 = vpack.c.b16 %v6999, %v6997
        %v7036 = vpack.c.b16 %v7002, %v7000
        %v7037 = vpack.c.b16 %v7003, %v7001
        %v7038 = vpack.c.b16 %v7006, %v7004
        %v7039 = vpack.c.b16 %v7007, %v7005
        %7072 = vmatprep.subr.bf16.mxu0 %v7009
        %7073 = vmatpush1.bf16.msra.mxu0 %v7008
        %7074 = vmatprep.subr.bf16.mxu0 %v7011
        %7075 = vmatpush1.bf16.msra.mxu0 %v7010
        %7076 = vmatprep.subr.bf16.mxu0 %v7013
        %7077 = vmatpush1.bf16.msra.mxu0 %v7012
        %7078 = vmatprep.subr.bf16.mxu0 %v7015
        %7079 = vmatpush1.bf16.msra.mxu0 %v7014
        %7080 = vmatprep.subr.bf16.mxu0 %v7017
        %7081 = vmatpush1.bf16.msra.mxu0 %v7016
        %7082 = vmatprep.subr.bf16.mxu0 %v7019
        %7083 = vmatpush1.bf16.msra.mxu0 %v7018
        %7084 = vmatprep.subr.bf16.mxu0 %v7021
        %7085 = vmatpush1.bf16.msra.mxu0 %v7020
        %7086 = vmatprep.subr.bf16.mxu0 %v7023
        %7087 = vmatpush1.bf16.msra.mxu0 %v7022
        %7088 = vmatprep.subr.bf16.mxu0 %v7025
        %7089 = vmatpush1.bf16.msra.mxu0 %v7024
        %7090 = vmatprep.subr.bf16.mxu0 %v7027
        %7091 = vmatpush1.bf16.msra.mxu0 %v7026
        %7092 = vmatprep.subr.bf16.mxu0 %v7029
        %7093 = vmatpush1.bf16.msra.mxu0 %v7028
        %7094 = vmatprep.subr.bf16.mxu0 %v7031
        %7095 = vmatpush1.bf16.msra.mxu0 %v7030
        %7096 = vmatprep.subr.bf16.mxu0 %v7033
        %7097 = vmatpush1.bf16.msra.mxu0 %v7032
        %7098 = vmatprep.subr.bf16.mxu0 %v7035
        %7099 = vmatpush1.bf16.msra.mxu0 %v7034
        %7100 = vmatprep.subr.bf16.mxu0 %v7037
        %7101 = vmatpush1.bf16.msra.mxu0 %v7036
        %7102 = vmatprep.subr.bf16.mxu0 %v7039
        %7103 = vmatpush1.bf16.msra.mxu0 %v7038
        %7104 = vmatprep.mubr.bf16.mxu0 %v6253
        %7105 = vmatmul.mubr.bf16.gmra.mrb[0].mxu0 %v6252
        %v7106 = vpop.f32.mrb[0].mxu0
        %v7107 = vadd.f32 0.0, %v7106
        %v7108 = vpop.f32.mrb[0].mxu0
        %v7109 = vadd.f32 0.0, %v7108
        %v7110 = vpop.f32.mrb[0].mxu0
        %v7111 = vadd.f32 0.0, %v7110
        %v7112 = vpop.f32.mrb[0].mxu0
        %v7113 = vadd.f32 0.0, %v7112
        %7114 = vmatprep.mubr.bf16.mxu0 %v6255
        %7115 = vmatmul.mubr.bf16.gmra.mrb[0].mxu0 %v6254
        %v7116 = vpop.f32.mrb[0].mxu0
        %v7117 = vadd.f32 0.0, %v7116
        %v7118 = vpop.f32.mrb[0].mxu0
        %v7119 = vadd.f32 0.0, %v7118
        %v7120 = vpop.f32.mrb[0].mxu0
        %v7121 = vadd.f32 0.0, %v7120
        %v7122 = vpop.f32.mrb[0].mxu0
        %v7123 = vadd.f32 0.0, %v7122
        %7124 = vmatprep.mubr.bf16.mxu0 %v6257
        %7125 = vmatmul.mubr.bf16.gmra.mrb[0].mxu0 %v6256
        %v7126 = vpop.f32.mrb[0].mxu0
        %v7127 = vadd.f32 0.0, %v7126
        %v7128 = vpop.f32.mrb[0].mxu0
        %v7129 = vadd.f32 0.0, %v7128
        %v7130 = vpop.f32.mrb[0].mxu0
        %v7131 = vadd.f32 0.0, %v7130
        %v7132 = vpop.f32.mrb[0].mxu0
        %v7133 = vadd.f32 0.0, %v7132
        %7134 = vmatprep.mubr.bf16.mxu0 %v6259
        %7135 = vmatmul.mubr.bf16.gmra.mrb[0].mxu0 %v6258
        %v7136 = vpop.f32.mrb[0].mxu0
        %v7137 = vadd.f32 0.0, %v7136
        %v7138 = vpop.f32.mrb[0].mxu0
        %v7139 = vadd.f32 0.0, %v7138
        %v7140 = vpop.f32.mrb[0].mxu0
        %v7141 = vadd.f32 0.0, %v7140
        %v7142 = vpop.f32.mrb[0].mxu0
        %v7143 = vadd.f32 0.0, %v7142
        %7144 = vmatprep.mubr.bf16.mxu0 %v6261
        %7145 = vmatmul.mubr.bf16.gmra.mrb[0].mxu0 %v6260
        %v7146 = vpop.f32.mrb[0].mxu0
        %v7147 = vadd.f32 0.0, %v7146
        %v7148 = vpop.f32.mrb[0].mxu0
        %v7149 = vadd.f32 0.0, %v7148
        %v7150 = vpop.f32.mrb[0].mxu0
        %v7151 = vadd.f32 0.0, %v7150
        %v7152 = vpop.f32.mrb[0].mxu0
        %v7153 = vadd.f32 0.0, %v7152
        %7154 = vmatprep.mubr.bf16.mxu0 %v6263
        %7155 = vmatmul.mubr.bf16.gmra.mrb[0].mxu0 %v6262
        %v7156 = vpop.f32.mrb[0].mxu0
        %v7157 = vadd.f32 0.0, %v7156
        %v7158 = vpop.f32.mrb[0].mxu0
        %v7159 = vadd.f32 0.0, %v7158
        %v7160 = vpop.f32.mrb[0].mxu0
        %v7161 = vadd.f32 0.0, %v7160
        %v7162 = vpop.f32.mrb[0].mxu0
        %v7163 = vadd.f32 0.0, %v7162
        %7164 = vmatprep.mubr.bf16.mxu0 %v6265
        %7165 = vmatmul.mubr.bf16.gmra.mrb[0].mxu0 %v6264
        %v7166 = vpop.f32.mrb[0].mxu0
        %v7167 = vadd.f32 0.0, %v7166
        %v7168 = vpop.f32.mrb[0].mxu0
        %v7169 = vadd.f32 0.0, %v7168
        %v7170 = vpop.f32.mrb[0].mxu0
        %v7171 = vadd.f32 0.0, %v7170
        %v7172 = vpop.f32.mrb[0].mxu0
        %v7173 = vadd.f32 0.0, %v7172
        %7174 = vmatprep.mubr.bf16.mxu0 %v6267
        %7175 = vmatmul.mubr.bf16.gmra.mrb[0].mxu0 %v6266
        %v7176 = vpop.f32.mrb[0].mxu0
        %v7177 = vadd.f32 0.0, %v7176
        %v7178 = vpop.f32.mrb[0].mxu0
        %v7179 = vadd.f32 0.0, %v7178
        %v7180 = vpop.f32.mrb[0].mxu0
        %v7181 = vadd.f32 0.0, %v7180
        %v7182 = vpop.f32.mrb[0].mxu0
        %v7183 = vadd.f32 0.0, %v7182
        %7184 = vdwg.mxu0
        %v7187 = vrot.slane %v6569, 7
        %v7188 = vrot.slane %v6571, 7
        %v7221 = vrot.slane %v6495, 7
        %v7222 = vrot.slane %v6497, 7
        %v7223 = vrot.slane %v6499, 7
        %v7224 = vsel %vm1309, %v7221, %v7223
        %v7225 = vrot.slane %v6501, 7
        %v7226 = vsel %vm1309, %v7222, %v7225
        %v7227 = vrot.slane %v6505, 7
        %v7228 = vsel %vm1309, %v7223, %v7227
        %v7229 = vrot.slane %v6507, 7
        %v7230 = vsel %vm1309, %v7225, %v7229
        %v7231 = vrot.slane %v6509, 7
        %v7232 = vsel %vm1309, %v7227, %v7231
        %v7233 = vrot.slane %v6511, 7
        %v7234 = vsel %vm1309, %v7229, %v7233
        %v7235 = vrot.slane %v6515, 7
        %v7236 = vsel %vm1309, %v7231, %v7235
        %v7237 = vrot.slane %v6517, 7
        %v7238 = vsel %vm1309, %v7233, %v7237
        %v7239 = vrot.slane %v6519, 7
        %v7240 = vsel %vm1309, %v7235, %v7239
        %v7241 = vrot.slane %v6521, 7
        %v7242 = vsel %vm1309, %v7237, %v7241
        %v7243 = vrot.slane %v6525, 7
        %v7244 = vsel %vm1309, %v7239, %v7243
        %v7245 = vrot.slane %v6527, 7
        %v7246 = vsel %vm1309, %v7241, %v7245
        %v7247 = vrot.slane %v6529, 7
        %v7248 = vsel %vm1309, %v7243, %v7247
        %v7249 = vrot.slane %v6531, 7
        %v7250 = vsel %vm1309, %v7245, %v7249
        %v7251 = vrot.slane %v6535, 7
        %v7252 = vsel %vm1309, %v7247, %v7251
        %v7253 = vrot.slane %v6537, 7
        %v7254 = vsel %vm1309, %v7249, %v7253
        %v7255 = vrot.slane %v6539, 7
        %v7256 = vsel %vm1309, %v7251, %v7255
        %v7257 = vrot.slane %v6541, 7
        %v7258 = vsel %vm1309, %v7253, %v7257
        %v7259 = vrot.slane %v6545, 7
        %v7260 = vsel %vm1309, %v7255, %v7259
        %v7261 = vrot.slane %v6547, 7
        %v7262 = vsel %vm1309, %v7257, %v7261
        %v7263 = vrot.slane %v6549, 7
        %v7264 = vsel %vm1309, %v7259, %v7263
        %v7265 = vrot.slane %v6551, 7
        %v7266 = vsel %vm1309, %v7261, %v7265
        %v7267 = vrot.slane %v6555, 7
        %v7268 = vsel %vm1309, %v7263, %v7267
        %v7269 = vrot.slane %v6557, 7
        %v7270 = vsel %vm1309, %v7265, %v7269
        %v7271 = vrot.slane %v6559, 7
        %v7272 = vsel %vm1309, %v7267, %v7271
        %v7273 = vrot.slane %v6561, 7
        %v7274 = vsel %vm1309, %v7269, %v7273
        %v7275 = vrot.slane %v6565, 7
        %v7276 = vsel %vm1309, %v7271, %v7275
        %v7277 = vrot.slane %v6567, 7
        %v7278 = vsel %vm1309, %v7273, %v7277
        %v7279 = vsel %vm1309, %v7275, %v7187
        %v7280 = vsel %vm1309, %v7277, %v7188
        %v7313 = vsel %vm1309, %v7187, %v7221
        %v7314 = vsel %vm1309, %v7188, %v7222
        %v7315 = vmul.f32 %v7313, %v1360
        %v7316 = vmul.f32 %v7314, %v1360
        %v7317 = vmul.f32 %v7224, %v1365
        %v7318 = vmul.f32 %v7226, %v1365
        %v7319 = vmul.f32 %v7228, %v1370
        %v7320 = vmul.f32 %v7230, %v1370
        %v7321 = vmul.f32 %v7232, %v1375
        %v7322 = vmul.f32 %v7234, %v1375
        %v7323 = vmul.f32 %v7236, %v1380
        %v7324 = vmul.f32 %v7238, %v1380
        %v7325 = vmul.f32 %v7240, %v1385
        %v7326 = vmul.f32 %v7242, %v1385
        %v7327 = vmul.f32 %v7244, %v1390
        %v7328 = vmul.f32 %v7246, %v1390
        %v7329 = vmul.f32 %v7248, %v1395
        %v7330 = vmul.f32 %v7250, %v1395
        %v7331 = vmul.f32 %v7252, %v1400
        %v7332 = vmul.f32 %v7254, %v1400
        %v7333 = vmul.f32 %v7256, %v1405
        %v7334 = vmul.f32 %v7258, %v1405
        %v7335 = vmul.f32 %v7260, %v1410
        %v7336 = vmul.f32 %v7262, %v1410
        %v7337 = vmul.f32 %v7264, %v1415
        %v7338 = vmul.f32 %v7266, %v1415
        %v7339 = vmul.f32 %v7268, %v1420
        %v7340 = vmul.f32 %v7270, %v1420
        %v7341 = vmul.f32 %v7272, %v1425
        %v7342 = vmul.f32 %v7274, %v1425
        %v7343 = vmul.f32 %v7276, %v1430
        %v7344 = vmul.f32 %v7278, %v1430
        %v7345 = vmul.f32 %v7279, %v1435
        %v7346 = vmul.f32 %v7280, %v1435
        %v7347 = vadd.f32 %v7315, %v6801
        %v7348 = vadd.f32 %v7316, %v6803
        %v7349 = vadd.f32 %v7317, %v6805
        %v7350 = vadd.f32 %v7318, %v6807
        %v7351 = vadd.f32 %v7319, %v6811
        %v7352 = vadd.f32 %v7320, %v6813
        %v7353 = vadd.f32 %v7321, %v6815
        %v7354 = vadd.f32 %v7322, %v6817
        %v7355 = vadd.f32 %v7323, %v6821
        %v7356 = vadd.f32 %v7324, %v6823
        %v7357 = vadd.f32 %v7325, %v6825
        %v7358 = vadd.f32 %v7326, %v6827
        %v7359 = vadd.f32 %v7327, %v6831
        %v7360 = vadd.f32 %v7328, %v6833
        %v7361 = vadd.f32 %v7329, %v6835
        %v7362 = vadd.f32 %v7330, %v6837
        %v7363 = vadd.f32 %v7331, %v6841
        %v7364 = vadd.f32 %v7332, %v6843
        %v7365 = vadd.f32 %v7333, %v6845
        %v7366 = vadd.f32 %v7334, %v6847
        %v7367 = vadd.f32 %v7335, %v6851
        %v7368 = vadd.f32 %v7336, %v6853
        %v7369 = vadd.f32 %v7337, %v6855
        %v7370 = vadd.f32 %v7338, %v6857
        %v7371 = vadd.f32 %v7339, %v6861
        %v7372 = vadd.f32 %v7340, %v6863
        %v7373 = vadd.f32 %v7341, %v6865
        %v7374 = vadd.f32 %v7342, %v6867
        %v7375 = vadd.f32 %v7343, %v6871
        %v7376 = vadd.f32 %v7344, %v6873
        %v7377 = vadd.f32 %v7345, %v6875
        %v7378 = vadd.f32 %v7346, %v6877
        %v7411 = vrot.slane %v7107, 1
        %v7412 = vrot.slane %v7111, 1
        %v7413 = vsel %vm1485, %v7411, %v7412
        %v7414 = vrot.slane %v7109, 1
        %v7415 = vrot.slane %v7113, 1
        %v7416 = vsel %vm1485, %v7414, %v7415
        %v7417 = vrot.slane %v7117, 1
        %v7418 = vsel %vm1485, %v7412, %v7417
        %v7419 = vrot.slane %v7119, 1
        %v7420 = vsel %vm1485, %v7415, %v7419
        %v7421 = vrot.slane %v7121, 1
        %v7422 = vsel %vm1485, %v7417, %v7421
        %v7423 = vrot.slane %v7123, 1
        %v7424 = vsel %vm1485, %v7419, %v7423
        %v7425 = vrot.slane %v7127, 1
        %v7426 = vsel %vm1485, %v7421, %v7425
        %v7427 = vrot.slane %v7129, 1
        %v7428 = vsel %vm1485, %v7423, %v7427
        %v7429 = vrot.slane %v7131, 1
        %v7430 = vsel %vm1485, %v7425, %v7429
        %v7431 = vrot.slane %v7133, 1
        %v7432 = vsel %vm1485, %v7427, %v7431
        %v7433 = vrot.slane %v7137, 1
        %v7434 = vsel %vm1485, %v7429, %v7433
        %v7435 = vrot.slane %v7139, 1
        %v7436 = vsel %vm1485, %v7431, %v7435
        %v7437 = vrot.slane %v7141, 1
        %v7438 = vsel %vm1485, %v7433, %v7437
        %v7439 = vrot.slane %v7143, 1
        %v7440 = vsel %vm1485, %v7435, %v7439
        %v7441 = vrot.slane %v7147, 1
        %v7442 = vsel %vm1485, %v7437, %v7441
        %v7443 = vrot.slane %v7149, 1
        %v7444 = vsel %vm1485, %v7439, %v7443
        %v7445 = vrot.slane %v7151, 1
        %v7446 = vsel %vm1485, %v7441, %v7445
        %v7447 = vrot.slane %v7153, 1
        %v7448 = vsel %vm1485, %v7443, %v7447
        %v7449 = vrot.slane %v7157, 1
        %v7450 = vsel %vm1485, %v7445, %v7449
        %v7451 = vrot.slane %v7159, 1
        %v7452 = vsel %vm1485, %v7447, %v7451
        %v7453 = vrot.slane %v7161, 1
        %v7454 = vsel %vm1485, %v7449, %v7453
        %v7455 = vrot.slane %v7163, 1
        %v7456 = vsel %vm1485, %v7451, %v7455
        %v7457 = vrot.slane %v7167, 1
        %v7458 = vsel %vm1485, %v7453, %v7457
        %v7459 = vrot.slane %v7169, 1
        %v7460 = vsel %vm1485, %v7455, %v7459
        %v7461 = vrot.slane %v7171, 1
        %v7462 = vsel %vm1485, %v7457, %v7461
        %v7463 = vrot.slane %v7173, 1
        %v7464 = vsel %vm1485, %v7459, %v7463
        %v7465 = vrot.slane %v7177, 1
        %v7466 = vsel %vm1485, %v7461, %v7465
        %v7467 = vrot.slane %v7179, 1
        %v7468 = vsel %vm1485, %v7463, %v7467
        %v7469 = vrot.slane %v7181, 1
        %v7470 = vsel %vm1485, %v7465, %v7469
        %v7471 = vrot.slane %v7183, 1
        %v7472 = vsel %vm1485, %v7467, %v7471
        %v7507 = vsel %vm1485, %v7469, %v7411
        %v7508 = vsel %vm1485, %v7471, %v7414
        %v7509 = vmul.f32 %v7413, %v1538
        %v7510 = vmul.f32 %v7416, %v1538
        %v7511 = vmul.f32 %v7418, %v1543
        %v7512 = vmul.f32 %v7420, %v1543
        %v7513 = vmul.f32 %v7422, %v1548
        %v7514 = vmul.f32 %v7424, %v1548
        %v7515 = vmul.f32 %v7426, %v1553
        %v7516 = vmul.f32 %v7428, %v1553
        %v7517 = vmul.f32 %v7430, %v1558
        %v7518 = vmul.f32 %v7432, %v1558
        %v7519 = vmul.f32 %v7434, %v1563
        %v7520 = vmul.f32 %v7436, %v1563
        %v7521 = vmul.f32 %v7438, %v1568
        %v7522 = vmul.f32 %v7440, %v1568
        %v7523 = vmul.f32 %v7442, %v1573
        %v7524 = vmul.f32 %v7444, %v1573
        %v7525 = vmul.f32 %v7446, %v1578
        %v7526 = vmul.f32 %v7448, %v1578
        %v7527 = vmul.f32 %v7450, %v1583
        %v7528 = vmul.f32 %v7452, %v1583
        %v7529 = vmul.f32 %v7454, %v1588
        %v7530 = vmul.f32 %v7456, %v1588
        %v7531 = vmul.f32 %v7458, %v1593
        %v7532 = vmul.f32 %v7460, %v1593
        %v7533 = vmul.f32 %v7462, %v1598
        %v7534 = vmul.f32 %v7464, %v1598
        %v7535 = vmul.f32 %v7466, %v1603
        %v7536 = vmul.f32 %v7468, %v1603
        %v7537 = vmul.f32 %v7470, %v1608
        %v7538 = vmul.f32 %v7472, %v1608
        %v7539 = vmul.f32 %v7507, %v1613
        %v7540 = vmul.f32 %v7508, %v1613
        %v7541 = vadd.f32 %v7347, %v7509
        %v7542 = vadd.f32 %v7348, %v7510
        %v7543 = vadd.f32 %v7349, %v7511
        %v7544 = vadd.f32 %v7350, %v7512
        %v7545 = vadd.f32 %v7351, %v7513
        %v7546 = vadd.f32 %v7352, %v7514
        %v7547 = vadd.f32 %v7353, %v7515
        %v7548 = vadd.f32 %v7354, %v7516
        %v7549 = vadd.f32 %v7355, %v7517
        %v7550 = vadd.f32 %v7356, %v7518
        %v7551 = vadd.f32 %v7357, %v7519
        %v7552 = vadd.f32 %v7358, %v7520
        %v7553 = vadd.f32 %v7359, %v7521
        %v7554 = vadd.f32 %v7360, %v7522
        %v7555 = vadd.f32 %v7361, %v7523
        %v7556 = vadd.f32 %v7362, %v7524
        %v7557 = vadd.f32 %v7363, %v7525
        %v7558 = vadd.f32 %v7364, %v7526
        %v7559 = vadd.f32 %v7365, %v7527
        %v7560 = vadd.f32 %v7366, %v7528
        %v7561 = vadd.f32 %v7367, %v7529
        %v7562 = vadd.f32 %v7368, %v7530
        %v7563 = vadd.f32 %v7369, %v7531
        %v7564 = vadd.f32 %v7370, %v7532
        %v7565 = vadd.f32 %v7371, %v7533
        %v7566 = vadd.f32 %v7372, %v7534
        %v7567 = vadd.f32 %v7373, %v7535
        %v7568 = vadd.f32 %v7374, %v7536
        %v7569 = vadd.f32 %v7375, %v7537
        %v7570 = vadd.f32 %v7376, %v7538
        %v7571 = vadd.f32 %v7377, %v7539
        %v7572 = vadd.f32 %v7378, %v7540
        %v7573 = vld [vmem:[%s15] sm:$0x3]
        %v7575 = vlaneseq
        %v7576 = vshrl.u32 %v7575, 7
        %v7577 = vsub.s32 0, %v7576
        %v7578 = vrot.slane %v7573, %v7577
        %v7579 = vlaneseq
        %v7580 = vshrl.u32 %v7579, 7
        %v7581 = vsub.s32 1, %v7580
        %v7582 = vrot.slane %v7573, %v7581
        %v7585 = vadd.f32 %v7541, %v7578
        %v7586 = vadd.f32 %v7542, %v7582
        %v7587 = vadd.f32 %v7543, %v7578
        %v7588 = vadd.f32 %v7544, %v7582
        %v7589 = vadd.f32 %v7545, %v7578
        %v7590 = vadd.f32 %v7546, %v7582
        %v7591 = vadd.f32 %v7547, %v7578
        %v7592 = vadd.f32 %v7548, %v7582
        %v7593 = vadd.f32 %v7549, %v7578
        %v7594 = vadd.f32 %v7550, %v7582
        %v7595 = vadd.f32 %v7551, %v7578
        %v7596 = vadd.f32 %v7552, %v7582
        %v7597 = vadd.f32 %v7553, %v7578
        %v7598 = vadd.f32 %v7554, %v7582
        %v7599 = vadd.f32 %v7555, %v7578
        %v7600 = vadd.f32 %v7556, %v7582
        %v7601 = vadd.f32 %v7557, %v7578
        %v7602 = vadd.f32 %v7558, %v7582
        %v7603 = vadd.f32 %v7559, %v7578
        %v7604 = vadd.f32 %v7560, %v7582
        %v7605 = vadd.f32 %v7561, %v7578
        %v7606 = vadd.f32 %v7562, %v7582
        %v7607 = vadd.f32 %v7563, %v7578
        %v7608 = vadd.f32 %v7564, %v7582
        %v7609 = vadd.f32 %v7565, %v7578
        %v7610 = vadd.f32 %v7566, %v7582
        %v7611 = vadd.f32 %v7567, %v7578
        %v7612 = vadd.f32 %v7568, %v7582
        %v7613 = vadd.f32 %v7569, %v7578
        %v7614 = vadd.f32 %v7570, %v7582
        %v7615 = vadd.f32 %v7571, %v7578
        %v7616 = vadd.f32 %v7572, %v7582
        %v7617 = vmax.f32 %v7585, 0.0
        %v7618 = vmax.f32 %v7586, 0.0
        %v7619 = vmax.f32 %v7587, 0.0
        %v7620 = vmax.f32 %v7588, 0.0
        %v7621 = vmax.f32 %v7589, 0.0
        %v7622 = vmax.f32 %v7590, 0.0
        %v7623 = vmax.f32 %v7591, 0.0
        %v7624 = vmax.f32 %v7592, 0.0
        %v7625 = vmax.f32 %v7593, 0.0
        %v7626 = vmax.f32 %v7594, 0.0
        %v7627 = vmax.f32 %v7595, 0.0
        %v7628 = vmax.f32 %v7596, 0.0
        %v7629 = vmax.f32 %v7597, 0.0
        %v7630 = vmax.f32 %v7598, 0.0
        %v7631 = vmax.f32 %v7599, 0.0
        %v7632 = vmax.f32 %v7600, 0.0
        %v7633 = vmax.f32 %v7601, 0.0
        %v7634 = vmax.f32 %v7602, 0.0
        %v7635 = vmax.f32 %v7603, 0.0
        %v7636 = vmax.f32 %v7604, 0.0
        %v7637 = vmax.f32 %v7605, 0.0
        %v7638 = vmax.f32 %v7606, 0.0
        %v7639 = vmax.f32 %v7607, 0.0
        %v7640 = vmax.f32 %v7608, 0.0
        %v7641 = vmax.f32 %v7609, 0.0
        %v7642 = vmax.f32 %v7610, 0.0
        %v7643 = vmax.f32 %v7611, 0.0
        %v7644 = vmax.f32 %v7612, 0.0
        %v7645 = vmax.f32 %v7613, 0.0
        %v7646 = vmax.f32 %v7614, 0.0
        %v7647 = vmax.f32 %v7615, 0.0
        %v7648 = vmax.f32 %v7616, 0.0
        %v7649 = vpack.c.bf16 %v7619, %v7617
        %v7650 = vpack.c.bf16 %v7620, %v7618
        %v7651 = vpack.c.bf16 %v7623, %v7621
        %v7652 = vpack.c.bf16 %v7624, %v7622
        %v7653 = vpack.c.bf16 %v7627, %v7625
        %v7654 = vpack.c.bf16 %v7628, %v7626
        %v7655 = vpack.c.bf16 %v7631, %v7629
        %v7656 = vpack.c.bf16 %v7632, %v7630
        %v7657 = vpack.c.bf16 %v7635, %v7633
        %v7658 = vpack.c.bf16 %v7636, %v7634
        %v7659 = vpack.c.bf16 %v7639, %v7637
        %v7660 = vpack.c.bf16 %v7640, %v7638
        %v7661 = vpack.c.bf16 %v7643, %v7641
        %v7662 = vpack.c.bf16 %v7644, %v7642
        %v7663 = vpack.c.bf16 %v7647, %v7645
        %v7664 = vpack.c.bf16 %v7648, %v7646
        %v7665 = vld [vmem:[#allocation17] sm:$0xff]
        %v7666 = vld [vmem:[#allocation17 + $0x8] sm:$0xff]
        %v7667 = vld [vmem:[#allocation17 + $0x10] sm:$0xff]
        %v7668 = vld [vmem:[#allocation17 + $0x18] sm:$0xff]
        %v7669 = vld [vmem:[#allocation17 + $0x20] sm:$0xff]
        %v7670 = vld [vmem:[#allocation17 + $0x28] sm:$0xff]
        %v7671 = vld [vmem:[#allocation17 + $0x30] sm:$0xff]
        %v7672 = vld [vmem:[#allocation17 + $0x38] sm:$0xff]
        %v7673 = vld [vmem:[#allocation17 + $0x40] sm:$0xff]
        %v7674 = vld [vmem:[#allocation17 + $0x48] sm:$0xff]
        %v7675 = vld [vmem:[#allocation17 + $0x50] sm:$0xff]
        %v7676 = vld [vmem:[#allocation17 + $0x58] sm:$0xff]
        %v7677 = vld [vmem:[#allocation17 + $0x60] sm:$0xff]
        %v7678 = vld [vmem:[#allocation17 + $0x68] sm:$0xff]
        %v7679 = vld [vmem:[#allocation17 + $0x70] sm:$0xff]
        %v7680 = vld [vmem:[#allocation17 + $0x78] sm:$0xff]
        %v7681 = vld [vmem:[#allocation17 + $0x80] sm:$0xff]
        %v7682 = vld [vmem:[#allocation17 + $0x88] sm:$0xff]
        %v7683 = vld [vmem:[#allocation17 + $0x90] sm:$0xff]
        %v7684 = vld [vmem:[#allocation17 + $0x98] sm:$0xff]
        %v7685 = vld [vmem:[#allocation17 + $0xa0] sm:$0xff]
        %v7686 = vld [vmem:[#allocation17 + $0xa8] sm:$0xff]
        %v7687 = vld [vmem:[#allocation17 + $0xb0] sm:$0xff]
        %v7688 = vld [vmem:[#allocation17 + $0xb8] sm:$0xff]
        %v7689 = vld [vmem:[#allocation17 + $0xc0] sm:$0xff]
        %v7690 = vld [vmem:[#allocation17 + $0xc8] sm:$0xff]
        %v7691 = vld [vmem:[#allocation17 + $0xd0] sm:$0xff]
        %v7692 = vld [vmem:[#allocation17 + $0xd8] sm:$0xff]
        %v7693 = vld [vmem:[#allocation17 + $0xe0] sm:$0xff]
        %v7694 = vld [vmem:[#allocation17 + $0xe8] sm:$0xff]
        %v7695 = vld [vmem:[#allocation17 + $0xf0] sm:$0xff]
        %v7696 = vld [vmem:[#allocation17 + $0xf8] sm:$0xff]
        %v7729 = vunpack.c.l.b16 %v7665
        %v7730 = vunpack.c.h.b16 %v7665
        %v7731 = vunpack.c.l.b16 %v7666
        %v7732 = vunpack.c.h.b16 %v7666
        %v7733 = vunpack.c.l.b16 %v7667
        %v7734 = vunpack.c.h.b16 %v7667
        %v7735 = vunpack.c.l.b16 %v7668
        %v7736 = vunpack.c.h.b16 %v7668
        %v7737 = vunpack.c.l.b16 %v7669
        %v7738 = vunpack.c.h.b16 %v7669
        %v7739 = vunpack.c.l.b16 %v7670
        %v7740 = vunpack.c.h.b16 %v7670
        %v7741 = vunpack.c.l.b16 %v7671
        %v7742 = vunpack.c.h.b16 %v7671
        %v7743 = vunpack.c.l.b16 %v7672
        %v7744 = vunpack.c.h.b16 %v7672
        %v7745 = vunpack.c.l.b16 %v7673
        %v7746 = vunpack.c.h.b16 %v7673
        %v7747 = vunpack.c.l.b16 %v7674
        %v7748 = vunpack.c.h.b16 %v7674
        %v7749 = vunpack.c.l.b16 %v7675
        %v7750 = vunpack.c.h.b16 %v7675
        %v7751 = vunpack.c.l.b16 %v7676
        %v7752 = vunpack.c.h.b16 %v7676
        %v7753 = vunpack.c.l.b16 %v7677
        %v7754 = vunpack.c.h.b16 %v7677
        %v7755 = vunpack.c.l.b16 %v7678
        %v7756 = vunpack.c.h.b16 %v7678
        %v7757 = vunpack.c.l.b16 %v7679
        %v7758 = vunpack.c.h.b16 %v7679
        %v7759 = vunpack.c.l.b16 %v7680
        %v7760 = vunpack.c.h.b16 %v7680
        %v7761 = vunpack.c.l.b16 %v7681
        %v7762 = vunpack.c.h.b16 %v7681
        %v7763 = vunpack.c.l.b16 %v7682
        %v7764 = vunpack.c.h.b16 %v7682
        %v7765 = vunpack.c.l.b16 %v7683
        %v7766 = vunpack.c.h.b16 %v7683
        %v7767 = vunpack.c.l.b16 %v7684
        %v7768 = vunpack.c.h.b16 %v7684
        %v7769 = vunpack.c.l.b16 %v7685
        %v7770 = vunpack.c.h.b16 %v7685
        %v7771 = vunpack.c.l.b16 %v7686
        %v7772 = vunpack.c.h.b16 %v7686
        %v7773 = vunpack.c.l.b16 %v7687
        %v7774 = vunpack.c.h.b16 %v7687
        %v7775 = vunpack.c.l.b16 %v7688
        %v7776 = vunpack.c.h.b16 %v7688
        %v7777 = vunpack.c.l.b16 %v7689
        %v7778 = vunpack.c.h.b16 %v7689
        %v7779 = vunpack.c.l.b16 %v7690
        %v7780 = vunpack.c.h.b16 %v7690
        %v7781 = vunpack.c.l.b16 %v7691
        %v7782 = vunpack.c.h.b16 %v7691
        %v7783 = vunpack.c.l.b16 %v7692
        %v7784 = vunpack.c.h.b16 %v7692
        %v7785 = vunpack.c.l.b16 %v7693
        %v7786 = vunpack.c.h.b16 %v7693
        %v7787 = vunpack.c.l.b16 %v7694
        %v7788 = vunpack.c.h.b16 %v7694
        %v7789 = vunpack.c.l.b16 %v7695
        %v7790 = vunpack.c.h.b16 %v7695
        %v7791 = vunpack.c.l.b16 %v7696
        %v7792 = vunpack.c.h.b16 %v7696
        %v7793 = vpack.c.b16 %v7731, %v7729
        %v7794 = vpack.c.b16 %v7732, %v7730
        %v7795 = vpack.c.b16 %v7735, %v7733
        %v7796 = vpack.c.b16 %v7736, %v7734
        %v7797 = vpack.c.b16 %v7739, %v7737
        %v7798 = vpack.c.b16 %v7740, %v7738
        %v7799 = vpack.c.b16 %v7743, %v7741
        %v7800 = vpack.c.b16 %v7744, %v7742
        %v7801 = vpack.c.b16 %v7747, %v7745
        %v7802 = vpack.c.b16 %v7748, %v7746
        %v7803 = vpack.c.b16 %v7751, %v7749
        %v7804 = vpack.c.b16 %v7752, %v7750
        %v7805 = vpack.c.b16 %v7755, %v7753
        %v7806 = vpack.c.b16 %v7756, %v7754
        %v7807 = vpack.c.b16 %v7759, %v7757
        %v7808 = vpack.c.b16 %v7760, %v7758
        %v7809 = vpack.c.b16 %v7763, %v7761
        %v7810 = vpack.c.b16 %v7764, %v7762
        %v7811 = vpack.c.b16 %v7767, %v7765
        %v7812 = vpack.c.b16 %v7768, %v7766
        %v7813 = vpack.c.b16 %v7771, %v7769
        %v7814 = vpack.c.b16 %v7772, %v7770
        %v7815 = vpack.c.b16 %v7775, %v7773
        %v7816 = vpack.c.b16 %v7776, %v7774
        %v7817 = vpack.c.b16 %v7779, %v7777
        %v7818 = vpack.c.b16 %v7780, %v7778
        %v7819 = vpack.c.b16 %v7783, %v7781
        %v7820 = vpack.c.b16 %v7784, %v7782
        %v7821 = vpack.c.b16 %v7787, %v7785
        %v7822 = vpack.c.b16 %v7788, %v7786
        %v7823 = vpack.c.b16 %v7791, %v7789
        %v7824 = vpack.c.b16 %v7792, %v7790
        %7857 = vmatprep.subr.bf16.mxu0 %v7794
        %7858 = vmatpush1.bf16.msra.mxu0 %v7793
        %7859 = vmatprep.subr.bf16.mxu0 %v7796
        %7860 = vmatpush1.bf16.msra.mxu0 %v7795
        %7861 = vmatprep.subr.bf16.mxu0 %v7798
        %7862 = vmatpush1.bf16.msra.mxu0 %v7797
        %7863 = vmatprep.subr.bf16.mxu0 %v7800
        %7864 = vmatpush1.bf16.msra.mxu0 %v7799
        %7865 = vmatprep.subr.bf16.mxu0 %v7802
        %7866 = vmatpush1.bf16.msra.mxu0 %v7801
        %7867 = vmatprep.subr.bf16.mxu0 %v7804
        %7868 = vmatpush1.bf16.msra.mxu0 %v7803
        %7869 = vmatprep.subr.bf16.mxu0 %v7806
        %7870 = vmatpush1.bf16.msra.mxu0 %v7805
        %7871 = vmatprep.subr.bf16.mxu0 %v7808
        %7872 = vmatpush1.bf16.msra.mxu0 %v7807
        %7873 = vmatprep.subr.bf16.mxu0 %v7810
        %7874 = vmatpush1.bf16.msra.mxu0 %v7809
        %7875 = vmatprep.subr.bf16.mxu0 %v7812
        %7876 = vmatpush1.bf16.msra.mxu0 %v7811
        %7877 = vmatprep.subr.bf16.mxu0 %v7814
        %7878 = vmatpush1.bf16.msra.mxu0 %v7813
        %7879 = vmatprep.subr.bf16.mxu0 %v7816
        %7880 = vmatpush1.bf16.msra.mxu0 %v7815
        %7881 = vmatprep.subr.bf16.mxu0 %v7818
        %7882 = vmatpush1.bf16.msra.mxu0 %v7817
        %7883 = vmatprep.subr.bf16.mxu0 %v7820
        %7884 = vmatpush1.bf16.msra.mxu0 %v7819
        %7885 = vmatprep.subr.bf16.mxu0 %v7822
        %7886 = vmatpush1.bf16.msra.mxu0 %v7821
        %7887 = vmatprep.subr.bf16.mxu0 %v7824
        %7888 = vmatpush1.bf16.msra.mxu0 %v7823
        %7889 = vmatprep.mubr.bf16.mxu0 %v7650
        %7890 = vmatmul.mubr.bf16.gmra.mrb[0].mxu0 %v7649
        %v7891 = vpop.f32.mrb[0].mxu0
        %v7892 = vadd.f32 0.0, %v7891
        %v7893 = vpop.f32.mrb[0].mxu0
        %v7894 = vadd.f32 0.0, %v7893
        %v7895 = vpop.f32.mrb[0].mxu0
        %v7896 = vadd.f32 0.0, %v7895
        %v7897 = vpop.f32.mrb[0].mxu0
        %v7898 = vadd.f32 0.0, %v7897
        %7899 = vmatprep.mubr.bf16.mxu0 %v7652
        %7900 = vmatmul.mubr.bf16.gmra.mrb[0].mxu0 %v7651
        %v7901 = vpop.f32.mrb[0].mxu0
        %v7902 = vadd.f32 0.0, %v7901
        %v7903 = vpop.f32.mrb[0].mxu0
        %v7904 = vadd.f32 0.0, %v7903
        %v7905 = vpop.f32.mrb[0].mxu0
        %v7906 = vadd.f32 0.0, %v7905
        %v7907 = vpop.f32.mrb[0].mxu0
        %v7908 = vadd.f32 0.0, %v7907
        %7909 = vmatprep.mubr.bf16.mxu0 %v7654
        %7910 = vmatmul.mubr.bf16.gmra.mrb[0].mxu0 %v7653
        %v7911 = vpop.f32.mrb[0].mxu0
        %v7912 = vadd.f32 0.0, %v7911
        %v7913 = vpop.f32.mrb[0].mxu0
        %v7914 = vadd.f32 0.0, %v7913
        %v7915 = vpop.f32.mrb[0].mxu0
        %v7916 = vadd.f32 0.0, %v7915
        %v7917 = vpop.f32.mrb[0].mxu0
        %v7918 = vadd.f32 0.0, %v7917
        %7919 = vmatprep.mubr.bf16.mxu0 %v7656
        %7920 = vmatmul.mubr.bf16.gmra.mrb[0].mxu0 %v7655
        %v7921 = vpop.f32.mrb[0].mxu0
        %v7922 = vadd.f32 0.0, %v7921
        %v7923 = vpop.f32.mrb[0].mxu0
        %v7924 = vadd.f32 0.0, %v7923
        %v7925 = vpop.f32.mrb[0].mxu0
        %v7926 = vadd.f32 0.0, %v7925
        %v7927 = vpop.f32.mrb[0].mxu0
        %v7928 = vadd.f32 0.0, %v7927
        %7929 = vmatprep.mubr.bf16.mxu0 %v7658
        %7930 = vmatmul.mubr.bf16.gmra.mrb[0].mxu0 %v7657
        %v7931 = vpop.f32.mrb[0].mxu0
        %v7932 = vadd.f32 0.0, %v7931
        %v7933 = vpop.f32.mrb[0].mxu0
        %v7934 = vadd.f32 0.0, %v7933
        %v7935 = vpop.f32.mrb[0].mxu0
        %v7936 = vadd.f32 0.0, %v7935
        %v7937 = vpop.f32.mrb[0].mxu0
        %v7938 = vadd.f32 0.0, %v7937
        %7939 = vmatprep.mubr.bf16.mxu0 %v7660
        %7940 = vmatmul.mubr.bf16.gmra.mrb[0].mxu0 %v7659
        %v7941 = vpop.f32.mrb[0].mxu0
        %v7942 = vadd.f32 0.0, %v7941
        %v7943 = vpop.f32.mrb[0].mxu0
        %v7944 = vadd.f32 0.0, %v7943
        %v7945 = vpop.f32.mrb[0].mxu0
        %v7946 = vadd.f32 0.0, %v7945
        %v7947 = vpop.f32.mrb[0].mxu0
        %v7948 = vadd.f32 0.0, %v7947
        %7949 = vmatprep.mubr.bf16.mxu0 %v7662
        %7950 = vmatmul.mubr.bf16.gmra.mrb[0].mxu0 %v7661
        %v7951 = vpop.f32.mrb[0].mxu0
        %v7952 = vadd.f32 0.0, %v7951
        %v7953 = vpop.f32.mrb[0].mxu0
        %v7954 = vadd.f32 0.0, %v7953
        %v7955 = vpop.f32.mrb[0].mxu0
        %v7956 = vadd.f32 0.0, %v7955
        %v7957 = vpop.f32.mrb[0].mxu0
        %v7958 = vadd.f32 0.0, %v7957
        %7959 = vmatprep.mubr.bf16.mxu0 %v7664
        %7960 = vmatmul.mubr.bf16.gmra.mrb[0].mxu0 %v7663
        %v7961 = vpop.f32.mrb[0].mxu0
        %v7962 = vadd.f32 0.0, %v7961
        %v7963 = vpop.f32.mrb[0].mxu0
        %v7964 = vadd.f32 0.0, %v7963
        %v7965 = vpop.f32.mrb[0].mxu0
        %v7966 = vadd.f32 0.0, %v7965
        %v7967 = vpop.f32.mrb[0].mxu0
        %v7968 = vadd.f32 0.0, %v7967
        %7969 = vdwg.mxu0
        %s7970 = scalar_lea.vmem [#allocation17], 256
        %v7971 = vld [vmem:[%s7970] sm:$0xff]
        %v7972 = vld [vmem:[%s7970 + $0x8] sm:$0xff]
        %v7973 = vld [vmem:[%s7970 + $0x10] sm:$0xff]
        %v7974 = vld [vmem:[%s7970 + $0x18] sm:$0xff]
        %v7975 = vld [vmem:[%s7970 + $0x20] sm:$0xff]
        %v7976 = vld [vmem:[%s7970 + $0x28] sm:$0xff]
        %v7977 = vld [vmem:[%s7970 + $0x30] sm:$0xff]
        %v7978 = vld [vmem:[%s7970 + $0x38] sm:$0xff]
        %v7979 = vld [vmem:[%s7970 + $0x40] sm:$0xff]
        %v7980 = vld [vmem:[%s7970 + $0x48] sm:$0xff]
        %v7981 = vld [vmem:[%s7970 + $0x50] sm:$0xff]
        %v7982 = vld [vmem:[%s7970 + $0x58] sm:$0xff]
        %v7983 = vld [vmem:[%s7970 + $0x60] sm:$0xff]
        %v7984 = vld [vmem:[%s7970 + $0x68] sm:$0xff]
        %v7985 = vld [vmem:[%s7970 + $0x70] sm:$0xff]
        %v7986 = vld [vmem:[%s7970 + $0x78] sm:$0xff]
        %v7987 = vld [vmem:[%s7970 + $0x80] sm:$0xff]
        %v7988 = vld [vmem:[%s7970 + $0x88] sm:$0xff]
        %v7989 = vld [vmem:[%s7970 + $0x90] sm:$0xff]
        %v7990 = vld [vmem:[%s7970 + $0x98] sm:$0xff]
        %v7991 = vld [vmem:[%s7970 + $0xa0] sm:$0xff]
        %v7992 = vld [vmem:[%s7970 + $0xa8] sm:$0xff]
        %v7993 = vld [vmem:[%s7970 + $0xb0] sm:$0xff]
        %v7994 = vld [vmem:[%s7970 + $0xb8] sm:$0xff]
        %v7995 = vld [vmem:[%s7970 + $0xc0] sm:$0xff]
        %v7996 = vld [vmem:[%s7970 + $0xc8] sm:$0xff]
        %v7997 = vld [vmem:[%s7970 + $0xd0] sm:$0xff]
        %v7998 = vld [vmem:[%s7970 + $0xd8] sm:$0xff]
        %v7999 = vld [vmem:[%s7970 + $0xe0] sm:$0xff]
        %v8000 = vld [vmem:[%s7970 + $0xe8] sm:$0xff]
        %v8001 = vld [vmem:[%s7970 + $0xf0] sm:$0xff]
        %v8002 = vld [vmem:[%s7970 + $0xf8] sm:$0xff]
        %v8035 = vunpack.c.l.b16 %v7971
        %v8036 = vunpack.c.h.b16 %v7971
        %v8037 = vunpack.c.l.b16 %v7972
        %v8038 = vunpack.c.h.b16 %v7972
        %v8039 = vunpack.c.l.b16 %v7973
        %v8040 = vunpack.c.h.b16 %v7973
        %v8041 = vunpack.c.l.b16 %v7974
        %v8042 = vunpack.c.h.b16 %v7974
        %v8043 = vunpack.c.l.b16 %v7975
        %v8044 = vunpack.c.h.b16 %v7975
        %v8045 = vunpack.c.l.b16 %v7976
        %v8046 = vunpack.c.h.b16 %v7976
        %v8047 = vunpack.c.l.b16 %v7977
        %v8048 = vunpack.c.h.b16 %v7977
        %v8049 = vunpack.c.l.b16 %v7978
        %v8050 = vunpack.c.h.b16 %v7978
        %v8051 = vunpack.c.l.b16 %v7979
        %v8052 = vunpack.c.h.b16 %v7979
        %v8053 = vunpack.c.l.b16 %v7980
        %v8054 = vunpack.c.h.b16 %v7980
        %v8055 = vunpack.c.l.b16 %v7981
        %v8056 = vunpack.c.h.b16 %v7981
        %v8057 = vunpack.c.l.b16 %v7982
        %v8058 = vunpack.c.h.b16 %v7982
        %v8059 = vunpack.c.l.b16 %v7983
        %v8060 = vunpack.c.h.b16 %v7983
        %v8061 = vunpack.c.l.b16 %v7984
        %v8062 = vunpack.c.h.b16 %v7984
        %v8063 = vunpack.c.l.b16 %v7985
        %v8064 = vunpack.c.h.b16 %v7985
        %v8065 = vunpack.c.l.b16 %v7986
        %v8066 = vunpack.c.h.b16 %v7986
        %v8067 = vunpack.c.l.b16 %v7987
        %v8068 = vunpack.c.h.b16 %v7987
        %v8069 = vunpack.c.l.b16 %v7988
        %v8070 = vunpack.c.h.b16 %v7988
        %v8071 = vunpack.c.l.b16 %v7989
        %v8072 = vunpack.c.h.b16 %v7989
        %v8073 = vunpack.c.l.b16 %v7990
        %v8074 = vunpack.c.h.b16 %v7990
        %v8075 = vunpack.c.l.b16 %v7991
        %v8076 = vunpack.c.h.b16 %v7991
        %v8077 = vunpack.c.l.b16 %v7992
        %v8078 = vunpack.c.h.b16 %v7992
        %v8079 = vunpack.c.l.b16 %v7993
        %v8080 = vunpack.c.h.b16 %v7993
        %v8081 = vunpack.c.l.b16 %v7994
        %v8082 = vunpack.c.h.b16 %v7994
        %v8083 = vunpack.c.l.b16 %v7995
        %v8084 = vunpack.c.h.b16 %v7995
        %v8085 = vunpack.c.l.b16 %v7996
        %v8086 = vunpack.c.h.b16 %v7996
        %v8087 = vunpack.c.l.b16 %v7997
        %v8088 = vunpack.c.h.b16 %v7997
        %v8089 = vunpack.c.l.b16 %v7998
        %v8090 = vunpack.c.h.b16 %v7998
        %v8091 = vunpack.c.l.b16 %v7999
        %v8092 = vunpack.c.h.b16 %v7999
        %v8093 = vunpack.c.l.b16 %v8000
        %v8094 = vunpack.c.h.b16 %v8000
        %v8095 = vunpack.c.l.b16 %v8001
        %v8096 = vunpack.c.h.b16 %v8001
        %v8097 = vunpack.c.l.b16 %v8002
        %v8098 = vunpack.c.h.b16 %v8002
        %v8099 = vpack.c.b16 %v8037, %v8035
        %v8100 = vpack.c.b16 %v8038, %v8036
        %v8101 = vpack.c.b16 %v8041, %v8039
        %v8102 = vpack.c.b16 %v8042, %v8040
        %v8103 = vpack.c.b16 %v8045, %v8043
        %v8104 = vpack.c.b16 %v8046, %v8044
        %v8105 = vpack.c.b16 %v8049, %v8047
        %v8106 = vpack.c.b16 %v8050, %v8048
        %v8107 = vpack.c.b16 %v8053, %v8051
        %v8108 = vpack.c.b16 %v8054, %v8052
        %v8109 = vpack.c.b16 %v8057, %v8055
        %v8110 = vpack.c.b16 %v8058, %v8056
        %v8111 = vpack.c.b16 %v8061, %v8059
        %v8112 = vpack.c.b16 %v8062, %v8060
        %v8113 = vpack.c.b16 %v8065, %v8063
        %v8114 = vpack.c.b16 %v8066, %v8064
        %v8115 = vpack.c.b16 %v8069, %v8067
        %v8116 = vpack.c.b16 %v8070, %v8068
        %v8117 = vpack.c.b16 %v8073, %v8071
        %v8118 = vpack.c.b16 %v8074, %v8072
        %v8119 = vpack.c.b16 %v8077, %v8075
        %v8120 = vpack.c.b16 %v8078, %v8076
        %v8121 = vpack.c.b16 %v8081, %v8079
        %v8122 = vpack.c.b16 %v8082, %v8080
        %v8123 = vpack.c.b16 %v8085, %v8083
        %v8124 = vpack.c.b16 %v8086, %v8084
        %v8125 = vpack.c.b16 %v8089, %v8087
        %v8126 = vpack.c.b16 %v8090, %v8088
        %v8127 = vpack.c.b16 %v8093, %v8091
        %v8128 = vpack.c.b16 %v8094, %v8092
        %v8129 = vpack.c.b16 %v8097, %v8095
        %v8130 = vpack.c.b16 %v8098, %v8096
        %8163 = vmatprep.subr.bf16.mxu0 %v8100
        %8164 = vmatpush1.bf16.msra.mxu0 %v8099
        %8165 = vmatprep.subr.bf16.mxu0 %v8102
        %8166 = vmatpush1.bf16.msra.mxu0 %v8101
        %8167 = vmatprep.subr.bf16.mxu0 %v8104
        %8168 = vmatpush1.bf16.msra.mxu0 %v8103
        %8169 = vmatprep.subr.bf16.mxu0 %v8106
        %8170 = vmatpush1.bf16.msra.mxu0 %v8105
        %8171 = vmatprep.subr.bf16.mxu0 %v8108
        %8172 = vmatpush1.bf16.msra.mxu0 %v8107
        %8173 = vmatprep.subr.bf16.mxu0 %v8110
        %8174 = vmatpush1.bf16.msra.mxu0 %v8109
        %8175 = vmatprep.subr.bf16.mxu0 %v8112
        %8176 = vmatpush1.bf16.msra.mxu0 %v8111
        %8177 = vmatprep.subr.bf16.mxu0 %v8114
        %8178 = vmatpush1.bf16.msra.mxu0 %v8113
        %8179 = vmatprep.subr.bf16.mxu0 %v8116
        %8180 = vmatpush1.bf16.msra.mxu0 %v8115
        %8181 = vmatprep.subr.bf16.mxu0 %v8118
        %8182 = vmatpush1.bf16.msra.mxu0 %v8117
        %8183 = vmatprep.subr.bf16.mxu0 %v8120
        %8184 = vmatpush1.bf16.msra.mxu0 %v8119
        %8185 = vmatprep.subr.bf16.mxu0 %v8122
        %8186 = vmatpush1.bf16.msra.mxu0 %v8121
        %8187 = vmatprep.subr.bf16.mxu0 %v8124
        %8188 = vmatpush1.bf16.msra.mxu0 %v8123
        %8189 = vmatprep.subr.bf16.mxu0 %v8126
        %8190 = vmatpush1.bf16.msra.mxu0 %v8125
        %8191 = vmatprep.subr.bf16.mxu0 %v8128
        %8192 = vmatpush1.bf16.msra.mxu0 %v8127
        %8193 = vmatprep.subr.bf16.mxu0 %v8130
        %8194 = vmatpush1.bf16.msra.mxu0 %v8129
        %8195 = vmatprep.mubr.bf16.mxu0 %v7650
        %8196 = vmatmul.mubr.bf16.gmra.mrb[0].mxu0 %v7649
        %v8197 = vpop.f32.mrb[0].mxu0
        %v8198 = vadd.f32 0.0, %v8197
        %v8199 = vpop.f32.mrb[0].mxu0
        %v8200 = vadd.f32 0.0, %v8199
        %v8201 = vpop.f32.mrb[0].mxu0
        %v8202 = vadd.f32 0.0, %v8201
        %v8203 = vpop.f32.mrb[0].mxu0
        %v8204 = vadd.f32 0.0, %v8203
        %8205 = vmatprep.mubr.bf16.mxu0 %v7652
        %8206 = vmatmul.mubr.bf16.gmra.mrb[0].mxu0 %v7651
        %v8207 = vpop.f32.mrb[0].mxu0
        %v8208 = vadd.f32 0.0, %v8207
        %v8209 = vpop.f32.mrb[0].mxu0
        %v8210 = vadd.f32 0.0, %v8209
        %v8211 = vpop.f32.mrb[0].mxu0
        %v8212 = vadd.f32 0.0, %v8211
        %v8213 = vpop.f32.mrb[0].mxu0
        %v8214 = vadd.f32 0.0, %v8213
        %8215 = vmatprep.mubr.bf16.mxu0 %v7654
        %8216 = vmatmul.mubr.bf16.gmra.mrb[0].mxu0 %v7653
        %v8217 = vpop.f32.mrb[0].mxu0
        %v8218 = vadd.f32 0.0, %v8217
        %v8219 = vpop.f32.mrb[0].mxu0
        %v8220 = vadd.f32 0.0, %v8219
        %v8221 = vpop.f32.mrb[0].mxu0
        %v8222 = vadd.f32 0.0, %v8221
        %v8223 = vpop.f32.mrb[0].mxu0
        %v8224 = vadd.f32 0.0, %v8223
        %8225 = vmatprep.mubr.bf16.mxu0 %v7656
        %8226 = vmatmul.mubr.bf16.gmra.mrb[0].mxu0 %v7655
        %v8227 = vpop.f32.mrb[0].mxu0
        %v8228 = vadd.f32 0.0, %v8227
        %v8229 = vpop.f32.mrb[0].mxu0
        %v8230 = vadd.f32 0.0, %v8229
        %v8231 = vpop.f32.mrb[0].mxu0
        %v8232 = vadd.f32 0.0, %v8231
        %v8233 = vpop.f32.mrb[0].mxu0
        %v8234 = vadd.f32 0.0, %v8233
        %8235 = vmatprep.mubr.bf16.mxu0 %v7658
        %8236 = vmatmul.mubr.bf16.gmra.mrb[0].mxu0 %v7657
        %v8237 = vpop.f32.mrb[0].mxu0
        %v8238 = vadd.f32 0.0, %v8237
        %v8239 = vpop.f32.mrb[0].mxu0
        %v8240 = vadd.f32 0.0, %v8239
        %v8241 = vpop.f32.mrb[0].mxu0
        %v8242 = vadd.f32 0.0, %v8241
        %v8243 = vpop.f32.mrb[0].mxu0
        %v8244 = vadd.f32 0.0, %v8243
        %8245 = vmatprep.mubr.bf16.mxu0 %v7660
        %8246 = vmatmul.mubr.bf16.gmra.mrb[0].mxu0 %v7659
        %v8247 = vpop.f32.mrb[0].mxu0
        %v8248 = vadd.f32 0.0, %v8247
        %v8249 = vpop.f32.mrb[0].mxu0
        %v8250 = vadd.f32 0.0, %v8249
        %v8251 = vpop.f32.mrb[0].mxu0
        %v8252 = vadd.f32 0.0, %v8251
        %v8253 = vpop.f32.mrb[0].mxu0
        %v8254 = vadd.f32 0.0, %v8253
        %8255 = vmatprep.mubr.bf16.mxu0 %v7662
        %8256 = vmatmul.mubr.bf16.gmra.mrb[0].mxu0 %v7661
        %v8257 = vpop.f32.mrb[0].mxu0
        %v8258 = vadd.f32 0.0, %v8257
        %v8259 = vpop.f32.mrb[0].mxu0
        %v8260 = vadd.f32 0.0, %v8259
        %v8261 = vpop.f32.mrb[0].mxu0
        %v8262 = vadd.f32 0.0, %v8261
        %v8263 = vpop.f32.mrb[0].mxu0
        %v8264 = vadd.f32 0.0, %v8263
        %8265 = vmatprep.mubr.bf16.mxu0 %v7664
        %8266 = vmatmul.mubr.bf16.gmra.mrb[0].mxu0 %v7663
        %v8267 = vpop.f32.mrb[0].mxu0
        %v8268 = vadd.f32 0.0, %v8267
        %v8269 = vpop.f32.mrb[0].mxu0
        %v8270 = vadd.f32 0.0, %v8269
        %v8271 = vpop.f32.mrb[0].mxu0
        %v8272 = vadd.f32 0.0, %v8271
        %v8273 = vpop.f32.mrb[0].mxu0
        %v8274 = vadd.f32 0.0, %v8273
        %8275 = vdwg.mxu0
        %s8276 = scalar_lea.vmem [#allocation17], 512
        %v8277 = vld [vmem:[%s8276] sm:$0xff]
        %v8278 = vld [vmem:[%s8276 + $0x8] sm:$0xff]
        %v8279 = vld [vmem:[%s8276 + $0x10] sm:$0xff]
        %v8280 = vld [vmem:[%s8276 + $0x18] sm:$0xff]
        %v8281 = vld [vmem:[%s8276 + $0x20] sm:$0xff]
        %v8282 = vld [vmem:[%s8276 + $0x28] sm:$0xff]
        %v8283 = vld [vmem:[%s8276 + $0x30] sm:$0xff]
        %v8284 = vld [vmem:[%s8276 + $0x38] sm:$0xff]
        %v8285 = vld [vmem:[%s8276 + $0x40] sm:$0xff]
        %v8286 = vld [vmem:[%s8276 + $0x48] sm:$0xff]
        %v8287 = vld [vmem:[%s8276 + $0x50] sm:$0xff]
        %v8288 = vld [vmem:[%s8276 + $0x58] sm:$0xff]
        %v8289 = vld [vmem:[%s8276 + $0x60] sm:$0xff]
        %v8290 = vld [vmem:[%s8276 + $0x68] sm:$0xff]
        %v8291 = vld [vmem:[%s8276 + $0x70] sm:$0xff]
        %v8292 = vld [vmem:[%s8276 + $0x78] sm:$0xff]
        %v8293 = vld [vmem:[%s8276 + $0x80] sm:$0xff]
        %v8294 = vld [vmem:[%s8276 + $0x88] sm:$0xff]
        %v8295 = vld [vmem:[%s8276 + $0x90] sm:$0xff]
        %v8296 = vld [vmem:[%s8276 + $0x98] sm:$0xff]
        %v8297 = vld [vmem:[%s8276 + $0xa0] sm:$0xff]
        %v8298 = vld [vmem:[%s8276 + $0xa8] sm:$0xff]
        %v8299 = vld [vmem:[%s8276 + $0xb0] sm:$0xff]
        %v8300 = vld [vmem:[%s8276 + $0xb8] sm:$0xff]
        %v8301 = vld [vmem:[%s8276 + $0xc0] sm:$0xff]
        %v8302 = vld [vmem:[%s8276 + $0xc8] sm:$0xff]
        %v8303 = vld [vmem:[%s8276 + $0xd0] sm:$0xff]
        %v8304 = vld [vmem:[%s8276 + $0xd8] sm:$0xff]
        %v8305 = vld [vmem:[%s8276 + $0xe0] sm:$0xff]
        %v8306 = vld [vmem:[%s8276 + $0xe8] sm:$0xff]
        %v8307 = vld [vmem:[%s8276 + $0xf0] sm:$0xff]
        %v8308 = vld [vmem:[%s8276 + $0xf8] sm:$0xff]
        %v8341 = vunpack.c.l.b16 %v8277
        %v8342 = vunpack.c.h.b16 %v8277
        %v8343 = vunpack.c.l.b16 %v8278
        %v8344 = vunpack.c.h.b16 %v8278
        %v8345 = vunpack.c.l.b16 %v8279
        %v8346 = vunpack.c.h.b16 %v8279
        %v8347 = vunpack.c.l.b16 %v8280
        %v8348 = vunpack.c.h.b16 %v8280
        %v8349 = vunpack.c.l.b16 %v8281
        %v8350 = vunpack.c.h.b16 %v8281
        %v8351 = vunpack.c.l.b16 %v8282
        %v8352 = vunpack.c.h.b16 %v8282
        %v8353 = vunpack.c.l.b16 %v8283
        %v8354 = vunpack.c.h.b16 %v8283
        %v8355 = vunpack.c.l.b16 %v8284
        %v8356 = vunpack.c.h.b16 %v8284
        %v8357 = vunpack.c.l.b16 %v8285
        %v8358 = vunpack.c.h.b16 %v8285
        %v8359 = vunpack.c.l.b16 %v8286
        %v8360 = vunpack.c.h.b16 %v8286
        %v8361 = vunpack.c.l.b16 %v8287
        %v8362 = vunpack.c.h.b16 %v8287
        %v8363 = vunpack.c.l.b16 %v8288
        %v8364 = vunpack.c.h.b16 %v8288
        %v8365 = vunpack.c.l.b16 %v8289
        %v8366 = vunpack.c.h.b16 %v8289
        %v8367 = vunpack.c.l.b16 %v8290
        %v8368 = vunpack.c.h.b16 %v8290
        %v8369 = vunpack.c.l.b16 %v8291
        %v8370 = vunpack.c.h.b16 %v8291
        %v8371 = vunpack.c.l.b16 %v8292
        %v8372 = vunpack.c.h.b16 %v8292
        %v8373 = vunpack.c.l.b16 %v8293
        %v8374 = vunpack.c.h.b16 %v8293
        %v8375 = vunpack.c.l.b16 %v8294
        %v8376 = vunpack.c.h.b16 %v8294
        %v8377 = vunpack.c.l.b16 %v8295
        %v8378 = vunpack.c.h.b16 %v8295
        %v8379 = vunpack.c.l.b16 %v8296
        %v8380 = vunpack.c.h.b16 %v8296
        %v8381 = vunpack.c.l.b16 %v8297
        %v8382 = vunpack.c.h.b16 %v8297
        %v8383 = vunpack.c.l.b16 %v8298
        %v8384 = vunpack.c.h.b16 %v8298
        %v8385 = vunpack.c.l.b16 %v8299
        %v8386 = vunpack.c.h.b16 %v8299
        %v8387 = vunpack.c.l.b16 %v8300
        %v8388 = vunpack.c.h.b16 %v8300
        %v8389 = vunpack.c.l.b16 %v8301
        %v8390 = vunpack.c.h.b16 %v8301
        %v8391 = vunpack.c.l.b16 %v8302
        %v8392 = vunpack.c.h.b16 %v8302
        %v8393 = vunpack.c.l.b16 %v8303
        %v8394 = vunpack.c.h.b16 %v8303
        %v8395 = vunpack.c.l.b16 %v8304
        %v8396 = vunpack.c.h.b16 %v8304
        %v8397 = vunpack.c.l.b16 %v8305
        %v8398 = vunpack.c.h.b16 %v8305
        %v8399 = vunpack.c.l.b16 %v8306
        %v8400 = vunpack.c.h.b16 %v8306
        %v8401 = vunpack.c.l.b16 %v8307
        %v8402 = vunpack.c.h.b16 %v8307
        %v8403 = vunpack.c.l.b16 %v8308
        %v8404 = vunpack.c.h.b16 %v8308
        %v8405 = vpack.c.b16 %v8343, %v8341
        %v8406 = vpack.c.b16 %v8344, %v8342
        %v8407 = vpack.c.b16 %v8347, %v8345
        %v8408 = vpack.c.b16 %v8348, %v8346
        %v8409 = vpack.c.b16 %v8351, %v8349
        %v8410 = vpack.c.b16 %v8352, %v8350
        %v8411 = vpack.c.b16 %v8355, %v8353
        %v8412 = vpack.c.b16 %v8356, %v8354
        %v8413 = vpack.c.b16 %v8359, %v8357
        %v8414 = vpack.c.b16 %v8360, %v8358
        %v8415 = vpack.c.b16 %v8363, %v8361
        %v8416 = vpack.c.b16 %v8364, %v8362
        %v8417 = vpack.c.b16 %v8367, %v8365
        %v8418 = vpack.c.b16 %v8368, %v8366
        %v8419 = vpack.c.b16 %v8371, %v8369
        %v8420 = vpack.c.b16 %v8372, %v8370
        %v8421 = vpack.c.b16 %v8375, %v8373
        %v8422 = vpack.c.b16 %v8376, %v8374
        %v8423 = vpack.c.b16 %v8379, %v8377
        %v8424 = vpack.c.b16 %v8380, %v8378
        %v8425 = vpack.c.b16 %v8383, %v8381
        %v8426 = vpack.c.b16 %v8384, %v8382
        %v8427 = vpack.c.b16 %v8387, %v8385
        %v8428 = vpack.c.b16 %v8388, %v8386
        %v8429 = vpack.c.b16 %v8391, %v8389
        %v8430 = vpack.c.b16 %v8392, %v8390
        %v8431 = vpack.c.b16 %v8395, %v8393
        %v8432 = vpack.c.b16 %v8396, %v8394
        %v8433 = vpack.c.b16 %v8399, %v8397
        %v8434 = vpack.c.b16 %v8400, %v8398
        %v8435 = vpack.c.b16 %v8403, %v8401
        %v8436 = vpack.c.b16 %v8404, %v8402
        %8469 = vmatprep.subr.bf16.mxu0 %v8406
        %8470 = vmatpush1.bf16.msra.mxu0 %v8405
        %8471 = vmatprep.subr.bf16.mxu0 %v8408
        %8472 = vmatpush1.bf16.msra.mxu0 %v8407
        %8473 = vmatprep.subr.bf16.mxu0 %v8410
        %8474 = vmatpush1.bf16.msra.mxu0 %v8409
        %8475 = vmatprep.subr.bf16.mxu0 %v8412
        %8476 = vmatpush1.bf16.msra.mxu0 %v8411
        %8477 = vmatprep.subr.bf16.mxu0 %v8414
        %8478 = vmatpush1.bf16.msra.mxu0 %v8413
        %8479 = vmatprep.subr.bf16.mxu0 %v8416
        %8480 = vmatpush1.bf16.msra.mxu0 %v8415
        %8481 = vmatprep.subr.bf16.mxu0 %v8418
        %8482 = vmatpush1.bf16.msra.mxu0 %v8417
        %8483 = vmatprep.subr.bf16.mxu0 %v8420
        %8484 = vmatpush1.bf16.msra.mxu0 %v8419
        %8485 = vmatprep.subr.bf16.mxu0 %v8422
        %8486 = vmatpush1.bf16.msra.mxu0 %v8421
        %8487 = vmatprep.subr.bf16.mxu0 %v8424
        %8488 = vmatpush1.bf16.msra.mxu0 %v8423
        %8489 = vmatprep.subr.bf16.mxu0 %v8426
        %8490 = vmatpush1.bf16.msra.mxu0 %v8425
        %8491 = vmatprep.subr.bf16.mxu0 %v8428
        %8492 = vmatpush1.bf16.msra.mxu0 %v8427
        %8493 = vmatprep.subr.bf16.mxu0 %v8430
        %8494 = vmatpush1.bf16.msra.mxu0 %v8429
        %8495 = vmatprep.subr.bf16.mxu0 %v8432
        %8496 = vmatpush1.bf16.msra.mxu0 %v8431
        %8497 = vmatprep.subr.bf16.mxu0 %v8434
        %8498 = vmatpush1.bf16.msra.mxu0 %v8433
        %8499 = vmatprep.subr.bf16.mxu0 %v8436
        %8500 = vmatpush1.bf16.msra.mxu0 %v8435
        %8501 = vmatprep.mubr.bf16.mxu0 %v7650
        %8502 = vmatmul.mubr.bf16.gmra.mrb[0].mxu0 %v7649
        %v8503 = vpop.f32.mrb[0].mxu0
        %v8504 = vadd.f32 0.0, %v8503
        %v8505 = vpop.f32.mrb[0].mxu0
        %v8506 = vadd.f32 0.0, %v8505
        %v8507 = vpop.f32.mrb[0].mxu0
        %v8508 = vadd.f32 0.0, %v8507
        %v8509 = vpop.f32.mrb[0].mxu0
        %v8510 = vadd.f32 0.0, %v8509
        %8511 = vmatprep.mubr.bf16.mxu0 %v7652
        %8512 = vmatmul.mubr.bf16.gmra.mrb[0].mxu0 %v7651
        %v8513 = vpop.f32.mrb[0].mxu0
        %v8514 = vadd.f32 0.0, %v8513
        %v8515 = vpop.f32.mrb[0].mxu0
        %v8516 = vadd.f32 0.0, %v8515
        %v8517 = vpop.f32.mrb[0].mxu0
        %v8518 = vadd.f32 0.0, %v8517
        %v8519 = vpop.f32.mrb[0].mxu0
        %v8520 = vadd.f32 0.0, %v8519
        %8521 = vmatprep.mubr.bf16.mxu0 %v7654
        %8522 = vmatmul.mubr.bf16.gmra.mrb[0].mxu0 %v7653
        %v8523 = vpop.f32.mrb[0].mxu0
        %v8524 = vadd.f32 0.0, %v8523
        %v8525 = vpop.f32.mrb[0].mxu0
        %v8526 = vadd.f32 0.0, %v8525
        %v8527 = vpop.f32.mrb[0].mxu0
        %v8528 = vadd.f32 0.0, %v8527
        %v8529 = vpop.f32.mrb[0].mxu0
        %v8530 = vadd.f32 0.0, %v8529
        %8531 = vmatprep.mubr.bf16.mxu0 %v7656
        %8532 = vmatmul.mubr.bf16.gmra.mrb[0].mxu0 %v7655
        %v8533 = vpop.f32.mrb[0].mxu0
        %v8534 = vadd.f32 0.0, %v8533
        %v8535 = vpop.f32.mrb[0].mxu0
        %v8536 = vadd.f32 0.0, %v8535
        %v8537 = vpop.f32.mrb[0].mxu0
        %v8538 = vadd.f32 0.0, %v8537
        %v8539 = vpop.f32.mrb[0].mxu0
        %v8540 = vadd.f32 0.0, %v8539
        %8541 = vmatprep.mubr.bf16.mxu0 %v7658
        %8542 = vmatmul.mubr.bf16.gmra.mrb[0].mxu0 %v7657
        %v8543 = vpop.f32.mrb[0].mxu0
        %v8544 = vadd.f32 0.0, %v8543
        %v8545 = vpop.f32.mrb[0].mxu0
        %v8546 = vadd.f32 0.0, %v8545
        %v8547 = vpop.f32.mrb[0].mxu0
        %v8548 = vadd.f32 0.0, %v8547
        %v8549 = vpop.f32.mrb[0].mxu0
        %v8550 = vadd.f32 0.0, %v8549
        %8551 = vmatprep.mubr.bf16.mxu0 %v7660
        %8552 = vmatmul.mubr.bf16.gmra.mrb[0].mxu0 %v7659
        %v8553 = vpop.f32.mrb[0].mxu0
        %v8554 = vadd.f32 0.0, %v8553
        %v8555 = vpop.f32.mrb[0].mxu0
        %v8556 = vadd.f32 0.0, %v8555
        %v8557 = vpop.f32.mrb[0].mxu0
        %v8558 = vadd.f32 0.0, %v8557
        %v8559 = vpop.f32.mrb[0].mxu0
        %v8560 = vadd.f32 0.0, %v8559
        %8561 = vmatprep.mubr.bf16.mxu0 %v7662
        %8562 = vmatmul.mubr.bf16.gmra.mrb[0].mxu0 %v7661
        %v8563 = vpop.f32.mrb[0].mxu0
        %v8564 = vadd.f32 0.0, %v8563
        %v8565 = vpop.f32.mrb[0].mxu0
        %v8566 = vadd.f32 0.0, %v8565
        %v8567 = vpop.f32.mrb[0].mxu0
        %v8568 = vadd.f32 0.0, %v8567
        %v8569 = vpop.f32.mrb[0].mxu0
        %v8570 = vadd.f32 0.0, %v8569
        %8571 = vmatprep.mubr.bf16.mxu0 %v7664
        %8572 = vmatmul.mubr.bf16.gmra.mrb[0].mxu0 %v7663
        %v8573 = vpop.f32.mrb[0].mxu0
        %v8574 = vadd.f32 0.0, %v8573
        %v8575 = vpop.f32.mrb[0].mxu0
        %v8576 = vadd.f32 0.0, %v8575
        %v8577 = vpop.f32.mrb[0].mxu0
        %v8578 = vadd.f32 0.0, %v8577
        %v8579 = vpop.f32.mrb[0].mxu0
        %v8580 = vadd.f32 0.0, %v8579
        %8581 = vdwg.mxu0
        %v8584 = vrot.slane %v7966, 7
        %v8585 = vrot.slane %v7968, 7
        %v8618 = vrot.slane %v7892, 7
        %v8619 = vrot.slane %v7894, 7
        %v8620 = vrot.slane %v7896, 7
        %v8621 = vsel %vm1309, %v8618, %v8620
        %v8622 = vrot.slane %v7898, 7
        %v8623 = vsel %vm1309, %v8619, %v8622
        %v8624 = vrot.slane %v7902, 7
        %v8625 = vsel %vm1309, %v8620, %v8624
        %v8626 = vrot.slane %v7904, 7
        %v8627 = vsel %vm1309, %v8622, %v8626
        %v8628 = vrot.slane %v7906, 7
        %v8629 = vsel %vm1309, %v8624, %v8628
        %v8630 = vrot.slane %v7908, 7
        %v8631 = vsel %vm1309, %v8626, %v8630
        %v8632 = vrot.slane %v7912, 7
        %v8633 = vsel %vm1309, %v8628, %v8632
        %v8634 = vrot.slane %v7914, 7
        %v8635 = vsel %vm1309, %v8630, %v8634
        %v8636 = vrot.slane %v7916, 7
        %v8637 = vsel %vm1309, %v8632, %v8636
        %v8638 = vrot.slane %v7918, 7
        %v8639 = vsel %vm1309, %v8634, %v8638
        %v8640 = vrot.slane %v7922, 7
        %v8641 = vsel %vm1309, %v8636, %v8640
        %v8642 = vrot.slane %v7924, 7
        %v8643 = vsel %vm1309, %v8638, %v8642
        %v8644 = vrot.slane %v7926, 7
        %v8645 = vsel %vm1309, %v8640, %v8644
        %v8646 = vrot.slane %v7928, 7
        %v8647 = vsel %vm1309, %v8642, %v8646
        %v8648 = vrot.slane %v7932, 7
        %v8649 = vsel %vm1309, %v8644, %v8648
        %v8650 = vrot.slane %v7934, 7
        %v8651 = vsel %vm1309, %v8646, %v8650
        %v8652 = vrot.slane %v7936, 7
        %v8653 = vsel %vm1309, %v8648, %v8652
        %v8654 = vrot.slane %v7938, 7
        %v8655 = vsel %vm1309, %v8650, %v8654
        %v8656 = vrot.slane %v7942, 7
        %v8657 = vsel %vm1309, %v8652, %v8656
        %v8658 = vrot.slane %v7944, 7
        %v8659 = vsel %vm1309, %v8654, %v8658
        %v8660 = vrot.slane %v7946, 7
        %v8661 = vsel %vm1309, %v8656, %v8660
        %v8662 = vrot.slane %v7948, 7
        %v8663 = vsel %vm1309, %v8658, %v8662
        %v8664 = vrot.slane %v7952, 7
        %v8665 = vsel %vm1309, %v8660, %v8664
        %v8666 = vrot.slane %v7954, 7
        %v8667 = vsel %vm1309, %v8662, %v8666
        %v8668 = vrot.slane %v7956, 7
        %v8669 = vsel %vm1309, %v8664, %v8668
        %v8670 = vrot.slane %v7958, 7
        %v8671 = vsel %vm1309, %v8666, %v8670
        %v8672 = vrot.slane %v7962, 7
        %v8673 = vsel %vm1309, %v8668, %v8672
        %v8674 = vrot.slane %v7964, 7
        %v8675 = vsel %vm1309, %v8670, %v8674
        %v8676 = vsel %vm1309, %v8672, %v8584
        %v8677 = vsel %vm1309, %v8674, %v8585
        %v8710 = vsel %vm1309, %v8584, %v8618
        %v8711 = vsel %vm1309, %v8585, %v8619
        %v8712 = vmul.f32 %v8710, %v1360
        %v8713 = vmul.f32 %v8711, %v1360
        %v8714 = vmul.f32 %v8621, %v1365
        %v8715 = vmul.f32 %v8623, %v1365
        %v8716 = vmul.f32 %v8625, %v1370
        %v8717 = vmul.f32 %v8627, %v1370
        %v8718 = vmul.f32 %v8629, %v1375
        %v8719 = vmul.f32 %v8631, %v1375
        %v8720 = vmul.f32 %v8633, %v1380
        %v8721 = vmul.f32 %v8635, %v1380
        %v8722 = vmul.f32 %v8637, %v1385
        %v8723 = vmul.f32 %v8639, %v1385
        %v8724 = vmul.f32 %v8641, %v1390
        %v8725 = vmul.f32 %v8643, %v1390
        %v8726 = vmul.f32 %v8645, %v1395
        %v8727 = vmul.f32 %v8647, %v1395
        %v8728 = vmul.f32 %v8649, %v1400
        %v8729 = vmul.f32 %v8651, %v1400
        %v8730 = vmul.f32 %v8653, %v1405
        %v8731 = vmul.f32 %v8655, %v1405
        %v8732 = vmul.f32 %v8657, %v1410
        %v8733 = vmul.f32 %v8659, %v1410
        %v8734 = vmul.f32 %v8661, %v1415
        %v8735 = vmul.f32 %v8663, %v1415
        %v8736 = vmul.f32 %v8665, %v1420
        %v8737 = vmul.f32 %v8667, %v1420
        %v8738 = vmul.f32 %v8669, %v1425
        %v8739 = vmul.f32 %v8671, %v1425
        %v8740 = vmul.f32 %v8673, %v1430
        %v8741 = vmul.f32 %v8675, %v1430
        %v8742 = vmul.f32 %v8676, %v1435
        %v8743 = vmul.f32 %v8677, %v1435
        %v8744 = vadd.f32 %v8712, %v8198
        %v8745 = vadd.f32 %v8713, %v8200
        %v8746 = vadd.f32 %v8714, %v8202
        %v8747 = vadd.f32 %v8715, %v8204
        %v8748 = vadd.f32 %v8716, %v8208
        %v8749 = vadd.f32 %v8717, %v8210
        %v8750 = vadd.f32 %v8718, %v8212
        %v8751 = vadd.f32 %v8719, %v8214
        %v8752 = vadd.f32 %v8720, %v8218
        %v8753 = vadd.f32 %v8721, %v8220
        %v8754 = vadd.f32 %v8722, %v8222
        %v8755 = vadd.f32 %v8723, %v8224
        %v8756 = vadd.f32 %v8724, %v8228
        %v8757 = vadd.f32 %v8725, %v8230
        %v8758 = vadd.f32 %v8726, %v8232
        %v8759 = vadd.f32 %v8727, %v8234
        %v8760 = vadd.f32 %v8728, %v8238
        %v8761 = vadd.f32 %v8729, %v8240
        %v8762 = vadd.f32 %v8730, %v8242
        %v8763 = vadd.f32 %v8731, %v8244
        %v8764 = vadd.f32 %v8732, %v8248
        %v8765 = vadd.f32 %v8733, %v8250
        %v8766 = vadd.f32 %v8734, %v8252
        %v8767 = vadd.f32 %v8735, %v8254
        %v8768 = vadd.f32 %v8736, %v8258
        %v8769 = vadd.f32 %v8737, %v8260
        %v8770 = vadd.f32 %v8738, %v8262
        %v8771 = vadd.f32 %v8739, %v8264
        %v8772 = vadd.f32 %v8740, %v8268
        %v8773 = vadd.f32 %v8741, %v8270
        %v8774 = vadd.f32 %v8742, %v8272
        %v8775 = vadd.f32 %v8743, %v8274
        %v8808 = vrot.slane %v8504, 1
        %v8809 = vrot.slane %v8508, 1
        %v8810 = vsel %vm1485, %v8808, %v8809
        %v8811 = vrot.slane %v8506, 1
        %v8812 = vrot.slane %v8510, 1
        %v8813 = vsel %vm1485, %v8811, %v8812
        %v8814 = vrot.slane %v8514, 1
        %v8815 = vsel %vm1485, %v8809, %v8814
        %v8816 = vrot.slane %v8516, 1
        %v8817 = vsel %vm1485, %v8812, %v8816
        %v8818 = vrot.slane %v8518, 1
        %v8819 = vsel %vm1485, %v8814, %v8818
        %v8820 = vrot.slane %v8520, 1
        %v8821 = vsel %vm1485, %v8816, %v8820
        %v8822 = vrot.slane %v8524, 1
        %v8823 = vsel %vm1485, %v8818, %v8822
        %v8824 = vrot.slane %v8526, 1
        %v8825 = vsel %vm1485, %v8820, %v8824
        %v8826 = vrot.slane %v8528, 1
        %v8827 = vsel %vm1485, %v8822, %v8826
        %v8828 = vrot.slane %v8530, 1
        %v8829 = vsel %vm1485, %v8824, %v8828
        %v8830 = vrot.slane %v8534, 1
        %v8831 = vsel %vm1485, %v8826, %v8830
        %v8832 = vrot.slane %v8536, 1
        %v8833 = vsel %vm1485, %v8828, %v8832
        %v8834 = vrot.slane %v8538, 1
        %v8835 = vsel %vm1485, %v8830, %v8834
        %v8836 = vrot.slane %v8540, 1
        %v8837 = vsel %vm1485, %v8832, %v8836
        %v8838 = vrot.slane %v8544, 1
        %v8839 = vsel %vm1485, %v8834, %v8838
        %v8840 = vrot.slane %v8546, 1
        %v8841 = vsel %vm1485, %v8836, %v8840
        %v8842 = vrot.slane %v8548, 1
        %v8843 = vsel %vm1485, %v8838, %v8842
        %v8844 = vrot.slane %v8550, 1
        %v8845 = vsel %vm1485, %v8840, %v8844
        %v8846 = vrot.slane %v8554, 1
        %v8847 = vsel %vm1485, %v8842, %v8846
        %v8848 = vrot.slane %v8556, 1
        %v8849 = vsel %vm1485, %v8844, %v8848
        %v8850 = vrot.slane %v8558, 1
        %v8851 = vsel %vm1485, %v8846, %v8850
        %v8852 = vrot.slane %v8560, 1
        %v8853 = vsel %vm1485, %v8848, %v8852
        %v8854 = vrot.slane %v8564, 1
        %v8855 = vsel %vm1485, %v8850, %v8854
        %v8856 = vrot.slane %v8566, 1
        %v8857 = vsel %vm1485, %v8852, %v8856
        %v8858 = vrot.slane %v8568, 1
        %v8859 = vsel %vm1485, %v8854, %v8858
        %v8860 = vrot.slane %v8570, 1
        %v8861 = vsel %vm1485, %v8856, %v8860
        %v8862 = vrot.slane %v8574, 1
        %v8863 = vsel %vm1485, %v8858, %v8862
        %v8864 = vrot.slane %v8576, 1
        %v8865 = vsel %vm1485, %v8860, %v8864
        %v8866 = vrot.slane %v8578, 1
        %v8867 = vsel %vm1485, %v8862, %v8866
        %v8868 = vrot.slane %v8580, 1
        %v8869 = vsel %vm1485, %v8864, %v8868
        %v8904 = vsel %vm1485, %v8866, %v8808
        %v8905 = vsel %vm1485, %v8868, %v8811
        %v8906 = vmul.f32 %v8810, %v1538
        %v8907 = vmul.f32 %v8813, %v1538
        %v8908 = vmul.f32 %v8815, %v1543
        %v8909 = vmul.f32 %v8817, %v1543
        %v8910 = vmul.f32 %v8819, %v1548
        %v8911 = vmul.f32 %v8821, %v1548
        %v8912 = vmul.f32 %v8823, %v1553
        %v8913 = vmul.f32 %v8825, %v1553
        %v8914 = vmul.f32 %v8827, %v1558
        %v8915 = vmul.f32 %v8829, %v1558
        %v8916 = vmul.f32 %v8831, %v1563
        %v8917 = vmul.f32 %v8833, %v1563
        %v8918 = vmul.f32 %v8835, %v1568
        %v8919 = vmul.f32 %v8837, %v1568
        %v8920 = vmul.f32 %v8839, %v1573
        %v8921 = vmul.f32 %v8841, %v1573
        %v8922 = vmul.f32 %v8843, %v1578
        %v8923 = vmul.f32 %v8845, %v1578
        %v8924 = vmul.f32 %v8847, %v1583
        %v8925 = vmul.f32 %v8849, %v1583
        %v8926 = vmul.f32 %v8851, %v1588
        %v8927 = vmul.f32 %v8853, %v1588
        %v8928 = vmul.f32 %v8855, %v1593
        %v8929 = vmul.f32 %v8857, %v1593
        %v8930 = vmul.f32 %v8859, %v1598
        %v8931 = vmul.f32 %v8861, %v1598
        %v8932 = vmul.f32 %v8863, %v1603
        %v8933 = vmul.f32 %v8865, %v1603
        %v8934 = vmul.f32 %v8867, %v1608
        %v8935 = vmul.f32 %v8869, %v1608
        %v8936 = vmul.f32 %v8904, %v1613
        %v8937 = vmul.f32 %v8905, %v1613
        %v8938 = vadd.f32 %v8744, %v8906
        %v8939 = vadd.f32 %v8745, %v8907
        %v8940 = vadd.f32 %v8746, %v8908
        %v8941 = vadd.f32 %v8747, %v8909
        %v8942 = vadd.f32 %v8748, %v8910
        %v8943 = vadd.f32 %v8749, %v8911
        %v8944 = vadd.f32 %v8750, %v8912
        %v8945 = vadd.f32 %v8751, %v8913
        %v8946 = vadd.f32 %v8752, %v8914
        %v8947 = vadd.f32 %v8753, %v8915
        %v8948 = vadd.f32 %v8754, %v8916
        %v8949 = vadd.f32 %v8755, %v8917
        %v8950 = vadd.f32 %v8756, %v8918
        %v8951 = vadd.f32 %v8757, %v8919
        %v8952 = vadd.f32 %v8758, %v8920
        %v8953 = vadd.f32 %v8759, %v8921
        %v8954 = vadd.f32 %v8760, %v8922
        %v8955 = vadd.f32 %v8761, %v8923
        %v8956 = vadd.f32 %v8762, %v8924
        %v8957 = vadd.f32 %v8763, %v8925
        %v8958 = vadd.f32 %v8764, %v8926
        %v8959 = vadd.f32 %v8765, %v8927
        %v8960 = vadd.f32 %v8766, %v8928
        %v8961 = vadd.f32 %v8767, %v8929
        %v8962 = vadd.f32 %v8768, %v8930
        %v8963 = vadd.f32 %v8769, %v8931
        %v8964 = vadd.f32 %v8770, %v8932
        %v8965 = vadd.f32 %v8771, %v8933
        %v8966 = vadd.f32 %v8772, %v8934
        %v8967 = vadd.f32 %v8773, %v8935
        %v8968 = vadd.f32 %v8774, %v8936
        %v8969 = vadd.f32 %v8775, %v8937
        %v8970 = vld [vmem:[%s17] sm:$0x3]
        %v8972 = vlaneseq
        %v8973 = vshrl.u32 %v8972, 7
        %v8974 = vsub.s32 0, %v8973
        %v8975 = vrot.slane %v8970, %v8974
        %v8976 = vlaneseq
        %v8977 = vshrl.u32 %v8976, 7
        %v8978 = vsub.s32 1, %v8977
        %v8979 = vrot.slane %v8970, %v8978
        %v8982 = vadd.f32 %v8938, %v8975
        %v8983 = vadd.f32 %v8939, %v8979
        %v8984 = vadd.f32 %v8940, %v8975
        %v8985 = vadd.f32 %v8941, %v8979
        %v8986 = vadd.f32 %v8942, %v8975
        %v8987 = vadd.f32 %v8943, %v8979
        %v8988 = vadd.f32 %v8944, %v8975
        %v8989 = vadd.f32 %v8945, %v8979
        %v8990 = vadd.f32 %v8946, %v8975
        %v8991 = vadd.f32 %v8947, %v8979
        %v8992 = vadd.f32 %v8948, %v8975
        %v8993 = vadd.f32 %v8949, %v8979
        %v8994 = vadd.f32 %v8950, %v8975
        %v8995 = vadd.f32 %v8951, %v8979
        %v8996 = vadd.f32 %v8952, %v8975
        %v8997 = vadd.f32 %v8953, %v8979
        %v8998 = vadd.f32 %v8954, %v8975
        %v8999 = vadd.f32 %v8955, %v8979
        %v9000 = vadd.f32 %v8956, %v8975
        %v9001 = vadd.f32 %v8957, %v8979
        %v9002 = vadd.f32 %v8958, %v8975
        %v9003 = vadd.f32 %v8959, %v8979
        %v9004 = vadd.f32 %v8960, %v8975
        %v9005 = vadd.f32 %v8961, %v8979
        %v9006 = vadd.f32 %v8962, %v8975
        %v9007 = vadd.f32 %v8963, %v8979
        %v9008 = vadd.f32 %v8964, %v8975
        %v9009 = vadd.f32 %v8965, %v8979
        %v9010 = vadd.f32 %v8966, %v8975
        %v9011 = vadd.f32 %v8967, %v8979
        %v9012 = vadd.f32 %v8968, %v8975
        %v9013 = vadd.f32 %v8969, %v8979
        %v9014 = vmax.f32 %v8982, 0.0
        %v9015 = vmax.f32 %v8983, 0.0
        %v9016 = vmax.f32 %v8984, 0.0
        %v9017 = vmax.f32 %v8985, 0.0
        %v9018 = vmax.f32 %v8986, 0.0
        %v9019 = vmax.f32 %v8987, 0.0
        %v9020 = vmax.f32 %v8988, 0.0
        %v9021 = vmax.f32 %v8989, 0.0
        %v9022 = vmax.f32 %v8990, 0.0
        %v9023 = vmax.f32 %v8991, 0.0
        %v9024 = vmax.f32 %v8992, 0.0
        %v9025 = vmax.f32 %v8993, 0.0
        %v9026 = vmax.f32 %v8994, 0.0
        %v9027 = vmax.f32 %v8995, 0.0
        %v9028 = vmax.f32 %v8996, 0.0
        %v9029 = vmax.f32 %v8997, 0.0
        %v9030 = vmax.f32 %v8998, 0.0
        %v9031 = vmax.f32 %v8999, 0.0
        %v9032 = vmax.f32 %v9000, 0.0
        %v9033 = vmax.f32 %v9001, 0.0
        %v9034 = vmax.f32 %v9002, 0.0
        %v9035 = vmax.f32 %v9003, 0.0
        %v9036 = vmax.f32 %v9004, 0.0
        %v9037 = vmax.f32 %v9005, 0.0
        %v9038 = vmax.f32 %v9006, 0.0
        %v9039 = vmax.f32 %v9007, 0.0
        %v9040 = vmax.f32 %v9008, 0.0
        %v9041 = vmax.f32 %v9009, 0.0
        %v9042 = vmax.f32 %v9010, 0.0
        %v9043 = vmax.f32 %v9011, 0.0
        %v9044 = vmax.f32 %v9012, 0.0
        %v9045 = vmax.f32 %v9013, 0.0
        %v9046 = vpack.c.bf16 %v9016, %v9014
        %v9047 = vpack.c.bf16 %v9017, %v9015
        %v9048 = vpack.c.bf16 %v9020, %v9018
        %v9049 = vpack.c.bf16 %v9021, %v9019
        %v9050 = vpack.c.bf16 %v9024, %v9022
        %v9051 = vpack.c.bf16 %v9025, %v9023
        %v9052 = vpack.c.bf16 %v9028, %v9026
        %v9053 = vpack.c.bf16 %v9029, %v9027
        %v9054 = vpack.c.bf16 %v9032, %v9030
        %v9055 = vpack.c.bf16 %v9033, %v9031
        %v9056 = vpack.c.bf16 %v9036, %v9034
        %v9057 = vpack.c.bf16 %v9037, %v9035
        %v9058 = vpack.c.bf16 %v9040, %v9038
        %v9059 = vpack.c.bf16 %v9041, %v9039
        %v9060 = vpack.c.bf16 %v9044, %v9042
        %v9061 = vpack.c.bf16 %v9045, %v9043
        %v9062 = vadd.bf16 %v6252, %v9046
        %v9063 = vadd.bf16 %v6253, %v9047
        %v9064 = vadd.bf16 %v6254, %v9048
        %v9065 = vadd.bf16 %v6255, %v9049
        %v9066 = vadd.bf16 %v6256, %v9050
        %v9067 = vadd.bf16 %v6257, %v9051
        %v9068 = vadd.bf16 %v6258, %v9052
        %v9069 = vadd.bf16 %v6259, %v9053
        %v9070 = vadd.bf16 %v6260, %v9054
        %v9071 = vadd.bf16 %v6261, %v9055
        %v9072 = vadd.bf16 %v6262, %v9056
        %v9073 = vadd.bf16 %v6263, %v9057
        %v9074 = vadd.bf16 %v6264, %v9058
        %v9075 = vadd.bf16 %v6265, %v9059
        %v9076 = vadd.bf16 %v6266, %v9060
        %v9077 = vadd.bf16 %v6267, %v9061
        %v9078 = vld [vmem:[#allocation2] sm:$0xf]
        %9079 = vmatprep.subr.bf16.mxu0 %v9063
        %9080 = vmatpush1.bf16.msra.mxu0 %v9062
        %9081 = vmatprep.subr.bf16.mxu0 %v9065
        %9082 = vmatpush1.bf16.msra.mxu0 %v9064
        %9083 = vmatprep.subr.bf16.mxu0 %v9067
        %9084 = vmatpush1.bf16.msra.mxu0 %v9066
        %9085 = vmatprep.subr.bf16.mxu0 %v9069
        %9086 = vmatpush1.bf16.msra.mxu0 %v9068
        %9087 = vmatprep.subr.bf16.mxu0 %v9071
        %9088 = vmatpush1.bf16.msra.mxu0 %v9070
        %9089 = vmatprep.subr.bf16.mxu0 %v9073
        %9090 = vmatpush1.bf16.msra.mxu0 %v9072
        %9091 = vmatprep.subr.bf16.mxu0 %v9075
        %9092 = vmatpush1.bf16.msra.mxu0 %v9074
        %9093 = vmatprep.subr.bf16.mxu0 %v9077
        %9094 = vmatpush1.bf16.msra.mxu0 %v9076
        %9095 = vmatprep.subr.bf16.mxu0 0
        %9096 = vmatpush1.bf16.msra.mxu0 0
        %9097 = vmatprep.subr.bf16.mxu0 0
        %9098 = vmatpush1.bf16.msra.mxu0 0
        %9099 = vmatprep.subr.bf16.mxu0 0
        %9100 = vmatpush1.bf16.msra.mxu0 0
        %9101 = vmatprep.subr.bf16.mxu0 0
        %9102 = vmatpush1.bf16.msra.mxu0 0
        %9103 = vmatprep.subr.bf16.mxu0 0
        %9104 = vmatpush1.bf16.msra.mxu0 0
        %9105 = vmatprep.subr.bf16.mxu0 0
        %9106 = vmatpush1.bf16.msra.mxu0 0
        %9107 = vmatprep.subr.bf16.mxu0 0
        %9108 = vmatpush1.bf16.msra.mxu0 0
        %9109 = vmatprep.subr.bf16.mxu0 0
        %9110 = vmatpush1.bf16.msra.mxu0 0
        %9111 = vmatprep.mubr.bf16.mxu0 0
        %9112 = vmatmul.mubr.bf16.gmra.mrb[0].mxu0 %v9078
        %v9113 = vpop.f32.mrb[0].mxu0
        %v9114 = vadd.f32 0.0, %v9113
        %v9115 = vpop.f32.mrb[0].mxu0
        %v9116 = vadd.f32 0.0, %v9115
        %v9117 = vpop.f32.mrb[0].mxu0
        %v9118 = vpop.f32.mrb[0].mxu0
        %9119 = vdwg.mxu0
        %v9120 = vmul.f32 %v9114, 0.0625
        %v9121 = vmul.f32 %v9116, 0.0625
        %v9122 = vpack.c.bf16 %v9120, %v9120
        %v9123 = vpack.c.bf16 %v9121, %v9121
        %v9124 = vld [vmem:[#allocation19] sm:$0xf]
        %v9125 = vld [vmem:[#allocation19 + $0x4] sm:$0xf]
        %v9126 = vld [vmem:[#allocation19 + $0x8] sm:$0xf]
        %v9127 = vld [vmem:[#allocation19 + $0xc] sm:$0xf]
        %v9128 = vld [vmem:[#allocation19 + $0x10] sm:$0xf]
        %v9129 = vld [vmem:[#allocation19 + $0x14] sm:$0xf]
        %v9130 = vld [vmem:[#allocation19 + $0x18] sm:$0xf]
        %v9131 = vld [vmem:[#allocation19 + $0x1c] sm:$0xf]
        %v9132 = vld [vmem:[#allocation19 + $0x20] sm:$0xf]
        %v9133 = vld [vmem:[#allocation19 + $0x24] sm:$0xf]
        %v9134 = vld [vmem:[#allocation19 + $0x28] sm:$0xf]
        %v9135 = vld [vmem:[#allocation19 + $0x2c] sm:$0xf]
        %v9136 = vld [vmem:[#allocation19 + $0x30] sm:$0xf]
        %v9137 = vld [vmem:[#allocation19 + $0x34] sm:$0xf]
        %v9138 = vld [vmem:[#allocation19 + $0x38] sm:$0xf]
        %v9139 = vld [vmem:[#allocation19 + $0x3c] sm:$0xf]
        %v9140 = vld [vmem:[#allocation19 + $0x40] sm:$0xf]
        %v9141 = vld [vmem:[#allocation19 + $0x44] sm:$0xf]
        %v9142 = vld [vmem:[#allocation19 + $0x48] sm:$0xf]
        %v9143 = vld [vmem:[#allocation19 + $0x4c] sm:$0xf]
        %v9144 = vld [vmem:[#allocation19 + $0x50] sm:$0xf]
        %v9145 = vld [vmem:[#allocation19 + $0x54] sm:$0xf]
        %v9146 = vld [vmem:[#allocation19 + $0x58] sm:$0xf]
        %v9147 = vld [vmem:[#allocation19 + $0x5c] sm:$0xf]
        %v9148 = vld [vmem:[#allocation19 + $0x60] sm:$0xf]
        %v9149 = vld [vmem:[#allocation19 + $0x64] sm:$0xf]
        %v9150 = vld [vmem:[#allocation19 + $0x68] sm:$0xf]
        %v9151 = vld [vmem:[#allocation19 + $0x6c] sm:$0xf]
        %v9152 = vld [vmem:[#allocation19 + $0x70] sm:$0xf]
        %v9153 = vld [vmem:[#allocation19 + $0x74] sm:$0xf]
        %v9154 = vld [vmem:[#allocation19 + $0x78] sm:$0xf]
        %v9155 = vld [vmem:[#allocation19 + $0x7c] sm:$0xf]
        %v9156 = vld [vmem:[%s19] sm:$0x1]
        %v9158 = vlaneseq
        %v9159 = vshrl.u32 %v9158, 7
        %v9160 = vsub.s32 0, %v9159
        %v9161 = vrot.slane %v9156, %v9160
        %v9195 = vunpack.c.l.b16 %v9124
        %v9196 = vunpack.c.l.b16 %v9125
        %v9197 = vunpack.c.l.b16 %v9126
        %v9198 = vunpack.c.l.b16 %v9127
        %v9199 = vunpack.c.l.b16 %v9128
        %v9200 = vunpack.c.l.b16 %v9129
        %v9201 = vunpack.c.l.b16 %v9130
        %v9202 = vunpack.c.l.b16 %v9131
        %v9203 = vunpack.c.l.b16 %v9132
        %v9204 = vunpack.c.l.b16 %v9133
        %v9205 = vunpack.c.l.b16 %v9134
        %v9206 = vunpack.c.l.b16 %v9135
        %v9207 = vunpack.c.l.b16 %v9136
        %v9208 = vunpack.c.l.b16 %v9137
        %v9209 = vunpack.c.l.b16 %v9138
        %v9210 = vunpack.c.l.b16 %v9139
        %v9211 = vunpack.c.l.b16 %v9140
        %v9212 = vunpack.c.l.b16 %v9141
        %v9213 = vunpack.c.l.b16 %v9142
        %v9214 = vunpack.c.l.b16 %v9143
        %v9215 = vunpack.c.l.b16 %v9144
        %v9216 = vunpack.c.l.b16 %v9145
        %v9217 = vunpack.c.l.b16 %v9146
        %v9218 = vunpack.c.l.b16 %v9147
        %v9219 = vunpack.c.l.b16 %v9148
        %v9220 = vunpack.c.l.b16 %v9149
        %v9221 = vunpack.c.l.b16 %v9150
        %v9222 = vunpack.c.l.b16 %v9151
        %v9223 = vunpack.c.l.b16 %v9152
        %v9224 = vunpack.c.l.b16 %v9153
        %v9225 = vunpack.c.l.b16 %v9154
        %v9226 = vunpack.c.l.b16 %v9155
        %v9227 = vpack.c.b16 %v9196, %v9195
        %v9228 = vpack.c.b16 %v9198, %v9197
        %v9229 = vpack.c.b16 %v9200, %v9199
        %v9230 = vpack.c.b16 %v9202, %v9201
        %v9231 = vpack.c.b16 %v9204, %v9203
        %v9232 = vpack.c.b16 %v9206, %v9205
        %v9233 = vpack.c.b16 %v9208, %v9207
        %v9234 = vpack.c.b16 %v9210, %v9209
        %v9235 = vpack.c.b16 %v9212, %v9211
        %v9236 = vpack.c.b16 %v9214, %v9213
        %v9237 = vpack.c.b16 %v9216, %v9215
        %v9238 = vpack.c.b16 %v9218, %v9217
        %v9239 = vpack.c.b16 %v9220, %v9219
        %v9240 = vpack.c.b16 %v9222, %v9221
        %v9241 = vpack.c.b16 %v9224, %v9223
        %v9242 = vpack.c.b16 %v9226, %v9225
        %9259 = vmatprep.subr.bf16.mxu0 0
        %9260 = vmatpush1.bf16.msra.mxu0 %v9227
        %9261 = vmatprep.subr.bf16.mxu0 0
        %9262 = vmatpush1.bf16.msra.mxu0 %v9228
        %9263 = vmatprep.subr.bf16.mxu0 0
        %9264 = vmatpush1.bf16.msra.mxu0 %v9229
        %9265 = vmatprep.subr.bf16.mxu0 0
        %9266 = vmatpush1.bf16.msra.mxu0 %v9230
        %9267 = vmatprep.subr.bf16.mxu0 0
        %9268 = vmatpush1.bf16.msra.mxu0 %v9231
        %9269 = vmatprep.subr.bf16.mxu0 0
        %9270 = vmatpush1.bf16.msra.mxu0 %v9232
        %9271 = vmatprep.subr.bf16.mxu0 0
        %9272 = vmatpush1.bf16.msra.mxu0 %v9233
        %9273 = vmatprep.subr.bf16.mxu0 0
        %9274 = vmatpush1.bf16.msra.mxu0 %v9234
        %9275 = vmatprep.subr.bf16.mxu0 0
        %9276 = vmatpush1.bf16.msra.mxu0 %v9235
        %9277 = vmatprep.subr.bf16.mxu0 0
        %9278 = vmatpush1.bf16.msra.mxu0 %v9236
        %9279 = vmatprep.subr.bf16.mxu0 0
        %9280 = vmatpush1.bf16.msra.mxu0 %v9237
        %9281 = vmatprep.subr.bf16.mxu0 0
        %9282 = vmatpush1.bf16.msra.mxu0 %v9238
        %9283 = vmatprep.subr.bf16.mxu0 0
        %9284 = vmatpush1.bf16.msra.mxu0 %v9239
        %9285 = vmatprep.subr.bf16.mxu0 0
        %9286 = vmatpush1.bf16.msra.mxu0 %v9240
        %9287 = vmatprep.subr.bf16.mxu0 0
        %9288 = vmatpush1.bf16.msra.mxu0 %v9241
        %9289 = vmatprep.subr.bf16.mxu0 0
        %9290 = vmatpush1.bf16.msra.mxu0 %v9242
        %9291 = vmatprep.mubr.bf16.mxu0 %v9123
        %9292 = vmatmul.mubr.bf16.gmra.mrb[0].mxu0 %v9122
        %v9293 = vpop.f32.mrb[0].mxu0
        %v9294 = vadd.f32 %v9161, %v9293
        %v9295 = vpop.f32.mrb[0].mxu0
        %v9296 = vpop.f32.mrb[0].mxu0
        %v9297 = vpop.f32.mrb[0].mxu0
        %9298 = vdwg.mxu0
        %v9299 = vmax.f32 %v9294, 0.0
        %v9300 = vpack.c.bf16 %v9299, %v9299
        %v9301 = vld [vmem:[%s20] sm:$0xf]
        %v9302 = vld [vmem:[%s20 + $0x4] sm:$0xf]
        %v9303 = vld [vmem:[%s20 + $0x8] sm:$0xf]
        %v9304 = vld [vmem:[%s20 + $0xc] sm:$0xf]
        %v9305 = vld [vmem:[%s20 + $0x10] sm:$0xf]
        %v9306 = vld [vmem:[%s20 + $0x14] sm:$0xf]
        %v9307 = vld [vmem:[%s20 + $0x18] sm:$0xf]
        %v9308 = vld [vmem:[%s20 + $0x1c] sm:$0xf]
        %v9309 = vld [vmem:[%s20 + $0x20] sm:$0xf]
        %v9310 = vld [vmem:[%s20 + $0x24] sm:$0xf]
        %v9311 = vld [vmem:[%s20 + $0x28] sm:$0xf]
        %v9312 = vld [vmem:[%s20 + $0x2c] sm:$0xf]
        %v9313 = vld [vmem:[%s20 + $0x30] sm:$0xf]
        %v9314 = vld [vmem:[%s20 + $0x34] sm:$0xf]
        %v9315 = vld [vmem:[%s20 + $0x38] sm:$0xf]
        %v9316 = vld [vmem:[%s20 + $0x3c] sm:$0xf]
        %v9317 = vld [vmem:[%s21] sm:$0x1]
        %v9319 = vlaneseq
        %v9320 = vshrl.u32 %v9319, 7
        %v9321 = vsub.s32 0, %v9320
        %v9322 = vrot.slane %v9317, %v9321
        %v9340 = vunpack.c.l.b16 %v9301
        %v9341 = vunpack.c.l.b16 %v9302
        %v9342 = vunpack.c.l.b16 %v9303
        %v9343 = vunpack.c.l.b16 %v9304
        %v9344 = vunpack.c.l.b16 %v9305
        %v9345 = vunpack.c.l.b16 %v9306
        %v9346 = vunpack.c.l.b16 %v9307
        %v9347 = vunpack.c.l.b16 %v9308
        %v9348 = vunpack.c.l.b16 %v9309
        %v9349 = vunpack.c.l.b16 %v9310
        %v9350 = vunpack.c.l.b16 %v9311
        %v9351 = vunpack.c.l.b16 %v9312
        %v9352 = vunpack.c.l.b16 %v9313
        %v9353 = vunpack.c.l.b16 %v9314
        %v9354 = vunpack.c.l.b16 %v9315
        %v9355 = vunpack.c.l.b16 %v9316
        %v9356 = vpack.c.b16 %v9341, %v9340
        %v9357 = vpack.c.b16 %v9343, %v9342
        %v9358 = vpack.c.b16 %v9345, %v9344
        %v9359 = vpack.c.b16 %v9347, %v9346
        %v9360 = vpack.c.b16 %v9349, %v9348
        %v9361 = vpack.c.b16 %v9351, %v9350
        %v9362 = vpack.c.b16 %v9353, %v9352
        %v9363 = vpack.c.b16 %v9355, %v9354
        %9372 = vmatprep.subr.bf16.mxu0 0
        %9373 = vmatpush1.bf16.msra.mxu0 %v9356
        %9374 = vmatprep.subr.bf16.mxu0 0
        %9375 = vmatpush1.bf16.msra.mxu0 %v9357
        %9376 = vmatprep.subr.bf16.mxu0 0
        %9377 = vmatpush1.bf16.msra.mxu0 %v9358
        %9378 = vmatprep.subr.bf16.mxu0 0
        %9379 = vmatpush1.bf16.msra.mxu0 %v9359
        %9380 = vmatprep.subr.bf16.mxu0 0
        %9381 = vmatpush1.bf16.msra.mxu0 %v9360
        %9382 = vmatprep.subr.bf16.mxu0 0
        %9383 = vmatpush1.bf16.msra.mxu0 %v9361
        %9384 = vmatprep.subr.bf16.mxu0 0
        %9385 = vmatpush1.bf16.msra.mxu0 %v9362
        %9386 = vmatprep.subr.bf16.mxu0 0
        %9387 = vmatpush1.bf16.msra.mxu0 %v9363
        %9388 = vmatprep.subr.bf16.mxu0 0
        %9389 = vmatpush1.bf16.msra.mxu0 0
        %9390 = vmatprep.subr.bf16.mxu0 0
        %9391 = vmatpush1.bf16.msra.mxu0 0
        %9392 = vmatprep.subr.bf16.mxu0 0
        %9393 = vmatpush1.bf16.msra.mxu0 0
        %9394 = vmatprep.subr.bf16.mxu0 0
        %9395 = vmatpush1.bf16.msra.mxu0 0
        %9396 = vmatprep.subr.bf16.mxu0 0
        %9397 = vmatpush1.bf16.msra.mxu0 0
        %9398 = vmatprep.subr.bf16.mxu0 0
        %9399 = vmatpush1.bf16.msra.mxu0 0
        %9400 = vmatprep.subr.bf16.mxu0 0
        %9401 = vmatpush1.bf16.msra.mxu0 0
        %9402 = vmatprep.subr.bf16.mxu0 0
        %9403 = vmatpush1.bf16.msra.mxu0 0
        %9404 = vmatprep.mubr.bf16.mxu0 0
        %9405 = vmatmul.mubr.bf16.gmra.mrb[0].mxu0 %v9300
        %v9406 = vpop.f32.mrb[0].mxu0
        %v9407 = vadd.f32 %v9322, %v9406
        %v9408 = vpop.f32.mrb[0].mxu0
        %v9409 = vpop.f32.mrb[0].mxu0
        %v9410 = vpop.f32.mrb[0].mxu0
        %9411 = vdwg.mxu0
        %9412 = vst [vmem:[%s829] sm:$0xff] %v9407
        %s9413 = sand.u32 %s517, 1
        %s9414 = scalar_lea.sflag [#allocation4], %s9413
        %s9415 = sand.u32 %s517, 1
        %s9416 = smul.addr %s9415, 8
        %s9417 = scalar_lea.vmem [#allocation20], %s9416
        // Predicated region
        $region153: #{tpu_custom_call.1} parent=107 // pred_check
          %p9418 = pneg %p527
        $region154: #{tpu_custom_call.1} parent=107 // pred_check_branch
          %9420 = sbr.rel (%p9418) target = $region156
        $region155: #{tpu_custom_call.1} parent=107 // pred_region
          %s9422 = ssub.s32 128, 128
          %9423 = vsyncadd %s9414, %s9422
          %s9424 = smul.addr %s42, 128
          %s9425 = scalar_lea.hbm %s22, %s9424
          %s9427 = sshll.u32 %s9417, 4
          %s9428 = int_to_ptr.vmem [resolvable:$true] %s9427
          %9430 = dma.vmem_to_hbm [thread:$0]  %s9428, 128, %s9425, %s9414
        $region156: #{tpu_custom_call.1} parent=107 // pred_fallthru
          _
      $region108: #{tpu_custom_call.1} parent=5 // pred_fallthru
        _
      %p9431 = scmp.le.s32.totalorder 2, %s37
      // Predicated region
      $region157: #{tpu_custom_call.1} parent=5 // pred_check
        %p9432 = pneg %p9431
      $region158: #{tpu_custom_call.1} parent=5 // pred_check_branch
        %9434 = sbr.rel (%p9432) target = $region160
      $region159: #{tpu_custom_call.1} parent=5 // pred_region
        %s9435 = ssub.s32 %s37, 2
        // Predicated region
        $region161: #{tpu_custom_call.1} parent=159 // pred_check
          %p9436 = pneg %p533
        $region162: #{tpu_custom_call.1} parent=159 // pred_check_branch
          %9438 = sbr.rel (%p9436) target = $region164
        $region163: #{tpu_custom_call.1} parent=159 // pred_region
          %s9439 = sand.u32 %s518, 1
          %s9440 = scalar_lea.sflag [#allocation4], %s9439
          %s9441 = sand.u32 %s518, 1
          %s9442 = smul.addr %s9441, 8
          %s9443 = scalar_lea.vmem [#allocation20], %s9442
          %9444 = dma.done %s9440, 128
        $region164: #{tpu_custom_call.1} parent=159 // pred_fallthru
          _
      $region160: #{tpu_custom_call.1} parent=5 // pred_fallthru
        _
    $region6: #{tpu_custom_call.1} parent=1 // loop_footer
      %s41 = sadd.s32 1, %s37
    $region7: #{tpu_custom_call.1} parent=1 // loop_footer_branch
      %36 = sbr.rel target = $region3
    $region8: #{tpu_custom_call.1} parent=1 // loop_exit
      _
    %9445 = vsyncpa [#allocation3], 1
    %s9446 = scalar_lea.sflag [#allocation3], 1
    %9447 = vsyncpa %s9446, 1
    %9448 = vsyncpa [#allocation6], 1
    %9449 = vsyncpa [#allocation9], 1
    %9450 = vsyncpa [#allocation12], 1
    %9451 = vsyncpa [#allocation15], 1
    %9452 = vsyncpa [#allocation18], 1
    %9453 = vsyncpa [#allocation4], 1
    %s9454 = scalar_lea.sflag [#allocation4], 1
    %9455 = vsyncpa %s9454, 1

</llo_original>
